<compile_context>
chip_gen: v5e
topology: v5e:2x2
jax: 0.10.0
libtpu: 0.0.40
codegen_flags: <defaults>
</compile_context>

<pallas_src>
import jax
import jax.numpy as jnp
from jax import lax
from jax.experimental import pallas as pl
from jax.experimental.pallas import tpu as pltpu

f32 = jnp.float32
bf16 = jnp.bfloat16


def _pick_spatial_tile(n, target=512):
    """Largest multiple of 128 that divides n and is <= target, else n itself."""
    best = None
    t = 128
    while t <= min(n, target):
        if n % t == 0:
            best = t
        t += 128
    return best if best is not None else n


# ---------------------------------------------------------------------------
# Kernel A: Q/K projections + energy accumulation + softmax  ->  attn (B1, B0)
# ---------------------------------------------------------------------------
def _energy_softmax_kernel(x0_ref, x1_ref, wq_ref, bq_ref, wk_ref, bk_ref,
                           attn_ref, e_acc):
    j = pl.program_id(0)

    @pl.when(j == 0)
    def _init():
        e_acc[...] = jnp.zeros_like(e_acc)

    nb0 = x0_ref.shape[0]
    nb1 = x1_ref.shape[0]

    wq = wq_ref[...]                          # (Cq, C) bf16
    wk = wk_ref[...]                          # (Cq, C) bf16
    bq = bq_ref[...]                          # (Cq, 1) f32
    bk = bk_ref[...]                          # (Cq, 1) f32

    # Per-image Q/K projections of this spatial tile: (Cq, C) @ (C, tn) on MXU,
    # bf16 operands, f32 accumulation.  x0 arrives in bf16; x1 is cast here.
    q_tiles = [jnp.dot(wq, x0_ref[b0], preferred_element_type=jnp.float32) + bq
               for b0 in range(nb0)]
    k_tiles = [jnp.dot(wk, x1_ref[b1].astype(wk.dtype),
                       preferred_element_type=jnp.float32) + bk
               for b1 in range(nb1)]

    # energy[b1, b0] += sum_{cq, n} K[b1] * Q[b0].
    # A (B1 x B0) MXU matmul would be ~3% utilised, so do it on the VPU
    # (elementwise multiply) + XLU (reduce) instead — those slots are idle.
    rows = []
    for b1 in range(nb1):
        parts = []
        for b0 in range(nb0):
            p = k_tiles[b1] * q_tiles[b0]                        # (Cq, tn) f32
            s = jnp.sum(p, axis=1, keepdims=True)                # (Cq, 1)
            parts.append(jnp.sum(s, axis=0, keepdims=True))      # (1, 1)
        rows.append(jnp.concatenate(parts, axis=1))              # (1, B0)
    e_acc[...] += jnp.concatenate(rows, axis=0)                  # (B1, B0)

    @pl.when(j == pl.num_programs(0) - 1)
    def _finalize():
        e = e_acc[...]
        m = jnp.max(e, axis=-1, keepdims=True)
        p = jnp.exp(e - m)
        s = jnp.sum(p, axis=-1, keepdims=True)
        attn_ref[...] = (p * pl.reciprocal(s, approx=True)).astype(attn_ref.dtype)


# ---------------------------------------------------------------------------
# Kernel B: V projection + attn @ V (VPU broadcast-FMA) + gamma residual
# ---------------------------------------------------------------------------
def _attnv_residual_kernel(attn_ref, gamma_ref, x0_ref, x1_ref, wv_ref, bv_ref,
                           out_ref):
    nb0 = x0_ref.shape[0]
    nb1 = x1_ref.shape[0]
    g = gamma_ref[0]                          # scalar f32 (SMEM)
    wv = wv_ref[...]                          # (C, C) bf16
    bv = bv_ref[...]                          # (C, 1) f32

    # out[b1] = x1[b1] + gamma * sum_b0 attn[b1, b0] * V[b0]
    # V is projected once per source image; the (b1, b0) accumulation is a
    # scalar-broadcast FMA on lane-dense (C, tn) tiles (MXU would be ~3% used).
    for b0 in range(nb0):
        v = jnp.dot(wv, x0_ref[b0], preferred_element_type=jnp.float32) + bv
        for b1 in range(nb1):
            contrib = (g * attn_ref[b1, b0]) * v
            if b0 == 0:
                out_ref[b1] = x1_ref[b1] + contrib      # fold in exact residual
            else:
                out_ref[b1] = out_ref[b1] + contrib


# ---------------------------------------------------------------------------
# Wrapper
# ---------------------------------------------------------------------------
def self_attn_forward(x0, x1, params):
    wq, bq, wk, bk, wv, bv, gamma = params
    B0, C0, H0, W0 = x0.shape
    B1, C1, H1, W1 = x1.shape
    N = H0 * W0
    if C0 != C1 or H1 * W1 != N:
        raise ValueError("Self_Attn requires x0/x1 with matching channel count "
                         "and flattened spatial size (module assumption).")
    C = C0
    Cq = wq.shape[0]

    # NCHW is already the layout we want: sublanes = channels, lanes = spatial.
    # x0 feeds only matmuls (Q, V sources) -> bf16; x1 also feeds the exact
    # residual -> keep f32 (cast to bf16 in-kernel only for the K matmul).
    x0_3d = x0.reshape(B0, C, N).astype(bf16)
    x1_3d = x1.reshape(B1, C, N).astype(f32)

    wq2 = wq[:, :, 0, 0].astype(bf16)         # (Cq, C)
    wk2 = wk[:, :, 0, 0].astype(bf16)         # (Cq, C)
    wv2 = wv[:, :, 0, 0].astype(bf16)         # (C, C)
    bq2 = bq.astype(f32).reshape(Cq, 1)
    bk2 = bk.astype(f32).reshape(Cq, 1)
    bv2 = bv.astype(f32).reshape(C, 1)
    gamma1 = gamma.astype(f32).reshape(1,)

    tn = _pick_spatial_tile(N)
    nsteps = N // tn

    # ---- kernel A: energy accumulation + softmax -> attn (B1, B0) ----------
    attn = pl.pallas_call(
        _energy_softmax_kernel,
        out_shape=jax.ShapeDtypeStruct((B1, B0), f32),
        grid_spec=pltpu.PrefetchScalarGridSpec(
            num_scalar_prefetch=0,
            grid=(nsteps,),
            in_specs=[
                pl.BlockSpec((B0, C, tn), lambda j: (0, 0, j)),      # x0 (bf16)
                pl.BlockSpec((B1, C, tn), lambda j: (0, 0, j)),      # x1 (f32)
                pl.BlockSpec((Cq, C), lambda j: (0, 0)),             # wq
                pl.BlockSpec((Cq, 1), lambda j: (0, 0)),             # bq
                pl.BlockSpec((Cq, C), lambda j: (0, 0)),             # wk
                pl.BlockSpec((Cq, 1), lambda j: (0, 0)),             # bk
            ],
            out_specs=pl.BlockSpec((B1, B0), lambda j: (0, 0)),
            scratch_shapes=[pltpu.VMEM((B1, B0), f32)],
        ),
        compiler_params=pltpu.CompilerParams(
            dimension_semantics=("arbitrary",)),       # energy accumulator
    )(x0_3d, x1_3d, wq2, bq2, wk2, bk2)

    # ---- kernel B: V projection + attn@V + gamma residual -> out -----------
    out_3d = pl.pallas_call(
        _attnv_residual_kernel,
        out_shape=jax.ShapeDtypeStruct((B1, C, N), f32),
        grid_spec=pltpu.PrefetchScalarGridSpec(
            num_scalar_prefetch=0,
            grid=(nsteps,),
            in_specs=[
                pl.BlockSpec(memory_space=pltpu.MemorySpace.SMEM),   # attn (B1,B0)
                pl.BlockSpec(memory_space=pltpu.MemorySpace.SMEM),   # gamma (1,)
                pl.BlockSpec((B0, C, tn), lambda j: (0, 0, j)),      # x0 (bf16)
                pl.BlockSpec((B1, C, tn), lambda j: (0, 0, j)),      # x1 (f32)
                pl.BlockSpec((C, C), lambda j: (0, 0)),              # wv
                pl.BlockSpec((C, 1), lambda j: (0, 0)),              # bv
            ],
            out_specs=pl.BlockSpec((B1, C, tn), lambda j: (0, 0, j)),
        ),
        compiler_params=pltpu.CompilerParams(
            dimension_semantics=("parallel",)),        # independent spatial tiles
    )(attn, gamma1, x0_3d, x1_3d, wv2, bv2)

    out = out_3d.reshape(B1, C1, H1, W1)
    return out, attn


# ---------------------------------------------------------------------------
# Pure-JAX reference (f32, HIGHEST precision)
# ---------------------------------------------------------------------------
def self_attn_reference(x0, x1, params):
    wq, bq, wk, bk, wv, bv, gamma = params
    B0 = x0.shape[0]
    B1, C1, H1, W1 = x1.shape

    def conv1x1(x, w, b):
        return (jnp.einsum('oc,bchw->bohw', w[:, :, 0, 0], x,
                           precision=lax.Precision.HIGHEST)
                + b[None, :, None, None])

    q = conv1x1(x0, wq, bq)
    k = conv1x1(x1, wk, bk)
    v = conv1x1(x0, wv, bv)
    energy = jnp.dot(k.reshape(B1, -1), q.reshape(B0, -1).T,
                     precision=lax.Precision.HIGHEST)
    attn = jax.nn.softmax(energy, axis=-1)
    out = jnp.dot(attn, v.reshape(B0, -1),
                  precision=lax.Precision.HIGHEST).reshape(B1, C1, H1, W1)
    out = gamma * out + x1
    return out, attn


if __name__ == "__main__":
    # in_dim=32 -> Cq=8; x0 / x1 share the spatial size (module assumption).
    # H=W=32 -> N=1024 = 2 spatial tiles of 512, so both the energy-accumulation
    # grid and the parallel output grid run multiple steps.
    B0, B1, C, H, W = 8, 4, 32, 32, 32
    Cq = C // 4
    key = jax.random.PRNGKey(0)
    ks = jax.random.split(key, 8)
    x0 = jax.random.normal(ks[0], (B0, C, H, W), f32)
    x1 = jax.random.normal(ks[1], (B1, C, H, W), f32)
    wq = 0.03 * jax.random.normal(ks[2], (Cq, C, 1, 1), f32)
    bq = 0.05 * jax.random.normal(ks[3], (Cq,), f32)
    wk = 0.03 * jax.random.normal(ks[4], (Cq, C, 1, 1), f32)
    bk = 0.05 * jax.random.normal(ks[5], (Cq,), f32)
    wv = 0.05 * jax.random.normal(ks[6], (C, C, 1, 1), f32)
    bv = 0.05 * jax.random.normal(ks[7], (C,), f32)
    # nn.Parameter(torch.zeros(1)) would make out == x1 trivially; use a nonzero
    # gamma so the attention @ V path is actually exercised.
    gamma = jnp.array([0.5], f32)
    params = (wq, bq, wk, bk, wv, bv, gamma)

    out, attn = jax.jit(self_attn_forward)(x0, x1, params)
    jax.block_until_ready((out, attn))

    out_ref, attn_ref = self_attn_reference(x0, x1, params)
    assert out.shape == (B1, C, H, W)
    assert attn.shape == (B1, B0)
    # Tolerances reflect bf16 matmul operands (with f32 accumulation) vs. the
    # HIGHEST-precision f32 reference: the long (N*Cq)-term energy contraction
    # carries the bf16 input rounding and is amplified through the softmax.
    ok = (bool(jnp.allclose(out, out_ref, atol=2e-2, rtol=2e-2))
          and bool(jnp.allclose(attn, attn_ref, atol=2e-2, rtol=2e-2)))
    if not ok:
        raise AssertionError("Pallas Self_Attn mismatch vs JAX reference")
    print("KERNEL_OK")
</pallas_src>

<mosaic_0001>
module attributes {stable_mosaic.version = 11 : i64} {
  func.func @_energy_softmax_kernel(%arg0: i32, %arg1: memref<8x32x512xbf16, #tpu.memory_space<vmem>>, %arg2: memref<4x32x512xf32, #tpu.memory_space<vmem>>, %arg3: memref<8x32xbf16, #tpu.memory_space<vmem>>, %arg4: memref<8x1xf32, #tpu.memory_space<vmem>>, %arg5: memref<8x32xbf16, #tpu.memory_space<vmem>>, %arg6: memref<8x1xf32, #tpu.memory_space<vmem>>, %arg7: memref<4x8xf32, #tpu.memory_space<vmem>>, %arg8: memref<4x8xf32, #tpu.memory_space<vmem>>) attributes {dimension_semantics = [#tpu.dimension_semantics<arbitrary>], iteration_bounds = array<i64: 2>, scalar_prefetch = 0 : i64, scratch_operands = 1 : i64, tpu.core_type = #tpu.core_type<tc>, window_params = [{transform_indices = @transform_0, window_bounds = array<i64: 8, 32, 512>}, {transform_indices = @transform_1, window_bounds = array<i64: 4, 32, 512>}, {pipeline_mode = #tpu.pipeline_mode<synchronous>, transform_indices = @transform_2, window_bounds = array<i64: 8, 32>}, {pipeline_mode = #tpu.pipeline_mode<synchronous>, transform_indices = @transform_3, window_bounds = array<i64: 8, 1>}, {pipeline_mode = #tpu.pipeline_mode<synchronous>, transform_indices = @transform_4, window_bounds = array<i64: 8, 32>}, {pipeline_mode = #tpu.pipeline_mode<synchronous>, transform_indices = @transform_5, window_bounds = array<i64: 8, 1>}, {pipeline_mode = #tpu.pipeline_mode<synchronous>, transform_indices = @transform_6, window_bounds = array<i64: 4, 8>}]} {
    %c0_i32 = arith.constant 0 : i32
    %0 = arith.cmpi eq, %arg0, %c0_i32 : i32
    %1 = arith.extui %0 : i1 to i32
    %c0_i32_0 = arith.constant 0 : i32
    %2 = arith.cmpi ne, %1, %c0_i32_0 : i32
    scf.if %2 {
      %cst_117 = arith.constant 0.000000e+00 : f32
      %242 = vector.broadcast %cst_117 : f32 to vector<4x8xf32>
      %c0_118 = arith.constant 0 : index
      %c0_119 = arith.constant 0 : index
      %243 = vector.load %arg8[%c0_118, %c0_119] : memref<4x8xf32, #tpu.memory_space<vmem>>, vector<4x8xf32>
      tpu.vector_store %arg8[%c0_118, %c0_119], %242 {strides = array<i32>} : memref<4x8xf32, #tpu.memory_space<vmem>>, vector<4x8xf32>,
    } else {
    }
    %c0 = arith.constant 0 : index
    %c0_1 = arith.constant 0 : index
    %3 = vector.load %arg3[%c0, %c0_1] : memref<8x32xbf16, #tpu.memory_space<vmem>>, vector<8x32xbf16>
    %c0_2 = arith.constant 0 : index
    %c0_3 = arith.constant 0 : index
    %4 = vector.load %arg5[%c0_2, %c0_3] : memref<8x32xbf16, #tpu.memory_space<vmem>>, vector<8x32xbf16>
    %c0_4 = arith.constant 0 : index
    %c0_5 = arith.constant 0 : index
    %5 = vector.load %arg4[%c0_4, %c0_5] : memref<8x1xf32, #tpu.memory_space<vmem>>, vector<8x1xf32>
    %c0_6 = arith.constant 0 : index
    %c0_7 = arith.constant 0 : index
    %6 = vector.load %arg6[%c0_6, %c0_7] : memref<8x1xf32, #tpu.memory_space<vmem>>, vector<8x1xf32>
    %c0_8 = arith.constant 0 : index
    %c0_9 = arith.constant 0 : index
    %c0_10 = arith.constant 0 : index
    %7 = vector.load %arg1[%c0_8, %c0_9, %c0_10] : memref<8x32x512xbf16, #tpu.memory_space<vmem>>, vector<1x32x512xbf16>
    %8 = vector.shape_cast %7 : vector<1x32x512xbf16> to vector<32x512xbf16>
    %cst = arith.constant dense<0.000000e+00> : vector<8x512xf32>
    %9 = tpu.matmul %3, %8, %cst {dimension_numbers = #tpu.dot_dimension_numbers<[1], [0], [0], [1], [0, 0, 1, 1], [], []>} : vector<8x32xbf16>, vector<32x512xbf16>, vector<8x512xf32> -> vector<8x512xf32>
    %10 = vector.broadcast %5 : vector<8x1xf32> to vector<8x512xf32>
    %11 = arith.addf %9, %10 : vector<8x512xf32>
    %c1 = arith.constant 1 : index
    %c0_11 = arith.constant 0 : index
    %c0_12 = arith.constant 0 : index
    %12 = vector.load %arg1[%c1, %c0_11, %c0_12] : memref<8x32x512xbf16, #tpu.memory_space<vmem>>, vector<1x32x512xbf16>
    %13 = vector.shape_cast %12 : vector<1x32x512xbf16> to vector<32x512xbf16>
    %cst_13 = arith.constant dense<0.000000e+00> : vector<8x512xf32>
    %14 = tpu.matmul %3, %13, %cst_13 {dimension_numbers = #tpu.dot_dimension_numbers<[1], [0], [0], [1], [0, 0, 1, 1], [], []>} : vector<8x32xbf16>, vector<32x512xbf16>, vector<8x512xf32> -> vector<8x512xf32>
    %15 = vector.broadcast %5 : vector<8x1xf32> to vector<8x512xf32>
    %16 = arith.addf %14, %15 : vector<8x512xf32>
    %c2 = arith.constant 2 : index
    %c0_14 = arith.constant 0 : index
    %c0_15 = arith.constant 0 : index
    %17 = vector.load %arg1[%c2, %c0_14, %c0_15] : memref<8x32x512xbf16, #tpu.memory_space<vmem>>, vector<1x32x512xbf16>
    %18 = vector.shape_cast %17 : vector<1x32x512xbf16> to vector<32x512xbf16>
    %cst_16 = arith.constant dense<0.000000e+00> : vector<8x512xf32>
    %19 = tpu.matmul %3, %18, %cst_16 {dimension_numbers = #tpu.dot_dimension_numbers<[1], [0], [0], [1], [0, 0, 1, 1], [], []>} : vector<8x32xbf16>, vector<32x512xbf16>, vector<8x512xf32> -> vector<8x512xf32>
    %20 = vector.broadcast %5 : vector<8x1xf32> to vector<8x512xf32>
    %21 = arith.addf %19, %20 : vector<8x512xf32>
    %c3 = arith.constant 3 : index
    %c0_17 = arith.constant 0 : index
    %c0_18 = arith.constant 0 : index
    %22 = vector.load %arg1[%c3, %c0_17, %c0_18] : memref<8x32x512xbf16, #tpu.memory_space<vmem>>, vector<1x32x512xbf16>
    %23 = vector.shape_cast %22 : vector<1x32x512xbf16> to vector<32x512xbf16>
    %cst_19 = arith.constant dense<0.000000e+00> : vector<8x512xf32>
    %24 = tpu.matmul %3, %23, %cst_19 {dimension_numbers = #tpu.dot_dimension_numbers<[1], [0], [0], [1], [0, 0, 1, 1], [], []>} : vector<8x32xbf16>, vector<32x512xbf16>, vector<8x512xf32> -> vector<8x512xf32>
    %25 = vector.broadcast %5 : vector<8x1xf32> to vector<8x512xf32>
    %26 = arith.addf %24, %25 : vector<8x512xf32>
    %c4 = arith.constant 4 : index
    %c0_20 = arith.constant 0 : index
    %c0_21 = arith.constant 0 : index
    %27 = vector.load %arg1[%c4, %c0_20, %c0_21] : memref<8x32x512xbf16, #tpu.memory_space<vmem>>, vector<1x32x512xbf16>
    %28 = vector.shape_cast %27 : vector<1x32x512xbf16> to vector<32x512xbf16>
    %cst_22 = arith.constant dense<0.000000e+00> : vector<8x512xf32>
    %29 = tpu.matmul %3, %28, %cst_22 {dimension_numbers = #tpu.dot_dimension_numbers<[1], [0], [0], [1], [0, 0, 1, 1], [], []>} : vector<8x32xbf16>, vector<32x512xbf16>, vector<8x512xf32> -> vector<8x512xf32>
    %30 = vector.broadcast %5 : vector<8x1xf32> to vector<8x512xf32>
    %31 = arith.addf %29, %30 : vector<8x512xf32>
    %c5 = arith.constant 5 : index
    %c0_23 = arith.constant 0 : index
    %c0_24 = arith.constant 0 : index
    %32 = vector.load %arg1[%c5, %c0_23, %c0_24] : memref<8x32x512xbf16, #tpu.memory_space<vmem>>, vector<1x32x512xbf16>
    %33 = vector.shape_cast %32 : vector<1x32x512xbf16> to vector<32x512xbf16>
    %cst_25 = arith.constant dense<0.000000e+00> : vector<8x512xf32>
    %34 = tpu.matmul %3, %33, %cst_25 {dimension_numbers = #tpu.dot_dimension_numbers<[1], [0], [0], [1], [0, 0, 1, 1], [], []>} : vector<8x32xbf16>, vector<32x512xbf16>, vector<8x512xf32> -> vector<8x512xf32>
    %35 = vector.broadcast %5 : vector<8x1xf32> to vector<8x512xf32>
    %36 = arith.addf %34, %35 : vector<8x512xf32>
    %c6 = arith.constant 6 : index
    %c0_26 = arith.constant 0 : index
    %c0_27 = arith.constant 0 : index
    %37 = vector.load %arg1[%c6, %c0_26, %c0_27] : memref<8x32x512xbf16, #tpu.memory_space<vmem>>, vector<1x32x512xbf16>
    %38 = vector.shape_cast %37 : vector<1x32x512xbf16> to vector<32x512xbf16>
    %cst_28 = arith.constant dense<0.000000e+00> : vector<8x512xf32>
    %39 = tpu.matmul %3, %38, %cst_28 {dimension_numbers = #tpu.dot_dimension_numbers<[1], [0], [0], [1], [0, 0, 1, 1], [], []>} : vector<8x32xbf16>, vector<32x512xbf16>, vector<8x512xf32> -> vector<8x512xf32>
    %40 = vector.broadcast %5 : vector<8x1xf32> to vector<8x512xf32>
    %41 = arith.addf %39, %40 : vector<8x512xf32>
    %c7 = arith.constant 7 : index
    %c0_29 = arith.constant 0 : index
    %c0_30 = arith.constant 0 : index
    %42 = vector.load %arg1[%c7, %c0_29, %c0_30] : memref<8x32x512xbf16, #tpu.memory_space<vmem>>, vector<1x32x512xbf16>
    %43 = vector.shape_cast %42 : vector<1x32x512xbf16> to vector<32x512xbf16>
    %cst_31 = arith.constant dense<0.000000e+00> : vector<8x512xf32>
    %44 = tpu.matmul %3, %43, %cst_31 {dimension_numbers = #tpu.dot_dimension_numbers<[1], [0], [0], [1], [0, 0, 1, 1], [], []>} : vector<8x32xbf16>, vector<32x512xbf16>, vector<8x512xf32> -> vector<8x512xf32>
    %45 = vector.broadcast %5 : vector<8x1xf32> to vector<8x512xf32>
    %46 = arith.addf %44, %45 : vector<8x512xf32>
    %c0_32 = arith.constant 0 : index
    %c0_33 = arith.constant 0 : index
    %c0_34 = arith.constant 0 : index
    %47 = vector.load %arg2[%c0_32, %c0_33, %c0_34] : memref<4x32x512xf32, #tpu.memory_space<vmem>>, vector<1x32x512xf32>
    %48 = vector.shape_cast %47 : vector<1x32x512xf32> to vector<32x512xf32>
    %49 = arith.truncf %48 : vector<32x512xf32> to vector<32x512xbf16>
    %cst_35 = arith.constant dense<0.000000e+00> : vector<8x512xf32>
    %50 = tpu.matmul %4, %49, %cst_35 {dimension_numbers = #tpu.dot_dimension_numbers<[1], [0], [0], [1], [0, 0, 1, 1], [], []>} : vector<8x32xbf16>, vector<32x512xbf16>, vector<8x512xf32> -> vector<8x512xf32>
    %51 = vector.broadcast %6 : vector<8x1xf32> to vector<8x512xf32>
    %52 = arith.addf %50, %51 : vector<8x512xf32>
    %c1_36 = arith.constant 1 : index
    %c0_37 = arith.constant 0 : index
    %c0_38 = arith.constant 0 : index
    %53 = vector.load %arg2[%c1_36, %c0_37, %c0_38] : memref<4x32x512xf32, #tpu.memory_space<vmem>>, vector<1x32x512xf32>
    %54 = vector.shape_cast %53 : vector<1x32x512xf32> to vector<32x512xf32>
    %55 = arith.truncf %54 : vector<32x512xf32> to vector<32x512xbf16>
    %cst_39 = arith.constant dense<0.000000e+00> : vector<8x512xf32>
    %56 = tpu.matmul %4, %55, %cst_39 {dimension_numbers = #tpu.dot_dimension_numbers<[1], [0], [0], [1], [0, 0, 1, 1], [], []>} : vector<8x32xbf16>, vector<32x512xbf16>, vector<8x512xf32> -> vector<8x512xf32>
    %57 = vector.broadcast %6 : vector<8x1xf32> to vector<8x512xf32>
    %58 = arith.addf %56, %57 : vector<8x512xf32>
    %c2_40 = arith.constant 2 : index
    %c0_41 = arith.constant 0 : index
    %c0_42 = arith.constant 0 : index
    %59 = vector.load %arg2[%c2_40, %c0_41, %c0_42] : memref<4x32x512xf32, #tpu.memory_space<vmem>>, vector<1x32x512xf32>
    %60 = vector.shape_cast %59 : vector<1x32x512xf32> to vector<32x512xf32>
    %61 = arith.truncf %60 : vector<32x512xf32> to vector<32x512xbf16>
    %cst_43 = arith.constant dense<0.000000e+00> : vector<8x512xf32>
    %62 = tpu.matmul %4, %61, %cst_43 {dimension_numbers = #tpu.dot_dimension_numbers<[1], [0], [0], [1], [0, 0, 1, 1], [], []>} : vector<8x32xbf16>, vector<32x512xbf16>, vector<8x512xf32> -> vector<8x512xf32>
    %63 = vector.broadcast %6 : vector<8x1xf32> to vector<8x512xf32>
    %64 = arith.addf %62, %63 : vector<8x512xf32>
    %c3_44 = arith.constant 3 : index
    %c0_45 = arith.constant 0 : index
    %c0_46 = arith.constant 0 : index
    %65 = vector.load %arg2[%c3_44, %c0_45, %c0_46] : memref<4x32x512xf32, #tpu.memory_space<vmem>>, vector<1x32x512xf32>
    %66 = vector.shape_cast %65 : vector<1x32x512xf32> to vector<32x512xf32>
    %67 = arith.truncf %66 : vector<32x512xf32> to vector<32x512xbf16>
    %cst_47 = arith.constant dense<0.000000e+00> : vector<8x512xf32>
    %68 = tpu.matmul %4, %67, %cst_47 {dimension_numbers = #tpu.dot_dimension_numbers<[1], [0], [0], [1], [0, 0, 1, 1], [], []>} : vector<8x32xbf16>, vector<32x512xbf16>, vector<8x512xf32> -> vector<8x512xf32>
    %69 = vector.broadcast %6 : vector<8x1xf32> to vector<8x512xf32>
    %70 = arith.addf %68, %69 : vector<8x512xf32>
    %71 = arith.mulf %52, %11 : vector<8x512xf32>
    %cst_48 = arith.constant dense<0.000000e+00> : vector<8xf32>
    %72 = vector.multi_reduction <add>, %71, %cst_48 [1] : vector<8x512xf32> to vector<8xf32>
    %73 = vector.shape_cast %72 : vector<8xf32> to vector<8x1xf32>
    %cst_49 = arith.constant dense<0.000000e+00> : vector<1xf32>
    %74 = vector.multi_reduction <add>, %73, %cst_49 [0] : vector<8x1xf32> to vector<1xf32>
    %75 = vector.shape_cast %74 : vector<1xf32> to vector<1x1xf32>
    %76 = arith.mulf %52, %16 : vector<8x512xf32>
    %cst_50 = arith.constant dense<0.000000e+00> : vector<8xf32>
    %77 = vector.multi_reduction <add>, %76, %cst_50 [1] : vector<8x512xf32> to vector<8xf32>
    %78 = vector.shape_cast %77 : vector<8xf32> to vector<8x1xf32>
    %cst_51 = arith.constant dense<0.000000e+00> : vector<1xf32>
    %79 = vector.multi_reduction <add>, %78, %cst_51 [0] : vector<8x1xf32> to vector<1xf32>
    %80 = vector.shape_cast %79 : vector<1xf32> to vector<1x1xf32>
    %81 = arith.mulf %52, %21 : vector<8x512xf32>
    %cst_52 = arith.constant dense<0.000000e+00> : vector<8xf32>
    %82 = vector.multi_reduction <add>, %81, %cst_52 [1] : vector<8x512xf32> to vector<8xf32>
    %83 = vector.shape_cast %82 : vector<8xf32> to vector<8x1xf32>
    %cst_53 = arith.constant dense<0.000000e+00> : vector<1xf32>
    %84 = vector.multi_reduction <add>, %83, %cst_53 [0] : vector<8x1xf32> to vector<1xf32>
    %85 = vector.shape_cast %84 : vector<1xf32> to vector<1x1xf32>
    %86 = arith.mulf %52, %26 : vector<8x512xf32>
    %cst_54 = arith.constant dense<0.000000e+00> : vector<8xf32>
    %87 = vector.multi_reduction <add>, %86, %cst_54 [1] : vector<8x512xf32> to vector<8xf32>
    %88 = vector.shape_cast %87 : vector<8xf32> to vector<8x1xf32>
    %cst_55 = arith.constant dense<0.000000e+00> : vector<1xf32>
    %89 = vector.multi_reduction <add>, %88, %cst_55 [0] : vector<8x1xf32> to vector<1xf32>
    %90 = vector.shape_cast %89 : vector<1xf32> to vector<1x1xf32>
    %91 = arith.mulf %52, %31 : vector<8x512xf32>
    %cst_56 = arith.constant dense<0.000000e+00> : vector<8xf32>
    %92 = vector.multi_reduction <add>, %91, %cst_56 [1] : vector<8x512xf32> to vector<8xf32>
    %93 = vector.shape_cast %92 : vector<8xf32> to vector<8x1xf32>
    %cst_57 = arith.constant dense<0.000000e+00> : vector<1xf32>
    %94 = vector.multi_reduction <add>, %93, %cst_57 [0] : vector<8x1xf32> to vector<1xf32>
    %95 = vector.shape_cast %94 : vector<1xf32> to vector<1x1xf32>
    %96 = arith.mulf %52, %36 : vector<8x512xf32>
    %cst_58 = arith.constant dense<0.000000e+00> : vector<8xf32>
    %97 = vector.multi_reduction <add>, %96, %cst_58 [1] : vector<8x512xf32> to vector<8xf32>
    %98 = vector.shape_cast %97 : vector<8xf32> to vector<8x1xf32>
    %cst_59 = arith.constant dense<0.000000e+00> : vector<1xf32>
    %99 = vector.multi_reduction <add>, %98, %cst_59 [0] : vector<8x1xf32> to vector<1xf32>
    %100 = vector.shape_cast %99 : vector<1xf32> to vector<1x1xf32>
    %101 = arith.mulf %52, %41 : vector<8x512xf32>
    %cst_60 = arith.constant dense<0.000000e+00> : vector<8xf32>
    %102 = vector.multi_reduction <add>, %101, %cst_60 [1] : vector<8x512xf32> to vector<8xf32>
    %103 = vector.shape_cast %102 : vector<8xf32> to vector<8x1xf32>
    %cst_61 = arith.constant dense<0.000000e+00> : vector<1xf32>
    %104 = vector.multi_reduction <add>, %103, %cst_61 [0] : vector<8x1xf32> to vector<1xf32>
    %105 = vector.shape_cast %104 : vector<1xf32> to vector<1x1xf32>
    %106 = arith.mulf %52, %46 : vector<8x512xf32>
    %cst_62 = arith.constant dense<0.000000e+00> : vector<8xf32>
    %107 = vector.multi_reduction <add>, %106, %cst_62 [1] : vector<8x512xf32> to vector<8xf32>
    %108 = vector.shape_cast %107 : vector<8xf32> to vector<8x1xf32>
    %cst_63 = arith.constant dense<0.000000e+00> : vector<1xf32>
    %109 = vector.multi_reduction <add>, %108, %cst_63 [0] : vector<8x1xf32> to vector<1xf32>
    %110 = vector.shape_cast %109 : vector<1xf32> to vector<1x1xf32>
    %111 = tpu.concatenate %75, %80, %85, %90, %95, %100, %105, %110 in 1 : vector<1x1xf32>, vector<1x1xf32>, vector<1x1xf32>, vector<1x1xf32>, vector<1x1xf32>, vector<1x1xf32>, vector<1x1xf32>, vector<1x1xf32> -> vector<1x8xf32>
    %112 = arith.mulf %58, %11 : vector<8x512xf32>
    %cst_64 = arith.constant dense<0.000000e+00> : vector<8xf32>
    %113 = vector.multi_reduction <add>, %112, %cst_64 [1] : vector<8x512xf32> to vector<8xf32>
    %114 = vector.shape_cast %113 : vector<8xf32> to vector<8x1xf32>
    %cst_65 = arith.constant dense<0.000000e+00> : vector<1xf32>
    %115 = vector.multi_reduction <add>, %114, %cst_65 [0] : vector<8x1xf32> to vector<1xf32>
    %116 = vector.shape_cast %115 : vector<1xf32> to vector<1x1xf32>
    %117 = arith.mulf %58, %16 : vector<8x512xf32>
    %cst_66 = arith.constant dense<0.000000e+00> : vector<8xf32>
    %118 = vector.multi_reduction <add>, %117, %cst_66 [1] : vector<8x512xf32> to vector<8xf32>
    %119 = vector.shape_cast %118 : vector<8xf32> to vector<8x1xf32>
    %cst_67 = arith.constant dense<0.000000e+00> : vector<1xf32>
    %120 = vector.multi_reduction <add>, %119, %cst_67 [0] : vector<8x1xf32> to vector<1xf32>
    %121 = vector.shape_cast %120 : vector<1xf32> to vector<1x1xf32>
    %122 = arith.mulf %58, %21 : vector<8x512xf32>
    %cst_68 = arith.constant dense<0.000000e+00> : vector<8xf32>
    %123 = vector.multi_reduction <add>, %122, %cst_68 [1] : vector<8x512xf32> to vector<8xf32>
    %124 = vector.shape_cast %123 : vector<8xf32> to vector<8x1xf32>
    %cst_69 = arith.constant dense<0.000000e+00> : vector<1xf32>
    %125 = vector.multi_reduction <add>, %124, %cst_69 [0] : vector<8x1xf32> to vector<1xf32>
    %126 = vector.shape_cast %125 : vector<1xf32> to vector<1x1xf32>
    %127 = arith.mulf %58, %26 : vector<8x512xf32>
    %cst_70 = arith.constant dense<0.000000e+00> : vector<8xf32>
    %128 = vector.multi_reduction <add>, %127, %cst_70 [1] : vector<8x512xf32> to vector<8xf32>
    %129 = vector.shape_cast %128 : vector<8xf32> to vector<8x1xf32>
    %cst_71 = arith.constant dense<0.000000e+00> : vector<1xf32>
    %130 = vector.multi_reduction <add>, %129, %cst_71 [0] : vector<8x1xf32> to vector<1xf32>
    %131 = vector.shape_cast %130 : vector<1xf32> to vector<1x1xf32>
    %132 = arith.mulf %58, %31 : vector<8x512xf32>
    %cst_72 = arith.constant dense<0.000000e+00> : vector<8xf32>
    %133 = vector.multi_reduction <add>, %132, %cst_72 [1] : vector<8x512xf32> to vector<8xf32>
    %134 = vector.shape_cast %133 : vector<8xf32> to vector<8x1xf32>
    %cst_73 = arith.constant dense<0.000000e+00> : vector<1xf32>
    %135 = vector.multi_reduction <add>, %134, %cst_73 [0] : vector<8x1xf32> to vector<1xf32>
    %136 = vector.shape_cast %135 : vector<1xf32> to vector<1x1xf32>
    %137 = arith.mulf %58, %36 : vector<8x512xf32>
    %cst_74 = arith.constant dense<0.000000e+00> : vector<8xf32>
    %138 = vector.multi_reduction <add>, %137, %cst_74 [1] : vector<8x512xf32> to vector<8xf32>
    %139 = vector.shape_cast %138 : vector<8xf32> to vector<8x1xf32>
    %cst_75 = arith.constant dense<0.000000e+00> : vector<1xf32>
    %140 = vector.multi_reduction <add>, %139, %cst_75 [0] : vector<8x1xf32> to vector<1xf32>
    %141 = vector.shape_cast %140 : vector<1xf32> to vector<1x1xf32>
    %142 = arith.mulf %58, %41 : vector<8x512xf32>
    %cst_76 = arith.constant dense<0.000000e+00> : vector<8xf32>
    %143 = vector.multi_reduction <add>, %142, %cst_76 [1] : vector<8x512xf32> to vector<8xf32>
    %144 = vector.shape_cast %143 : vector<8xf32> to vector<8x1xf32>
    %cst_77 = arith.constant dense<0.000000e+00> : vector<1xf32>
    %145 = vector.multi_reduction <add>, %144, %cst_77 [0] : vector<8x1xf32> to vector<1xf32>
    %146 = vector.shape_cast %145 : vector<1xf32> to vector<1x1xf32>
    %147 = arith.mulf %58, %46 : vector<8x512xf32>
    %cst_78 = arith.constant dense<0.000000e+00> : vector<8xf32>
    %148 = vector.multi_reduction <add>, %147, %cst_78 [1] : vector<8x512xf32> to vector<8xf32>
    %149 = vector.shape_cast %148 : vector<8xf32> to vector<8x1xf32>
    %cst_79 = arith.constant dense<0.000000e+00> : vector<1xf32>
    %150 = vector.multi_reduction <add>, %149, %cst_79 [0] : vector<8x1xf32> to vector<1xf32>
    %151 = vector.shape_cast %150 : vector<1xf32> to vector<1x1xf32>
    %152 = tpu.concatenate %116, %121, %126, %131, %136, %141, %146, %151 in 1 : vector<1x1xf32>, vector<1x1xf32>, vector<1x1xf32>, vector<1x1xf32>, vector<1x1xf32>, vector<1x1xf32>, vector<1x1xf32>, vector<1x1xf32> -> vector<1x8xf32>
    %153 = arith.mulf %64, %11 : vector<8x512xf32>
    %cst_80 = arith.constant dense<0.000000e+00> : vector<8xf32>
    %154 = vector.multi_reduction <add>, %153, %cst_80 [1] : vector<8x512xf32> to vector<8xf32>
    %155 = vector.shape_cast %154 : vector<8xf32> to vector<8x1xf32>
    %cst_81 = arith.constant dense<0.000000e+00> : vector<1xf32>
    %156 = vector.multi_reduction <add>, %155, %cst_81 [0] : vector<8x1xf32> to vector<1xf32>
    %157 = vector.shape_cast %156 : vector<1xf32> to vector<1x1xf32>
    %158 = arith.mulf %64, %16 : vector<8x512xf32>
    %cst_82 = arith.constant dense<0.000000e+00> : vector<8xf32>
    %159 = vector.multi_reduction <add>, %158, %cst_82 [1] : vector<8x512xf32> to vector<8xf32>
    %160 = vector.shape_cast %159 : vector<8xf32> to vector<8x1xf32>
    %cst_83 = arith.constant dense<0.000000e+00> : vector<1xf32>
    %161 = vector.multi_reduction <add>, %160, %cst_83 [0] : vector<8x1xf32> to vector<1xf32>
    %162 = vector.shape_cast %161 : vector<1xf32> to vector<1x1xf32>
    %163 = arith.mulf %64, %21 : vector<8x512xf32>
    %cst_84 = arith.constant dense<0.000000e+00> : vector<8xf32>
    %164 = vector.multi_reduction <add>, %163, %cst_84 [1] : vector<8x512xf32> to vector<8xf32>
    %165 = vector.shape_cast %164 : vector<8xf32> to vector<8x1xf32>
    %cst_85 = arith.constant dense<0.000000e+00> : vector<1xf32>
    %166 = vector.multi_reduction <add>, %165, %cst_85 [0] : vector<8x1xf32> to vector<1xf32>
    %167 = vector.shape_cast %166 : vector<1xf32> to vector<1x1xf32>
    %168 = arith.mulf %64, %26 : vector<8x512xf32>
    %cst_86 = arith.constant dense<0.000000e+00> : vector<8xf32>
    %169 = vector.multi_reduction <add>, %168, %cst_86 [1] : vector<8x512xf32> to vector<8xf32>
    %170 = vector.shape_cast %169 : vector<8xf32> to vector<8x1xf32>
    %cst_87 = arith.constant dense<0.000000e+00> : vector<1xf32>
    %171 = vector.multi_reduction <add>, %170, %cst_87 [0] : vector<8x1xf32> to vector<1xf32>
    %172 = vector.shape_cast %171 : vector<1xf32> to vector<1x1xf32>
    %173 = arith.mulf %64, %31 : vector<8x512xf32>
    %cst_88 = arith.constant dense<0.000000e+00> : vector<8xf32>
    %174 = vector.multi_reduction <add>, %173, %cst_88 [1] : vector<8x512xf32> to vector<8xf32>
    %175 = vector.shape_cast %174 : vector<8xf32> to vector<8x1xf32>
    %cst_89 = arith.constant dense<0.000000e+00> : vector<1xf32>
    %176 = vector.multi_reduction <add>, %175, %cst_89 [0] : vector<8x1xf32> to vector<1xf32>
    %177 = vector.shape_cast %176 : vector<1xf32> to vector<1x1xf32>
    %178 = arith.mulf %64, %36 : vector<8x512xf32>
    %cst_90 = arith.constant dense<0.000000e+00> : vector<8xf32>
    %179 = vector.multi_reduction <add>, %178, %cst_90 [1] : vector<8x512xf32> to vector<8xf32>
    %180 = vector.shape_cast %179 : vector<8xf32> to vector<8x1xf32>
    %cst_91 = arith.constant dense<0.000000e+00> : vector<1xf32>
    %181 = vector.multi_reduction <add>, %180, %cst_91 [0] : vector<8x1xf32> to vector<1xf32>
    %182 = vector.shape_cast %181 : vector<1xf32> to vector<1x1xf32>
    %183 = arith.mulf %64, %41 : vector<8x512xf32>
    %cst_92 = arith.constant dense<0.000000e+00> : vector<8xf32>
    %184 = vector.multi_reduction <add>, %183, %cst_92 [1] : vector<8x512xf32> to vector<8xf32>
    %185 = vector.shape_cast %184 : vector<8xf32> to vector<8x1xf32>
    %cst_93 = arith.constant dense<0.000000e+00> : vector<1xf32>
    %186 = vector.multi_reduction <add>, %185, %cst_93 [0] : vector<8x1xf32> to vector<1xf32>
    %187 = vector.shape_cast %186 : vector<1xf32> to vector<1x1xf32>
    %188 = arith.mulf %64, %46 : vector<8x512xf32>
    %cst_94 = arith.constant dense<0.000000e+00> : vector<8xf32>
    %189 = vector.multi_reduction <add>, %188, %cst_94 [1] : vector<8x512xf32> to vector<8xf32>
    %190 = vector.shape_cast %189 : vector<8xf32> to vector<8x1xf32>
    %cst_95 = arith.constant dense<0.000000e+00> : vector<1xf32>
    %191 = vector.multi_reduction <add>, %190, %cst_95 [0] : vector<8x1xf32> to vector<1xf32>
    %192 = vector.shape_cast %191 : vector<1xf32> to vector<1x1xf32>
    %193 = tpu.concatenate %157, %162, %167, %172, %177, %182, %187, %192 in 1 : vector<1x1xf32>, vector<1x1xf32>, vector<1x1xf32>, vector<1x1xf32>, vector<1x1xf32>, vector<1x1xf32>, vector<1x1xf32>, vector<1x1xf32> -> vector<1x8xf32>
    %194 = arith.mulf %70, %11 : vector<8x512xf32>
    %cst_96 = arith.constant dense<0.000000e+00> : vector<8xf32>
    %195 = vector.multi_reduction <add>, %194, %cst_96 [1] : vector<8x512xf32> to vector<8xf32>
    %196 = vector.shape_cast %195 : vector<8xf32> to vector<8x1xf32>
    %cst_97 = arith.constant dense<0.000000e+00> : vector<1xf32>
    %197 = vector.multi_reduction <add>, %196, %cst_97 [0] : vector<8x1xf32> to vector<1xf32>
    %198 = vector.shape_cast %197 : vector<1xf32> to vector<1x1xf32>
    %199 = arith.mulf %70, %16 : vector<8x512xf32>
    %cst_98 = arith.constant dense<0.000000e+00> : vector<8xf32>
    %200 = vector.multi_reduction <add>, %199, %cst_98 [1] : vector<8x512xf32> to vector<8xf32>
    %201 = vector.shape_cast %200 : vector<8xf32> to vector<8x1xf32>
    %cst_99 = arith.constant dense<0.000000e+00> : vector<1xf32>
    %202 = vector.multi_reduction <add>, %201, %cst_99 [0] : vector<8x1xf32> to vector<1xf32>
    %203 = vector.shape_cast %202 : vector<1xf32> to vector<1x1xf32>
    %204 = arith.mulf %70, %21 : vector<8x512xf32>
    %cst_100 = arith.constant dense<0.000000e+00> : vector<8xf32>
    %205 = vector.multi_reduction <add>, %204, %cst_100 [1] : vector<8x512xf32> to vector<8xf32>
    %206 = vector.shape_cast %205 : vector<8xf32> to vector<8x1xf32>
    %cst_101 = arith.constant dense<0.000000e+00> : vector<1xf32>
    %207 = vector.multi_reduction <add>, %206, %cst_101 [0] : vector<8x1xf32> to vector<1xf32>
    %208 = vector.shape_cast %207 : vector<1xf32> to vector<1x1xf32>
    %209 = arith.mulf %70, %26 : vector<8x512xf32>
    %cst_102 = arith.constant dense<0.000000e+00> : vector<8xf32>
    %210 = vector.multi_reduction <add>, %209, %cst_102 [1] : vector<8x512xf32> to vector<8xf32>
    %211 = vector.shape_cast %210 : vector<8xf32> to vector<8x1xf32>
    %cst_103 = arith.constant dense<0.000000e+00> : vector<1xf32>
    %212 = vector.multi_reduction <add>, %211, %cst_103 [0] : vector<8x1xf32> to vector<1xf32>
    %213 = vector.shape_cast %212 : vector<1xf32> to vector<1x1xf32>
    %214 = arith.mulf %70, %31 : vector<8x512xf32>
    %cst_104 = arith.constant dense<0.000000e+00> : vector<8xf32>
    %215 = vector.multi_reduction <add>, %214, %cst_104 [1] : vector<8x512xf32> to vector<8xf32>
    %216 = vector.shape_cast %215 : vector<8xf32> to vector<8x1xf32>
    %cst_105 = arith.constant dense<0.000000e+00> : vector<1xf32>
    %217 = vector.multi_reduction <add>, %216, %cst_105 [0] : vector<8x1xf32> to vector<1xf32>
    %218 = vector.shape_cast %217 : vector<1xf32> to vector<1x1xf32>
    %219 = arith.mulf %70, %36 : vector<8x512xf32>
    %cst_106 = arith.constant dense<0.000000e+00> : vector<8xf32>
    %220 = vector.multi_reduction <add>, %219, %cst_106 [1] : vector<8x512xf32> to vector<8xf32>
    %221 = vector.shape_cast %220 : vector<8xf32> to vector<8x1xf32>
    %cst_107 = arith.constant dense<0.000000e+00> : vector<1xf32>
    %222 = vector.multi_reduction <add>, %221, %cst_107 [0] : vector<8x1xf32> to vector<1xf32>
    %223 = vector.shape_cast %222 : vector<1xf32> to vector<1x1xf32>
    %224 = arith.mulf %70, %41 : vector<8x512xf32>
    %cst_108 = arith.constant dense<0.000000e+00> : vector<8xf32>
    %225 = vector.multi_reduction <add>, %224, %cst_108 [1] : vector<8x512xf32> to vector<8xf32>
    %226 = vector.shape_cast %225 : vector<8xf32> to vector<8x1xf32>
    %cst_109 = arith.constant dense<0.000000e+00> : vector<1xf32>
    %227 = vector.multi_reduction <add>, %226, %cst_109 [0] : vector<8x1xf32> to vector<1xf32>
    %228 = vector.shape_cast %227 : vector<1xf32> to vector<1x1xf32>
    %229 = arith.mulf %70, %46 : vector<8x512xf32>
    %cst_110 = arith.constant dense<0.000000e+00> : vector<8xf32>
    %230 = vector.multi_reduction <add>, %229, %cst_110 [1] : vector<8x512xf32> to vector<8xf32>
    %231 = vector.shape_cast %230 : vector<8xf32> to vector<8x1xf32>
    %cst_111 = arith.constant dense<0.000000e+00> : vector<1xf32>
    %232 = vector.multi_reduction <add>, %231, %cst_111 [0] : vector<8x1xf32> to vector<1xf32>
    %233 = vector.shape_cast %232 : vector<1xf32> to vector<1x1xf32>
    %234 = tpu.concatenate %198, %203, %208, %213, %218, %223, %228, %233 in 1 : vector<1x1xf32>, vector<1x1xf32>, vector<1x1xf32>, vector<1x1xf32>, vector<1x1xf32>, vector<1x1xf32>, vector<1x1xf32>, vector<1x1xf32> -> vector<1x8xf32>
    %c0_112 = arith.constant 0 : index
    %c0_113 = arith.constant 0 : index
    %235 = vector.load %arg8[%c0_112, %c0_113] : memref<4x8xf32, #tpu.memory_space<vmem>>, vector<4x8xf32>
    %236 = tpu.concatenate %111, %152, %193, %234 in 0 : vector<1x8xf32>, vector<1x8xf32>, vector<1x8xf32>, vector<1x8xf32> -> vector<4x8xf32>
    %237 = arith.addf %235, %236 : vector<4x8xf32>
    %c0_114 = arith.constant 0 : index
    %c0_115 = arith.constant 0 : index
    %238 = vector.load %arg8[%c0_114, %c0_115] : memref<4x8xf32, #tpu.memory_space<vmem>>, vector<4x8xf32>
    tpu.vector_store %arg8[%c0_114, %c0_115], %237 {strides = array<i32>} : memref<4x8xf32, #tpu.memory_space<vmem>>, vector<4x8xf32>,
    %c1_i32 = arith.constant 1 : i32
    %239 = arith.cmpi eq, %arg0, %c1_i32 : i32
    %240 = arith.extui %239 : i1 to i32
    %c0_i32_116 = arith.constant 0 : i32
    %241 = arith.cmpi ne, %240, %c0_i32_116 : i32
    scf.if %241 {
      %c0_117 = arith.constant 0 : index
      %c0_118 = arith.constant 0 : index
      %242 = vector.load %arg8[%c0_117, %c0_118] : memref<4x8xf32, #tpu.memory_space<vmem>>, vector<4x8xf32>
      %cst_119 = arith.constant dense<0xFF800000> : vector<4xf32>
      %243 = vector.multi_reduction <maximumf>, %242, %cst_119 [1] : vector<4x8xf32> to vector<4xf32>
      %244 = vector.shape_cast %243 : vector<4xf32> to vector<4x1xf32>
      %245 = vector.broadcast %244 : vector<4x1xf32> to vector<4x8xf32>
      %246 = arith.subf %242, %245 : vector<4x8xf32>
      %247 = math.exp %246 : vector<4x8xf32>
      %cst_120 = arith.constant dense<0.000000e+00> : vector<4xf32>
      %248 = vector.multi_reduction <add>, %247, %cst_120 [1] : vector<4x8xf32> to vector<4xf32>
      %249 = vector.shape_cast %248 : vector<4xf32> to vector<4x1xf32>
      %250 = tpu.reciprocal %249 {approx = true} : vector<4x1xf32> -> vector<4x1xf32>
      %251 = vector.broadcast %250 : vector<4x1xf32> to vector<4x8xf32>
      %252 = arith.mulf %247, %251 : vector<4x8xf32>
      %c0_121 = arith.constant 0 : index
      %c0_122 = arith.constant 0 : index
      %253 = vector.load %arg7[%c0_121, %c0_122] : memref<4x8xf32, #tpu.memory_space<vmem>>, vector<4x8xf32>
      tpu.vector_store %arg7[%c0_121, %c0_122], %252 {strides = array<i32>} : memref<4x8xf32, #tpu.memory_space<vmem>>, vector<4x8xf32>,
    } else {
    }
    return
  }
  func.func @transform_0(%arg0: i32) -> (i32, i32, i32) {
    %c0_i32 = arith.constant 0 : i32
    %c0_i32_0 = arith.constant 0 : i32
    %c0_i32_1 = arith.constant 0 : i32
    return %c0_i32, %c0_i32_0, %arg0 : i32, i32, i32
  }
  func.func @transform_1(%arg0: i32) -> (i32, i32, i32) {
    %c0_i32 = arith.constant 0 : i32
    %c0_i32_0 = arith.constant 0 : i32
    %c0_i32_1 = arith.constant 0 : i32
    return %c0_i32, %c0_i32_0, %arg0 : i32, i32, i32
  }
  func.func @transform_2(%arg0: i32) -> (i32, i32) {
    %c0_i32 = arith.constant 0 : i32
    %c0_i32_0 = arith.constant 0 : i32
    %c0_i32_1 = arith.constant 0 : i32
    return %c0_i32, %c0_i32_0 : i32, i32
  }
  func.func @transform_3(%arg0: i32) -> (i32, i32) {
    %c0_i32 = arith.constant 0 : i32
    %c0_i32_0 = arith.constant 0 : i32
    %c0_i32_1 = arith.constant 0 : i32
    return %c0_i32, %c0_i32_0 : i32, i32
  }
  func.func @transform_4(%arg0: i32) -> (i32, i32) {
    %c0_i32 = arith.constant 0 : i32
    %c0_i32_0 = arith.constant 0 : i32
    %c0_i32_1 = arith.constant 0 : i32
    return %c0_i32, %c0_i32_0 : i32, i32
  }
  func.func @transform_5(%arg0: i32) -> (i32, i32) {
    %c0_i32 = arith.constant 0 : i32
    %c0_i32_0 = arith.constant 0 : i32
    %c0_i32_1 = arith.constant 0 : i32
    return %c0_i32, %c0_i32_0 : i32, i32
  }
  func.func @transform_6(%arg0: i32) -> (i32, i32) {
    %c0_i32 = arith.constant 0 : i32
    %c0_i32_0 = arith.constant 0 : i32
    %c0_i32_1 = arith.constant 0 : i32
    return %c0_i32, %c0_i32_0 : i32, i32
  }
}

module attributes {stable_mosaic.version = 11 : i64} {
  func.func @_attnv_residual_kernel(%arg0: i32, %arg1: memref<4x8xf32, #tpu.memory_space<smem>>, %arg2: memref<1xf32, #tpu.memory_space<smem>>, %arg3: memref<8x32x512xbf16, #tpu.memory_space<vmem>>, %arg4: memref<4x32x512xf32, #tpu.memory_space<vmem>>, %arg5: memref<32x32xbf16, #tpu.memory_space<vmem>>, %arg6: memref<32x1xf32, #tpu.memory_space<vmem>>, %arg7: memref<4x32x512xf32, #tpu.memory_space<vmem>>) attributes {dimension_semantics = [#tpu.dimension_semantics<parallel>], iteration_bounds = array<i64: 2>, scalar_prefetch = 0 : i64, scratch_operands = 0 : i64, tpu.core_type = #tpu.core_type<tc>, window_params = [{transform_indices = @transform_0, window_bounds = array<i64: 4, 8>}, {transform_indices = @transform_1, window_bounds = array<i64: 1>}, {transform_indices = @transform_2, window_bounds = array<i64: 8, 32, 512>}, {transform_indices = @transform_3, window_bounds = array<i64: 4, 32, 512>}, {pipeline_mode = #tpu.pipeline_mode<synchronous>, transform_indices = @transform_4, window_bounds = array<i64: 32, 32>}, {pipeline_mode = #tpu.pipeline_mode<synchronous>, transform_indices = @transform_5, window_bounds = array<i64: 32, 1>}, {transform_indices = @transform_6, window_bounds = array<i64: 4, 32, 512>}]} {
    %c0 = arith.constant 0 : index
    %0 = memref.load %arg2[%c0] : memref<1xf32, #tpu.memory_space<smem>>
    %c0_0 = arith.constant 0 : index
    %c0_1 = arith.constant 0 : index
    %1 = vector.load %arg5[%c0_0, %c0_1] : memref<32x32xbf16, #tpu.memory_space<vmem>>, vector<32x32xbf16>
    %c0_2 = arith.constant 0 : index
    %c0_3 = arith.constant 0 : index
    %2 = vector.load %arg6[%c0_2, %c0_3] : memref<32x1xf32, #tpu.memory_space<vmem>>, vector<32x1xf32>
    %c0_4 = arith.constant 0 : index
    %c0_5 = arith.constant 0 : index
    %c0_6 = arith.constant 0 : index
    %3 = vector.load %arg3[%c0_4, %c0_5, %c0_6] : memref<8x32x512xbf16, #tpu.memory_space<vmem>>, vector<1x32x512xbf16>
    %4 = vector.shape_cast %3 : vector<1x32x512xbf16> to vector<32x512xbf16>
    %cst = arith.constant dense<0.000000e+00> : vector<32x512xf32>
    %5 = tpu.matmul %1, %4, %cst {dimension_numbers = #tpu.dot_dimension_numbers<[1], [0], [0], [1], [0, 0, 1, 1], [], []>} : vector<32x32xbf16>, vector<32x512xbf16>, vector<32x512xf32> -> vector<32x512xf32>
    %6 = vector.broadcast %2 : vector<32x1xf32> to vector<32x512xf32>
    %7 = arith.addf %5, %6 : vector<32x512xf32>
    %c0_7 = arith.constant 0 : index
    %c0_8 = arith.constant 0 : index
    %8 = memref.load %arg1[%c0_7, %c0_8] : memref<4x8xf32, #tpu.memory_space<smem>>
    %9 = arith.mulf %0, %8 : f32
    %10 = vector.broadcast %9 : f32 to vector<32x512xf32>
    %11 = arith.mulf %10, %7 : vector<32x512xf32>
    %c0_9 = arith.constant 0 : index
    %c0_10 = arith.constant 0 : index
    %c0_11 = arith.constant 0 : index
    %12 = vector.load %arg4[%c0_9, %c0_10, %c0_11] : memref<4x32x512xf32, #tpu.memory_space<vmem>>, vector<1x32x512xf32>
    %13 = vector.shape_cast %12 : vector<1x32x512xf32> to vector<32x512xf32>
    %14 = arith.addf %13, %11 : vector<32x512xf32>
    %c0_12 = arith.constant 0 : index
    %c0_13 = arith.constant 0 : index
    %c0_14 = arith.constant 0 : index
    %15 = vector.load %arg7[%c0_12, %c0_13, %c0_14] : memref<4x32x512xf32, #tpu.memory_space<vmem>>, vector<1x32x512xf32>
    %16 = vector.shape_cast %15 : vector<1x32x512xf32> to vector<32x512xf32>
    %17 = vector.shape_cast %14 : vector<32x512xf32> to vector<1x32x512xf32>
    tpu.vector_store %arg7[%c0_12, %c0_13, %c0_14], %17 {strides = array<i32>} : memref<4x32x512xf32, #tpu.memory_space<vmem>>, vector<1x32x512xf32>,
    %c1 = arith.constant 1 : index
    %c0_15 = arith.constant 0 : index
    %18 = memref.load %arg1[%c1, %c0_15] : memref<4x8xf32, #tpu.memory_space<smem>>
    %19 = arith.mulf %0, %18 : f32
    %20 = vector.broadcast %19 : f32 to vector<32x512xf32>
    %21 = arith.mulf %20, %7 : vector<32x512xf32>
    %c1_16 = arith.constant 1 : index
    %c0_17 = arith.constant 0 : index
    %c0_18 = arith.constant 0 : index
    %22 = vector.load %arg4[%c1_16, %c0_17, %c0_18] : memref<4x32x512xf32, #tpu.memory_space<vmem>>, vector<1x32x512xf32>
    %23 = vector.shape_cast %22 : vector<1x32x512xf32> to vector<32x512xf32>
    %24 = arith.addf %23, %21 : vector<32x512xf32>
    %c1_19 = arith.constant 1 : index
    %c0_20 = arith.constant 0 : index
    %c0_21 = arith.constant 0 : index
    %25 = vector.load %arg7[%c1_19, %c0_20, %c0_21] : memref<4x32x512xf32, #tpu.memory_space<vmem>>, vector<1x32x512xf32>
    %26 = vector.shape_cast %25 : vector<1x32x512xf32> to vector<32x512xf32>
    %27 = vector.shape_cast %24 : vector<32x512xf32> to vector<1x32x512xf32>
    tpu.vector_store %arg7[%c1_19, %c0_20, %c0_21], %27 {strides = array<i32>} : memref<4x32x512xf32, #tpu.memory_space<vmem>>, vector<1x32x512xf32>,
    %c2 = arith.constant 2 : index
    %c0_22 = arith.constant 0 : index
    %28 = memref.load %arg1[%c2, %c0_22] : memref<4x8xf32, #tpu.memory_space<smem>>
    %29 = arith.mulf %0, %28 : f32
    %30 = vector.broadcast %29 : f32 to vector<32x512xf32>
    %31 = arith.mulf %30, %7 : vector<32x512xf32>
    %c2_23 = arith.constant 2 : index
    %c0_24 = arith.constant 0 : index
    %c0_25 = arith.constant 0 : index
    %32 = vector.load %arg4[%c2_23, %c0_24, %c0_25] : memref<4x32x512xf32, #tpu.memory_space<vmem>>, vector<1x32x512xf32>
    %33 = vector.shape_cast %32 : vector<1x32x512xf32> to vector<32x512xf32>
    %34 = arith.addf %33, %31 : vector<32x512xf32>
    %c2_26 = arith.constant 2 : index
    %c0_27 = arith.constant 0 : index
    %c0_28 = arith.constant 0 : index
    %35 = vector.load %arg7[%c2_26, %c0_27, %c0_28] : memref<4x32x512xf32, #tpu.memory_space<vmem>>, vector<1x32x512xf32>
    %36 = vector.shape_cast %35 : vector<1x32x512xf32> to vector<32x512xf32>
    %37 = vector.shape_cast %34 : vector<32x512xf32> to vector<1x32x512xf32>
    tpu.vector_store %arg7[%c2_26, %c0_27, %c0_28], %37 {strides = array<i32>} : memref<4x32x512xf32, #tpu.memory_space<vmem>>, vector<1x32x512xf32>,
    %c3 = arith.constant 3 : index
    %c0_29 = arith.constant 0 : index
    %38 = memref.load %arg1[%c3, %c0_29] : memref<4x8xf32, #tpu.memory_space<smem>>
    %39 = arith.mulf %0, %38 : f32
    %40 = vector.broadcast %39 : f32 to vector<32x512xf32>
    %41 = arith.mulf %40, %7 : vector<32x512xf32>
    %c3_30 = arith.constant 3 : index
    %c0_31 = arith.constant 0 : index
    %c0_32 = arith.constant 0 : index
    %42 = vector.load %arg4[%c3_30, %c0_31, %c0_32] : memref<4x32x512xf32, #tpu.memory_space<vmem>>, vector<1x32x512xf32>
    %43 = vector.shape_cast %42 : vector<1x32x512xf32> to vector<32x512xf32>
    %44 = arith.addf %43, %41 : vector<32x512xf32>
    %c3_33 = arith.constant 3 : index
    %c0_34 = arith.constant 0 : index
    %c0_35 = arith.constant 0 : index
    %45 = vector.load %arg7[%c3_33, %c0_34, %c0_35] : memref<4x32x512xf32, #tpu.memory_space<vmem>>, vector<1x32x512xf32>
    %46 = vector.shape_cast %45 : vector<1x32x512xf32> to vector<32x512xf32>
    %47 = vector.shape_cast %44 : vector<32x512xf32> to vector<1x32x512xf32>
    tpu.vector_store %arg7[%c3_33, %c0_34, %c0_35], %47 {strides = array<i32>} : memref<4x32x512xf32, #tpu.memory_space<vmem>>, vector<1x32x512xf32>,
    %c1_36 = arith.constant 1 : index
    %c0_37 = arith.constant 0 : index
    %c0_38 = arith.constant 0 : index
    %48 = vector.load %arg3[%c1_36, %c0_37, %c0_38] : memref<8x32x512xbf16, #tpu.memory_space<vmem>>, vector<1x32x512xbf16>
    %49 = vector.shape_cast %48 : vector<1x32x512xbf16> to vector<32x512xbf16>
    %cst_39 = arith.constant dense<0.000000e+00> : vector<32x512xf32>
    %50 = tpu.matmul %1, %49, %cst_39 {dimension_numbers = #tpu.dot_dimension_numbers<[1], [0], [0], [1], [0, 0, 1, 1], [], []>} : vector<32x32xbf16>, vector<32x512xbf16>, vector<32x512xf32> -> vector<32x512xf32>
    %51 = vector.broadcast %2 : vector<32x1xf32> to vector<32x512xf32>
    %52 = arith.addf %50, %51 : vector<32x512xf32>
    %c0_40 = arith.constant 0 : index
    %c1_41 = arith.constant 1 : index
    %53 = memref.load %arg1[%c0_40, %c1_41] : memref<4x8xf32, #tpu.memory_space<smem>>
    %54 = arith.mulf %0, %53 : f32
    %55 = vector.broadcast %54 : f32 to vector<32x512xf32>
    %56 = arith.mulf %55, %52 : vector<32x512xf32>
    %c0_42 = arith.constant 0 : index
    %c0_43 = arith.constant 0 : index
    %c0_44 = arith.constant 0 : index
    %57 = vector.load %arg7[%c0_42, %c0_43, %c0_44] : memref<4x32x512xf32, #tpu.memory_space<vmem>>, vector<1x32x512xf32>
    %58 = vector.shape_cast %57 : vector<1x32x512xf32> to vector<32x512xf32>
    %59 = arith.addf %58, %56 : vector<32x512xf32>
    %c0_45 = arith.constant 0 : index
    %c0_46 = arith.constant 0 : index
    %c0_47 = arith.constant 0 : index
    %60 = vector.load %arg7[%c0_45, %c0_46, %c0_47] : memref<4x32x512xf32, #tpu.memory_space<vmem>>, vector<1x32x512xf32>
    %61 = vector.shape_cast %60 : vector<1x32x512xf32> to vector<32x512xf32>
    %62 = vector.shape_cast %59 : vector<32x512xf32> to vector<1x32x512xf32>
    tpu.vector_store %arg7[%c0_45, %c0_46, %c0_47], %62 {strides = array<i32>} : memref<4x32x512xf32, #tpu.memory_space<vmem>>, vector<1x32x512xf32>,
    %c1_48 = arith.constant 1 : index
    %c1_49 = arith.constant 1 : index
    %63 = memref.load %arg1[%c1_48, %c1_49] : memref<4x8xf32, #tpu.memory_space<smem>>
    %64 = arith.mulf %0, %63 : f32
    %65 = vector.broadcast %64 : f32 to vector<32x512xf32>
    %66 = arith.mulf %65, %52 : vector<32x512xf32>
    %c1_50 = arith.constant 1 : index
    %c0_51 = arith.constant 0 : index
    %c0_52 = arith.constant 0 : index
    %67 = vector.load %arg7[%c1_50, %c0_51, %c0_52] : memref<4x32x512xf32, #tpu.memory_space<vmem>>, vector<1x32x512xf32>
    %68 = vector.shape_cast %67 : vector<1x32x512xf32> to vector<32x512xf32>
    %69 = arith.addf %68, %66 : vector<32x512xf32>
    %c1_53 = arith.constant 1 : index
    %c0_54 = arith.constant 0 : index
    %c0_55 = arith.constant 0 : index
    %70 = vector.load %arg7[%c1_53, %c0_54, %c0_55] : memref<4x32x512xf32, #tpu.memory_space<vmem>>, vector<1x32x512xf32>
    %71 = vector.shape_cast %70 : vector<1x32x512xf32> to vector<32x512xf32>
    %72 = vector.shape_cast %69 : vector<32x512xf32> to vector<1x32x512xf32>
    tpu.vector_store %arg7[%c1_53, %c0_54, %c0_55], %72 {strides = array<i32>} : memref<4x32x512xf32, #tpu.memory_space<vmem>>, vector<1x32x512xf32>,
    %c2_56 = arith.constant 2 : index
    %c1_57 = arith.constant 1 : index
    %73 = memref.load %arg1[%c2_56, %c1_57] : memref<4x8xf32, #tpu.memory_space<smem>>
    %74 = arith.mulf %0, %73 : f32
    %75 = vector.broadcast %74 : f32 to vector<32x512xf32>
    %76 = arith.mulf %75, %52 : vector<32x512xf32>
    %c2_58 = arith.constant 2 : index
    %c0_59 = arith.constant 0 : index
    %c0_60 = arith.constant 0 : index
    %77 = vector.load %arg7[%c2_58, %c0_59, %c0_60] : memref<4x32x512xf32, #tpu.memory_space<vmem>>, vector<1x32x512xf32>
    %78 = vector.shape_cast %77 : vector<1x32x512xf32> to vector<32x512xf32>
    %79 = arith.addf %78, %76 : vector<32x512xf32>
    %c2_61 = arith.constant 2 : index
    %c0_62 = arith.constant 0 : index
    %c0_63 = arith.constant 0 : index
    %80 = vector.load %arg7[%c2_61, %c0_62, %c0_63] : memref<4x32x512xf32, #tpu.memory_space<vmem>>, vector<1x32x512xf32>
    %81 = vector.shape_cast %80 : vector<1x32x512xf32> to vector<32x512xf32>
    %82 = vector.shape_cast %79 : vector<32x512xf32> to vector<1x32x512xf32>
    tpu.vector_store %arg7[%c2_61, %c0_62, %c0_63], %82 {strides = array<i32>} : memref<4x32x512xf32, #tpu.memory_space<vmem>>, vector<1x32x512xf32>,
    %c3_64 = arith.constant 3 : index
    %c1_65 = arith.constant 1 : index
    %83 = memref.load %arg1[%c3_64, %c1_65] : memref<4x8xf32, #tpu.memory_space<smem>>
    %84 = arith.mulf %0, %83 : f32
    %85 = vector.broadcast %84 : f32 to vector<32x512xf32>
    %86 = arith.mulf %85, %52 : vector<32x512xf32>
    %c3_66 = arith.constant 3 : index
    %c0_67 = arith.constant 0 : index
    %c0_68 = arith.constant 0 : index
    %87 = vector.load %arg7[%c3_66, %c0_67, %c0_68] : memref<4x32x512xf32, #tpu.memory_space<vmem>>, vector<1x32x512xf32>
    %88 = vector.shape_cast %87 : vector<1x32x512xf32> to vector<32x512xf32>
    %89 = arith.addf %88, %86 : vector<32x512xf32>
    %c3_69 = arith.constant 3 : index
    %c0_70 = arith.constant 0 : index
    %c0_71 = arith.constant 0 : index
    %90 = vector.load %arg7[%c3_69, %c0_70, %c0_71] : memref<4x32x512xf32, #tpu.memory_space<vmem>>, vector<1x32x512xf32>
    %91 = vector.shape_cast %90 : vector<1x32x512xf32> to vector<32x512xf32>
    %92 = vector.shape_cast %89 : vector<32x512xf32> to vector<1x32x512xf32>
    tpu.vector_store %arg7[%c3_69, %c0_70, %c0_71], %92 {strides = array<i32>} : memref<4x32x512xf32, #tpu.memory_space<vmem>>, vector<1x32x512xf32>,
    %c2_72 = arith.constant 2 : index
    %c0_73 = arith.constant 0 : index
    %c0_74 = arith.constant 0 : index
    %93 = vector.load %arg3[%c2_72, %c0_73, %c0_74] : memref<8x32x512xbf16, #tpu.memory_space<vmem>>, vector<1x32x512xbf16>
    %94 = vector.shape_cast %93 : vector<1x32x512xbf16> to vector<32x512xbf16>
    %cst_75 = arith.constant dense<0.000000e+00> : vector<32x512xf32>
    %95 = tpu.matmul %1, %94, %cst_75 {dimension_numbers = #tpu.dot_dimension_numbers<[1], [0], [0], [1], [0, 0, 1, 1], [], []>} : vector<32x32xbf16>, vector<32x512xbf16>, vector<32x512xf32> -> vector<32x512xf32>
    %96 = vector.broadcast %2 : vector<32x1xf32> to vector<32x512xf32>
    %97 = arith.addf %95, %96 : vector<32x512xf32>
    %c0_76 = arith.constant 0 : index
    %c2_77 = arith.constant 2 : index
    %98 = memref.load %arg1[%c0_76, %c2_77] : memref<4x8xf32, #tpu.memory_space<smem>>
    %99 = arith.mulf %0, %98 : f32
    %100 = vector.broadcast %99 : f32 to vector<32x512xf32>
    %101 = arith.mulf %100, %97 : vector<32x512xf32>
    %c0_78 = arith.constant 0 : index
    %c0_79 = arith.constant 0 : index
    %c0_80 = arith.constant 0 : index
    %102 = vector.load %arg7[%c0_78, %c0_79, %c0_80] : memref<4x32x512xf32, #tpu.memory_space<vmem>>, vector<1x32x512xf32>
    %103 = vector.shape_cast %102 : vector<1x32x512xf32> to vector<32x512xf32>
    %104 = arith.addf %103, %101 : vector<32x512xf32>
    %c0_81 = arith.constant 0 : index
    %c0_82 = arith.constant 0 : index
    %c0_83 = arith.constant 0 : index
    %105 = vector.load %arg7[%c0_81, %c0_82, %c0_83] : memref<4x32x512xf32, #tpu.memory_space<vmem>>, vector<1x32x512xf32>
    %106 = vector.shape_cast %105 : vector<1x32x512xf32> to vector<32x512xf32>
    %107 = vector.shape_cast %104 : vector<32x512xf32> to vector<1x32x512xf32>
    tpu.vector_store %arg7[%c0_81, %c0_82, %c0_83], %107 {strides = array<i32>} : memref<4x32x512xf32, #tpu.memory_space<vmem>>, vector<1x32x512xf32>,
    %c1_84 = arith.constant 1 : index
    %c2_85 = arith.constant 2 : index
    %108 = memref.load %arg1[%c1_84, %c2_85] : memref<4x8xf32, #tpu.memory_space<smem>>
    %109 = arith.mulf %0, %108 : f32
    %110 = vector.broadcast %109 : f32 to vector<32x512xf32>
    %111 = arith.mulf %110, %97 : vector<32x512xf32>
    %c1_86 = arith.constant 1 : index
    %c0_87 = arith.constant 0 : index
    %c0_88 = arith.constant 0 : index
    %112 = vector.load %arg7[%c1_86, %c0_87, %c0_88] : memref<4x32x512xf32, #tpu.memory_space<vmem>>, vector<1x32x512xf32>
    %113 = vector.shape_cast %112 : vector<1x32x512xf32> to vector<32x512xf32>
    %114 = arith.addf %113, %111 : vector<32x512xf32>
    %c1_89 = arith.constant 1 : index
    %c0_90 = arith.constant 0 : index
    %c0_91 = arith.constant 0 : index
    %115 = vector.load %arg7[%c1_89, %c0_90, %c0_91] : memref<4x32x512xf32, #tpu.memory_space<vmem>>, vector<1x32x512xf32>
    %116 = vector.shape_cast %115 : vector<1x32x512xf32> to vector<32x512xf32>
    %117 = vector.shape_cast %114 : vector<32x512xf32> to vector<1x32x512xf32>
    tpu.vector_store %arg7[%c1_89, %c0_90, %c0_91], %117 {strides = array<i32>} : memref<4x32x512xf32, #tpu.memory_space<vmem>>, vector<1x32x512xf32>,
    %c2_92 = arith.constant 2 : index
    %c2_93 = arith.constant 2 : index
    %118 = memref.load %arg1[%c2_92, %c2_93] : memref<4x8xf32, #tpu.memory_space<smem>>
    %119 = arith.mulf %0, %118 : f32
    %120 = vector.broadcast %119 : f32 to vector<32x512xf32>
    %121 = arith.mulf %120, %97 : vector<32x512xf32>
    %c2_94 = arith.constant 2 : index
    %c0_95 = arith.constant 0 : index
    %c0_96 = arith.constant 0 : index
    %122 = vector.load %arg7[%c2_94, %c0_95, %c0_96] : memref<4x32x512xf32, #tpu.memory_space<vmem>>, vector<1x32x512xf32>
    %123 = vector.shape_cast %122 : vector<1x32x512xf32> to vector<32x512xf32>
    %124 = arith.addf %123, %121 : vector<32x512xf32>
    %c2_97 = arith.constant 2 : index
    %c0_98 = arith.constant 0 : index
    %c0_99 = arith.constant 0 : index
    %125 = vector.load %arg7[%c2_97, %c0_98, %c0_99] : memref<4x32x512xf32, #tpu.memory_space<vmem>>, vector<1x32x512xf32>
    %126 = vector.shape_cast %125 : vector<1x32x512xf32> to vector<32x512xf32>
    %127 = vector.shape_cast %124 : vector<32x512xf32> to vector<1x32x512xf32>
    tpu.vector_store %arg7[%c2_97, %c0_98, %c0_99], %127 {strides = array<i32>} : memref<4x32x512xf32, #tpu.memory_space<vmem>>, vector<1x32x512xf32>,
    %c3_100 = arith.constant 3 : index
    %c2_101 = arith.constant 2 : index
    %128 = memref.load %arg1[%c3_100, %c2_101] : memref<4x8xf32, #tpu.memory_space<smem>>
    %129 = arith.mulf %0, %128 : f32
    %130 = vector.broadcast %129 : f32 to vector<32x512xf32>
    %131 = arith.mulf %130, %97 : vector<32x512xf32>
    %c3_102 = arith.constant 3 : index
    %c0_103 = arith.constant 0 : index
    %c0_104 = arith.constant 0 : index
    %132 = vector.load %arg7[%c3_102, %c0_103, %c0_104] : memref<4x32x512xf32, #tpu.memory_space<vmem>>, vector<1x32x512xf32>
    %133 = vector.shape_cast %132 : vector<1x32x512xf32> to vector<32x512xf32>
    %134 = arith.addf %133, %131 : vector<32x512xf32>
    %c3_105 = arith.constant 3 : index
    %c0_106 = arith.constant 0 : index
    %c0_107 = arith.constant 0 : index
    %135 = vector.load %arg7[%c3_105, %c0_106, %c0_107] : memref<4x32x512xf32, #tpu.memory_space<vmem>>, vector<1x32x512xf32>
    %136 = vector.shape_cast %135 : vector<1x32x512xf32> to vector<32x512xf32>
    %137 = vector.shape_cast %134 : vector<32x512xf32> to vector<1x32x512xf32>
    tpu.vector_store %arg7[%c3_105, %c0_106, %c0_107], %137 {strides = array<i32>} : memref<4x32x512xf32, #tpu.memory_space<vmem>>, vector<1x32x512xf32>,
    %c3_108 = arith.constant 3 : index
    %c0_109 = arith.constant 0 : index
    %c0_110 = arith.constant 0 : index
    %138 = vector.load %arg3[%c3_108, %c0_109, %c0_110] : memref<8x32x512xbf16, #tpu.memory_space<vmem>>, vector<1x32x512xbf16>
    %139 = vector.shape_cast %138 : vector<1x32x512xbf16> to vector<32x512xbf16>
    %cst_111 = arith.constant dense<0.000000e+00> : vector<32x512xf32>
    %140 = tpu.matmul %1, %139, %cst_111 {dimension_numbers = #tpu.dot_dimension_numbers<[1], [0], [0], [1], [0, 0, 1, 1], [], []>} : vector<32x32xbf16>, vector<32x512xbf16>, vector<32x512xf32> -> vector<32x512xf32>
    %141 = vector.broadcast %2 : vector<32x1xf32> to vector<32x512xf32>
    %142 = arith.addf %140, %141 : vector<32x512xf32>
    %c0_112 = arith.constant 0 : index
    %c3_113 = arith.constant 3 : index
    %143 = memref.load %arg1[%c0_112, %c3_113] : memref<4x8xf32, #tpu.memory_space<smem>>
    %144 = arith.mulf %0, %143 : f32
    %145 = vector.broadcast %144 : f32 to vector<32x512xf32>
    %146 = arith.mulf %145, %142 : vector<32x512xf32>
    %c0_114 = arith.constant 0 : index
    %c0_115 = arith.constant 0 : index
    %c0_116 = arith.constant 0 : index
    %147 = vector.load %arg7[%c0_114, %c0_115, %c0_116] : memref<4x32x512xf32, #tpu.memory_space<vmem>>, vector<1x32x512xf32>
    %148 = vector.shape_cast %147 : vector<1x32x512xf32> to vector<32x512xf32>
    %149 = arith.addf %148, %146 : vector<32x512xf32>
    %c0_117 = arith.constant 0 : index
    %c0_118 = arith.constant 0 : index
    %c0_119 = arith.constant 0 : index
    %150 = vector.load %arg7[%c0_117, %c0_118, %c0_119] : memref<4x32x512xf32, #tpu.memory_space<vmem>>, vector<1x32x512xf32>
    %151 = vector.shape_cast %150 : vector<1x32x512xf32> to vector<32x512xf32>
    %152 = vector.shape_cast %149 : vector<32x512xf32> to vector<1x32x512xf32>
    tpu.vector_store %arg7[%c0_117, %c0_118, %c0_119], %152 {strides = array<i32>} : memref<4x32x512xf32, #tpu.memory_space<vmem>>, vector<1x32x512xf32>,
    %c1_120 = arith.constant 1 : index
    %c3_121 = arith.constant 3 : index
    %153 = memref.load %arg1[%c1_120, %c3_121] : memref<4x8xf32, #tpu.memory_space<smem>>
    %154 = arith.mulf %0, %153 : f32
    %155 = vector.broadcast %154 : f32 to vector<32x512xf32>
    %156 = arith.mulf %155, %142 : vector<32x512xf32>
    %c1_122 = arith.constant 1 : index
    %c0_123 = arith.constant 0 : index
    %c0_124 = arith.constant 0 : index
    %157 = vector.load %arg7[%c1_122, %c0_123, %c0_124] : memref<4x32x512xf32, #tpu.memory_space<vmem>>, vector<1x32x512xf32>
    %158 = vector.shape_cast %157 : vector<1x32x512xf32> to vector<32x512xf32>
    %159 = arith.addf %158, %156 : vector<32x512xf32>
    %c1_125 = arith.constant 1 : index
    %c0_126 = arith.constant 0 : index
    %c0_127 = arith.constant 0 : index
    %160 = vector.load %arg7[%c1_125, %c0_126, %c0_127] : memref<4x32x512xf32, #tpu.memory_space<vmem>>, vector<1x32x512xf32>
    %161 = vector.shape_cast %160 : vector<1x32x512xf32> to vector<32x512xf32>
    %162 = vector.shape_cast %159 : vector<32x512xf32> to vector<1x32x512xf32>
    tpu.vector_store %arg7[%c1_125, %c0_126, %c0_127], %162 {strides = array<i32>} : memref<4x32x512xf32, #tpu.memory_space<vmem>>, vector<1x32x512xf32>,
    %c2_128 = arith.constant 2 : index
    %c3_129 = arith.constant 3 : index
    %163 = memref.load %arg1[%c2_128, %c3_129] : memref<4x8xf32, #tpu.memory_space<smem>>
    %164 = arith.mulf %0, %163 : f32
    %165 = vector.broadcast %164 : f32 to vector<32x512xf32>
    %166 = arith.mulf %165, %142 : vector<32x512xf32>
    %c2_130 = arith.constant 2 : index
    %c0_131 = arith.constant 0 : index
    %c0_132 = arith.constant 0 : index
    %167 = vector.load %arg7[%c2_130, %c0_131, %c0_132] : memref<4x32x512xf32, #tpu.memory_space<vmem>>, vector<1x32x512xf32>
    %168 = vector.shape_cast %167 : vector<1x32x512xf32> to vector<32x512xf32>
    %169 = arith.addf %168, %166 : vector<32x512xf32>
    %c2_133 = arith.constant 2 : index
    %c0_134 = arith.constant 0 : index
    %c0_135 = arith.constant 0 : index
    %170 = vector.load %arg7[%c2_133, %c0_134, %c0_135] : memref<4x32x512xf32, #tpu.memory_space<vmem>>, vector<1x32x512xf32>
    %171 = vector.shape_cast %170 : vector<1x32x512xf32> to vector<32x512xf32>
    %172 = vector.shape_cast %169 : vector<32x512xf32> to vector<1x32x512xf32>
    tpu.vector_store %arg7[%c2_133, %c0_134, %c0_135], %172 {strides = array<i32>} : memref<4x32x512xf32, #tpu.memory_space<vmem>>, vector<1x32x512xf32>,
    %c3_136 = arith.constant 3 : index
    %c3_137 = arith.constant 3 : index
    %173 = memref.load %arg1[%c3_136, %c3_137] : memref<4x8xf32, #tpu.memory_space<smem>>
    %174 = arith.mulf %0, %173 : f32
    %175 = vector.broadcast %174 : f32 to vector<32x512xf32>
    %176 = arith.mulf %175, %142 : vector<32x512xf32>
    %c3_138 = arith.constant 3 : index
    %c0_139 = arith.constant 0 : index
    %c0_140 = arith.constant 0 : index
    %177 = vector.load %arg7[%c3_138, %c0_139, %c0_140] : memref<4x32x512xf32, #tpu.memory_space<vmem>>, vector<1x32x512xf32>
    %178 = vector.shape_cast %177 : vector<1x32x512xf32> to vector<32x512xf32>
    %179 = arith.addf %178, %176 : vector<32x512xf32>
    %c3_141 = arith.constant 3 : index
    %c0_142 = arith.constant 0 : index
    %c0_143 = arith.constant 0 : index
    %180 = vector.load %arg7[%c3_141, %c0_142, %c0_143] : memref<4x32x512xf32, #tpu.memory_space<vmem>>, vector<1x32x512xf32>
    %181 = vector.shape_cast %180 : vector<1x32x512xf32> to vector<32x512xf32>
    %182 = vector.shape_cast %179 : vector<32x512xf32> to vector<1x32x512xf32>
    tpu.vector_store %arg7[%c3_141, %c0_142, %c0_143], %182 {strides = array<i32>} : memref<4x32x512xf32, #tpu.memory_space<vmem>>, vector<1x32x512xf32>,
    %c4 = arith.constant 4 : index
    %c0_144 = arith.constant 0 : index
    %c0_145 = arith.constant 0 : index
    %183 = vector.load %arg3[%c4, %c0_144, %c0_145] : memref<8x32x512xbf16, #tpu.memory_space<vmem>>, vector<1x32x512xbf16>
    %184 = vector.shape_cast %183 : vector<1x32x512xbf16> to vector<32x512xbf16>
    %cst_146 = arith.constant dense<0.000000e+00> : vector<32x512xf32>
    %185 = tpu.matmul %1, %184, %cst_146 {dimension_numbers = #tpu.dot_dimension_numbers<[1], [0], [0], [1], [0, 0, 1, 1], [], []>} : vector<32x32xbf16>, vector<32x512xbf16>, vector<32x512xf32> -> vector<32x512xf32>
    %186 = vector.broadcast %2 : vector<32x1xf32> to vector<32x512xf32>
    %187 = arith.addf %185, %186 : vector<32x512xf32>
    %c0_147 = arith.constant 0 : index
    %c4_148 = arith.constant 4 : index
    %188 = memref.load %arg1[%c0_147, %c4_148] : memref<4x8xf32, #tpu.memory_space<smem>>
    %189 = arith.mulf %0, %188 : f32
    %190 = vector.broadcast %189 : f32 to vector<32x512xf32>
    %191 = arith.mulf %190, %187 : vector<32x512xf32>
    %c0_149 = arith.constant 0 : index
    %c0_150 = arith.constant 0 : index
    %c0_151 = arith.constant 0 : index
    %192 = vector.load %arg7[%c0_149, %c0_150, %c0_151] : memref<4x32x512xf32, #tpu.memory_space<vmem>>, vector<1x32x512xf32>
    %193 = vector.shape_cast %192 : vector<1x32x512xf32> to vector<32x512xf32>
    %194 = arith.addf %193, %191 : vector<32x512xf32>
    %c0_152 = arith.constant 0 : index
    %c0_153 = arith.constant 0 : index
    %c0_154 = arith.constant 0 : index
    %195 = vector.load %arg7[%c0_152, %c0_153, %c0_154] : memref<4x32x512xf32, #tpu.memory_space<vmem>>, vector<1x32x512xf32>
    %196 = vector.shape_cast %195 : vector<1x32x512xf32> to vector<32x512xf32>
    %197 = vector.shape_cast %194 : vector<32x512xf32> to vector<1x32x512xf32>
    tpu.vector_store %arg7[%c0_152, %c0_153, %c0_154], %197 {strides = array<i32>} : memref<4x32x512xf32, #tpu.memory_space<vmem>>, vector<1x32x512xf32>,
    %c1_155 = arith.constant 1 : index
    %c4_156 = arith.constant 4 : index
    %198 = memref.load %arg1[%c1_155, %c4_156] : memref<4x8xf32, #tpu.memory_space<smem>>
    %199 = arith.mulf %0, %198 : f32
    %200 = vector.broadcast %199 : f32 to vector<32x512xf32>
    %201 = arith.mulf %200, %187 : vector<32x512xf32>
    %c1_157 = arith.constant 1 : index
    %c0_158 = arith.constant 0 : index
    %c0_159 = arith.constant 0 : index
    %202 = vector.load %arg7[%c1_157, %c0_158, %c0_159] : memref<4x32x512xf32, #tpu.memory_space<vmem>>, vector<1x32x512xf32>
    %203 = vector.shape_cast %202 : vector<1x32x512xf32> to vector<32x512xf32>
    %204 = arith.addf %203, %201 : vector<32x512xf32>
    %c1_160 = arith.constant 1 : index
    %c0_161 = arith.constant 0 : index
    %c0_162 = arith.constant 0 : index
    %205 = vector.load %arg7[%c1_160, %c0_161, %c0_162] : memref<4x32x512xf32, #tpu.memory_space<vmem>>, vector<1x32x512xf32>
    %206 = vector.shape_cast %205 : vector<1x32x512xf32> to vector<32x512xf32>
    %207 = vector.shape_cast %204 : vector<32x512xf32> to vector<1x32x512xf32>
    tpu.vector_store %arg7[%c1_160, %c0_161, %c0_162], %207 {strides = array<i32>} : memref<4x32x512xf32, #tpu.memory_space<vmem>>, vector<1x32x512xf32>,
    %c2_163 = arith.constant 2 : index
    %c4_164 = arith.constant 4 : index
    %208 = memref.load %arg1[%c2_163, %c4_164] : memref<4x8xf32, #tpu.memory_space<smem>>
    %209 = arith.mulf %0, %208 : f32
    %210 = vector.broadcast %209 : f32 to vector<32x512xf32>
    %211 = arith.mulf %210, %187 : vector<32x512xf32>
    %c2_165 = arith.constant 2 : index
    %c0_166 = arith.constant 0 : index
    %c0_167 = arith.constant 0 : index
    %212 = vector.load %arg7[%c2_165, %c0_166, %c0_167] : memref<4x32x512xf32, #tpu.memory_space<vmem>>, vector<1x32x512xf32>
    %213 = vector.shape_cast %212 : vector<1x32x512xf32> to vector<32x512xf32>
    %214 = arith.addf %213, %211 : vector<32x512xf32>
    %c2_168 = arith.constant 2 : index
    %c0_169 = arith.constant 0 : index
    %c0_170 = arith.constant 0 : index
    %215 = vector.load %arg7[%c2_168, %c0_169, %c0_170] : memref<4x32x512xf32, #tpu.memory_space<vmem>>, vector<1x32x512xf32>
    %216 = vector.shape_cast %215 : vector<1x32x512xf32> to vector<32x512xf32>
    %217 = vector.shape_cast %214 : vector<32x512xf32> to vector<1x32x512xf32>
    tpu.vector_store %arg7[%c2_168, %c0_169, %c0_170], %217 {strides = array<i32>} : memref<4x32x512xf32, #tpu.memory_space<vmem>>, vector<1x32x512xf32>,
    %c3_171 = arith.constant 3 : index
    %c4_172 = arith.constant 4 : index
    %218 = memref.load %arg1[%c3_171, %c4_172] : memref<4x8xf32, #tpu.memory_space<smem>>
    %219 = arith.mulf %0, %218 : f32
    %220 = vector.broadcast %219 : f32 to vector<32x512xf32>
    %221 = arith.mulf %220, %187 : vector<32x512xf32>
    %c3_173 = arith.constant 3 : index
    %c0_174 = arith.constant 0 : index
    %c0_175 = arith.constant 0 : index
    %222 = vector.load %arg7[%c3_173, %c0_174, %c0_175] : memref<4x32x512xf32, #tpu.memory_space<vmem>>, vector<1x32x512xf32>
    %223 = vector.shape_cast %222 : vector<1x32x512xf32> to vector<32x512xf32>
    %224 = arith.addf %223, %221 : vector<32x512xf32>
    %c3_176 = arith.constant 3 : index
    %c0_177 = arith.constant 0 : index
    %c0_178 = arith.constant 0 : index
    %225 = vector.load %arg7[%c3_176, %c0_177, %c0_178] : memref<4x32x512xf32, #tpu.memory_space<vmem>>, vector<1x32x512xf32>
    %226 = vector.shape_cast %225 : vector<1x32x512xf32> to vector<32x512xf32>
    %227 = vector.shape_cast %224 : vector<32x512xf32> to vector<1x32x512xf32>
    tpu.vector_store %arg7[%c3_176, %c0_177, %c0_178], %227 {strides = array<i32>} : memref<4x32x512xf32, #tpu.memory_space<vmem>>, vector<1x32x512xf32>,
    %c5 = arith.constant 5 : index
    %c0_179 = arith.constant 0 : index
    %c0_180 = arith.constant 0 : index
    %228 = vector.load %arg3[%c5, %c0_179, %c0_180] : memref<8x32x512xbf16, #tpu.memory_space<vmem>>, vector<1x32x512xbf16>
    %229 = vector.shape_cast %228 : vector<1x32x512xbf16> to vector<32x512xbf16>
    %cst_181 = arith.constant dense<0.000000e+00> : vector<32x512xf32>
    %230 = tpu.matmul %1, %229, %cst_181 {dimension_numbers = #tpu.dot_dimension_numbers<[1], [0], [0], [1], [0, 0, 1, 1], [], []>} : vector<32x32xbf16>, vector<32x512xbf16>, vector<32x512xf32> -> vector<32x512xf32>
    %231 = vector.broadcast %2 : vector<32x1xf32> to vector<32x512xf32>
    %232 = arith.addf %230, %231 : vector<32x512xf32>
    %c0_182 = arith.constant 0 : index
    %c5_183 = arith.constant 5 : index
    %233 = memref.load %arg1[%c0_182, %c5_183] : memref<4x8xf32, #tpu.memory_space<smem>>
    %234 = arith.mulf %0, %233 : f32
    %235 = vector.broadcast %234 : f32 to vector<32x512xf32>
    %236 = arith.mulf %235, %232 : vector<32x512xf32>
    %c0_184 = arith.constant 0 : index
    %c0_185 = arith.constant 0 : index
    %c0_186 = arith.constant 0 : index
    %237 = vector.load %arg7[%c0_184, %c0_185, %c0_186] : memref<4x32x512xf32, #tpu.memory_space<vmem>>, vector<1x32x512xf32>
    %238 = vector.shape_cast %237 : vector<1x32x512xf32> to vector<32x512xf32>
    %239 = arith.addf %238, %236 : vector<32x512xf32>
    %c0_187 = arith.constant 0 : index
    %c0_188 = arith.constant 0 : index
    %c0_189 = arith.constant 0 : index
    %240 = vector.load %arg7[%c0_187, %c0_188, %c0_189] : memref<4x32x512xf32, #tpu.memory_space<vmem>>, vector<1x32x512xf32>
    %241 = vector.shape_cast %240 : vector<1x32x512xf32> to vector<32x512xf32>
    %242 = vector.shape_cast %239 : vector<32x512xf32> to vector<1x32x512xf32>
    tpu.vector_store %arg7[%c0_187, %c0_188, %c0_189], %242 {strides = array<i32>} : memref<4x32x512xf32, #tpu.memory_space<vmem>>, vector<1x32x512xf32>,
    %c1_190 = arith.constant 1 : index
    %c5_191 = arith.constant 5 : index
    %243 = memref.load %arg1[%c1_190, %c5_191] : memref<4x8xf32, #tpu.memory_space<smem>>
    %244 = arith.mulf %0, %243 : f32
    %245 = vector.broadcast %244 : f32 to vector<32x512xf32>
    %246 = arith.mulf %245, %232 : vector<32x512xf32>
    %c1_192 = arith.constant 1 : index
    %c0_193 = arith.constant 0 : index
    %c0_194 = arith.constant 0 : index
    %247 = vector.load %arg7[%c1_192, %c0_193, %c0_194] : memref<4x32x512xf32, #tpu.memory_space<vmem>>, vector<1x32x512xf32>
    %248 = vector.shape_cast %247 : vector<1x32x512xf32> to vector<32x512xf32>
    %249 = arith.addf %248, %246 : vector<32x512xf32>
    %c1_195 = arith.constant 1 : index
    %c0_196 = arith.constant 0 : index
    %c0_197 = arith.constant 0 : index
    %250 = vector.load %arg7[%c1_195, %c0_196, %c0_197] : memref<4x32x512xf32, #tpu.memory_space<vmem>>, vector<1x32x512xf32>
    %251 = vector.shape_cast %250 : vector<1x32x512xf32> to vector<32x512xf32>
    %252 = vector.shape_cast %249 : vector<32x512xf32> to vector<1x32x512xf32>
    tpu.vector_store %arg7[%c1_195, %c0_196, %c0_197], %252 {strides = array<i32>} : memref<4x32x512xf32, #tpu.memory_space<vmem>>, vector<1x32x512xf32>,
    %c2_198 = arith.constant 2 : index
    %c5_199 = arith.constant 5 : index
    %253 = memref.load %arg1[%c2_198, %c5_199] : memref<4x8xf32, #tpu.memory_space<smem>>
    %254 = arith.mulf %0, %253 : f32
    %255 = vector.broadcast %254 : f32 to vector<32x512xf32>
    %256 = arith.mulf %255, %232 : vector<32x512xf32>
    %c2_200 = arith.constant 2 : index
    %c0_201 = arith.constant 0 : index
    %c0_202 = arith.constant 0 : index
    %257 = vector.load %arg7[%c2_200, %c0_201, %c0_202] : memref<4x32x512xf32, #tpu.memory_space<vmem>>, vector<1x32x512xf32>
    %258 = vector.shape_cast %257 : vector<1x32x512xf32> to vector<32x512xf32>
    %259 = arith.addf %258, %256 : vector<32x512xf32>
    %c2_203 = arith.constant 2 : index
    %c0_204 = arith.constant 0 : index
    %c0_205 = arith.constant 0 : index
    %260 = vector.load %arg7[%c2_203, %c0_204, %c0_205] : memref<4x32x512xf32, #tpu.memory_space<vmem>>, vector<1x32x512xf32>
    %261 = vector.shape_cast %260 : vector<1x32x512xf32> to vector<32x512xf32>
    %262 = vector.shape_cast %259 : vector<32x512xf32> to vector<1x32x512xf32>
    tpu.vector_store %arg7[%c2_203, %c0_204, %c0_205], %262 {strides = array<i32>} : memref<4x32x512xf32, #tpu.memory_space<vmem>>, vector<1x32x512xf32>,
    %c3_206 = arith.constant 3 : index
    %c5_207 = arith.constant 5 : index
    %263 = memref.load %arg1[%c3_206, %c5_207] : memref<4x8xf32, #tpu.memory_space<smem>>
    %264 = arith.mulf %0, %263 : f32
    %265 = vector.broadcast %264 : f32 to vector<32x512xf32>
    %266 = arith.mulf %265, %232 : vector<32x512xf32>
    %c3_208 = arith.constant 3 : index
    %c0_209 = arith.constant 0 : index
    %c0_210 = arith.constant 0 : index
    %267 = vector.load %arg7[%c3_208, %c0_209, %c0_210] : memref<4x32x512xf32, #tpu.memory_space<vmem>>, vector<1x32x512xf32>
    %268 = vector.shape_cast %267 : vector<1x32x512xf32> to vector<32x512xf32>
    %269 = arith.addf %268, %266 : vector<32x512xf32>
    %c3_211 = arith.constant 3 : index
    %c0_212 = arith.constant 0 : index
    %c0_213 = arith.constant 0 : index
    %270 = vector.load %arg7[%c3_211, %c0_212, %c0_213] : memref<4x32x512xf32, #tpu.memory_space<vmem>>, vector<1x32x512xf32>
    %271 = vector.shape_cast %270 : vector<1x32x512xf32> to vector<32x512xf32>
    %272 = vector.shape_cast %269 : vector<32x512xf32> to vector<1x32x512xf32>
    tpu.vector_store %arg7[%c3_211, %c0_212, %c0_213], %272 {strides = array<i32>} : memref<4x32x512xf32, #tpu.memory_space<vmem>>, vector<1x32x512xf32>,
    %c6 = arith.constant 6 : index
    %c0_214 = arith.constant 0 : index
    %c0_215 = arith.constant 0 : index
    %273 = vector.load %arg3[%c6, %c0_214, %c0_215] : memref<8x32x512xbf16, #tpu.memory_space<vmem>>, vector<1x32x512xbf16>
    %274 = vector.shape_cast %273 : vector<1x32x512xbf16> to vector<32x512xbf16>
    %cst_216 = arith.constant dense<0.000000e+00> : vector<32x512xf32>
    %275 = tpu.matmul %1, %274, %cst_216 {dimension_numbers = #tpu.dot_dimension_numbers<[1], [0], [0], [1], [0, 0, 1, 1], [], []>} : vector<32x32xbf16>, vector<32x512xbf16>, vector<32x512xf32> -> vector<32x512xf32>
    %276 = vector.broadcast %2 : vector<32x1xf32> to vector<32x512xf32>
    %277 = arith.addf %275, %276 : vector<32x512xf32>
    %c0_217 = arith.constant 0 : index
    %c6_218 = arith.constant 6 : index
    %278 = memref.load %arg1[%c0_217, %c6_218] : memref<4x8xf32, #tpu.memory_space<smem>>
    %279 = arith.mulf %0, %278 : f32
    %280 = vector.broadcast %279 : f32 to vector<32x512xf32>
    %281 = arith.mulf %280, %277 : vector<32x512xf32>
    %c0_219 = arith.constant 0 : index
    %c0_220 = arith.constant 0 : index
    %c0_221 = arith.constant 0 : index
    %282 = vector.load %arg7[%c0_219, %c0_220, %c0_221] : memref<4x32x512xf32, #tpu.memory_space<vmem>>, vector<1x32x512xf32>
    %283 = vector.shape_cast %282 : vector<1x32x512xf32> to vector<32x512xf32>
    %284 = arith.addf %283, %281 : vector<32x512xf32>
    %c0_222 = arith.constant 0 : index
    %c0_223 = arith.constant 0 : index
    %c0_224 = arith.constant 0 : index
    %285 = vector.load %arg7[%c0_222, %c0_223, %c0_224] : memref<4x32x512xf32, #tpu.memory_space<vmem>>, vector<1x32x512xf32>
    %286 = vector.shape_cast %285 : vector<1x32x512xf32> to vector<32x512xf32>
    %287 = vector.shape_cast %284 : vector<32x512xf32> to vector<1x32x512xf32>
    tpu.vector_store %arg7[%c0_222, %c0_223, %c0_224], %287 {strides = array<i32>} : memref<4x32x512xf32, #tpu.memory_space<vmem>>, vector<1x32x512xf32>,
    %c1_225 = arith.constant 1 : index
    %c6_226 = arith.constant 6 : index
    %288 = memref.load %arg1[%c1_225, %c6_226] : memref<4x8xf32, #tpu.memory_space<smem>>
    %289 = arith.mulf %0, %288 : f32
    %290 = vector.broadcast %289 : f32 to vector<32x512xf32>
    %291 = arith.mulf %290, %277 : vector<32x512xf32>
    %c1_227 = arith.constant 1 : index
    %c0_228 = arith.constant 0 : index
    %c0_229 = arith.constant 0 : index
    %292 = vector.load %arg7[%c1_227, %c0_228, %c0_229] : memref<4x32x512xf32, #tpu.memory_space<vmem>>, vector<1x32x512xf32>
    %293 = vector.shape_cast %292 : vector<1x32x512xf32> to vector<32x512xf32>
    %294 = arith.addf %293, %291 : vector<32x512xf32>
    %c1_230 = arith.constant 1 : index
    %c0_231 = arith.constant 0 : index
    %c0_232 = arith.constant 0 : index
    %295 = vector.load %arg7[%c1_230, %c0_231, %c0_232] : memref<4x32x512xf32, #tpu.memory_space<vmem>>, vector<1x32x512xf32>
    %296 = vector.shape_cast %295 : vector<1x32x512xf32> to vector<32x512xf32>
    %297 = vector.shape_cast %294 : vector<32x512xf32> to vector<1x32x512xf32>
    tpu.vector_store %arg7[%c1_230, %c0_231, %c0_232], %297 {strides = array<i32>} : memref<4x32x512xf32, #tpu.memory_space<vmem>>, vector<1x32x512xf32>,
    %c2_233 = arith.constant 2 : index
    %c6_234 = arith.constant 6 : index
    %298 = memref.load %arg1[%c2_233, %c6_234] : memref<4x8xf32, #tpu.memory_space<smem>>
    %299 = arith.mulf %0, %298 : f32
    %300 = vector.broadcast %299 : f32 to vector<32x512xf32>
    %301 = arith.mulf %300, %277 : vector<32x512xf32>
    %c2_235 = arith.constant 2 : index
    %c0_236 = arith.constant 0 : index
    %c0_237 = arith.constant 0 : index
    %302 = vector.load %arg7[%c2_235, %c0_236, %c0_237] : memref<4x32x512xf32, #tpu.memory_space<vmem>>, vector<1x32x512xf32>
    %303 = vector.shape_cast %302 : vector<1x32x512xf32> to vector<32x512xf32>
    %304 = arith.addf %303, %301 : vector<32x512xf32>
    %c2_238 = arith.constant 2 : index
    %c0_239 = arith.constant 0 : index
    %c0_240 = arith.constant 0 : index
    %305 = vector.load %arg7[%c2_238, %c0_239, %c0_240] : memref<4x32x512xf32, #tpu.memory_space<vmem>>, vector<1x32x512xf32>
    %306 = vector.shape_cast %305 : vector<1x32x512xf32> to vector<32x512xf32>
    %307 = vector.shape_cast %304 : vector<32x512xf32> to vector<1x32x512xf32>
    tpu.vector_store %arg7[%c2_238, %c0_239, %c0_240], %307 {strides = array<i32>} : memref<4x32x512xf32, #tpu.memory_space<vmem>>, vector<1x32x512xf32>,
    %c3_241 = arith.constant 3 : index
    %c6_242 = arith.constant 6 : index
    %308 = memref.load %arg1[%c3_241, %c6_242] : memref<4x8xf32, #tpu.memory_space<smem>>
    %309 = arith.mulf %0, %308 : f32
    %310 = vector.broadcast %309 : f32 to vector<32x512xf32>
    %311 = arith.mulf %310, %277 : vector<32x512xf32>
    %c3_243 = arith.constant 3 : index
    %c0_244 = arith.constant 0 : index
    %c0_245 = arith.constant 0 : index
    %312 = vector.load %arg7[%c3_243, %c0_244, %c0_245] : memref<4x32x512xf32, #tpu.memory_space<vmem>>, vector<1x32x512xf32>
    %313 = vector.shape_cast %312 : vector<1x32x512xf32> to vector<32x512xf32>
    %314 = arith.addf %313, %311 : vector<32x512xf32>
    %c3_246 = arith.constant 3 : index
    %c0_247 = arith.constant 0 : index
    %c0_248 = arith.constant 0 : index
    %315 = vector.load %arg7[%c3_246, %c0_247, %c0_248] : memref<4x32x512xf32, #tpu.memory_space<vmem>>, vector<1x32x512xf32>
    %316 = vector.shape_cast %315 : vector<1x32x512xf32> to vector<32x512xf32>
    %317 = vector.shape_cast %314 : vector<32x512xf32> to vector<1x32x512xf32>
    tpu.vector_store %arg7[%c3_246, %c0_247, %c0_248], %317 {strides = array<i32>} : memref<4x32x512xf32, #tpu.memory_space<vmem>>, vector<1x32x512xf32>,
    %c7 = arith.constant 7 : index
    %c0_249 = arith.constant 0 : index
    %c0_250 = arith.constant 0 : index
    %318 = vector.load %arg3[%c7, %c0_249, %c0_250] : memref<8x32x512xbf16, #tpu.memory_space<vmem>>, vector<1x32x512xbf16>
    %319 = vector.shape_cast %318 : vector<1x32x512xbf16> to vector<32x512xbf16>
    %cst_251 = arith.constant dense<0.000000e+00> : vector<32x512xf32>
    %320 = tpu.matmul %1, %319, %cst_251 {dimension_numbers = #tpu.dot_dimension_numbers<[1], [0], [0], [1], [0, 0, 1, 1], [], []>} : vector<32x32xbf16>, vector<32x512xbf16>, vector<32x512xf32> -> vector<32x512xf32>
    %321 = vector.broadcast %2 : vector<32x1xf32> to vector<32x512xf32>
    %322 = arith.addf %320, %321 : vector<32x512xf32>
    %c0_252 = arith.constant 0 : index
    %c7_253 = arith.constant 7 : index
    %323 = memref.load %arg1[%c0_252, %c7_253] : memref<4x8xf32, #tpu.memory_space<smem>>
    %324 = arith.mulf %0, %323 : f32
    %325 = vector.broadcast %324 : f32 to vector<32x512xf32>
    %326 = arith.mulf %325, %322 : vector<32x512xf32>
    %c0_254 = arith.constant 0 : index
    %c0_255 = arith.constant 0 : index
    %c0_256 = arith.constant 0 : index
    %327 = vector.load %arg7[%c0_254, %c0_255, %c0_256] : memref<4x32x512xf32, #tpu.memory_space<vmem>>, vector<1x32x512xf32>
    %328 = vector.shape_cast %327 : vector<1x32x512xf32> to vector<32x512xf32>
    %329 = arith.addf %328, %326 : vector<32x512xf32>
    %c0_257 = arith.constant 0 : index
    %c0_258 = arith.constant 0 : index
    %c0_259 = arith.constant 0 : index
    %330 = vector.load %arg7[%c0_257, %c0_258, %c0_259] : memref<4x32x512xf32, #tpu.memory_space<vmem>>, vector<1x32x512xf32>
    %331 = vector.shape_cast %330 : vector<1x32x512xf32> to vector<32x512xf32>
    %332 = vector.shape_cast %329 : vector<32x512xf32> to vector<1x32x512xf32>
    tpu.vector_store %arg7[%c0_257, %c0_258, %c0_259], %332 {strides = array<i32>} : memref<4x32x512xf32, #tpu.memory_space<vmem>>, vector<1x32x512xf32>,
    %c1_260 = arith.constant 1 : index
    %c7_261 = arith.constant 7 : index
    %333 = memref.load %arg1[%c1_260, %c7_261] : memref<4x8xf32, #tpu.memory_space<smem>>
    %334 = arith.mulf %0, %333 : f32
    %335 = vector.broadcast %334 : f32 to vector<32x512xf32>
    %336 = arith.mulf %335, %322 : vector<32x512xf32>
    %c1_262 = arith.constant 1 : index
    %c0_263 = arith.constant 0 : index
    %c0_264 = arith.constant 0 : index
    %337 = vector.load %arg7[%c1_262, %c0_263, %c0_264] : memref<4x32x512xf32, #tpu.memory_space<vmem>>, vector<1x32x512xf32>
    %338 = vector.shape_cast %337 : vector<1x32x512xf32> to vector<32x512xf32>
    %339 = arith.addf %338, %336 : vector<32x512xf32>
    %c1_265 = arith.constant 1 : index
    %c0_266 = arith.constant 0 : index
    %c0_267 = arith.constant 0 : index
    %340 = vector.load %arg7[%c1_265, %c0_266, %c0_267] : memref<4x32x512xf32, #tpu.memory_space<vmem>>, vector<1x32x512xf32>
    %341 = vector.shape_cast %340 : vector<1x32x512xf32> to vector<32x512xf32>
    %342 = vector.shape_cast %339 : vector<32x512xf32> to vector<1x32x512xf32>
    tpu.vector_store %arg7[%c1_265, %c0_266, %c0_267], %342 {strides = array<i32>} : memref<4x32x512xf32, #tpu.memory_space<vmem>>, vector<1x32x512xf32>,
    %c2_268 = arith.constant 2 : index
    %c7_269 = arith.constant 7 : index
    %343 = memref.load %arg1[%c2_268, %c7_269] : memref<4x8xf32, #tpu.memory_space<smem>>
    %344 = arith.mulf %0, %343 : f32
    %345 = vector.broadcast %344 : f32 to vector<32x512xf32>
    %346 = arith.mulf %345, %322 : vector<32x512xf32>
    %c2_270 = arith.constant 2 : index
    %c0_271 = arith.constant 0 : index
    %c0_272 = arith.constant 0 : index
    %347 = vector.load %arg7[%c2_270, %c0_271, %c0_272] : memref<4x32x512xf32, #tpu.memory_space<vmem>>, vector<1x32x512xf32>
    %348 = vector.shape_cast %347 : vector<1x32x512xf32> to vector<32x512xf32>
    %349 = arith.addf %348, %346 : vector<32x512xf32>
    %c2_273 = arith.constant 2 : index
    %c0_274 = arith.constant 0 : index
    %c0_275 = arith.constant 0 : index
    %350 = vector.load %arg7[%c2_273, %c0_274, %c0_275] : memref<4x32x512xf32, #tpu.memory_space<vmem>>, vector<1x32x512xf32>
    %351 = vector.shape_cast %350 : vector<1x32x512xf32> to vector<32x512xf32>
    %352 = vector.shape_cast %349 : vector<32x512xf32> to vector<1x32x512xf32>
    tpu.vector_store %arg7[%c2_273, %c0_274, %c0_275], %352 {strides = array<i32>} : memref<4x32x512xf32, #tpu.memory_space<vmem>>, vector<1x32x512xf32>,
    %c3_276 = arith.constant 3 : index
    %c7_277 = arith.constant 7 : index
    %353 = memref.load %arg1[%c3_276, %c7_277] : memref<4x8xf32, #tpu.memory_space<smem>>
    %354 = arith.mulf %0, %353 : f32
    %355 = vector.broadcast %354 : f32 to vector<32x512xf32>
    %356 = arith.mulf %355, %322 : vector<32x512xf32>
    %c3_278 = arith.constant 3 : index
    %c0_279 = arith.constant 0 : index
    %c0_280 = arith.constant 0 : index
    %357 = vector.load %arg7[%c3_278, %c0_279, %c0_280] : memref<4x32x512xf32, #tpu.memory_space<vmem>>, vector<1x32x512xf32>
    %358 = vector.shape_cast %357 : vector<1x32x512xf32> to vector<32x512xf32>
    %359 = arith.addf %358, %356 : vector<32x512xf32>
    %c3_281 = arith.constant 3 : index
    %c0_282 = arith.constant 0 : index
    %c0_283 = arith.constant 0 : index
    %360 = vector.load %arg7[%c3_281, %c0_282, %c0_283] : memref<4x32x512xf32, #tpu.memory_space<vmem>>, vector<1x32x512xf32>
    %361 = vector.shape_cast %360 : vector<1x32x512xf32> to vector<32x512xf32>
    %362 = vector.shape_cast %359 : vector<32x512xf32> to vector<1x32x512xf32>
    tpu.vector_store %arg7[%c3_281, %c0_282, %c0_283], %362 {strides = array<i32>} : memref<4x32x512xf32, #tpu.memory_space<vmem>>, vector<1x32x512xf32>,
    return
  }
  func.func @transform_0(%arg0: i32) -> (i32, i32) {
    %c0_i32 = arith.constant 0 : i32
    %c0_i32_0 = arith.constant 0 : i32
    %c0_i32_1 = arith.constant 0 : i32
    return %c0_i32, %c0_i32_0 : i32, i32
  }
  func.func @transform_1(%arg0: i32) -> i32 {
    %c0_i32 = arith.constant 0 : i32
    %c0_i32_0 = arith.constant 0 : i32
    return %c0_i32 : i32
  }
  func.func @transform_2(%arg0: i32) -> (i32, i32, i32) {
    %c0_i32 = arith.constant 0 : i32
    %c0_i32_0 = arith.constant 0 : i32
    %c0_i32_1 = arith.constant 0 : i32
    return %c0_i32, %c0_i32_0, %arg0 : i32, i32, i32
  }
  func.func @transform_3(%arg0: i32) -> (i32, i32, i32) {
    %c0_i32 = arith.constant 0 : i32
    %c0_i32_0 = arith.constant 0 : i32
    %c0_i32_1 = arith.constant 0 : i32
    return %c0_i32, %c0_i32_0, %arg0 : i32, i32, i32
  }
  func.func @transform_4(%arg0: i32) -> (i32, i32) {
    %c0_i32 = arith.constant 0 : i32
    %c0_i32_0 = arith.constant 0 : i32
    %c0_i32_1 = arith.constant 0 : i32
    return %c0_i32, %c0_i32_0 : i32, i32
  }
  func.func @transform_5(%arg0: i32) -> (i32, i32) {
    %c0_i32 = arith.constant 0 : i32
    %c0_i32_0 = arith.constant 0 : i32
    %c0_i32_1 = arith.constant 0 : i32
    return %c0_i32, %c0_i32_0 : i32, i32
  }
  func.func @transform_6(%arg0: i32) -> (i32, i32, i32) {
    %c0_i32 = arith.constant 0 : i32
    %c0_i32_0 = arith.constant 0 : i32
    %c0_i32_1 = arith.constant 0 : i32
    return %c0_i32, %c0_i32_0, %arg0 : i32, i32, i32
  }
}

</mosaic_0001>

<llo_original>
// kernel: self_attn_forward.2
$region0: #{self_attn_forward.2}
  #allocation0 [shape = 'u32[]', space=smem, size = 0x4, offset = 0x4, fixed_abs, tag = 'smem constant byte address 0x4 - core index']
  #allocation1 [shape = 'u32[72,128]{1,0:T(1,128)}', space=vmem, size = 0x9000, scoped, tag = 'internal scratch']
  #allocation2 [shape = 'f32[4,8]{1,0:T(4,128)}', space=vmem, size = 0x800, scoped, tag = 'scratch operand']
  %s0 = inlined_call_operand.vmem [shape: bf16[8,32,1024], index: 0, kind: input, shape index: {}]
  %s1 = inlined_call_operand.vmem [shape: f32[4,32,1024], index: 1, kind: input, shape index: {}]
  %s2 = inlined_call_operand.vmem [shape: bf16[8,32], index: 2, kind: input, shape index: {}]
  %s3 = inlined_call_operand.vmem [shape: f32[8,1], index: 3, kind: input, shape index: {}]
  %s4 = inlined_call_operand.vmem [shape: bf16[8,32], index: 4, kind: input, shape index: {}]
  %s5 = inlined_call_operand.vmem [shape: f32[8,1], index: 5, kind: input, shape index: {}]
  %s6 = inlined_call_operand.vmem [shape: f32[4,8], index: 6, kind: output, shape index: {}]
  %s7 = sld [smem:[#allocation0]]
  $region111: #{self_attn_forward.2} parent=0
    _
  %s9 = ssub.s32 1, %s7
  %s10 = scalar_select 0, %s9, %s7
  $region1: #{self_attn_forward.2} parent=0
    #allocation3 [shape = 'u8[524288]{0}', space=vmem, size = 0x80000, scoped, tag = 'input window, operand 0']
    #allocation4 [shape = 'u8[524288]{0}', space=vmem, size = 0x80000, scoped, tag = 'input window, operand 1']
    loop: start=0, step=1, limit=4
    $region2: #{self_attn_forward.2} parent=1 // loop_pre_header
      _
    $region3: #{self_attn_forward.2} parent=1 // loop_header
      %s12 = sphi 0, %s16
      %p13 = scmp.ge.s32.totalorder %s12, 4
      %s22 = sphi 0, %s24
      %s25 = sphi 0, %s22
      %s26 = sphi 0, %s25
      %s42 = sphi 0, %s26
      %s48 = sphi 0, %s50
      %s51 = sphi 0, %s48
      %s52 = sphi 0, %s51
      %s68 = sphi 0, %s52
      %s72 = sphi 0, %s72
      %s74 = sphi 0, %s72
      %s75 = sphi 0, %s74
      %s89 = sphi 0, %s75
      %s93 = sphi 0, %s93
      %s95 = sphi 0, %s93
      %s96 = sphi 0, %s95
      %s110 = sphi 0, %s96
      %s114 = sphi 0, %s114
      %s116 = sphi 0, %s114
      %s117 = sphi 0, %s116
      %s131 = sphi 0, %s117
      %s135 = sphi 0, %s135
      %s137 = sphi 0, %s135
      %s138 = sphi 0, %s137
      %s152 = sphi 0, %s138
      %s156 = sphi 0, %s156
      %s158 = sphi 0, %s156
      %s159 = sphi 0, %s158
      %s173 = sphi 0, %s159
    $region4: #{self_attn_forward.2} parent=1 // loop_header_branch
      %15 = sbr.rel (%p13) target = $region8
    $region5: #{self_attn_forward.2} parent=1 // loop_body
      %s17 = ssub.s32 %s12, 1
      %s18 = ssub.s32 %s12, 2
      %s19 = sadd.s32 %s12, 1
      %s20 = ssub.s32 %s12, %s19
      %p21 = scmp.eq.s32.totalorder %s20, 0
      %s23 = sadd.s32 %s22, 1
      %s24 = scalar_select %p21, %s22, %s23
      %p27 = pneg %p21
      %p28 = scmp.eq.s32.totalorder %s12, 1
      %p29 = por %p27, %p28
      %p30 = scmp.ne.s32.totalorder %s22, %s25
      %p31 = scmp.eq.s32.totalorder %s12, 0
      %p32 = por %p30, %p31
      %p33 = scmp.ne.s32.totalorder %s22, %s25
      %p34 = scmp.eq.s32.totalorder %s17, 1
      %p35 = por %p33, %p34
      %p36 = scmp.ne.s32.totalorder %s25, %s26
      %p37 = scmp.eq.s32.totalorder %s17, 0
      %p38 = por %p36, %p37
      %p39 = scmp.ne.s32.totalorder %s25, %s26
      %p40 = scmp.eq.s32.totalorder %s18, 1
      %p41 = por %p39, %p40
      %p43 = scmp.ne.s32.totalorder %s26, %s42
      %p44 = scmp.eq.s32.totalorder %s18, 0
      %p45 = por %p43, %p44
      %s46 = ssub.s32 %s12, %s19
      %p47 = scmp.eq.s32.totalorder %s46, 0
      %s49 = sadd.s32 %s48, 1
      %s50 = scalar_select %p47, %s48, %s49
      %p53 = pneg %p47
      %p54 = scmp.eq.s32.totalorder %s12, 1
      %p55 = por %p53, %p54
      %p56 = scmp.ne.s32.totalorder %s48, %s51
      %p57 = scmp.eq.s32.totalorder %s12, 0
      %p58 = por %p56, %p57
      %p59 = scmp.ne.s32.totalorder %s48, %s51
      %p60 = scmp.eq.s32.totalorder %s17, 1
      %p61 = por %p59, %p60
      %p62 = scmp.ne.s32.totalorder %s51, %s52
      %p63 = scmp.eq.s32.totalorder %s17, 0
      %p64 = por %p62, %p63
      %p65 = scmp.ne.s32.totalorder %s51, %s52
      %p66 = scmp.eq.s32.totalorder %s18, 1
      %p67 = por %p65, %p66
      %p69 = scmp.ne.s32.totalorder %s52, %s68
      %p70 = scmp.eq.s32.totalorder %s18, 0
      %p71 = por %p69, %p70
      %s73 = sadd.s32 %s72, 1
      %p76 = scmp.eq.s32.totalorder %s12, 1
      %p77 = scmp.ne.s32.totalorder %s72, %s74
      %p78 = scmp.eq.s32.totalorder %s12, 0
      %p79 = por %p77, %p78
      %p80 = scmp.ne.s32.totalorder %s72, %s74
      %p81 = scmp.eq.s32.totalorder %s17, 1
      %p82 = por %p80, %p81
      %p83 = scmp.ne.s32.totalorder %s74, %s75
      %p84 = scmp.eq.s32.totalorder %s17, 0
      %p85 = por %p83, %p84
      %p86 = scmp.ne.s32.totalorder %s74, %s75
      %p87 = scmp.eq.s32.totalorder %s18, 1
      %p88 = por %p86, %p87
      %p90 = scmp.ne.s32.totalorder %s75, %s89
      %p91 = scmp.eq.s32.totalorder %s18, 0
      %p92 = por %p90, %p91
      %s94 = sadd.s32 %s93, 1
      %p97 = scmp.eq.s32.totalorder %s12, 1
      %p98 = scmp.ne.s32.totalorder %s93, %s95
      %p99 = scmp.eq.s32.totalorder %s12, 0
      %p100 = por %p98, %p99
      %p101 = scmp.ne.s32.totalorder %s93, %s95
      %p102 = scmp.eq.s32.totalorder %s17, 1
      %p103 = por %p101, %p102
      %p104 = scmp.ne.s32.totalorder %s95, %s96
      %p105 = scmp.eq.s32.totalorder %s17, 0
      %p106 = por %p104, %p105
      %p107 = scmp.ne.s32.totalorder %s95, %s96
      %p108 = scmp.eq.s32.totalorder %s18, 1
      %p109 = por %p107, %p108
      %p111 = scmp.ne.s32.totalorder %s96, %s110
      %p112 = scmp.eq.s32.totalorder %s18, 0
      %p113 = por %p111, %p112
      %s115 = sadd.s32 %s114, 1
      %p118 = scmp.eq.s32.totalorder %s12, 1
      %p119 = scmp.ne.s32.totalorder %s114, %s116
      %p120 = scmp.eq.s32.totalorder %s12, 0
      %p121 = por %p119, %p120
      %p122 = scmp.ne.s32.totalorder %s114, %s116
      %p123 = scmp.eq.s32.totalorder %s17, 1
      %p124 = por %p122, %p123
      %p125 = scmp.ne.s32.totalorder %s116, %s117
      %p126 = scmp.eq.s32.totalorder %s17, 0
      %p127 = por %p125, %p126
      %p128 = scmp.ne.s32.totalorder %s116, %s117
      %p129 = scmp.eq.s32.totalorder %s18, 1
      %p130 = por %p128, %p129
      %p132 = scmp.ne.s32.totalorder %s117, %s131
      %p133 = scmp.eq.s32.totalorder %s18, 0
      %p134 = por %p132, %p133
      %s136 = sadd.s32 %s135, 1
      %p139 = scmp.eq.s32.totalorder %s12, 1
      %p140 = scmp.ne.s32.totalorder %s135, %s137
      %p141 = scmp.eq.s32.totalorder %s12, 0
      %p142 = por %p140, %p141
      %p143 = scmp.ne.s32.totalorder %s135, %s137
      %p144 = scmp.eq.s32.totalorder %s17, 1
      %p145 = por %p143, %p144
      %p146 = scmp.ne.s32.totalorder %s137, %s138
      %p147 = scmp.eq.s32.totalorder %s17, 0
      %p148 = por %p146, %p147
      %p149 = scmp.ne.s32.totalorder %s137, %s138
      %p150 = scmp.eq.s32.totalorder %s18, 1
      %p151 = por %p149, %p150
      %p153 = scmp.ne.s32.totalorder %s138, %s152
      %p154 = scmp.eq.s32.totalorder %s18, 0
      %p155 = por %p153, %p154
      %s157 = sadd.s32 %s156, 1
      %p160 = scmp.eq.s32.totalorder %s12, 1
      %p161 = scmp.ne.s32.totalorder %s156, %s158
      %p162 = scmp.eq.s32.totalorder %s12, 0
      %p163 = por %p161, %p162
      %p164 = scmp.ne.s32.totalorder %s156, %s158
      %p165 = scmp.eq.s32.totalorder %s17, 1
      %p166 = por %p164, %p165
      %p167 = scmp.ne.s32.totalorder %s158, %s159
      %p168 = scmp.eq.s32.totalorder %s17, 0
      %p169 = por %p167, %p168
      %p170 = scmp.ne.s32.totalorder %s158, %s159
      %p171 = scmp.eq.s32.totalorder %s18, 1
      %p172 = por %p170, %p171
      %p174 = scmp.ne.s32.totalorder %s159, %s173
      %p175 = scmp.eq.s32.totalorder %s18, 0
      %p176 = por %p174, %p175
      %p177 = scmp.le.s32.totalorder 1, %s12
      %p178 = scmp.lt.s32.totalorder %s12, 3
      %p179 = pnand %p177, %p178
      %p180 = pneg %p179
      // Predicated region
      $region9: #{self_attn_forward.2} parent=5 // pred_check
        _
      $region10: #{self_attn_forward.2} parent=5 // pred_check_branch
        %182 = sbr.rel (%p179) target = $region12
      $region11: #{self_attn_forward.2} parent=5 // pred_region
        %s183 = ssub.s32 %s12, 1
        // Predicated region
        $region13: #{self_attn_forward.2} parent=11 // pred_check
          %p184 = pneg %p85
        $region14: #{self_attn_forward.2} parent=11 // pred_check_branch
          %186 = sbr.rel (%p184) target = $region16
        $region15: #{self_attn_forward.2} parent=11 // pred_region
          _
        $region16: #{self_attn_forward.2} parent=11 // pred_fallthru
          _
        // Predicated region
        $region17: #{self_attn_forward.2} parent=11 // pred_check
          %p187 = pneg %p106
        $region18: #{self_attn_forward.2} parent=11 // pred_check_branch
          %189 = sbr.rel (%p187) target = $region20
        $region19: #{self_attn_forward.2} parent=11 // pred_region
          _
        $region20: #{self_attn_forward.2} parent=11 // pred_fallthru
          _
        // Predicated region
        $region21: #{self_attn_forward.2} parent=11 // pred_check
          %p190 = pneg %p127
        $region22: #{self_attn_forward.2} parent=11 // pred_check_branch
          %192 = sbr.rel (%p190) target = $region24
        $region23: #{self_attn_forward.2} parent=11 // pred_region
          _
        $region24: #{self_attn_forward.2} parent=11 // pred_fallthru
          _
        // Predicated region
        $region25: #{self_attn_forward.2} parent=11 // pred_check
          %p193 = pneg %p148
        $region26: #{self_attn_forward.2} parent=11 // pred_check_branch
          %195 = sbr.rel (%p193) target = $region28
        $region27: #{self_attn_forward.2} parent=11 // pred_region
          _
        $region28: #{self_attn_forward.2} parent=11 // pred_fallthru
          _
      $region12: #{self_attn_forward.2} parent=5 // pred_fallthru
        _
      %p196 = scmp.lt.s32.totalorder %s12, 2
      // Predicated region
      $region29: #{self_attn_forward.2} parent=5 // pred_check
        %p197 = pneg %p196
      $region30: #{self_attn_forward.2} parent=5 // pred_check_branch
        %199 = sbr.rel (%p197) target = $region32
      $region31: #{self_attn_forward.2} parent=5 // pred_region
        // Predicated region
        $region33: #{self_attn_forward.2} parent=31 // pred_check
          %p200 = pneg %p32
        $region34: #{self_attn_forward.2} parent=31 // pred_check_branch
          %202 = sbr.rel (%p200) target = $region36
        $region35: #{self_attn_forward.2} parent=31 // pred_region
          %s203 = sand.u32 %s22, 1
          %s204 = sand.u32 %s22, 1
          %s205 = smul.addr %s204, 512
          %s206 = scalar_lea.vmem [#allocation3], %s205
          %s207 = smul.u32 4, %s12
          %s208 = smul.addr %s207, 4
          %s209 = scalar_lea.vmem %s0, %s208
          // Predicated region
          $region37: #{self_attn_forward.2} parent=35 // pred_check
            _
          $region38: #{self_attn_forward.2} parent=35 // pred_check_branch
            %211 = sbr.rel (0) target = $region40
          $region39: #{self_attn_forward.2} parent=35 // pred_region
            // Predicated region
            $region41: #{self_attn_forward.2} parent=39 // pred_check
              _
            $region42: #{self_attn_forward.2} parent=39 // pred_check_branch
              %213 = sbr.rel (0) target = $region44
            $region43: #{self_attn_forward.2} parent=39 // pred_region
              loop: start=0, step=1, limit=1
              $region45: #{self_attn_forward.2} parent=43 // loop_pre_header
                _
              $region46: #{self_attn_forward.2} parent=43 // loop_header
                %s215 = sphi 0, %s219
                %p216 = scmp.ge.s32.totalorder %s215, 1
                %s220 = sphi %s209, %s209
                %s221 = sphi %s206, %s206
              $region47: #{self_attn_forward.2} parent=43 // loop_header_branch
                %218 = sbr.rel (%p216) target = $region51
              $region48: #{self_attn_forward.2} parent=43 // loop_body
                %v222 = vld [vmem:[%s220] sm:$0xff]
                %223 = vst [vmem:[%s221] sm:$0xff] %v222
                %v224 = vld [vmem:[%s220 + $0x8] sm:$0xff]
                %225 = vst [vmem:[%s221 + $0x8] sm:$0xff] %v224
                %v226 = vld [vmem:[%s220 + $0x20] sm:$0xff]
                %227 = vst [vmem:[%s221 + $0x10] sm:$0xff] %v226
                %v228 = vld [vmem:[%s220 + $0x28] sm:$0xff]
                %229 = vst [vmem:[%s221 + $0x18] sm:$0xff] %v228
                %v230 = vld [vmem:[%s220 + $0x40] sm:$0xff]
                %231 = vst [vmem:[%s221 + $0x20] sm:$0xff] %v230
                %v232 = vld [vmem:[%s220 + $0x48] sm:$0xff]
                %233 = vst [vmem:[%s221 + $0x28] sm:$0xff] %v232
                %v234 = vld [vmem:[%s220 + $0x60] sm:$0xff]
                %235 = vst [vmem:[%s221 + $0x30] sm:$0xff] %v234
                %v236 = vld [vmem:[%s220 + $0x68] sm:$0xff]
                %237 = vst [vmem:[%s221 + $0x38] sm:$0xff] %v236
                %v238 = vld [vmem:[%s220 + $0x80] sm:$0xff]
                %239 = vst [vmem:[%s221 + $0x40] sm:$0xff] %v238
                %v240 = vld [vmem:[%s220 + $0x88] sm:$0xff]
                %241 = vst [vmem:[%s221 + $0x48] sm:$0xff] %v240
                %v242 = vld [vmem:[%s220 + $0xa0] sm:$0xff]
                %243 = vst [vmem:[%s221 + $0x50] sm:$0xff] %v242
                %v244 = vld [vmem:[%s220 + $0xa8] sm:$0xff]
                %245 = vst [vmem:[%s221 + $0x58] sm:$0xff] %v244
                %v246 = vld [vmem:[%s220 + $0xc0] sm:$0xff]
                %247 = vst [vmem:[%s221 + $0x60] sm:$0xff] %v246
                %v248 = vld [vmem:[%s220 + $0xc8] sm:$0xff]
                %249 = vst [vmem:[%s221 + $0x68] sm:$0xff] %v248
                %v250 = vld [vmem:[%s220 + $0xe0] sm:$0xff]
                %251 = vst [vmem:[%s221 + $0x70] sm:$0xff] %v250
                %v252 = vld [vmem:[%s220 + $0xe8] sm:$0xff]
                %253 = vst [vmem:[%s221 + $0x78] sm:$0xff] %v252
                %v254 = vld [vmem:[%s220 + $0x100] sm:$0xff]
                %255 = vst [vmem:[%s221 + $0x80] sm:$0xff] %v254
                %v256 = vld [vmem:[%s220 + $0x108] sm:$0xff]
                %257 = vst [vmem:[%s221 + $0x88] sm:$0xff] %v256
                %v258 = vld [vmem:[%s220 + $0x120] sm:$0xff]
                %259 = vst [vmem:[%s221 + $0x90] sm:$0xff] %v258
                %v260 = vld [vmem:[%s220 + $0x128] sm:$0xff]
                %261 = vst [vmem:[%s221 + $0x98] sm:$0xff] %v260
                %v262 = vld [vmem:[%s220 + $0x140] sm:$0xff]
                %263 = vst [vmem:[%s221 + $0xa0] sm:$0xff] %v262
                %v264 = vld [vmem:[%s220 + $0x148] sm:$0xff]
                %265 = vst [vmem:[%s221 + $0xa8] sm:$0xff] %v264
                %v266 = vld [vmem:[%s220 + $0x160] sm:$0xff]
                %267 = vst [vmem:[%s221 + $0xb0] sm:$0xff] %v266
                %v268 = vld [vmem:[%s220 + $0x168] sm:$0xff]
                %269 = vst [vmem:[%s221 + $0xb8] sm:$0xff] %v268
                %v270 = vld [vmem:[%s220 + $0x180] sm:$0xff]
                %271 = vst [vmem:[%s221 + $0xc0] sm:$0xff] %v270
                %v272 = vld [vmem:[%s220 + $0x188] sm:$0xff]
                %273 = vst [vmem:[%s221 + $0xc8] sm:$0xff] %v272
                %v274 = vld [vmem:[%s220 + $0x1a0] sm:$0xff]
                %275 = vst [vmem:[%s221 + $0xd0] sm:$0xff] %v274
                %v276 = vld [vmem:[%s220 + $0x1a8] sm:$0xff]
                %277 = vst [vmem:[%s221 + $0xd8] sm:$0xff] %v276
                %v278 = vld [vmem:[%s220 + $0x1c0] sm:$0xff]
                %279 = vst [vmem:[%s221 + $0xe0] sm:$0xff] %v278
                %v280 = vld [vmem:[%s220 + $0x1c8] sm:$0xff]
                %281 = vst [vmem:[%s221 + $0xe8] sm:$0xff] %v280
                %v282 = vld [vmem:[%s220 + $0x1e0] sm:$0xff]
                %283 = vst [vmem:[%s221 + $0xf0] sm:$0xff] %v282
                %v284 = vld [vmem:[%s220 + $0x1e8] sm:$0xff]
                %285 = vst [vmem:[%s221 + $0xf8] sm:$0xff] %v284
                %v286 = vld [vmem:[%s220 + $0x200] sm:$0xff]
                %287 = vst [vmem:[%s221 + $0x100] sm:$0xff] %v286
                %v288 = vld [vmem:[%s220 + $0x208] sm:$0xff]
                %289 = vst [vmem:[%s221 + $0x108] sm:$0xff] %v288
                %v290 = vld [vmem:[%s220 + $0x220] sm:$0xff]
                %291 = vst [vmem:[%s221 + $0x110] sm:$0xff] %v290
                %v292 = vld [vmem:[%s220 + $0x228] sm:$0xff]
                %293 = vst [vmem:[%s221 + $0x118] sm:$0xff] %v292
                %v294 = vld [vmem:[%s220 + $0x240] sm:$0xff]
                %295 = vst [vmem:[%s221 + $0x120] sm:$0xff] %v294
                %v296 = vld [vmem:[%s220 + $0x248] sm:$0xff]
                %297 = vst [vmem:[%s221 + $0x128] sm:$0xff] %v296
                %v298 = vld [vmem:[%s220 + $0x260] sm:$0xff]
                %299 = vst [vmem:[%s221 + $0x130] sm:$0xff] %v298
                %v300 = vld [vmem:[%s220 + $0x268] sm:$0xff]
                %301 = vst [vmem:[%s221 + $0x138] sm:$0xff] %v300
                %v302 = vld [vmem:[%s220 + $0x280] sm:$0xff]
                %303 = vst [vmem:[%s221 + $0x140] sm:$0xff] %v302
                %v304 = vld [vmem:[%s220 + $0x288] sm:$0xff]
                %305 = vst [vmem:[%s221 + $0x148] sm:$0xff] %v304
                %v306 = vld [vmem:[%s220 + $0x2a0] sm:$0xff]
                %307 = vst [vmem:[%s221 + $0x150] sm:$0xff] %v306
                %v308 = vld [vmem:[%s220 + $0x2a8] sm:$0xff]
                %309 = vst [vmem:[%s221 + $0x158] sm:$0xff] %v308
                %v310 = vld [vmem:[%s220 + $0x2c0] sm:$0xff]
                %311 = vst [vmem:[%s221 + $0x160] sm:$0xff] %v310
                %v312 = vld [vmem:[%s220 + $0x2c8] sm:$0xff]
                %313 = vst [vmem:[%s221 + $0x168] sm:$0xff] %v312
                %v314 = vld [vmem:[%s220 + $0x2e0] sm:$0xff]
                %315 = vst [vmem:[%s221 + $0x170] sm:$0xff] %v314
                %v316 = vld [vmem:[%s220 + $0x2e8] sm:$0xff]
                %317 = vst [vmem:[%s221 + $0x178] sm:$0xff] %v316
                %v318 = vld [vmem:[%s220 + $0x300] sm:$0xff]
                %319 = vst [vmem:[%s221 + $0x180] sm:$0xff] %v318
                %v320 = vld [vmem:[%s220 + $0x308] sm:$0xff]
                %321 = vst [vmem:[%s221 + $0x188] sm:$0xff] %v320
                %v322 = vld [vmem:[%s220 + $0x320] sm:$0xff]
                %323 = vst [vmem:[%s221 + $0x190] sm:$0xff] %v322
                %v324 = vld [vmem:[%s220 + $0x328] sm:$0xff]
                %325 = vst [vmem:[%s221 + $0x198] sm:$0xff] %v324
                %v326 = vld [vmem:[%s220 + $0x340] sm:$0xff]
                %327 = vst [vmem:[%s221 + $0x1a0] sm:$0xff] %v326
                %v328 = vld [vmem:[%s220 + $0x348] sm:$0xff]
                %329 = vst [vmem:[%s221 + $0x1a8] sm:$0xff] %v328
                %v330 = vld [vmem:[%s220 + $0x360] sm:$0xff]
                %331 = vst [vmem:[%s221 + $0x1b0] sm:$0xff] %v330
                %v332 = vld [vmem:[%s220 + $0x368] sm:$0xff]
                %333 = vst [vmem:[%s221 + $0x1b8] sm:$0xff] %v332
                %v334 = vld [vmem:[%s220 + $0x380] sm:$0xff]
                %335 = vst [vmem:[%s221 + $0x1c0] sm:$0xff] %v334
                %v336 = vld [vmem:[%s220 + $0x388] sm:$0xff]
                %337 = vst [vmem:[%s221 + $0x1c8] sm:$0xff] %v336
                %v338 = vld [vmem:[%s220 + $0x3a0] sm:$0xff]
                %339 = vst [vmem:[%s221 + $0x1d0] sm:$0xff] %v338
                %v340 = vld [vmem:[%s220 + $0x3a8] sm:$0xff]
                %341 = vst [vmem:[%s221 + $0x1d8] sm:$0xff] %v340
                %v342 = vld [vmem:[%s220 + $0x3c0] sm:$0xff]
                %343 = vst [vmem:[%s221 + $0x1e0] sm:$0xff] %v342
                %v344 = vld [vmem:[%s220 + $0x3c8] sm:$0xff]
                %345 = vst [vmem:[%s221 + $0x1e8] sm:$0xff] %v344
                %v346 = vld [vmem:[%s220 + $0x3e0] sm:$0xff]
                %347 = vst [vmem:[%s221 + $0x1f0] sm:$0xff] %v346
                %v348 = vld [vmem:[%s220 + $0x3e8] sm:$0xff]
                %349 = vst [vmem:[%s221 + $0x1f8] sm:$0xff] %v348
              $region49: #{self_attn_forward.2} parent=43 // loop_footer
                %s219 = sadd.s32 1, %s215
              $region50: #{self_attn_forward.2} parent=43 // loop_footer_branch
                %214 = sbr.rel target = $region46
              $region51: #{self_attn_forward.2} parent=43 // loop_exit
                _
            $region44: #{self_attn_forward.2} parent=39 // pred_fallthru
              _
            // Predicated region
            $region52: #{self_attn_forward.2} parent=39 // pred_check
              _
            $region53: #{self_attn_forward.2} parent=39 // pred_check_branch
              %351 = sbr.rel target = $region55
            $region54: #{self_attn_forward.2} parent=39 // pred_region
              _
            $region55: #{self_attn_forward.2} parent=39 // pred_fallthru
              _
          $region40: #{self_attn_forward.2} parent=35 // pred_fallthru
            _
          %352 = vnop
        $region36: #{self_attn_forward.2} parent=31 // pred_fallthru
          _
        // Predicated region
        $region56: #{self_attn_forward.2} parent=31 // pred_check
          %p353 = pneg %p58
        $region57: #{self_attn_forward.2} parent=31 // pred_check_branch
          %355 = sbr.rel (%p353) target = $region59
        $region58: #{self_attn_forward.2} parent=31 // pred_region
          %s356 = sand.u32 %s48, 1
          %s357 = sand.u32 %s48, 1
          %s358 = smul.addr %s357, 512
          %s359 = scalar_lea.vmem [#allocation4], %s358
          %s360 = smul.u32 4, %s12
          %s361 = smul.addr %s360, 8
          %s362 = scalar_lea.vmem %s1, %s361
          // Predicated region
          $region60: #{self_attn_forward.2} parent=58 // pred_check
            _
          $region61: #{self_attn_forward.2} parent=58 // pred_check_branch
            %364 = sbr.rel (0) target = $region63
          $region62: #{self_attn_forward.2} parent=58 // pred_region
            // Predicated region
            $region64: #{self_attn_forward.2} parent=62 // pred_check
              _
            $region65: #{self_attn_forward.2} parent=62 // pred_check_branch
              %366 = sbr.rel (0) target = $region67
            $region66: #{self_attn_forward.2} parent=62 // pred_region
              loop: start=0, step=1, limit=1
              $region68: #{self_attn_forward.2} parent=66 // loop_pre_header
                _
              $region69: #{self_attn_forward.2} parent=66 // loop_header
                %s368 = sphi 0, %s372
                %p369 = scmp.ge.s32.totalorder %s368, 1
                %s373 = sphi %s362, %s362
                %s374 = sphi %s359, %s359
              $region70: #{self_attn_forward.2} parent=66 // loop_header_branch
                %371 = sbr.rel (%p369) target = $region74
              $region71: #{self_attn_forward.2} parent=66 // loop_body
                %v375 = vld [vmem:[%s373] sm:$0xff]
                %376 = vst [vmem:[%s374] sm:$0xff] %v375
                %v377 = vld [vmem:[%s373 + $0x8] sm:$0xff]
                %378 = vst [vmem:[%s374 + $0x8] sm:$0xff] %v377
                %v379 = vld [vmem:[%s373 + $0x10] sm:$0xff]
                %380 = vst [vmem:[%s374 + $0x10] sm:$0xff] %v379
                %v381 = vld [vmem:[%s373 + $0x18] sm:$0xff]
                %382 = vst [vmem:[%s374 + $0x18] sm:$0xff] %v381
                %v383 = vld [vmem:[%s373 + $0x40] sm:$0xff]
                %384 = vst [vmem:[%s374 + $0x20] sm:$0xff] %v383
                %v385 = vld [vmem:[%s373 + $0x48] sm:$0xff]
                %386 = vst [vmem:[%s374 + $0x28] sm:$0xff] %v385
                %v387 = vld [vmem:[%s373 + $0x50] sm:$0xff]
                %388 = vst [vmem:[%s374 + $0x30] sm:$0xff] %v387
                %v389 = vld [vmem:[%s373 + $0x58] sm:$0xff]
                %390 = vst [vmem:[%s374 + $0x38] sm:$0xff] %v389
                %v391 = vld [vmem:[%s373 + $0x80] sm:$0xff]
                %392 = vst [vmem:[%s374 + $0x40] sm:$0xff] %v391
                %v393 = vld [vmem:[%s373 + $0x88] sm:$0xff]
                %394 = vst [vmem:[%s374 + $0x48] sm:$0xff] %v393
                %v395 = vld [vmem:[%s373 + $0x90] sm:$0xff]
                %396 = vst [vmem:[%s374 + $0x50] sm:$0xff] %v395
                %v397 = vld [vmem:[%s373 + $0x98] sm:$0xff]
                %398 = vst [vmem:[%s374 + $0x58] sm:$0xff] %v397
                %v399 = vld [vmem:[%s373 + $0xc0] sm:$0xff]
                %400 = vst [vmem:[%s374 + $0x60] sm:$0xff] %v399
                %v401 = vld [vmem:[%s373 + $0xc8] sm:$0xff]
                %402 = vst [vmem:[%s374 + $0x68] sm:$0xff] %v401
                %v403 = vld [vmem:[%s373 + $0xd0] sm:$0xff]
                %404 = vst [vmem:[%s374 + $0x70] sm:$0xff] %v403
                %v405 = vld [vmem:[%s373 + $0xd8] sm:$0xff]
                %406 = vst [vmem:[%s374 + $0x78] sm:$0xff] %v405
                %v407 = vld [vmem:[%s373 + $0x100] sm:$0xff]
                %408 = vst [vmem:[%s374 + $0x80] sm:$0xff] %v407
                %v409 = vld [vmem:[%s373 + $0x108] sm:$0xff]
                %410 = vst [vmem:[%s374 + $0x88] sm:$0xff] %v409
                %v411 = vld [vmem:[%s373 + $0x110] sm:$0xff]
                %412 = vst [vmem:[%s374 + $0x90] sm:$0xff] %v411
                %v413 = vld [vmem:[%s373 + $0x118] sm:$0xff]
                %414 = vst [vmem:[%s374 + $0x98] sm:$0xff] %v413
                %v415 = vld [vmem:[%s373 + $0x140] sm:$0xff]
                %416 = vst [vmem:[%s374 + $0xa0] sm:$0xff] %v415
                %v417 = vld [vmem:[%s373 + $0x148] sm:$0xff]
                %418 = vst [vmem:[%s374 + $0xa8] sm:$0xff] %v417
                %v419 = vld [vmem:[%s373 + $0x150] sm:$0xff]
                %420 = vst [vmem:[%s374 + $0xb0] sm:$0xff] %v419
                %v421 = vld [vmem:[%s373 + $0x158] sm:$0xff]
                %422 = vst [vmem:[%s374 + $0xb8] sm:$0xff] %v421
                %v423 = vld [vmem:[%s373 + $0x180] sm:$0xff]
                %424 = vst [vmem:[%s374 + $0xc0] sm:$0xff] %v423
                %v425 = vld [vmem:[%s373 + $0x188] sm:$0xff]
                %426 = vst [vmem:[%s374 + $0xc8] sm:$0xff] %v425
                %v427 = vld [vmem:[%s373 + $0x190] sm:$0xff]
                %428 = vst [vmem:[%s374 + $0xd0] sm:$0xff] %v427
                %v429 = vld [vmem:[%s373 + $0x198] sm:$0xff]
                %430 = vst [vmem:[%s374 + $0xd8] sm:$0xff] %v429
                %v431 = vld [vmem:[%s373 + $0x1c0] sm:$0xff]
                %432 = vst [vmem:[%s374 + $0xe0] sm:$0xff] %v431
                %v433 = vld [vmem:[%s373 + $0x1c8] sm:$0xff]
                %434 = vst [vmem:[%s374 + $0xe8] sm:$0xff] %v433
                %v435 = vld [vmem:[%s373 + $0x1d0] sm:$0xff]
                %436 = vst [vmem:[%s374 + $0xf0] sm:$0xff] %v435
                %v437 = vld [vmem:[%s373 + $0x1d8] sm:$0xff]
                %438 = vst [vmem:[%s374 + $0xf8] sm:$0xff] %v437
                %v439 = vld [vmem:[%s373 + $0x200] sm:$0xff]
                %440 = vst [vmem:[%s374 + $0x100] sm:$0xff] %v439
                %v441 = vld [vmem:[%s373 + $0x208] sm:$0xff]
                %442 = vst [vmem:[%s374 + $0x108] sm:$0xff] %v441
                %v443 = vld [vmem:[%s373 + $0x210] sm:$0xff]
                %444 = vst [vmem:[%s374 + $0x110] sm:$0xff] %v443
                %v445 = vld [vmem:[%s373 + $0x218] sm:$0xff]
                %446 = vst [vmem:[%s374 + $0x118] sm:$0xff] %v445
                %v447 = vld [vmem:[%s373 + $0x240] sm:$0xff]
                %448 = vst [vmem:[%s374 + $0x120] sm:$0xff] %v447
                %v449 = vld [vmem:[%s373 + $0x248] sm:$0xff]
                %450 = vst [vmem:[%s374 + $0x128] sm:$0xff] %v449
                %v451 = vld [vmem:[%s373 + $0x250] sm:$0xff]
                %452 = vst [vmem:[%s374 + $0x130] sm:$0xff] %v451
                %v453 = vld [vmem:[%s373 + $0x258] sm:$0xff]
                %454 = vst [vmem:[%s374 + $0x138] sm:$0xff] %v453
                %v455 = vld [vmem:[%s373 + $0x280] sm:$0xff]
                %456 = vst [vmem:[%s374 + $0x140] sm:$0xff] %v455
                %v457 = vld [vmem:[%s373 + $0x288] sm:$0xff]
                %458 = vst [vmem:[%s374 + $0x148] sm:$0xff] %v457
                %v459 = vld [vmem:[%s373 + $0x290] sm:$0xff]
                %460 = vst [vmem:[%s374 + $0x150] sm:$0xff] %v459
                %v461 = vld [vmem:[%s373 + $0x298] sm:$0xff]
                %462 = vst [vmem:[%s374 + $0x158] sm:$0xff] %v461
                %v463 = vld [vmem:[%s373 + $0x2c0] sm:$0xff]
                %464 = vst [vmem:[%s374 + $0x160] sm:$0xff] %v463
                %v465 = vld [vmem:[%s373 + $0x2c8] sm:$0xff]
                %466 = vst [vmem:[%s374 + $0x168] sm:$0xff] %v465
                %v467 = vld [vmem:[%s373 + $0x2d0] sm:$0xff]
                %468 = vst [vmem:[%s374 + $0x170] sm:$0xff] %v467
                %v469 = vld [vmem:[%s373 + $0x2d8] sm:$0xff]
                %470 = vst [vmem:[%s374 + $0x178] sm:$0xff] %v469
                %v471 = vld [vmem:[%s373 + $0x300] sm:$0xff]
                %472 = vst [vmem:[%s374 + $0x180] sm:$0xff] %v471
                %v473 = vld [vmem:[%s373 + $0x308] sm:$0xff]
                %474 = vst [vmem:[%s374 + $0x188] sm:$0xff] %v473
                %v475 = vld [vmem:[%s373 + $0x310] sm:$0xff]
                %476 = vst [vmem:[%s374 + $0x190] sm:$0xff] %v475
                %v477 = vld [vmem:[%s373 + $0x318] sm:$0xff]
                %478 = vst [vmem:[%s374 + $0x198] sm:$0xff] %v477
                %v479 = vld [vmem:[%s373 + $0x340] sm:$0xff]
                %480 = vst [vmem:[%s374 + $0x1a0] sm:$0xff] %v479
                %v481 = vld [vmem:[%s373 + $0x348] sm:$0xff]
                %482 = vst [vmem:[%s374 + $0x1a8] sm:$0xff] %v481
                %v483 = vld [vmem:[%s373 + $0x350] sm:$0xff]
                %484 = vst [vmem:[%s374 + $0x1b0] sm:$0xff] %v483
                %v485 = vld [vmem:[%s373 + $0x358] sm:$0xff]
                %486 = vst [vmem:[%s374 + $0x1b8] sm:$0xff] %v485
                %v487 = vld [vmem:[%s373 + $0x380] sm:$0xff]
                %488 = vst [vmem:[%s374 + $0x1c0] sm:$0xff] %v487
                %v489 = vld [vmem:[%s373 + $0x388] sm:$0xff]
                %490 = vst [vmem:[%s374 + $0x1c8] sm:$0xff] %v489
                %v491 = vld [vmem:[%s373 + $0x390] sm:$0xff]
                %492 = vst [vmem:[%s374 + $0x1d0] sm:$0xff] %v491
                %v493 = vld [vmem:[%s373 + $0x398] sm:$0xff]
                %494 = vst [vmem:[%s374 + $0x1d8] sm:$0xff] %v493
                %v495 = vld [vmem:[%s373 + $0x3c0] sm:$0xff]
                %496 = vst [vmem:[%s374 + $0x1e0] sm:$0xff] %v495
                %v497 = vld [vmem:[%s373 + $0x3c8] sm:$0xff]
                %498 = vst [vmem:[%s374 + $0x1e8] sm:$0xff] %v497
                %v499 = vld [vmem:[%s373 + $0x3d0] sm:$0xff]
                %500 = vst [vmem:[%s374 + $0x1f0] sm:$0xff] %v499
                %v501 = vld [vmem:[%s373 + $0x3d8] sm:$0xff]
                %502 = vst [vmem:[%s374 + $0x1f8] sm:$0xff] %v501
              $region72: #{self_attn_forward.2} parent=66 // loop_footer
                %s372 = sadd.s32 1, %s368
              $region73: #{self_attn_forward.2} parent=66 // loop_footer_branch
                %367 = sbr.rel target = $region69
              $region74: #{self_attn_forward.2} parent=66 // loop_exit
                _
            $region67: #{self_attn_forward.2} parent=62 // pred_fallthru
              _
            // Predicated region
            $region75: #{self_attn_forward.2} parent=62 // pred_check
              _
            $region76: #{self_attn_forward.2} parent=62 // pred_check_branch
              %504 = sbr.rel target = $region78
            $region77: #{self_attn_forward.2} parent=62 // pred_region
              _
            $region78: #{self_attn_forward.2} parent=62 // pred_fallthru
              _
          $region63: #{self_attn_forward.2} parent=58 // pred_fallthru
            _
          %505 = vnop
        $region59: #{self_attn_forward.2} parent=31 // pred_fallthru
          _
      $region32: #{self_attn_forward.2} parent=5 // pred_fallthru
        _
      %p506 = scmp.le.s32.totalorder 1, %s12
      %p507 = scmp.lt.s32.totalorder %s12, 3
      %p508 = pnand %p506, %p507
      %p509 = pneg %p508
      // Predicated region
      $region79: #{self_attn_forward.2} parent=5 // pred_check
        _
      $region80: #{self_attn_forward.2} parent=5 // pred_check_branch
        %511 = sbr.rel (%p508) target = $region82
      $region81: #{self_attn_forward.2} parent=5 // pred_region
        %s512 = ssub.s32 %s12, 1
        %s513 = sand.u32 %s25, 1
        %s514 = sand.u32 %s25, 1
        %s515 = smul.addr %s514, 512
        %s516 = scalar_lea.vmem [#allocation3], %s515
        // Predicated region
        $region83: #{self_attn_forward.2} parent=81 // pred_check
          %p517 = pneg %p38
        $region84: #{self_attn_forward.2} parent=81 // pred_check_branch
          %519 = sbr.rel (%p517) target = $region86
        $region85: #{self_attn_forward.2} parent=81 // pred_region
          _
        $region86: #{self_attn_forward.2} parent=81 // pred_fallthru
          _
        %s520 = sand.u32 %s51, 1
        %s521 = sand.u32 %s51, 1
        %s522 = smul.addr %s521, 512
        %s523 = scalar_lea.vmem [#allocation4], %s522
        // Predicated region
        $region87: #{self_attn_forward.2} parent=81 // pred_check
          %p524 = pneg %p64
        $region88: #{self_attn_forward.2} parent=81 // pred_check_branch
          %526 = sbr.rel (%p524) target = $region90
        $region89: #{self_attn_forward.2} parent=81 // pred_region
          _
        $region90: #{self_attn_forward.2} parent=81 // pred_fallthru
          _
        %s527 = sand.u32 %s25, 1
        %s528 = sand.u32 %s25, 1
        %s529 = smul.addr %s528, 512
        %s530 = scalar_lea.vmem [#allocation3], %s529
        %p531 = pneg %p38
        %p532 = pneg %p35
        %s533 = sand.u32 %s51, 1
        %s534 = sand.u32 %s51, 1
        %s535 = smul.addr %s534, 512
        %s536 = scalar_lea.vmem [#allocation4], %s535
        %p537 = pneg %p64
        %p538 = pneg %p61
        %p539 = pneg %p85
        %p540 = pneg %p82
        %p541 = pneg %p106
        %p542 = pneg %p103
        %p543 = pneg %p127
        %p544 = pneg %p124
        %p545 = pneg %p148
        %p546 = pneg %p145
        %p547 = pneg %p169
        %p548 = pneg %p166
        %s549 = smul.u32 4, %s17
        %s550 = smul.u32 4, %s17
        %p552 = scmp.eq.s32.totalorder %s17, 0
        // Predicated region
        $region91: #{self_attn_forward.2} parent=81 // pred_check
          %p553 = pneg %p552
        $region92: #{self_attn_forward.2} parent=81 // pred_check_branch
          %555 = sbr.rel (%p553) target = $region94
        $region93: #{self_attn_forward.2} parent=81 // pred_region
          %vm556 = vcmask 60416
          %557 = vst.msk [vmem:[#allocation2] sm:$0xf] %vm556, 0.0
        $region94: #{self_attn_forward.2} parent=81 // pred_fallthru
          _
        %v558 = vld [vmem:[%s2] sm:$0xf]
        %v559 = vld [vmem:[%s4] sm:$0xf]
        %v560 = vld [vmem:[%s3] sm:$0xff]
        %v561 = vld [vmem:[%s5] sm:$0xff]
        %v562 = vld [vmem:[%s516] sm:$0xff]
        %v563 = vld [vmem:[%s516 + $0x8] sm:$0xff]
        %v564 = vld [vmem:[%s516 + $0x10] sm:$0xff]
        %v565 = vld [vmem:[%s516 + $0x18] sm:$0xff]
        %v566 = vld [vmem:[%s516 + $0x20] sm:$0xff]
        %v567 = vld [vmem:[%s516 + $0x28] sm:$0xff]
        %v568 = vld [vmem:[%s516 + $0x30] sm:$0xff]
        %v569 = vld [vmem:[%s516 + $0x38] sm:$0xff]
        %571 = vset.pattern.permute.xlu0 0
        %572 = vperm.xlu0 %571, %v560
        %v573 = vpop.permute.xlu0 %572
        %v583 = vunpack.c.l.b16 %v562
        %v584 = vunpack.c.h.b16 %v562
        %v585 = vunpack.c.l.b16 %v563
        %v586 = vunpack.c.h.b16 %v563
        %v587 = vunpack.c.l.b16 %v564
        %v588 = vunpack.c.h.b16 %v564
        %v589 = vunpack.c.l.b16 %v565
        %v590 = vunpack.c.h.b16 %v565
        %v591 = vunpack.c.l.b16 %v566
        %v592 = vunpack.c.h.b16 %v566
        %v593 = vunpack.c.l.b16 %v567
        %v594 = vunpack.c.h.b16 %v567
        %v595 = vunpack.c.l.b16 %v568
        %v596 = vunpack.c.h.b16 %v568
        %v597 = vunpack.c.l.b16 %v569
        %v598 = vunpack.c.h.b16 %v569
        %v599 = vpack.c.b16 %v587, %v583
        %v600 = vpack.c.b16 %v588, %v584
        %v601 = vpack.c.b16 %v589, %v585
        %v602 = vpack.c.b16 %v590, %v586
        %v603 = vpack.c.b16 %v595, %v591
        %v604 = vpack.c.b16 %v596, %v592
        %v605 = vpack.c.b16 %v597, %v593
        %v606 = vpack.c.b16 %v598, %v594
        %vm615 = vcmask 261120
        %v617 = vsel %vm615, %v558, 0
        %619 = vmatpush.bf16.msra.mxu0 0
        %620 = vmatpush.bf16.msra.mxu0 0
        %621 = vmatpush.bf16.msra.mxu0 0
        %622 = vmatpush.bf16.msra.mxu0 0
        %623 = vmatpush.bf16.msra.mxu0 0
        %624 = vmatpush.bf16.msra.mxu0 0
        %625 = vmatpush.bf16.msra.mxu0 %v603
        %626 = vmatpush.bf16.msra.mxu0 %v599
        %627 = vmatmul.bf16.gmra.mxu0 %v617
        %v628 = vpop.f32.mrf.mxu0
        %v629 = vadd.f32 %v573, %v628
        %v630 = vpop.f32.mrf.mxu0
        %631 = vdwg.mxu0
        %632 = vmatpush.bf16.msra.mxu0 0
        %633 = vmatpush.bf16.msra.mxu0 0
        %634 = vmatpush.bf16.msra.mxu0 0
        %635 = vmatpush.bf16.msra.mxu0 0
        %636 = vmatpush.bf16.msra.mxu0 0
        %637 = vmatpush.bf16.msra.mxu0 0
        %638 = vmatpush.bf16.msra.mxu0 %v604
        %639 = vmatpush.bf16.msra.mxu0 %v600
        %640 = vmatmul.bf16.gmra.mxu0 %v617
        %v641 = vpop.f32.mrf.mxu0
        %v642 = vadd.f32 %v573, %v641
        %v643 = vpop.f32.mrf.mxu0
        %644 = vdwg.mxu0
        %645 = vmatpush.bf16.msra.mxu0 0
        %646 = vmatpush.bf16.msra.mxu0 0
        %647 = vmatpush.bf16.msra.mxu0 0
        %648 = vmatpush.bf16.msra.mxu0 0
        %649 = vmatpush.bf16.msra.mxu0 0
        %650 = vmatpush.bf16.msra.mxu0 0
        %651 = vmatpush.bf16.msra.mxu0 %v605
        %652 = vmatpush.bf16.msra.mxu0 %v601
        %653 = vmatmul.bf16.gmra.mxu0 %v617
        %v654 = vpop.f32.mrf.mxu0
        %v655 = vadd.f32 %v573, %v654
        %v656 = vpop.f32.mrf.mxu0
        %657 = vdwg.mxu0
        %658 = vmatpush.bf16.msra.mxu0 0
        %659 = vmatpush.bf16.msra.mxu0 0
        %660 = vmatpush.bf16.msra.mxu0 0
        %661 = vmatpush.bf16.msra.mxu0 0
        %662 = vmatpush.bf16.msra.mxu0 0
        %663 = vmatpush.bf16.msra.mxu0 0
        %664 = vmatpush.bf16.msra.mxu0 %v606
        %665 = vmatpush.bf16.msra.mxu0 %v602
        %666 = vmatmul.bf16.gmra.mxu0 %v617
        %v667 = vpop.f32.mrf.mxu0
        %v668 = vadd.f32 %v573, %v667
        %v669 = vpop.f32.mrf.mxu0
        %670 = vdwg.mxu0
        %s671 = scalar_lea.vmem %s516, 64 [#allocation3]
        %v672 = vld [vmem:[%s671] sm:$0xff]
        %v673 = vld [vmem:[%s671 + $0x8] sm:$0xff]
        %v674 = vld [vmem:[%s671 + $0x10] sm:$0xff]
        %v675 = vld [vmem:[%s671 + $0x18] sm:$0xff]
        %v676 = vld [vmem:[%s671 + $0x20] sm:$0xff]
        %v677 = vld [vmem:[%s671 + $0x28] sm:$0xff]
        %v678 = vld [vmem:[%s671 + $0x30] sm:$0xff]
        %v679 = vld [vmem:[%s671 + $0x38] sm:$0xff]
        %v688 = vunpack.c.l.b16 %v672
        %v689 = vunpack.c.h.b16 %v672
        %v690 = vunpack.c.l.b16 %v673
        %v691 = vunpack.c.h.b16 %v673
        %v692 = vunpack.c.l.b16 %v674
        %v693 = vunpack.c.h.b16 %v674
        %v694 = vunpack.c.l.b16 %v675
        %v695 = vunpack.c.h.b16 %v675
        %v696 = vunpack.c.l.b16 %v676
        %v697 = vunpack.c.h.b16 %v676
        %v698 = vunpack.c.l.b16 %v677
        %v699 = vunpack.c.h.b16 %v677
        %v700 = vunpack.c.l.b16 %v678
        %v701 = vunpack.c.h.b16 %v678
        %v702 = vunpack.c.l.b16 %v679
        %v703 = vunpack.c.h.b16 %v679
        %v704 = vpack.c.b16 %v692, %v688
        %v705 = vpack.c.b16 %v693, %v689
        %v706 = vpack.c.b16 %v694, %v690
        %v707 = vpack.c.b16 %v695, %v691
        %v708 = vpack.c.b16 %v700, %v696
        %v709 = vpack.c.b16 %v701, %v697
        %v710 = vpack.c.b16 %v702, %v698
        %v711 = vpack.c.b16 %v703, %v699
        %720 = vmatpush.bf16.msra.mxu0 0
        %721 = vmatpush.bf16.msra.mxu0 0
        %722 = vmatpush.bf16.msra.mxu0 0
        %723 = vmatpush.bf16.msra.mxu0 0
        %724 = vmatpush.bf16.msra.mxu0 0
        %725 = vmatpush.bf16.msra.mxu0 0
        %726 = vmatpush.bf16.msra.mxu0 %v708
        %727 = vmatpush.bf16.msra.mxu0 %v704
        %728 = vmatmul.bf16.gmra.mxu0 %v617
        %v729 = vpop.f32.mrf.mxu0
        %v730 = vadd.f32 %v573, %v729
        %v731 = vpop.f32.mrf.mxu0
        %732 = vdwg.mxu0
        %733 = vmatpush.bf16.msra.mxu0 0
        %734 = vmatpush.bf16.msra.mxu0 0
        %735 = vmatpush.bf16.msra.mxu0 0
        %736 = vmatpush.bf16.msra.mxu0 0
        %737 = vmatpush.bf16.msra.mxu0 0
        %738 = vmatpush.bf16.msra.mxu0 0
        %739 = vmatpush.bf16.msra.mxu0 %v709
        %740 = vmatpush.bf16.msra.mxu0 %v705
        %741 = vmatmul.bf16.gmra.mxu0 %v617
        %v742 = vpop.f32.mrf.mxu0
        %v743 = vadd.f32 %v573, %v742
        %v744 = vpop.f32.mrf.mxu0
        %745 = vdwg.mxu0
        %746 = vmatpush.bf16.msra.mxu0 0
        %747 = vmatpush.bf16.msra.mxu0 0
        %748 = vmatpush.bf16.msra.mxu0 0
        %749 = vmatpush.bf16.msra.mxu0 0
        %750 = vmatpush.bf16.msra.mxu0 0
        %751 = vmatpush.bf16.msra.mxu0 0
        %752 = vmatpush.bf16.msra.mxu0 %v710
        %753 = vmatpush.bf16.msra.mxu0 %v706
        %754 = vmatmul.bf16.gmra.mxu0 %v617
        %v755 = vpop.f32.mrf.mxu0
        %v756 = vadd.f32 %v573, %v755
        %v757 = vpop.f32.mrf.mxu0
        %758 = vdwg.mxu0
        %759 = vmatpush.bf16.msra.mxu0 0
        %760 = vmatpush.bf16.msra.mxu0 0
        %761 = vmatpush.bf16.msra.mxu0 0
        %762 = vmatpush.bf16.msra.mxu0 0
        %763 = vmatpush.bf16.msra.mxu0 0
        %764 = vmatpush.bf16.msra.mxu0 0
        %765 = vmatpush.bf16.msra.mxu0 %v711
        %766 = vmatpush.bf16.msra.mxu0 %v707
        %767 = vmatmul.bf16.gmra.mxu0 %v617
        %v768 = vpop.f32.mrf.mxu0
        %v769 = vadd.f32 %v573, %v768
        %v770 = vpop.f32.mrf.mxu0
        %771 = vdwg.mxu0
        %s772 = scalar_lea.vmem %s516, 128 [#allocation3]
        %v773 = vld [vmem:[%s772] sm:$0xff]
        %v774 = vld [vmem:[%s772 + $0x8] sm:$0xff]
        %v775 = vld [vmem:[%s772 + $0x10] sm:$0xff]
        %v776 = vld [vmem:[%s772 + $0x18] sm:$0xff]
        %v777 = vld [vmem:[%s772 + $0x20] sm:$0xff]
        %v778 = vld [vmem:[%s772 + $0x28] sm:$0xff]
        %v779 = vld [vmem:[%s772 + $0x30] sm:$0xff]
        %v780 = vld [vmem:[%s772 + $0x38] sm:$0xff]
        %v789 = vunpack.c.l.b16 %v773
        %v790 = vunpack.c.h.b16 %v773
        %v791 = vunpack.c.l.b16 %v774
        %v792 = vunpack.c.h.b16 %v774
        %v793 = vunpack.c.l.b16 %v775
        %v794 = vunpack.c.h.b16 %v775
        %v795 = vunpack.c.l.b16 %v776
        %v796 = vunpack.c.h.b16 %v776
        %v797 = vunpack.c.l.b16 %v777
        %v798 = vunpack.c.h.b16 %v777
        %v799 = vunpack.c.l.b16 %v778
        %v800 = vunpack.c.h.b16 %v778
        %v801 = vunpack.c.l.b16 %v779
        %v802 = vunpack.c.h.b16 %v779
        %v803 = vunpack.c.l.b16 %v780
        %v804 = vunpack.c.h.b16 %v780
        %v805 = vpack.c.b16 %v793, %v789
        %v806 = vpack.c.b16 %v794, %v790
        %v807 = vpack.c.b16 %v795, %v791
        %v808 = vpack.c.b16 %v796, %v792
        %v809 = vpack.c.b16 %v801, %v797
        %v810 = vpack.c.b16 %v802, %v798
        %v811 = vpack.c.b16 %v803, %v799
        %v812 = vpack.c.b16 %v804, %v800
        %821 = vmatpush.bf16.msra.mxu0 0
        %822 = vmatpush.bf16.msra.mxu0 0
        %823 = vmatpush.bf16.msra.mxu0 0
        %824 = vmatpush.bf16.msra.mxu0 0
        %825 = vmatpush.bf16.msra.mxu0 0
        %826 = vmatpush.bf16.msra.mxu0 0
        %827 = vmatpush.bf16.msra.mxu0 %v809
        %828 = vmatpush.bf16.msra.mxu0 %v805
        %829 = vmatmul.bf16.gmra.mxu0 %v617
        %v830 = vpop.f32.mrf.mxu0
        %v831 = vadd.f32 %v573, %v830
        %v832 = vpop.f32.mrf.mxu0
        %833 = vdwg.mxu0
        %834 = vmatpush.bf16.msra.mxu0 0
        %835 = vmatpush.bf16.msra.mxu0 0
        %836 = vmatpush.bf16.msra.mxu0 0
        %837 = vmatpush.bf16.msra.mxu0 0
        %838 = vmatpush.bf16.msra.mxu0 0
        %839 = vmatpush.bf16.msra.mxu0 0
        %840 = vmatpush.bf16.msra.mxu0 %v810
        %841 = vmatpush.bf16.msra.mxu0 %v806
        %842 = vmatmul.bf16.gmra.mxu0 %v617
        %v843 = vpop.f32.mrf.mxu0
        %v844 = vadd.f32 %v573, %v843
        %v845 = vpop.f32.mrf.mxu0
        %846 = vdwg.mxu0
        %847 = vmatpush.bf16.msra.mxu0 0
        %848 = vmatpush.bf16.msra.mxu0 0
        %849 = vmatpush.bf16.msra.mxu0 0
        %850 = vmatpush.bf16.msra.mxu0 0
        %851 = vmatpush.bf16.msra.mxu0 0
        %852 = vmatpush.bf16.msra.mxu0 0
        %853 = vmatpush.bf16.msra.mxu0 %v811
        %854 = vmatpush.bf16.msra.mxu0 %v807
        %855 = vmatmul.bf16.gmra.mxu0 %v617
        %v856 = vpop.f32.mrf.mxu0
        %v857 = vadd.f32 %v573, %v856
        %v858 = vpop.f32.mrf.mxu0
        %859 = vdwg.mxu0
        %860 = vmatpush.bf16.msra.mxu0 0
        %861 = vmatpush.bf16.msra.mxu0 0
        %862 = vmatpush.bf16.msra.mxu0 0
        %863 = vmatpush.bf16.msra.mxu0 0
        %864 = vmatpush.bf16.msra.mxu0 0
        %865 = vmatpush.bf16.msra.mxu0 0
        %866 = vmatpush.bf16.msra.mxu0 %v812
        %867 = vmatpush.bf16.msra.mxu0 %v808
        %868 = vmatmul.bf16.gmra.mxu0 %v617
        %v869 = vpop.f32.mrf.mxu0
        %v870 = vadd.f32 %v573, %v869
        %v871 = vpop.f32.mrf.mxu0
        %872 = vdwg.mxu0
        %s873 = scalar_lea.vmem %s516, 192 [#allocation3]
        %v874 = vld [vmem:[%s873] sm:$0xff]
        %v875 = vld [vmem:[%s873 + $0x8] sm:$0xff]
        %v876 = vld [vmem:[%s873 + $0x10] sm:$0xff]
        %v877 = vld [vmem:[%s873 + $0x18] sm:$0xff]
        %v878 = vld [vmem:[%s873 + $0x20] sm:$0xff]
        %v879 = vld [vmem:[%s873 + $0x28] sm:$0xff]
        %v880 = vld [vmem:[%s873 + $0x30] sm:$0xff]
        %v881 = vld [vmem:[%s873 + $0x38] sm:$0xff]
        %v890 = vunpack.c.l.b16 %v874
        %v891 = vunpack.c.h.b16 %v874
        %v892 = vunpack.c.l.b16 %v875
        %v893 = vunpack.c.h.b16 %v875
        %v894 = vunpack.c.l.b16 %v876
        %v895 = vunpack.c.h.b16 %v876
        %v896 = vunpack.c.l.b16 %v877
        %v897 = vunpack.c.h.b16 %v877
        %v898 = vunpack.c.l.b16 %v878
        %v899 = vunpack.c.h.b16 %v878
        %v900 = vunpack.c.l.b16 %v879
        %v901 = vunpack.c.h.b16 %v879
        %v902 = vunpack.c.l.b16 %v880
        %v903 = vunpack.c.h.b16 %v880
        %v904 = vunpack.c.l.b16 %v881
        %v905 = vunpack.c.h.b16 %v881
        %v906 = vpack.c.b16 %v894, %v890
        %v907 = vpack.c.b16 %v895, %v891
        %v908 = vpack.c.b16 %v896, %v892
        %v909 = vpack.c.b16 %v897, %v893
        %v910 = vpack.c.b16 %v902, %v898
        %v911 = vpack.c.b16 %v903, %v899
        %v912 = vpack.c.b16 %v904, %v900
        %v913 = vpack.c.b16 %v905, %v901
        %922 = vmatpush.bf16.msra.mxu0 0
        %923 = vmatpush.bf16.msra.mxu0 0
        %924 = vmatpush.bf16.msra.mxu0 0
        %925 = vmatpush.bf16.msra.mxu0 0
        %926 = vmatpush.bf16.msra.mxu0 0
        %927 = vmatpush.bf16.msra.mxu0 0
        %928 = vmatpush.bf16.msra.mxu0 %v910
        %929 = vmatpush.bf16.msra.mxu0 %v906
        %930 = vmatmul.bf16.gmra.mxu0 %v617
        %v931 = vpop.f32.mrf.mxu0
        %v932 = vadd.f32 %v573, %v931
        %v933 = vpop.f32.mrf.mxu0
        %934 = vdwg.mxu0
        %935 = vmatpush.bf16.msra.mxu0 0
        %936 = vmatpush.bf16.msra.mxu0 0
        %937 = vmatpush.bf16.msra.mxu0 0
        %938 = vmatpush.bf16.msra.mxu0 0
        %939 = vmatpush.bf16.msra.mxu0 0
        %940 = vmatpush.bf16.msra.mxu0 0
        %941 = vmatpush.bf16.msra.mxu0 %v911
        %942 = vmatpush.bf16.msra.mxu0 %v907
        %943 = vmatmul.bf16.gmra.mxu0 %v617
        %v944 = vpop.f32.mrf.mxu0
        %v945 = vadd.f32 %v573, %v944
        %v946 = vpop.f32.mrf.mxu0
        %947 = vdwg.mxu0
        %948 = vmatpush.bf16.msra.mxu0 0
        %949 = vmatpush.bf16.msra.mxu0 0
        %950 = vmatpush.bf16.msra.mxu0 0
        %951 = vmatpush.bf16.msra.mxu0 0
        %952 = vmatpush.bf16.msra.mxu0 0
        %953 = vmatpush.bf16.msra.mxu0 0
        %954 = vmatpush.bf16.msra.mxu0 %v912
        %955 = vmatpush.bf16.msra.mxu0 %v908
        %956 = vmatmul.bf16.gmra.mxu0 %v617
        %v957 = vpop.f32.mrf.mxu0
        %v958 = vadd.f32 %v573, %v957
        %v959 = vpop.f32.mrf.mxu0
        %960 = vdwg.mxu0
        %961 = vmatpush.bf16.msra.mxu0 0
        %962 = vmatpush.bf16.msra.mxu0 0
        %963 = vmatpush.bf16.msra.mxu0 0
        %964 = vmatpush.bf16.msra.mxu0 0
        %965 = vmatpush.bf16.msra.mxu0 0
        %966 = vmatpush.bf16.msra.mxu0 0
        %967 = vmatpush.bf16.msra.mxu0 %v913
        %968 = vmatpush.bf16.msra.mxu0 %v909
        %969 = vmatmul.bf16.gmra.mxu0 %v617
        %v970 = vpop.f32.mrf.mxu0
        %v971 = vadd.f32 %v573, %v970
        %v972 = vpop.f32.mrf.mxu0
        %973 = vdwg.mxu0
        %s974 = scalar_lea.vmem %s516, 256 [#allocation3]
        %v975 = vld [vmem:[%s974] sm:$0xff]
        %v976 = vld [vmem:[%s974 + $0x8] sm:$0xff]
        %v977 = vld [vmem:[%s974 + $0x10] sm:$0xff]
        %v978 = vld [vmem:[%s974 + $0x18] sm:$0xff]
        %v979 = vld [vmem:[%s974 + $0x20] sm:$0xff]
        %v980 = vld [vmem:[%s974 + $0x28] sm:$0xff]
        %v981 = vld [vmem:[%s974 + $0x30] sm:$0xff]
        %v982 = vld [vmem:[%s974 + $0x38] sm:$0xff]
        %v991 = vunpack.c.l.b16 %v975
        %v992 = vunpack.c.h.b16 %v975
        %v993 = vunpack.c.l.b16 %v976
        %v994 = vunpack.c.h.b16 %v976
        %v995 = vunpack.c.l.b16 %v977
        %v996 = vunpack.c.h.b16 %v977
        %v997 = vunpack.c.l.b16 %v978
        %v998 = vunpack.c.h.b16 %v978
        %v999 = vunpack.c.l.b16 %v979
        %v1000 = vunpack.c.h.b16 %v979
        %v1001 = vunpack.c.l.b16 %v980
        %v1002 = vunpack.c.h.b16 %v980
        %v1003 = vunpack.c.l.b16 %v981
        %v1004 = vunpack.c.h.b16 %v981
        %v1005 = vunpack.c.l.b16 %v982
        %v1006 = vunpack.c.h.b16 %v982
        %v1007 = vpack.c.b16 %v995, %v991
        %v1008 = vpack.c.b16 %v996, %v992
        %v1009 = vpack.c.b16 %v997, %v993
        %v1010 = vpack.c.b16 %v998, %v994
        %v1011 = vpack.c.b16 %v1003, %v999
        %v1012 = vpack.c.b16 %v1004, %v1000
        %v1013 = vpack.c.b16 %v1005, %v1001
        %v1014 = vpack.c.b16 %v1006, %v1002
        %1023 = vmatpush.bf16.msra.mxu0 0
        %1024 = vmatpush.bf16.msra.mxu0 0
        %1025 = vmatpush.bf16.msra.mxu0 0
        %1026 = vmatpush.bf16.msra.mxu0 0
        %1027 = vmatpush.bf16.msra.mxu0 0
        %1028 = vmatpush.bf16.msra.mxu0 0
        %1029 = vmatpush.bf16.msra.mxu0 %v1011
        %1030 = vmatpush.bf16.msra.mxu0 %v1007
        %1031 = vmatmul.bf16.gmra.mxu0 %v617
        %v1032 = vpop.f32.mrf.mxu0
        %v1033 = vadd.f32 %v573, %v1032
        %v1034 = vpop.f32.mrf.mxu0
        %1035 = vdwg.mxu0
        %1036 = vmatpush.bf16.msra.mxu0 0
        %1037 = vmatpush.bf16.msra.mxu0 0
        %1038 = vmatpush.bf16.msra.mxu0 0
        %1039 = vmatpush.bf16.msra.mxu0 0
        %1040 = vmatpush.bf16.msra.mxu0 0
        %1041 = vmatpush.bf16.msra.mxu0 0
        %1042 = vmatpush.bf16.msra.mxu0 %v1012
        %1043 = vmatpush.bf16.msra.mxu0 %v1008
        %1044 = vmatmul.bf16.gmra.mxu0 %v617
        %v1045 = vpop.f32.mrf.mxu0
        %v1046 = vadd.f32 %v573, %v1045
        %v1047 = vpop.f32.mrf.mxu0
        %1048 = vdwg.mxu0
        %1049 = vmatpush.bf16.msra.mxu0 0
        %1050 = vmatpush.bf16.msra.mxu0 0
        %1051 = vmatpush.bf16.msra.mxu0 0
        %1052 = vmatpush.bf16.msra.mxu0 0
        %1053 = vmatpush.bf16.msra.mxu0 0
        %1054 = vmatpush.bf16.msra.mxu0 0
        %1055 = vmatpush.bf16.msra.mxu0 %v1013
        %1056 = vmatpush.bf16.msra.mxu0 %v1009
        %1057 = vmatmul.bf16.gmra.mxu0 %v617
        %v1058 = vpop.f32.mrf.mxu0
        %v1059 = vadd.f32 %v573, %v1058
        %v1060 = vpop.f32.mrf.mxu0
        %1061 = vdwg.mxu0
        %1062 = vmatpush.bf16.msra.mxu0 0
        %1063 = vmatpush.bf16.msra.mxu0 0
        %1064 = vmatpush.bf16.msra.mxu0 0
        %1065 = vmatpush.bf16.msra.mxu0 0
        %1066 = vmatpush.bf16.msra.mxu0 0
        %1067 = vmatpush.bf16.msra.mxu0 0
        %1068 = vmatpush.bf16.msra.mxu0 %v1014
        %1069 = vmatpush.bf16.msra.mxu0 %v1010
        %1070 = vmatmul.bf16.gmra.mxu0 %v617
        %v1071 = vpop.f32.mrf.mxu0
        %v1072 = vadd.f32 %v573, %v1071
        %v1073 = vpop.f32.mrf.mxu0
        %1074 = vdwg.mxu0
        %s1075 = scalar_lea.vmem %s516, 320 [#allocation3]
        %v1076 = vld [vmem:[%s1075] sm:$0xff]
        %v1077 = vld [vmem:[%s1075 + $0x8] sm:$0xff]
        %v1078 = vld [vmem:[%s1075 + $0x10] sm:$0xff]
        %v1079 = vld [vmem:[%s1075 + $0x18] sm:$0xff]
        %v1080 = vld [vmem:[%s1075 + $0x20] sm:$0xff]
        %v1081 = vld [vmem:[%s1075 + $0x28] sm:$0xff]
        %v1082 = vld [vmem:[%s1075 + $0x30] sm:$0xff]
        %v1083 = vld [vmem:[%s1075 + $0x38] sm:$0xff]
        %v1092 = vunpack.c.l.b16 %v1076
        %v1093 = vunpack.c.h.b16 %v1076
        %v1094 = vunpack.c.l.b16 %v1077
        %v1095 = vunpack.c.h.b16 %v1077
        %v1096 = vunpack.c.l.b16 %v1078
        %v1097 = vunpack.c.h.b16 %v1078
        %v1098 = vunpack.c.l.b16 %v1079
        %v1099 = vunpack.c.h.b16 %v1079
        %v1100 = vunpack.c.l.b16 %v1080
        %v1101 = vunpack.c.h.b16 %v1080
        %v1102 = vunpack.c.l.b16 %v1081
        %v1103 = vunpack.c.h.b16 %v1081
        %v1104 = vunpack.c.l.b16 %v1082
        %v1105 = vunpack.c.h.b16 %v1082
        %v1106 = vunpack.c.l.b16 %v1083
        %v1107 = vunpack.c.h.b16 %v1083
        %v1108 = vpack.c.b16 %v1096, %v1092
        %v1109 = vpack.c.b16 %v1097, %v1093
        %v1110 = vpack.c.b16 %v1098, %v1094
        %v1111 = vpack.c.b16 %v1099, %v1095
        %v1112 = vpack.c.b16 %v1104, %v1100
        %v1113 = vpack.c.b16 %v1105, %v1101
        %v1114 = vpack.c.b16 %v1106, %v1102
        %v1115 = vpack.c.b16 %v1107, %v1103
        %1124 = vmatpush.bf16.msra.mxu0 0
        %1125 = vmatpush.bf16.msra.mxu0 0
        %1126 = vmatpush.bf16.msra.mxu0 0
        %1127 = vmatpush.bf16.msra.mxu0 0
        %1128 = vmatpush.bf16.msra.mxu0 0
        %1129 = vmatpush.bf16.msra.mxu0 0
        %1130 = vmatpush.bf16.msra.mxu0 %v1112
        %1131 = vmatpush.bf16.msra.mxu0 %v1108
        %1132 = vmatmul.bf16.gmra.mxu0 %v617
        %v1133 = vpop.f32.mrf.mxu0
        %v1134 = vadd.f32 %v573, %v1133
        %v1135 = vpop.f32.mrf.mxu0
        %1136 = vdwg.mxu0
        %1137 = vmatpush.bf16.msra.mxu0 0
        %1138 = vmatpush.bf16.msra.mxu0 0
        %1139 = vmatpush.bf16.msra.mxu0 0
        %1140 = vmatpush.bf16.msra.mxu0 0
        %1141 = vmatpush.bf16.msra.mxu0 0
        %1142 = vmatpush.bf16.msra.mxu0 0
        %1143 = vmatpush.bf16.msra.mxu0 %v1113
        %1144 = vmatpush.bf16.msra.mxu0 %v1109
        %1145 = vmatmul.bf16.gmra.mxu0 %v617
        %v1146 = vpop.f32.mrf.mxu0
        %v1147 = vadd.f32 %v573, %v1146
        %v1148 = vpop.f32.mrf.mxu0
        %1149 = vdwg.mxu0
        %1150 = vmatpush.bf16.msra.mxu0 0
        %1151 = vmatpush.bf16.msra.mxu0 0
        %1152 = vmatpush.bf16.msra.mxu0 0
        %1153 = vmatpush.bf16.msra.mxu0 0
        %1154 = vmatpush.bf16.msra.mxu0 0
        %1155 = vmatpush.bf16.msra.mxu0 0
        %1156 = vmatpush.bf16.msra.mxu0 %v1114
        %1157 = vmatpush.bf16.msra.mxu0 %v1110
        %1158 = vmatmul.bf16.gmra.mxu0 %v617
        %v1159 = vpop.f32.mrf.mxu0
        %v1160 = vadd.f32 %v573, %v1159
        %v1161 = vpop.f32.mrf.mxu0
        %1162 = vdwg.mxu0
        %1163 = vmatpush.bf16.msra.mxu0 0
        %1164 = vmatpush.bf16.msra.mxu0 0
        %1165 = vmatpush.bf16.msra.mxu0 0
        %1166 = vmatpush.bf16.msra.mxu0 0
        %1167 = vmatpush.bf16.msra.mxu0 0
        %1168 = vmatpush.bf16.msra.mxu0 0
        %1169 = vmatpush.bf16.msra.mxu0 %v1115
        %1170 = vmatpush.bf16.msra.mxu0 %v1111
        %1171 = vmatmul.bf16.gmra.mxu0 %v617
        %v1172 = vpop.f32.mrf.mxu0
        %v1173 = vadd.f32 %v573, %v1172
        %v1174 = vpop.f32.mrf.mxu0
        %1175 = vdwg.mxu0
        %s1176 = scalar_lea.vmem %s516, 384 [#allocation3]
        %v1177 = vld [vmem:[%s1176] sm:$0xff]
        %v1178 = vld [vmem:[%s1176 + $0x8] sm:$0xff]
        %v1179 = vld [vmem:[%s1176 + $0x10] sm:$0xff]
        %v1180 = vld [vmem:[%s1176 + $0x18] sm:$0xff]
        %v1181 = vld [vmem:[%s1176 + $0x20] sm:$0xff]
        %v1182 = vld [vmem:[%s1176 + $0x28] sm:$0xff]
        %v1183 = vld [vmem:[%s1176 + $0x30] sm:$0xff]
        %v1184 = vld [vmem:[%s1176 + $0x38] sm:$0xff]
        %v1193 = vunpack.c.l.b16 %v1177
        %v1194 = vunpack.c.h.b16 %v1177
        %v1195 = vunpack.c.l.b16 %v1178
        %v1196 = vunpack.c.h.b16 %v1178
        %v1197 = vunpack.c.l.b16 %v1179
        %v1198 = vunpack.c.h.b16 %v1179
        %v1199 = vunpack.c.l.b16 %v1180
        %v1200 = vunpack.c.h.b16 %v1180
        %v1201 = vunpack.c.l.b16 %v1181
        %v1202 = vunpack.c.h.b16 %v1181
        %v1203 = vunpack.c.l.b16 %v1182
        %v1204 = vunpack.c.h.b16 %v1182
        %v1205 = vunpack.c.l.b16 %v1183
        %v1206 = vunpack.c.h.b16 %v1183
        %v1207 = vunpack.c.l.b16 %v1184
        %v1208 = vunpack.c.h.b16 %v1184
        %v1209 = vpack.c.b16 %v1197, %v1193
        %v1210 = vpack.c.b16 %v1198, %v1194
        %v1211 = vpack.c.b16 %v1199, %v1195
        %v1212 = vpack.c.b16 %v1200, %v1196
        %v1213 = vpack.c.b16 %v1205, %v1201
        %v1214 = vpack.c.b16 %v1206, %v1202
        %v1215 = vpack.c.b16 %v1207, %v1203
        %v1216 = vpack.c.b16 %v1208, %v1204
        %1225 = vmatpush.bf16.msra.mxu0 0
        %1226 = vmatpush.bf16.msra.mxu0 0
        %1227 = vmatpush.bf16.msra.mxu0 0
        %1228 = vmatpush.bf16.msra.mxu0 0
        %1229 = vmatpush.bf16.msra.mxu0 0
        %1230 = vmatpush.bf16.msra.mxu0 0
        %1231 = vmatpush.bf16.msra.mxu0 %v1213
        %1232 = vmatpush.bf16.msra.mxu0 %v1209
        %1233 = vmatmul.bf16.gmra.mxu0 %v617
        %v1234 = vpop.f32.mrf.mxu0
        %v1235 = vadd.f32 %v573, %v1234
        %v1236 = vpop.f32.mrf.mxu0
        %1237 = vdwg.mxu0
        %1238 = vmatpush.bf16.msra.mxu0 0
        %1239 = vmatpush.bf16.msra.mxu0 0
        %1240 = vmatpush.bf16.msra.mxu0 0
        %1241 = vmatpush.bf16.msra.mxu0 0
        %1242 = vmatpush.bf16.msra.mxu0 0
        %1243 = vmatpush.bf16.msra.mxu0 0
        %1244 = vmatpush.bf16.msra.mxu0 %v1214
        %1245 = vmatpush.bf16.msra.mxu0 %v1210
        %1246 = vmatmul.bf16.gmra.mxu0 %v617
        %v1247 = vpop.f32.mrf.mxu0
        %v1248 = vadd.f32 %v573, %v1247
        %v1249 = vpop.f32.mrf.mxu0
        %1250 = vdwg.mxu0
        %1251 = vmatpush.bf16.msra.mxu0 0
        %1252 = vmatpush.bf16.msra.mxu0 0
        %1253 = vmatpush.bf16.msra.mxu0 0
        %1254 = vmatpush.bf16.msra.mxu0 0
        %1255 = vmatpush.bf16.msra.mxu0 0
        %1256 = vmatpush.bf16.msra.mxu0 0
        %1257 = vmatpush.bf16.msra.mxu0 %v1215
        %1258 = vmatpush.bf16.msra.mxu0 %v1211
        %1259 = vmatmul.bf16.gmra.mxu0 %v617
        %v1260 = vpop.f32.mrf.mxu0
        %v1261 = vadd.f32 %v573, %v1260
        %v1262 = vpop.f32.mrf.mxu0
        %1263 = vdwg.mxu0
        %1264 = vmatpush.bf16.msra.mxu0 0
        %1265 = vmatpush.bf16.msra.mxu0 0
        %1266 = vmatpush.bf16.msra.mxu0 0
        %1267 = vmatpush.bf16.msra.mxu0 0
        %1268 = vmatpush.bf16.msra.mxu0 0
        %1269 = vmatpush.bf16.msra.mxu0 0
        %1270 = vmatpush.bf16.msra.mxu0 %v1216
        %1271 = vmatpush.bf16.msra.mxu0 %v1212
        %1272 = vmatmul.bf16.gmra.mxu0 %v617
        %v1273 = vpop.f32.mrf.mxu0
        %v1274 = vadd.f32 %v573, %v1273
        %v1275 = vpop.f32.mrf.mxu0
        %1276 = vdwg.mxu0
        %s1277 = scalar_lea.vmem %s516, 448 [#allocation3]
        %v1278 = vld [vmem:[%s1277] sm:$0xff]
        %v1279 = vld [vmem:[%s1277 + $0x8] sm:$0xff]
        %v1280 = vld [vmem:[%s1277 + $0x10] sm:$0xff]
        %v1281 = vld [vmem:[%s1277 + $0x18] sm:$0xff]
        %v1282 = vld [vmem:[%s1277 + $0x20] sm:$0xff]
        %v1283 = vld [vmem:[%s1277 + $0x28] sm:$0xff]
        %v1284 = vld [vmem:[%s1277 + $0x30] sm:$0xff]
        %v1285 = vld [vmem:[%s1277 + $0x38] sm:$0xff]
        %v1294 = vunpack.c.l.b16 %v1278
        %v1295 = vunpack.c.h.b16 %v1278
        %v1296 = vunpack.c.l.b16 %v1279
        %v1297 = vunpack.c.h.b16 %v1279
        %v1298 = vunpack.c.l.b16 %v1280
        %v1299 = vunpack.c.h.b16 %v1280
        %v1300 = vunpack.c.l.b16 %v1281
        %v1301 = vunpack.c.h.b16 %v1281
        %v1302 = vunpack.c.l.b16 %v1282
        %v1303 = vunpack.c.h.b16 %v1282
        %v1304 = vunpack.c.l.b16 %v1283
        %v1305 = vunpack.c.h.b16 %v1283
        %v1306 = vunpack.c.l.b16 %v1284
        %v1307 = vunpack.c.h.b16 %v1284
        %v1308 = vunpack.c.l.b16 %v1285
        %v1309 = vunpack.c.h.b16 %v1285
        %v1310 = vpack.c.b16 %v1298, %v1294
        %v1311 = vpack.c.b16 %v1299, %v1295
        %v1312 = vpack.c.b16 %v1300, %v1296
        %v1313 = vpack.c.b16 %v1301, %v1297
        %v1314 = vpack.c.b16 %v1306, %v1302
        %v1315 = vpack.c.b16 %v1307, %v1303
        %v1316 = vpack.c.b16 %v1308, %v1304
        %v1317 = vpack.c.b16 %v1309, %v1305
        %1326 = vmatpush.bf16.msra.mxu0 0
        %1327 = vmatpush.bf16.msra.mxu0 0
        %1328 = vmatpush.bf16.msra.mxu0 0
        %1329 = vmatpush.bf16.msra.mxu0 0
        %1330 = vmatpush.bf16.msra.mxu0 0
        %1331 = vmatpush.bf16.msra.mxu0 0
        %1332 = vmatpush.bf16.msra.mxu0 %v1314
        %1333 = vmatpush.bf16.msra.mxu0 %v1310
        %1334 = vmatmul.bf16.gmra.mxu0 %v617
        %v1335 = vpop.f32.mrf.mxu0
        %v1336 = vadd.f32 %v573, %v1335
        %v1337 = vpop.f32.mrf.mxu0
        %1338 = vdwg.mxu0
        %1339 = vmatpush.bf16.msra.mxu0 0
        %1340 = vmatpush.bf16.msra.mxu0 0
        %1341 = vmatpush.bf16.msra.mxu0 0
        %1342 = vmatpush.bf16.msra.mxu0 0
        %1343 = vmatpush.bf16.msra.mxu0 0
        %1344 = vmatpush.bf16.msra.mxu0 0
        %1345 = vmatpush.bf16.msra.mxu0 %v1315
        %1346 = vmatpush.bf16.msra.mxu0 %v1311
        %1347 = vmatmul.bf16.gmra.mxu0 %v617
        %v1348 = vpop.f32.mrf.mxu0
        %v1349 = vadd.f32 %v573, %v1348
        %v1350 = vpop.f32.mrf.mxu0
        %1351 = vdwg.mxu0
        %1352 = vmatpush.bf16.msra.mxu0 0
        %1353 = vmatpush.bf16.msra.mxu0 0
        %1354 = vmatpush.bf16.msra.mxu0 0
        %1355 = vmatpush.bf16.msra.mxu0 0
        %1356 = vmatpush.bf16.msra.mxu0 0
        %1357 = vmatpush.bf16.msra.mxu0 0
        %1358 = vmatpush.bf16.msra.mxu0 %v1316
        %1359 = vmatpush.bf16.msra.mxu0 %v1312
        %1360 = vmatmul.bf16.gmra.mxu0 %v617
        %v1361 = vpop.f32.mrf.mxu0
        %v1362 = vadd.f32 %v573, %v1361
        %v1363 = vpop.f32.mrf.mxu0
        %1364 = vdwg.mxu0
        %1365 = vmatpush.bf16.msra.mxu0 0
        %1366 = vmatpush.bf16.msra.mxu0 0
        %1367 = vmatpush.bf16.msra.mxu0 0
        %1368 = vmatpush.bf16.msra.mxu0 0
        %1369 = vmatpush.bf16.msra.mxu0 0
        %1370 = vmatpush.bf16.msra.mxu0 0
        %1371 = vmatpush.bf16.msra.mxu0 %v1317
        %1372 = vmatpush.bf16.msra.mxu0 %v1313
        %1373 = vmatmul.bf16.gmra.mxu0 %v617
        %v1374 = vpop.f32.mrf.mxu0
        %v1375 = vadd.f32 %v573, %v1374
        %v1376 = vpop.f32.mrf.mxu0
        %1377 = vdwg.mxu0
        %v1378 = vld [vmem:[%s523] sm:$0xff]
        %v1379 = vld [vmem:[%s523 + $0x8] sm:$0xff]
        %v1380 = vld [vmem:[%s523 + $0x10] sm:$0xff]
        %v1381 = vld [vmem:[%s523 + $0x18] sm:$0xff]
        %v1382 = vld [vmem:[%s523 + $0x20] sm:$0xff]
        %v1383 = vld [vmem:[%s523 + $0x28] sm:$0xff]
        %v1384 = vld [vmem:[%s523 + $0x30] sm:$0xff]
        %v1385 = vld [vmem:[%s523 + $0x38] sm:$0xff]
        %v1386 = vld [vmem:[%s523 + $0x40] sm:$0xff]
        %v1387 = vld [vmem:[%s523 + $0x48] sm:$0xff]
        %v1388 = vld [vmem:[%s523 + $0x50] sm:$0xff]
        %v1389 = vld [vmem:[%s523 + $0x58] sm:$0xff]
        %v1390 = vld [vmem:[%s523 + $0x60] sm:$0xff]
        %v1391 = vld [vmem:[%s523 + $0x68] sm:$0xff]
        %v1392 = vld [vmem:[%s523 + $0x70] sm:$0xff]
        %v1393 = vld [vmem:[%s523 + $0x78] sm:$0xff]
        %v1394 = vpack.c.bf16 %v1382, %v1378
        %v1395 = vpack.c.bf16 %v1383, %v1379
        %v1396 = vpack.c.bf16 %v1384, %v1380
        %v1397 = vpack.c.bf16 %v1385, %v1381
        %v1398 = vpack.c.bf16 %v1390, %v1386
        %v1399 = vpack.c.bf16 %v1391, %v1387
        %v1400 = vpack.c.bf16 %v1392, %v1388
        %v1401 = vpack.c.bf16 %v1393, %v1389
        %1403 = vset.pattern.permute.xlu0 0
        %1404 = vperm.xlu0 %1403, %v561
        %v1405 = vpop.permute.xlu0 %1404
        %v1408 = vsel %vm615, %v559, 0
        %1410 = vmatpush.bf16.msra.mxu0 0
        %1411 = vmatpush.bf16.msra.mxu0 0
        %1412 = vmatpush.bf16.msra.mxu0 0
        %1413 = vmatpush.bf16.msra.mxu0 0
        %1414 = vmatpush.bf16.msra.mxu0 0
        %1415 = vmatpush.bf16.msra.mxu0 0
        %1416 = vmatpush.bf16.msra.mxu0 %v1398
        %1417 = vmatpush.bf16.msra.mxu0 %v1394
        %1418 = vmatmul.bf16.gmra.mxu0 %v1408
        %v1419 = vpop.f32.mrf.mxu0
        %v1420 = vadd.f32 %v1405, %v1419
        %v1421 = vpop.f32.mrf.mxu0
        %1422 = vdwg.mxu0
        %1423 = vmatpush.bf16.msra.mxu0 0
        %1424 = vmatpush.bf16.msra.mxu0 0
        %1425 = vmatpush.bf16.msra.mxu0 0
        %1426 = vmatpush.bf16.msra.mxu0 0
        %1427 = vmatpush.bf16.msra.mxu0 0
        %1428 = vmatpush.bf16.msra.mxu0 0
        %1429 = vmatpush.bf16.msra.mxu0 %v1399
        %1430 = vmatpush.bf16.msra.mxu0 %v1395
        %1431 = vmatmul.bf16.gmra.mxu0 %v1408
        %v1432 = vpop.f32.mrf.mxu0
        %v1433 = vadd.f32 %v1405, %v1432
        %v1434 = vpop.f32.mrf.mxu0
        %1435 = vdwg.mxu0
        %1436 = vmatpush.bf16.msra.mxu0 0
        %1437 = vmatpush.bf16.msra.mxu0 0
        %1438 = vmatpush.bf16.msra.mxu0 0
        %1439 = vmatpush.bf16.msra.mxu0 0
        %1440 = vmatpush.bf16.msra.mxu0 0
        %1441 = vmatpush.bf16.msra.mxu0 0
        %1442 = vmatpush.bf16.msra.mxu0 %v1400
        %1443 = vmatpush.bf16.msra.mxu0 %v1396
        %1444 = vmatmul.bf16.gmra.mxu0 %v1408
        %v1445 = vpop.f32.mrf.mxu0
        %v1446 = vadd.f32 %v1405, %v1445
        %v1447 = vpop.f32.mrf.mxu0
        %1448 = vdwg.mxu0
        %1449 = vmatpush.bf16.msra.mxu0 0
        %1450 = vmatpush.bf16.msra.mxu0 0
        %1451 = vmatpush.bf16.msra.mxu0 0
        %1452 = vmatpush.bf16.msra.mxu0 0
        %1453 = vmatpush.bf16.msra.mxu0 0
        %1454 = vmatpush.bf16.msra.mxu0 0
        %1455 = vmatpush.bf16.msra.mxu0 %v1401
        %1456 = vmatpush.bf16.msra.mxu0 %v1397
        %1457 = vmatmul.bf16.gmra.mxu0 %v1408
        %v1458 = vpop.f32.mrf.mxu0
        %v1459 = vadd.f32 %v1405, %v1458
        %v1460 = vpop.f32.mrf.mxu0
        %1461 = vdwg.mxu0
        %s1462 = scalar_lea.vmem %s523, 128 [#allocation4]
        %v1463 = vld [vmem:[%s1462] sm:$0xff]
        %v1464 = vld [vmem:[%s1462 + $0x8] sm:$0xff]
        %v1465 = vld [vmem:[%s1462 + $0x10] sm:$0xff]
        %v1466 = vld [vmem:[%s1462 + $0x18] sm:$0xff]
        %v1467 = vld [vmem:[%s1462 + $0x20] sm:$0xff]
        %v1468 = vld [vmem:[%s1462 + $0x28] sm:$0xff]
        %v1469 = vld [vmem:[%s1462 + $0x30] sm:$0xff]
        %v1470 = vld [vmem:[%s1462 + $0x38] sm:$0xff]
        %v1471 = vld [vmem:[%s1462 + $0x40] sm:$0xff]
        %v1472 = vld [vmem:[%s1462 + $0x48] sm:$0xff]
        %v1473 = vld [vmem:[%s1462 + $0x50] sm:$0xff]
        %v1474 = vld [vmem:[%s1462 + $0x58] sm:$0xff]
        %v1475 = vld [vmem:[%s1462 + $0x60] sm:$0xff]
        %v1476 = vld [vmem:[%s1462 + $0x68] sm:$0xff]
        %v1477 = vld [vmem:[%s1462 + $0x70] sm:$0xff]
        %v1478 = vld [vmem:[%s1462 + $0x78] sm:$0xff]
        %v1479 = vpack.c.bf16 %v1467, %v1463
        %v1480 = vpack.c.bf16 %v1468, %v1464
        %v1481 = vpack.c.bf16 %v1469, %v1465
        %v1482 = vpack.c.bf16 %v1470, %v1466
        %v1483 = vpack.c.bf16 %v1475, %v1471
        %v1484 = vpack.c.bf16 %v1476, %v1472
        %v1485 = vpack.c.bf16 %v1477, %v1473
        %v1486 = vpack.c.bf16 %v1478, %v1474
        %1487 = vmatpush.bf16.msra.mxu0 0
        %1488 = vmatpush.bf16.msra.mxu0 0
        %1489 = vmatpush.bf16.msra.mxu0 0
        %1490 = vmatpush.bf16.msra.mxu0 0
        %1491 = vmatpush.bf16.msra.mxu0 0
        %1492 = vmatpush.bf16.msra.mxu0 0
        %1493 = vmatpush.bf16.msra.mxu0 %v1483
        %1494 = vmatpush.bf16.msra.mxu0 %v1479
        %1495 = vmatmul.bf16.gmra.mxu0 %v1408
        %v1496 = vpop.f32.mrf.mxu0
        %v1497 = vadd.f32 %v1405, %v1496
        %v1498 = vpop.f32.mrf.mxu0
        %1499 = vdwg.mxu0
        %1500 = vmatpush.bf16.msra.mxu0 0
        %1501 = vmatpush.bf16.msra.mxu0 0
        %1502 = vmatpush.bf16.msra.mxu0 0
        %1503 = vmatpush.bf16.msra.mxu0 0
        %1504 = vmatpush.bf16.msra.mxu0 0
        %1505 = vmatpush.bf16.msra.mxu0 0
        %1506 = vmatpush.bf16.msra.mxu0 %v1484
        %1507 = vmatpush.bf16.msra.mxu0 %v1480
        %1508 = vmatmul.bf16.gmra.mxu0 %v1408
        %v1509 = vpop.f32.mrf.mxu0
        %v1510 = vadd.f32 %v1405, %v1509
        %v1511 = vpop.f32.mrf.mxu0
        %1512 = vdwg.mxu0
        %1513 = vmatpush.bf16.msra.mxu0 0
        %1514 = vmatpush.bf16.msra.mxu0 0
        %1515 = vmatpush.bf16.msra.mxu0 0
        %1516 = vmatpush.bf16.msra.mxu0 0
        %1517 = vmatpush.bf16.msra.mxu0 0
        %1518 = vmatpush.bf16.msra.mxu0 0
        %1519 = vmatpush.bf16.msra.mxu0 %v1485
        %1520 = vmatpush.bf16.msra.mxu0 %v1481
        %1521 = vmatmul.bf16.gmra.mxu0 %v1408
        %v1522 = vpop.f32.mrf.mxu0
        %v1523 = vadd.f32 %v1405, %v1522
        %v1524 = vpop.f32.mrf.mxu0
        %1525 = vdwg.mxu0
        %1526 = vmatpush.bf16.msra.mxu0 0
        %1527 = vmatpush.bf16.msra.mxu0 0
        %1528 = vmatpush.bf16.msra.mxu0 0
        %1529 = vmatpush.bf16.msra.mxu0 0
        %1530 = vmatpush.bf16.msra.mxu0 0
        %1531 = vmatpush.bf16.msra.mxu0 0
        %1532 = vmatpush.bf16.msra.mxu0 %v1486
        %1533 = vmatpush.bf16.msra.mxu0 %v1482
        %1534 = vmatmul.bf16.gmra.mxu0 %v1408
        %v1535 = vpop.f32.mrf.mxu0
        %v1536 = vadd.f32 %v1405, %v1535
        %v1537 = vpop.f32.mrf.mxu0
        %1538 = vdwg.mxu0
        %s1539 = scalar_lea.vmem %s523, 256 [#allocation4]
        %v1540 = vld [vmem:[%s1539] sm:$0xff]
        %v1541 = vld [vmem:[%s1539 + $0x8] sm:$0xff]
        %v1542 = vld [vmem:[%s1539 + $0x10] sm:$0xff]
        %v1543 = vld [vmem:[%s1539 + $0x18] sm:$0xff]
        %v1544 = vld [vmem:[%s1539 + $0x20] sm:$0xff]
        %v1545 = vld [vmem:[%s1539 + $0x28] sm:$0xff]
        %v1546 = vld [vmem:[%s1539 + $0x30] sm:$0xff]
        %v1547 = vld [vmem:[%s1539 + $0x38] sm:$0xff]
        %v1548 = vld [vmem:[%s1539 + $0x40] sm:$0xff]
        %v1549 = vld [vmem:[%s1539 + $0x48] sm:$0xff]
        %v1550 = vld [vmem:[%s1539 + $0x50] sm:$0xff]
        %v1551 = vld [vmem:[%s1539 + $0x58] sm:$0xff]
        %v1552 = vld [vmem:[%s1539 + $0x60] sm:$0xff]
        %v1553 = vld [vmem:[%s1539 + $0x68] sm:$0xff]
        %v1554 = vld [vmem:[%s1539 + $0x70] sm:$0xff]
        %v1555 = vld [vmem:[%s1539 + $0x78] sm:$0xff]
        %v1556 = vpack.c.bf16 %v1544, %v1540
        %v1557 = vpack.c.bf16 %v1545, %v1541
        %v1558 = vpack.c.bf16 %v1546, %v1542
        %v1559 = vpack.c.bf16 %v1547, %v1543
        %v1560 = vpack.c.bf16 %v1552, %v1548
        %v1561 = vpack.c.bf16 %v1553, %v1549
        %v1562 = vpack.c.bf16 %v1554, %v1550
        %v1563 = vpack.c.bf16 %v1555, %v1551
        %1564 = vmatpush.bf16.msra.mxu0 0
        %1565 = vmatpush.bf16.msra.mxu0 0
        %1566 = vmatpush.bf16.msra.mxu0 0
        %1567 = vmatpush.bf16.msra.mxu0 0
        %1568 = vmatpush.bf16.msra.mxu0 0
        %1569 = vmatpush.bf16.msra.mxu0 0
        %1570 = vmatpush.bf16.msra.mxu0 %v1560
        %1571 = vmatpush.bf16.msra.mxu0 %v1556
        %1572 = vmatmul.bf16.gmra.mxu0 %v1408
        %v1573 = vpop.f32.mrf.mxu0
        %v1574 = vadd.f32 %v1405, %v1573
        %v1575 = vpop.f32.mrf.mxu0
        %1576 = vdwg.mxu0
        %1577 = vmatpush.bf16.msra.mxu0 0
        %1578 = vmatpush.bf16.msra.mxu0 0
        %1579 = vmatpush.bf16.msra.mxu0 0
        %1580 = vmatpush.bf16.msra.mxu0 0
        %1581 = vmatpush.bf16.msra.mxu0 0
        %1582 = vmatpush.bf16.msra.mxu0 0
        %1583 = vmatpush.bf16.msra.mxu0 %v1561
        %1584 = vmatpush.bf16.msra.mxu0 %v1557
        %1585 = vmatmul.bf16.gmra.mxu0 %v1408
        %v1586 = vpop.f32.mrf.mxu0
        %v1587 = vadd.f32 %v1405, %v1586
        %v1588 = vpop.f32.mrf.mxu0
        %1589 = vdwg.mxu0
        %1590 = vmatpush.bf16.msra.mxu0 0
        %1591 = vmatpush.bf16.msra.mxu0 0
        %1592 = vmatpush.bf16.msra.mxu0 0
        %1593 = vmatpush.bf16.msra.mxu0 0
        %1594 = vmatpush.bf16.msra.mxu0 0
        %1595 = vmatpush.bf16.msra.mxu0 0
        %1596 = vmatpush.bf16.msra.mxu0 %v1562
        %1597 = vmatpush.bf16.msra.mxu0 %v1558
        %1598 = vmatmul.bf16.gmra.mxu0 %v1408
        %v1599 = vpop.f32.mrf.mxu0
        %v1600 = vadd.f32 %v1405, %v1599
        %v1601 = vpop.f32.mrf.mxu0
        %1602 = vdwg.mxu0
        %1603 = vmatpush.bf16.msra.mxu0 0
        %1604 = vmatpush.bf16.msra.mxu0 0
        %1605 = vmatpush.bf16.msra.mxu0 0
        %1606 = vmatpush.bf16.msra.mxu0 0
        %1607 = vmatpush.bf16.msra.mxu0 0
        %1608 = vmatpush.bf16.msra.mxu0 0
        %1609 = vmatpush.bf16.msra.mxu0 %v1563
        %1610 = vmatpush.bf16.msra.mxu0 %v1559
        %1611 = vmatmul.bf16.gmra.mxu0 %v1408
        %v1612 = vpop.f32.mrf.mxu0
        %v1613 = vadd.f32 %v1405, %v1612
        %v1614 = vpop.f32.mrf.mxu0
        %1615 = vdwg.mxu0
        %s1616 = scalar_lea.vmem %s523, 384 [#allocation4]
        %v1617 = vld [vmem:[%s1616] sm:$0xff]
        %v1618 = vld [vmem:[%s1616 + $0x8] sm:$0xff]
        %v1619 = vld [vmem:[%s1616 + $0x10] sm:$0xff]
        %v1620 = vld [vmem:[%s1616 + $0x18] sm:$0xff]
        %v1621 = vld [vmem:[%s1616 + $0x20] sm:$0xff]
        %v1622 = vld [vmem:[%s1616 + $0x28] sm:$0xff]
        %v1623 = vld [vmem:[%s1616 + $0x30] sm:$0xff]
        %v1624 = vld [vmem:[%s1616 + $0x38] sm:$0xff]
        %v1625 = vld [vmem:[%s1616 + $0x40] sm:$0xff]
        %v1626 = vld [vmem:[%s1616 + $0x48] sm:$0xff]
        %v1627 = vld [vmem:[%s1616 + $0x50] sm:$0xff]
        %v1628 = vld [vmem:[%s1616 + $0x58] sm:$0xff]
        %v1629 = vld [vmem:[%s1616 + $0x60] sm:$0xff]
        %v1630 = vld [vmem:[%s1616 + $0x68] sm:$0xff]
        %v1631 = vld [vmem:[%s1616 + $0x70] sm:$0xff]
        %v1632 = vld [vmem:[%s1616 + $0x78] sm:$0xff]
        %v1633 = vpack.c.bf16 %v1621, %v1617
        %v1634 = vpack.c.bf16 %v1622, %v1618
        %v1635 = vpack.c.bf16 %v1623, %v1619
        %v1636 = vpack.c.bf16 %v1624, %v1620
        %v1637 = vpack.c.bf16 %v1629, %v1625
        %v1638 = vpack.c.bf16 %v1630, %v1626
        %v1639 = vpack.c.bf16 %v1631, %v1627
        %v1640 = vpack.c.bf16 %v1632, %v1628
        %1641 = vmatpush.bf16.msra.mxu0 0
        %1642 = vmatpush.bf16.msra.mxu0 0
        %1643 = vmatpush.bf16.msra.mxu0 0
        %1644 = vmatpush.bf16.msra.mxu0 0
        %1645 = vmatpush.bf16.msra.mxu0 0
        %1646 = vmatpush.bf16.msra.mxu0 0
        %1647 = vmatpush.bf16.msra.mxu0 %v1637
        %1648 = vmatpush.bf16.msra.mxu0 %v1633
        %1649 = vmatmul.bf16.gmra.mxu0 %v1408
        %v1650 = vpop.f32.mrf.mxu0
        %v1651 = vadd.f32 %v1405, %v1650
        %v1652 = vpop.f32.mrf.mxu0
        %1653 = vdwg.mxu0
        %1654 = vmatpush.bf16.msra.mxu0 0
        %1655 = vmatpush.bf16.msra.mxu0 0
        %1656 = vmatpush.bf16.msra.mxu0 0
        %1657 = vmatpush.bf16.msra.mxu0 0
        %1658 = vmatpush.bf16.msra.mxu0 0
        %1659 = vmatpush.bf16.msra.mxu0 0
        %1660 = vmatpush.bf16.msra.mxu0 %v1638
        %1661 = vmatpush.bf16.msra.mxu0 %v1634
        %1662 = vmatmul.bf16.gmra.mxu0 %v1408
        %v1663 = vpop.f32.mrf.mxu0
        %v1664 = vadd.f32 %v1405, %v1663
        %v1665 = vpop.f32.mrf.mxu0
        %1666 = vdwg.mxu0
        %1667 = vmatpush.bf16.msra.mxu0 0
        %1668 = vmatpush.bf16.msra.mxu0 0
        %1669 = vmatpush.bf16.msra.mxu0 0
        %1670 = vmatpush.bf16.msra.mxu0 0
        %1671 = vmatpush.bf16.msra.mxu0 0
        %1672 = vmatpush.bf16.msra.mxu0 0
        %1673 = vmatpush.bf16.msra.mxu0 %v1639
        %1674 = vmatpush.bf16.msra.mxu0 %v1635
        %1675 = vmatmul.bf16.gmra.mxu0 %v1408
        %v1676 = vpop.f32.mrf.mxu0
        %v1677 = vadd.f32 %v1405, %v1676
        %v1678 = vpop.f32.mrf.mxu0
        %1679 = vdwg.mxu0
        %1680 = vmatpush.bf16.msra.mxu0 0
        %1681 = vmatpush.bf16.msra.mxu0 0
        %1682 = vmatpush.bf16.msra.mxu0 0
        %1683 = vmatpush.bf16.msra.mxu0 0
        %1684 = vmatpush.bf16.msra.mxu0 0
        %1685 = vmatpush.bf16.msra.mxu0 0
        %1686 = vmatpush.bf16.msra.mxu0 %v1640
        %1687 = vmatpush.bf16.msra.mxu0 %v1636
        %1688 = vmatmul.bf16.gmra.mxu0 %v1408
        %v1689 = vpop.f32.mrf.mxu0
        %v1690 = vadd.f32 %v1405, %v1689
        %v1691 = vpop.f32.mrf.mxu0
        %1692 = vdwg.mxu0
        %v1693 = vmul.f32 %v1420, %v629
        %v1694 = vmul.f32 %v1433, %v642
        %v1695 = vmul.f32 %v1446, %v655
        %v1696 = vmul.f32 %v1459, %v668
        %v1697 = vadd.f32 %v1693, %v1694
        %v1698 = vadd.f32 %v1697, %v1695
        %v1699 = vadd.f32 %v1698, %v1696
        %1700 = vadd.xlane.f32.xlu0 %v1699
        %v1701 = vpop.xlane.xlu0 %1700
        %v1702 = vrot.slane %v1701, 4
        %v1703 = vadd.f32 %v1701, %v1702
        %v1704 = vrot.slane %v1703, 2
        %v1705 = vadd.f32 %v1703, %v1704
        %v1706 = vrot.slane %v1705, 1
        %v1707 = vadd.f32 %v1705, %v1706
        %v1708 = vmul.f32 %v1420, %v730
        %v1709 = vmul.f32 %v1433, %v743
        %v1710 = vmul.f32 %v1446, %v756
        %v1711 = vmul.f32 %v1459, %v769
        %v1712 = vadd.f32 %v1708, %v1709
        %v1713 = vadd.f32 %v1712, %v1710
        %v1714 = vadd.f32 %v1713, %v1711
        %1715 = vadd.xlane.f32.xlu0 %v1714
        %v1716 = vpop.xlane.xlu0 %1715
        %v1717 = vrot.slane %v1716, 4
        %v1718 = vadd.f32 %v1716, %v1717
        %v1719 = vrot.slane %v1718, 2
        %v1720 = vadd.f32 %v1718, %v1719
        %v1721 = vrot.slane %v1720, 1
        %v1722 = vadd.f32 %v1720, %v1721
        %v1723 = vmul.f32 %v1420, %v831
        %v1724 = vmul.f32 %v1433, %v844
        %v1725 = vmul.f32 %v1446, %v857
        %v1726 = vmul.f32 %v1459, %v870
        %v1727 = vadd.f32 %v1723, %v1724
        %v1728 = vadd.f32 %v1727, %v1725
        %v1729 = vadd.f32 %v1728, %v1726
        %1730 = vadd.xlane.f32.xlu0 %v1729
        %v1731 = vpop.xlane.xlu0 %1730
        %v1732 = vrot.slane %v1731, 4
        %v1733 = vadd.f32 %v1731, %v1732
        %v1734 = vrot.slane %v1733, 2
        %v1735 = vadd.f32 %v1733, %v1734
        %v1736 = vrot.slane %v1735, 1
        %v1737 = vadd.f32 %v1735, %v1736
        %v1738 = vmul.f32 %v1420, %v932
        %v1739 = vmul.f32 %v1433, %v945
        %v1740 = vmul.f32 %v1446, %v958
        %v1741 = vmul.f32 %v1459, %v971
        %v1742 = vadd.f32 %v1738, %v1739
        %v1743 = vadd.f32 %v1742, %v1740
        %v1744 = vadd.f32 %v1743, %v1741
        %1745 = vadd.xlane.f32.xlu0 %v1744
        %v1746 = vpop.xlane.xlu0 %1745
        %v1747 = vrot.slane %v1746, 4
        %v1748 = vadd.f32 %v1746, %v1747
        %v1749 = vrot.slane %v1748, 2
        %v1750 = vadd.f32 %v1748, %v1749
        %v1751 = vrot.slane %v1750, 1
        %v1752 = vadd.f32 %v1750, %v1751
        %v1753 = vmul.f32 %v1420, %v1033
        %v1754 = vmul.f32 %v1433, %v1046
        %v1755 = vmul.f32 %v1446, %v1059
        %v1756 = vmul.f32 %v1459, %v1072
        %v1757 = vadd.f32 %v1753, %v1754
        %v1758 = vadd.f32 %v1757, %v1755
        %v1759 = vadd.f32 %v1758, %v1756
        %1760 = vadd.xlane.f32.xlu0 %v1759
        %v1761 = vpop.xlane.xlu0 %1760
        %v1762 = vrot.slane %v1761, 4
        %v1763 = vadd.f32 %v1761, %v1762
        %v1764 = vrot.slane %v1763, 2
        %v1765 = vadd.f32 %v1763, %v1764
        %v1766 = vrot.slane %v1765, 1
        %v1767 = vadd.f32 %v1765, %v1766
        %v1768 = vmul.f32 %v1420, %v1134
        %v1769 = vmul.f32 %v1433, %v1147
        %v1770 = vmul.f32 %v1446, %v1160
        %v1771 = vmul.f32 %v1459, %v1173
        %v1772 = vadd.f32 %v1768, %v1769
        %v1773 = vadd.f32 %v1772, %v1770
        %v1774 = vadd.f32 %v1773, %v1771
        %1775 = vadd.xlane.f32.xlu0 %v1774
        %v1776 = vpop.xlane.xlu0 %1775
        %v1777 = vrot.slane %v1776, 4
        %v1778 = vadd.f32 %v1776, %v1777
        %v1779 = vrot.slane %v1778, 2
        %v1780 = vadd.f32 %v1778, %v1779
        %v1781 = vrot.slane %v1780, 1
        %v1782 = vadd.f32 %v1780, %v1781
        %v1783 = vmul.f32 %v1420, %v1235
        %v1784 = vmul.f32 %v1433, %v1248
        %v1785 = vmul.f32 %v1446, %v1261
        %v1786 = vmul.f32 %v1459, %v1274
        %v1787 = vadd.f32 %v1783, %v1784
        %v1788 = vadd.f32 %v1787, %v1785
        %v1789 = vadd.f32 %v1788, %v1786
        %1790 = vadd.xlane.f32.xlu0 %v1789
        %v1791 = vpop.xlane.xlu0 %1790
        %v1792 = vrot.slane %v1791, 4
        %v1793 = vadd.f32 %v1791, %v1792
        %v1794 = vrot.slane %v1793, 2
        %v1795 = vadd.f32 %v1793, %v1794
        %v1796 = vrot.slane %v1795, 1
        %v1797 = vadd.f32 %v1795, %v1796
        %v1798 = vmul.f32 %v1420, %v1336
        %v1799 = vmul.f32 %v1433, %v1349
        %v1800 = vmul.f32 %v1446, %v1362
        %v1801 = vmul.f32 %v1459, %v1375
        %v1802 = vadd.f32 %v1798, %v1799
        %v1803 = vadd.f32 %v1802, %v1800
        %v1804 = vadd.f32 %v1803, %v1801
        %1805 = vadd.xlane.f32.xlu0 %v1804
        %v1806 = vpop.xlane.xlu0 %1805
        %v1807 = vrot.slane %v1806, 4
        %v1808 = vadd.f32 %v1806, %v1807
        %v1809 = vrot.slane %v1808, 2
        %v1810 = vadd.f32 %v1808, %v1809
        %v1811 = vrot.slane %v1810, 1
        %v1812 = vadd.f32 %v1810, %v1811
        %vm1813 = vcmask 7168
        %v1814 = vsel %vm1813, %v1707, %v1722
        %vm1815 = vcmask 15360
        %v1816 = vsel %vm1815, %v1814, %v1737
        %vm1817 = vcmask 23552
        %v1818 = vsel %vm1817, %v1816, %v1752
        %vm1819 = vcmask 31744
        %v1820 = vsel %vm1819, %v1818, %v1767
        %vm1821 = vcmask 39936
        %v1822 = vsel %vm1821, %v1820, %v1782
        %vm1823 = vcmask 48128
        %v1824 = vsel %vm1823, %v1822, %v1797
        %vm1825 = vcmask 56320
        %v1826 = vsel %vm1825, %v1824, %v1812
        %v1827 = vmul.f32 %v1497, %v629
        %v1828 = vmul.f32 %v1510, %v642
        %v1829 = vmul.f32 %v1523, %v655
        %v1830 = vmul.f32 %v1536, %v668
        %v1831 = vadd.f32 %v1827, %v1828
        %v1832 = vadd.f32 %v1831, %v1829
        %v1833 = vadd.f32 %v1832, %v1830
        %1834 = vadd.xlane.f32.xlu0 %v1833
        %v1835 = vpop.xlane.xlu0 %1834
        %v1836 = vrot.slane %v1835, 4
        %v1837 = vadd.f32 %v1835, %v1836
        %v1838 = vrot.slane %v1837, 2
        %v1839 = vadd.f32 %v1837, %v1838
        %v1840 = vrot.slane %v1839, 1
        %v1841 = vadd.f32 %v1839, %v1840
        %v1842 = vmul.f32 %v1497, %v730
        %v1843 = vmul.f32 %v1510, %v743
        %v1844 = vmul.f32 %v1523, %v756
        %v1845 = vmul.f32 %v1536, %v769
        %v1846 = vadd.f32 %v1842, %v1843
        %v1847 = vadd.f32 %v1846, %v1844
        %v1848 = vadd.f32 %v1847, %v1845
        %1849 = vadd.xlane.f32.xlu0 %v1848
        %v1850 = vpop.xlane.xlu0 %1849
        %v1851 = vrot.slane %v1850, 4
        %v1852 = vadd.f32 %v1850, %v1851
        %v1853 = vrot.slane %v1852, 2
        %v1854 = vadd.f32 %v1852, %v1853
        %v1855 = vrot.slane %v1854, 1
        %v1856 = vadd.f32 %v1854, %v1855
        %v1857 = vmul.f32 %v1497, %v831
        %v1858 = vmul.f32 %v1510, %v844
        %v1859 = vmul.f32 %v1523, %v857
        %v1860 = vmul.f32 %v1536, %v870
        %v1861 = vadd.f32 %v1857, %v1858
        %v1862 = vadd.f32 %v1861, %v1859
        %v1863 = vadd.f32 %v1862, %v1860
        %1864 = vadd.xlane.f32.xlu0 %v1863
        %v1865 = vpop.xlane.xlu0 %1864
        %v1866 = vrot.slane %v1865, 4
        %v1867 = vadd.f32 %v1865, %v1866
        %v1868 = vrot.slane %v1867, 2
        %v1869 = vadd.f32 %v1867, %v1868
        %v1870 = vrot.slane %v1869, 1
        %v1871 = vadd.f32 %v1869, %v1870
        %v1872 = vmul.f32 %v1497, %v932
        %v1873 = vmul.f32 %v1510, %v945
        %v1874 = vmul.f32 %v1523, %v958
        %v1875 = vmul.f32 %v1536, %v971
        %v1876 = vadd.f32 %v1872, %v1873
        %v1877 = vadd.f32 %v1876, %v1874
        %v1878 = vadd.f32 %v1877, %v1875
        %1879 = vadd.xlane.f32.xlu0 %v1878
        %v1880 = vpop.xlane.xlu0 %1879
        %v1881 = vrot.slane %v1880, 4
        %v1882 = vadd.f32 %v1880, %v1881
        %v1883 = vrot.slane %v1882, 2
        %v1884 = vadd.f32 %v1882, %v1883
        %v1885 = vrot.slane %v1884, 1
        %v1886 = vadd.f32 %v1884, %v1885
        %v1887 = vmul.f32 %v1497, %v1033
        %v1888 = vmul.f32 %v1510, %v1046
        %v1889 = vmul.f32 %v1523, %v1059
        %v1890 = vmul.f32 %v1536, %v1072
        %v1891 = vadd.f32 %v1887, %v1888
        %v1892 = vadd.f32 %v1891, %v1889
        %v1893 = vadd.f32 %v1892, %v1890
        %1894 = vadd.xlane.f32.xlu0 %v1893
        %v1895 = vpop.xlane.xlu0 %1894
        %v1896 = vrot.slane %v1895, 4
        %v1897 = vadd.f32 %v1895, %v1896
        %v1898 = vrot.slane %v1897, 2
        %v1899 = vadd.f32 %v1897, %v1898
        %v1900 = vrot.slane %v1899, 1
        %v1901 = vadd.f32 %v1899, %v1900
        %v1902 = vmul.f32 %v1497, %v1134
        %v1903 = vmul.f32 %v1510, %v1147
        %v1904 = vmul.f32 %v1523, %v1160
        %v1905 = vmul.f32 %v1536, %v1173
        %v1906 = vadd.f32 %v1902, %v1903
        %v1907 = vadd.f32 %v1906, %v1904
        %v1908 = vadd.f32 %v1907, %v1905
        %1909 = vadd.xlane.f32.xlu0 %v1908
        %v1910 = vpop.xlane.xlu0 %1909
        %v1911 = vrot.slane %v1910, 4
        %v1912 = vadd.f32 %v1910, %v1911
        %v1913 = vrot.slane %v1912, 2
        %v1914 = vadd.f32 %v1912, %v1913
        %v1915 = vrot.slane %v1914, 1
        %v1916 = vadd.f32 %v1914, %v1915
        %v1917 = vmul.f32 %v1497, %v1235
        %v1918 = vmul.f32 %v1510, %v1248
        %v1919 = vmul.f32 %v1523, %v1261
        %v1920 = vmul.f32 %v1536, %v1274
        %v1921 = vadd.f32 %v1917, %v1918
        %v1922 = vadd.f32 %v1921, %v1919
        %v1923 = vadd.f32 %v1922, %v1920
        %1924 = vadd.xlane.f32.xlu0 %v1923
        %v1925 = vpop.xlane.xlu0 %1924
        %v1926 = vrot.slane %v1925, 4
        %v1927 = vadd.f32 %v1925, %v1926
        %v1928 = vrot.slane %v1927, 2
        %v1929 = vadd.f32 %v1927, %v1928
        %v1930 = vrot.slane %v1929, 1
        %v1931 = vadd.f32 %v1929, %v1930
        %v1932 = vmul.f32 %v1497, %v1336
        %v1933 = vmul.f32 %v1510, %v1349
        %v1934 = vmul.f32 %v1523, %v1362
        %v1935 = vmul.f32 %v1536, %v1375
        %v1936 = vadd.f32 %v1932, %v1933
        %v1937 = vadd.f32 %v1936, %v1934
        %v1938 = vadd.f32 %v1937, %v1935
        %1939 = vadd.xlane.f32.xlu0 %v1938
        %v1940 = vpop.xlane.xlu0 %1939
        %v1941 = vrot.slane %v1940, 4
        %v1942 = vadd.f32 %v1940, %v1941
        %v1943 = vrot.slane %v1942, 2
        %v1944 = vadd.f32 %v1942, %v1943
        %v1945 = vrot.slane %v1944, 1
        %v1946 = vadd.f32 %v1944, %v1945
        %v1947 = vsel %vm1813, %v1841, %v1856
        %v1948 = vsel %vm1815, %v1947, %v1871
        %v1949 = vsel %vm1817, %v1948, %v1886
        %v1950 = vsel %vm1819, %v1949, %v1901
        %v1951 = vsel %vm1821, %v1950, %v1916
        %v1952 = vsel %vm1823, %v1951, %v1931
        %v1953 = vsel %vm1825, %v1952, %v1946
        %v1954 = vmul.f32 %v1574, %v629
        %v1955 = vmul.f32 %v1587, %v642
        %v1956 = vmul.f32 %v1600, %v655
        %v1957 = vmul.f32 %v1613, %v668
        %v1958 = vadd.f32 %v1954, %v1955
        %v1959 = vadd.f32 %v1958, %v1956
        %v1960 = vadd.f32 %v1959, %v1957
        %1961 = vadd.xlane.f32.xlu0 %v1960
        %v1962 = vpop.xlane.xlu0 %1961
        %v1963 = vrot.slane %v1962, 4
        %v1964 = vadd.f32 %v1962, %v1963
        %v1965 = vrot.slane %v1964, 2
        %v1966 = vadd.f32 %v1964, %v1965
        %v1967 = vrot.slane %v1966, 1
        %v1968 = vadd.f32 %v1966, %v1967
        %v1969 = vmul.f32 %v1574, %v730
        %v1970 = vmul.f32 %v1587, %v743
        %v1971 = vmul.f32 %v1600, %v756
        %v1972 = vmul.f32 %v1613, %v769
        %v1973 = vadd.f32 %v1969, %v1970
        %v1974 = vadd.f32 %v1973, %v1971
        %v1975 = vadd.f32 %v1974, %v1972
        %1976 = vadd.xlane.f32.xlu0 %v1975
        %v1977 = vpop.xlane.xlu0 %1976
        %v1978 = vrot.slane %v1977, 4
        %v1979 = vadd.f32 %v1977, %v1978
        %v1980 = vrot.slane %v1979, 2
        %v1981 = vadd.f32 %v1979, %v1980
        %v1982 = vrot.slane %v1981, 1
        %v1983 = vadd.f32 %v1981, %v1982
        %v1984 = vmul.f32 %v1574, %v831
        %v1985 = vmul.f32 %v1587, %v844
        %v1986 = vmul.f32 %v1600, %v857
        %v1987 = vmul.f32 %v1613, %v870
        %v1988 = vadd.f32 %v1984, %v1985
        %v1989 = vadd.f32 %v1988, %v1986
        %v1990 = vadd.f32 %v1989, %v1987
        %1991 = vadd.xlane.f32.xlu0 %v1990
        %v1992 = vpop.xlane.xlu0 %1991
        %v1993 = vrot.slane %v1992, 4
        %v1994 = vadd.f32 %v1992, %v1993
        %v1995 = vrot.slane %v1994, 2
        %v1996 = vadd.f32 %v1994, %v1995
        %v1997 = vrot.slane %v1996, 1
        %v1998 = vadd.f32 %v1996, %v1997
        %v1999 = vmul.f32 %v1574, %v932
        %v2000 = vmul.f32 %v1587, %v945
        %v2001 = vmul.f32 %v1600, %v958
        %v2002 = vmul.f32 %v1613, %v971
        %v2003 = vadd.f32 %v1999, %v2000
        %v2004 = vadd.f32 %v2003, %v2001
        %v2005 = vadd.f32 %v2004, %v2002
        %2006 = vadd.xlane.f32.xlu0 %v2005
        %v2007 = vpop.xlane.xlu0 %2006
        %v2008 = vrot.slane %v2007, 4
        %v2009 = vadd.f32 %v2007, %v2008
        %v2010 = vrot.slane %v2009, 2
        %v2011 = vadd.f32 %v2009, %v2010
        %v2012 = vrot.slane %v2011, 1
        %v2013 = vadd.f32 %v2011, %v2012
        %v2014 = vmul.f32 %v1574, %v1033
        %v2015 = vmul.f32 %v1587, %v1046
        %v2016 = vmul.f32 %v1600, %v1059
        %v2017 = vmul.f32 %v1613, %v1072
        %v2018 = vadd.f32 %v2014, %v2015
        %v2019 = vadd.f32 %v2018, %v2016
        %v2020 = vadd.f32 %v2019, %v2017
        %2021 = vadd.xlane.f32.xlu0 %v2020
        %v2022 = vpop.xlane.xlu0 %2021
        %v2023 = vrot.slane %v2022, 4
        %v2024 = vadd.f32 %v2022, %v2023
        %v2025 = vrot.slane %v2024, 2
        %v2026 = vadd.f32 %v2024, %v2025
        %v2027 = vrot.slane %v2026, 1
        %v2028 = vadd.f32 %v2026, %v2027
        %v2029 = vmul.f32 %v1574, %v1134
        %v2030 = vmul.f32 %v1587, %v1147
        %v2031 = vmul.f32 %v1600, %v1160
        %v2032 = vmul.f32 %v1613, %v1173
        %v2033 = vadd.f32 %v2029, %v2030
        %v2034 = vadd.f32 %v2033, %v2031
        %v2035 = vadd.f32 %v2034, %v2032
        %2036 = vadd.xlane.f32.xlu0 %v2035
        %v2037 = vpop.xlane.xlu0 %2036
        %v2038 = vrot.slane %v2037, 4
        %v2039 = vadd.f32 %v2037, %v2038
        %v2040 = vrot.slane %v2039, 2
        %v2041 = vadd.f32 %v2039, %v2040
        %v2042 = vrot.slane %v2041, 1
        %v2043 = vadd.f32 %v2041, %v2042
        %v2044 = vmul.f32 %v1574, %v1235
        %v2045 = vmul.f32 %v1587, %v1248
        %v2046 = vmul.f32 %v1600, %v1261
        %v2047 = vmul.f32 %v1613, %v1274
        %v2048 = vadd.f32 %v2044, %v2045
        %v2049 = vadd.f32 %v2048, %v2046
        %v2050 = vadd.f32 %v2049, %v2047
        %2051 = vadd.xlane.f32.xlu0 %v2050
        %v2052 = vpop.xlane.xlu0 %2051
        %v2053 = vrot.slane %v2052, 4
        %v2054 = vadd.f32 %v2052, %v2053
        %v2055 = vrot.slane %v2054, 2
        %v2056 = vadd.f32 %v2054, %v2055
        %v2057 = vrot.slane %v2056, 1
        %v2058 = vadd.f32 %v2056, %v2057
        %v2059 = vmul.f32 %v1574, %v1336
        %v2060 = vmul.f32 %v1587, %v1349
        %v2061 = vmul.f32 %v1600, %v1362
        %v2062 = vmul.f32 %v1613, %v1375
        %v2063 = vadd.f32 %v2059, %v2060
        %v2064 = vadd.f32 %v2063, %v2061
        %v2065 = vadd.f32 %v2064, %v2062
        %2066 = vadd.xlane.f32.xlu0 %v2065
        %v2067 = vpop.xlane.xlu0 %2066
        %v2068 = vrot.slane %v2067, 4
        %v2069 = vadd.f32 %v2067, %v2068
        %v2070 = vrot.slane %v2069, 2
        %v2071 = vadd.f32 %v2069, %v2070
        %v2072 = vrot.slane %v2071, 1
        %v2073 = vadd.f32 %v2071, %v2072
        %v2074 = vsel %vm1813, %v1968, %v1983
        %v2075 = vsel %vm1815, %v2074, %v1998
        %v2076 = vsel %vm1817, %v2075, %v2013
        %v2077 = vsel %vm1819, %v2076, %v2028
        %v2078 = vsel %vm1821, %v2077, %v2043
        %v2079 = vsel %vm1823, %v2078, %v2058
        %v2080 = vsel %vm1825, %v2079, %v2073
        %v2081 = vmul.f32 %v1651, %v629
        %v2082 = vmul.f32 %v1664, %v642
        %v2083 = vmul.f32 %v1677, %v655
        %v2084 = vmul.f32 %v1690, %v668
        %v2085 = vadd.f32 %v2081, %v2082
        %v2086 = vadd.f32 %v2085, %v2083
        %v2087 = vadd.f32 %v2086, %v2084
        %2088 = vadd.xlane.f32.xlu0 %v2087
        %v2089 = vpop.xlane.xlu0 %2088
        %v2090 = vrot.slane %v2089, 4
        %v2091 = vadd.f32 %v2089, %v2090
        %v2092 = vrot.slane %v2091, 2
        %v2093 = vadd.f32 %v2091, %v2092
        %v2094 = vrot.slane %v2093, 1
        %v2095 = vadd.f32 %v2093, %v2094
        %v2096 = vmul.f32 %v1651, %v730
        %v2097 = vmul.f32 %v1664, %v743
        %v2098 = vmul.f32 %v1677, %v756
        %v2099 = vmul.f32 %v1690, %v769
        %v2100 = vadd.f32 %v2096, %v2097
        %v2101 = vadd.f32 %v2100, %v2098
        %v2102 = vadd.f32 %v2101, %v2099
        %2103 = vadd.xlane.f32.xlu0 %v2102
        %v2104 = vpop.xlane.xlu0 %2103
        %v2105 = vrot.slane %v2104, 4
        %v2106 = vadd.f32 %v2104, %v2105
        %v2107 = vrot.slane %v2106, 2
        %v2108 = vadd.f32 %v2106, %v2107
        %v2109 = vrot.slane %v2108, 1
        %v2110 = vadd.f32 %v2108, %v2109
        %v2111 = vmul.f32 %v1651, %v831
        %v2112 = vmul.f32 %v1664, %v844
        %v2113 = vmul.f32 %v1677, %v857
        %v2114 = vmul.f32 %v1690, %v870
        %v2115 = vadd.f32 %v2111, %v2112
        %v2116 = vadd.f32 %v2115, %v2113
        %v2117 = vadd.f32 %v2116, %v2114
        %2118 = vadd.xlane.f32.xlu0 %v2117
        %v2119 = vpop.xlane.xlu0 %2118
        %v2120 = vrot.slane %v2119, 4
        %v2121 = vadd.f32 %v2119, %v2120
        %v2122 = vrot.slane %v2121, 2
        %v2123 = vadd.f32 %v2121, %v2122
        %v2124 = vrot.slane %v2123, 1
        %v2125 = vadd.f32 %v2123, %v2124
        %v2126 = vmul.f32 %v1651, %v932
        %v2127 = vmul.f32 %v1664, %v945
        %v2128 = vmul.f32 %v1677, %v958
        %v2129 = vmul.f32 %v1690, %v971
        %v2130 = vadd.f32 %v2126, %v2127
        %v2131 = vadd.f32 %v2130, %v2128
        %v2132 = vadd.f32 %v2131, %v2129
        %2133 = vadd.xlane.f32.xlu0 %v2132
        %v2134 = vpop.xlane.xlu0 %2133
        %v2135 = vrot.slane %v2134, 4
        %v2136 = vadd.f32 %v2134, %v2135
        %v2137 = vrot.slane %v2136, 2
        %v2138 = vadd.f32 %v2136, %v2137
        %v2139 = vrot.slane %v2138, 1
        %v2140 = vadd.f32 %v2138, %v2139
        %v2141 = vmul.f32 %v1651, %v1033
        %v2142 = vmul.f32 %v1664, %v1046
        %v2143 = vmul.f32 %v1677, %v1059
        %v2144 = vmul.f32 %v1690, %v1072
        %v2145 = vadd.f32 %v2141, %v2142
        %v2146 = vadd.f32 %v2145, %v2143
        %v2147 = vadd.f32 %v2146, %v2144
        %2148 = vadd.xlane.f32.xlu0 %v2147
        %v2149 = vpop.xlane.xlu0 %2148
        %v2150 = vrot.slane %v2149, 4
        %v2151 = vadd.f32 %v2149, %v2150
        %v2152 = vrot.slane %v2151, 2
        %v2153 = vadd.f32 %v2151, %v2152
        %v2154 = vrot.slane %v2153, 1
        %v2155 = vadd.f32 %v2153, %v2154
        %v2156 = vmul.f32 %v1651, %v1134
        %v2157 = vmul.f32 %v1664, %v1147
        %v2158 = vmul.f32 %v1677, %v1160
        %v2159 = vmul.f32 %v1690, %v1173
        %v2160 = vadd.f32 %v2156, %v2157
        %v2161 = vadd.f32 %v2160, %v2158
        %v2162 = vadd.f32 %v2161, %v2159
        %2163 = vadd.xlane.f32.xlu0 %v2162
        %v2164 = vpop.xlane.xlu0 %2163
        %v2165 = vrot.slane %v2164, 4
        %v2166 = vadd.f32 %v2164, %v2165
        %v2167 = vrot.slane %v2166, 2
        %v2168 = vadd.f32 %v2166, %v2167
        %v2169 = vrot.slane %v2168, 1
        %v2170 = vadd.f32 %v2168, %v2169
        %v2171 = vmul.f32 %v1651, %v1235
        %v2172 = vmul.f32 %v1664, %v1248
        %v2173 = vmul.f32 %v1677, %v1261
        %v2174 = vmul.f32 %v1690, %v1274
        %v2175 = vadd.f32 %v2171, %v2172
        %v2176 = vadd.f32 %v2175, %v2173
        %v2177 = vadd.f32 %v2176, %v2174
        %2178 = vadd.xlane.f32.xlu0 %v2177
        %v2179 = vpop.xlane.xlu0 %2178
        %v2180 = vrot.slane %v2179, 4
        %v2181 = vadd.f32 %v2179, %v2180
        %v2182 = vrot.slane %v2181, 2
        %v2183 = vadd.f32 %v2181, %v2182
        %v2184 = vrot.slane %v2183, 1
        %v2185 = vadd.f32 %v2183, %v2184
        %v2186 = vmul.f32 %v1651, %v1336
        %v2187 = vmul.f32 %v1664, %v1349
        %v2188 = vmul.f32 %v1677, %v1362
        %v2189 = vmul.f32 %v1690, %v1375
        %v2190 = vadd.f32 %v2186, %v2187
        %v2191 = vadd.f32 %v2190, %v2188
        %v2192 = vadd.f32 %v2191, %v2189
        %2193 = vadd.xlane.f32.xlu0 %v2192
        %v2194 = vpop.xlane.xlu0 %2193
        %v2195 = vrot.slane %v2194, 4
        %v2196 = vadd.f32 %v2194, %v2195
        %v2197 = vrot.slane %v2196, 2
        %v2198 = vadd.f32 %v2196, %v2197
        %v2199 = vrot.slane %v2198, 1
        %v2200 = vadd.f32 %v2198, %v2199
        %v2201 = vsel %vm1813, %v2095, %v2110
        %v2202 = vsel %vm1815, %v2201, %v2125
        %v2203 = vsel %vm1817, %v2202, %v2140
        %v2204 = vsel %vm1819, %v2203, %v2155
        %v2205 = vsel %vm1821, %v2204, %v2170
        %v2206 = vsel %vm1823, %v2205, %v2185
        %v2207 = vsel %vm1825, %v2206, %v2200
        %v2208 = vld [vmem:[#allocation2] sm:$0xf]
        %v2210 = vrot.slane %v1953, 7
        %v2213 = vrot.slane %v2080, 6
        %v2216 = vrot.slane %v2207, 5
        %vm2218 = vcmask 1040384
        %v2219 = vsel %vm2218, %v1826, %v2210
        %vm2220 = vcmask 1041408
        %v2221 = vsel %vm2220, %v2219, %v2213
        %vm2222 = vcmask 1042432
        %v2223 = vsel %vm2222, %v2221, %v2216
        %v2224 = vadd.f32 %v2208, %v2223
        %vm2225 = vcmask 60416
        %2226 = vst.msk [vmem:[#allocation2] sm:$0xf] %vm2225, %v2224
        %p2227 = scmp.eq.s32.totalorder %s17, 1
        // Predicated region
        $region95: #{self_attn_forward.2} parent=81 // pred_check
          %p2228 = pneg %p2227
        $region96: #{self_attn_forward.2} parent=81 // pred_check_branch
          %2230 = sbr.rel (%p2228) target = $region98
        $region97: #{self_attn_forward.2} parent=81 // pred_region
          %v2231 = vld [vmem:[#allocation2] sm:$0xf]
          %v2232 = vsel %vm2225, %v2231, -inf
          %2233 = vmax.xlane.f32.xlu0 %v2232
          %v2234 = vpop.xlane.xlu0 %2233
          %v2235 = vsub.f32 %v2231, %v2234
          %v2236 = vmul.f32 %v2235, 1.442695
          %v2237 = vpow.pop %v2236
          %v2238 = vsel %vm2225, %v2237, 0.0
          %2239 = vadd.xlane.f32.xlu0 %v2238
          %v2240 = vpop.xlane.xlu0 %2239
          %v2241 = vrcp.pop %v2240
          %v2242 = vmul.f32 %v2237, %v2241
          %2243 = vst.msk [vmem:[%s6] sm:$0xf] %vm2225, %v2242
        $region98: #{self_attn_forward.2} parent=81 // pred_fallthru
          _
        // Predicated region
        $region99: #{self_attn_forward.2} parent=81 // pred_check
          %p2244 = pneg %p166
        $region100: #{self_attn_forward.2} parent=81 // pred_check_branch
          %2246 = sbr.rel (%p2244) target = $region102
        $region101: #{self_attn_forward.2} parent=81 // pred_region
          _
        $region102: #{self_attn_forward.2} parent=81 // pred_fallthru
          _
        // Predicated region
        $region103: #{self_attn_forward.2} parent=81 // pred_check
          %p2247 = pneg %p166
        $region104: #{self_attn_forward.2} parent=81 // pred_check_branch
          %2249 = sbr.rel (%p2247) target = $region106
        $region105: #{self_attn_forward.2} parent=81 // pred_region
          _
        $region106: #{self_attn_forward.2} parent=81 // pred_fallthru
          _
      $region82: #{self_attn_forward.2} parent=5 // pred_fallthru
        _
      %p2250 = scmp.le.s32.totalorder 2, %s12
      // Predicated region
      $region107: #{self_attn_forward.2} parent=5 // pred_check
        %p2251 = pneg %p2250
      $region108: #{self_attn_forward.2} parent=5 // pred_check_branch
        %2253 = sbr.rel (%p2251) target = $region110
      $region109: #{self_attn_forward.2} parent=5 // pred_region
        %s2254 = ssub.s32 %s12, 2
      $region110: #{self_attn_forward.2} parent=5 // pred_fallthru
        _
    $region6: #{self_attn_forward.2} parent=1 // loop_footer
      %s16 = sadd.s32 1, %s12
    $region7: #{self_attn_forward.2} parent=1 // loop_footer_branch
      %11 = sbr.rel target = $region3
    $region8: #{self_attn_forward.2} parent=1 // loop_exit
      _

// kernel: self_attn_forward.3
$region0: #{self_attn_forward.3}
  #allocation0 [shape = 'u32[]', space=smem, size = 0x4, offset = 0x4, fixed_abs, tag = 'smem constant byte address 0x4 - core index']
  #allocation1 [shape = 'u32[72,128]{1,0:T(1,128)}', space=vmem, size = 0x9000, scoped, tag = 'internal scratch']
  #allocation2 [shape = 'f32[1]{0:T(128)S(6)}', space=smem, size = 0x200, scoped, tag = 'scoped memory for self_attn_forward.3']
  %s0 = inlined_call_operand.vmem [shape: f32[4,8], index: 0, kind: input, shape index: {}]
  %s1 = inlined_call_operand.<no memory space> [shape: f32[1], index: 1, kind: input, shape index: {}]
  %s2 = inlined_call_operand.vmem [shape: bf16[8,32,1024], index: 2, kind: input, shape index: {}]
  %s3 = inlined_call_operand.vmem [shape: f32[4,32,1024], index: 3, kind: input, shape index: {}]
  %s4 = inlined_call_operand.vmem [shape: bf16[32,32], index: 4, kind: input, shape index: {}]
  %s5 = inlined_call_operand.vmem [shape: f32[32,1], index: 5, kind: input, shape index: {}]
  %s6 = inlined_call_operand.vmem [shape: f32[4,32,1024], index: 6, kind: output, shape index: {}]
  %s7 = sld [smem:[#allocation0]]
  $region126: #{self_attn_forward.3} parent=0
    _
  %s9 = ssub.s32 1, %s7
  %s10 = scalar_select 0, %s9, %s7
  %11 = sst [smem:[#allocation2]] %s1
  $region1: #{self_attn_forward.3} parent=0
    #allocation3 [shape = 'u8[2048]{0}', space=smem, size = 0x800, scoped, tag = 'input window, operand 0, single buffered']
    #allocation4 [shape = 's32[2]{0}', space=sflag, size = 0x8, scoped, tag = 'scoped memory for self_attn_forward.3']
    #allocation5 [shape = 'u8[524288]{0}', space=vmem, size = 0x80000, scoped, tag = 'input window, operand 2']
    #allocation6 [shape = 'u8[524288]{0}', space=vmem, size = 0x80000, scoped, tag = 'input window, operand 3']
    #allocation7 [shape = 'u8[524288]{0}', space=vmem, size = 0x80000, scoped, tag = 'output window, operand 0']
    %12 = vsyncpa [#allocation4], 0
    loop: start=0, step=1, limit=4
    $region2: #{self_attn_forward.3} parent=1 // loop_pre_header
      _
    $region3: #{self_attn_forward.3} parent=1 // loop_header
      %s14 = sphi 0, %s18
      %p15 = scmp.ge.s32.totalorder %s14, 4
      %s22 = sphi 0, %s22
      %s24 = sphi 0, %s22
      %s25 = sphi 0, %s24
      %s39 = sphi 0, %s25
      %s43 = sphi 0, %s43
      %s45 = sphi 0, %s43
      %s46 = sphi 0, %s45
      %s60 = sphi 0, %s46
      %s66 = sphi 0, %s68
      %s69 = sphi 0, %s66
      %s70 = sphi 0, %s69
      %s86 = sphi 0, %s70
      %s92 = sphi 0, %s94
      %s95 = sphi 0, %s92
      %s96 = sphi 0, %s95
      %s112 = sphi 0, %s96
      %s116 = sphi 0, %s116
      %s118 = sphi 0, %s116
      %s119 = sphi 0, %s118
      %s133 = sphi 0, %s119
      %s137 = sphi 0, %s137
      %s139 = sphi 0, %s137
      %s140 = sphi 0, %s139
      %s154 = sphi 0, %s140
      %s160 = sphi 0, %s162
      %s163 = sphi 0, %s160
      %s164 = sphi 0, %s163
      %s180 = sphi 0, %s164
    $region4: #{self_attn_forward.3} parent=1 // loop_header_branch
      %17 = sbr.rel (%p15) target = $region8
    $region5: #{self_attn_forward.3} parent=1 // loop_body
      %s19 = ssub.s32 %s14, 1
      %s20 = ssub.s32 %s14, 2
      %s21 = sadd.s32 %s14, 1
      %s23 = sadd.s32 %s22, 1
      %p26 = scmp.eq.s32.totalorder %s14, 1
      %p27 = scmp.ne.s32.totalorder %s22, %s24
      %p28 = scmp.eq.s32.totalorder %s14, 0
      %p29 = por %p27, %p28
      %p30 = scmp.ne.s32.totalorder %s22, %s24
      %p31 = scmp.eq.s32.totalorder %s19, 1
      %p32 = por %p30, %p31
      %p33 = scmp.ne.s32.totalorder %s24, %s25
      %p34 = scmp.eq.s32.totalorder %s19, 0
      %p35 = por %p33, %p34
      %p36 = scmp.ne.s32.totalorder %s24, %s25
      %p37 = scmp.eq.s32.totalorder %s20, 1
      %p38 = por %p36, %p37
      %p40 = scmp.ne.s32.totalorder %s25, %s39
      %p41 = scmp.eq.s32.totalorder %s20, 0
      %p42 = por %p40, %p41
      %s44 = sadd.s32 %s43, 1
      %p47 = scmp.eq.s32.totalorder %s14, 1
      %p48 = scmp.ne.s32.totalorder %s43, %s45
      %p49 = scmp.eq.s32.totalorder %s14, 0
      %p50 = por %p48, %p49
      %p51 = scmp.ne.s32.totalorder %s43, %s45
      %p52 = scmp.eq.s32.totalorder %s19, 1
      %p53 = por %p51, %p52
      %p54 = scmp.ne.s32.totalorder %s45, %s46
      %p55 = scmp.eq.s32.totalorder %s19, 0
      %p56 = por %p54, %p55
      %p57 = scmp.ne.s32.totalorder %s45, %s46
      %p58 = scmp.eq.s32.totalorder %s20, 1
      %p59 = por %p57, %p58
      %p61 = scmp.ne.s32.totalorder %s46, %s60
      %p62 = scmp.eq.s32.totalorder %s20, 0
      %p63 = por %p61, %p62
      %s64 = ssub.s32 %s14, %s21
      %p65 = scmp.eq.s32.totalorder %s64, 0
      %s67 = sadd.s32 %s66, 1
      %s68 = scalar_select %p65, %s66, %s67
      %p71 = pneg %p65
      %p72 = scmp.eq.s32.totalorder %s14, 1
      %p73 = por %p71, %p72
      %p74 = scmp.ne.s32.totalorder %s66, %s69
      %p75 = scmp.eq.s32.totalorder %s14, 0
      %p76 = por %p74, %p75
      %p77 = scmp.ne.s32.totalorder %s66, %s69
      %p78 = scmp.eq.s32.totalorder %s19, 1
      %p79 = por %p77, %p78
      %p80 = scmp.ne.s32.totalorder %s69, %s70
      %p81 = scmp.eq.s32.totalorder %s19, 0
      %p82 = por %p80, %p81
      %p83 = scmp.ne.s32.totalorder %s69, %s70
      %p84 = scmp.eq.s32.totalorder %s20, 1
      %p85 = por %p83, %p84
      %p87 = scmp.ne.s32.totalorder %s70, %s86
      %p88 = scmp.eq.s32.totalorder %s20, 0
      %p89 = por %p87, %p88
      %s90 = ssub.s32 %s14, %s21
      %p91 = scmp.eq.s32.totalorder %s90, 0
      %s93 = sadd.s32 %s92, 1
      %s94 = scalar_select %p91, %s92, %s93
      %p97 = pneg %p91
      %p98 = scmp.eq.s32.totalorder %s14, 1
      %p99 = por %p97, %p98
      %p100 = scmp.ne.s32.totalorder %s92, %s95
      %p101 = scmp.eq.s32.totalorder %s14, 0
      %p102 = por %p100, %p101
      %p103 = scmp.ne.s32.totalorder %s92, %s95
      %p104 = scmp.eq.s32.totalorder %s19, 1
      %p105 = por %p103, %p104
      %p106 = scmp.ne.s32.totalorder %s95, %s96
      %p107 = scmp.eq.s32.totalorder %s19, 0
      %p108 = por %p106, %p107
      %p109 = scmp.ne.s32.totalorder %s95, %s96
      %p110 = scmp.eq.s32.totalorder %s20, 1
      %p111 = por %p109, %p110
      %p113 = scmp.ne.s32.totalorder %s96, %s112
      %p114 = scmp.eq.s32.totalorder %s20, 0
      %p115 = por %p113, %p114
      %s117 = sadd.s32 %s116, 1
      %p120 = scmp.eq.s32.totalorder %s14, 1
      %p121 = scmp.ne.s32.totalorder %s116, %s118
      %p122 = scmp.eq.s32.totalorder %s14, 0
      %p123 = por %p121, %p122
      %p124 = scmp.ne.s32.totalorder %s116, %s118
      %p125 = scmp.eq.s32.totalorder %s19, 1
      %p126 = por %p124, %p125
      %p127 = scmp.ne.s32.totalorder %s118, %s119
      %p128 = scmp.eq.s32.totalorder %s19, 0
      %p129 = por %p127, %p128
      %p130 = scmp.ne.s32.totalorder %s118, %s119
      %p131 = scmp.eq.s32.totalorder %s20, 1
      %p132 = por %p130, %p131
      %p134 = scmp.ne.s32.totalorder %s119, %s133
      %p135 = scmp.eq.s32.totalorder %s20, 0
      %p136 = por %p134, %p135
      %s138 = sadd.s32 %s137, 1
      %p141 = scmp.eq.s32.totalorder %s14, 1
      %p142 = scmp.ne.s32.totalorder %s137, %s139
      %p143 = scmp.eq.s32.totalorder %s14, 0
      %p144 = por %p142, %p143
      %p145 = scmp.ne.s32.totalorder %s137, %s139
      %p146 = scmp.eq.s32.totalorder %s19, 1
      %p147 = por %p145, %p146
      %p148 = scmp.ne.s32.totalorder %s139, %s140
      %p149 = scmp.eq.s32.totalorder %s19, 0
      %p150 = por %p148, %p149
      %p151 = scmp.ne.s32.totalorder %s139, %s140
      %p152 = scmp.eq.s32.totalorder %s20, 1
      %p153 = por %p151, %p152
      %p155 = scmp.ne.s32.totalorder %s140, %s154
      %p156 = scmp.eq.s32.totalorder %s20, 0
      %p157 = por %p155, %p156
      %s158 = ssub.s32 %s14, %s21
      %p159 = scmp.eq.s32.totalorder %s158, 0
      %s161 = sadd.s32 %s160, 1
      %s162 = scalar_select %p159, %s160, %s161
      %p165 = pneg %p159
      %p166 = scmp.eq.s32.totalorder %s14, 1
      %p167 = por %p165, %p166
      %p168 = scmp.ne.s32.totalorder %s160, %s163
      %p169 = scmp.eq.s32.totalorder %s14, 0
      %p170 = por %p168, %p169
      %p171 = scmp.ne.s32.totalorder %s160, %s163
      %p172 = scmp.eq.s32.totalorder %s19, 1
      %p173 = por %p171, %p172
      %p174 = scmp.ne.s32.totalorder %s163, %s164
      %p175 = scmp.eq.s32.totalorder %s19, 0
      %p176 = por %p174, %p175
      %p177 = scmp.ne.s32.totalorder %s163, %s164
      %p178 = scmp.eq.s32.totalorder %s20, 1
      %p179 = por %p177, %p178
      %p181 = scmp.ne.s32.totalorder %s164, %s180
      %p182 = scmp.eq.s32.totalorder %s20, 0
      %p183 = por %p181, %p182
      %p184 = scmp.le.s32.totalorder 1, %s14
      %p185 = scmp.lt.s32.totalorder %s14, 3
      %p186 = pnand %p184, %p185
      %p187 = pneg %p186
      // Predicated region
      $region9: #{self_attn_forward.3} parent=5 // pred_check
        _
      $region10: #{self_attn_forward.3} parent=5 // pred_check_branch
        %189 = sbr.rel (%p186) target = $region12
      $region11: #{self_attn_forward.3} parent=5 // pred_region
        %s190 = ssub.s32 %s14, 1
        // Predicated region
        $region13: #{self_attn_forward.3} parent=11 // pred_check
          %p191 = pneg %p35
        $region14: #{self_attn_forward.3} parent=11 // pred_check_branch
          %193 = sbr.rel (%p191) target = $region16
        $region15: #{self_attn_forward.3} parent=11 // pred_region
          %195 = vsyncadd [#allocation4], 0
          %s197 = sshll.u32 %s0, 4
          %s198 = int_to_ptr.vmem [resolvable:$true] %s197
          %200 = dma.vmem_to_smem %s198, 64, [#allocation3], [#allocation4]
        $region16: #{self_attn_forward.3} parent=11 // pred_fallthru
          _
        // Predicated region
        $region17: #{self_attn_forward.3} parent=11 // pred_check
          %p201 = pneg %p56
        $region18: #{self_attn_forward.3} parent=11 // pred_check_branch
          %203 = sbr.rel (%p201) target = $region20
        $region19: #{self_attn_forward.3} parent=11 // pred_region
          _
        $region20: #{self_attn_forward.3} parent=11 // pred_fallthru
          _
        // Predicated region
        $region21: #{self_attn_forward.3} parent=11 // pred_check
          %p204 = pneg %p129
        $region22: #{self_attn_forward.3} parent=11 // pred_check_branch
          %206 = sbr.rel (%p204) target = $region24
        $region23: #{self_attn_forward.3} parent=11 // pred_region
          _
        $region24: #{self_attn_forward.3} parent=11 // pred_fallthru
          _
        // Predicated region
        $region25: #{self_attn_forward.3} parent=11 // pred_check
          %p207 = pneg %p150
        $region26: #{self_attn_forward.3} parent=11 // pred_check_branch
          %209 = sbr.rel (%p207) target = $region28
        $region27: #{self_attn_forward.3} parent=11 // pred_region
          _
        $region28: #{self_attn_forward.3} parent=11 // pred_fallthru
          _
      $region12: #{self_attn_forward.3} parent=5 // pred_fallthru
        _
      %p210 = scmp.lt.s32.totalorder %s14, 2
      // Predicated region
      $region29: #{self_attn_forward.3} parent=5 // pred_check
        %p211 = pneg %p210
      $region30: #{self_attn_forward.3} parent=5 // pred_check_branch
        %213 = sbr.rel (%p211) target = $region32
      $region31: #{self_attn_forward.3} parent=5 // pred_region
        // Predicated region
        $region33: #{self_attn_forward.3} parent=31 // pred_check
          %p214 = pneg %p76
        $region34: #{self_attn_forward.3} parent=31 // pred_check_branch
          %216 = sbr.rel (%p214) target = $region36
        $region35: #{self_attn_forward.3} parent=31 // pred_region
          %s217 = sand.u32 %s66, 1
          %s218 = sand.u32 %s66, 1
          %s219 = smul.addr %s218, 512
          %s220 = scalar_lea.vmem [#allocation5], %s219
          %s221 = smul.u32 4, %s14
          %s222 = smul.addr %s221, 4
          %s223 = scalar_lea.vmem %s2, %s222
          // Predicated region
          $region37: #{self_attn_forward.3} parent=35 // pred_check
            _
          $region38: #{self_attn_forward.3} parent=35 // pred_check_branch
            %225 = sbr.rel (0) target = $region40
          $region39: #{self_attn_forward.3} parent=35 // pred_region
            // Predicated region
            $region41: #{self_attn_forward.3} parent=39 // pred_check
              _
            $region42: #{self_attn_forward.3} parent=39 // pred_check_branch
              %227 = sbr.rel (0) target = $region44
            $region43: #{self_attn_forward.3} parent=39 // pred_region
              loop: start=0, step=1, limit=1
              $region45: #{self_attn_forward.3} parent=43 // loop_pre_header
                _
              $region46: #{self_attn_forward.3} parent=43 // loop_header
                %s229 = sphi 0, %s233
                %p230 = scmp.ge.s32.totalorder %s229, 1
                %s234 = sphi %s223, %s223
                %s235 = sphi %s220, %s220
              $region47: #{self_attn_forward.3} parent=43 // loop_header_branch
                %232 = sbr.rel (%p230) target = $region51
              $region48: #{self_attn_forward.3} parent=43 // loop_body
                %v236 = vld [vmem:[%s234] sm:$0xff]
                %237 = vst [vmem:[%s235] sm:$0xff] %v236
                %v238 = vld [vmem:[%s234 + $0x8] sm:$0xff]
                %239 = vst [vmem:[%s235 + $0x8] sm:$0xff] %v238
                %v240 = vld [vmem:[%s234 + $0x20] sm:$0xff]
                %241 = vst [vmem:[%s235 + $0x10] sm:$0xff] %v240
                %v242 = vld [vmem:[%s234 + $0x28] sm:$0xff]
                %243 = vst [vmem:[%s235 + $0x18] sm:$0xff] %v242
                %v244 = vld [vmem:[%s234 + $0x40] sm:$0xff]
                %245 = vst [vmem:[%s235 + $0x20] sm:$0xff] %v244
                %v246 = vld [vmem:[%s234 + $0x48] sm:$0xff]
                %247 = vst [vmem:[%s235 + $0x28] sm:$0xff] %v246
                %v248 = vld [vmem:[%s234 + $0x60] sm:$0xff]
                %249 = vst [vmem:[%s235 + $0x30] sm:$0xff] %v248
                %v250 = vld [vmem:[%s234 + $0x68] sm:$0xff]
                %251 = vst [vmem:[%s235 + $0x38] sm:$0xff] %v250
                %v252 = vld [vmem:[%s234 + $0x80] sm:$0xff]
                %253 = vst [vmem:[%s235 + $0x40] sm:$0xff] %v252
                %v254 = vld [vmem:[%s234 + $0x88] sm:$0xff]
                %255 = vst [vmem:[%s235 + $0x48] sm:$0xff] %v254
                %v256 = vld [vmem:[%s234 + $0xa0] sm:$0xff]
                %257 = vst [vmem:[%s235 + $0x50] sm:$0xff] %v256
                %v258 = vld [vmem:[%s234 + $0xa8] sm:$0xff]
                %259 = vst [vmem:[%s235 + $0x58] sm:$0xff] %v258
                %v260 = vld [vmem:[%s234 + $0xc0] sm:$0xff]
                %261 = vst [vmem:[%s235 + $0x60] sm:$0xff] %v260
                %v262 = vld [vmem:[%s234 + $0xc8] sm:$0xff]
                %263 = vst [vmem:[%s235 + $0x68] sm:$0xff] %v262
                %v264 = vld [vmem:[%s234 + $0xe0] sm:$0xff]
                %265 = vst [vmem:[%s235 + $0x70] sm:$0xff] %v264
                %v266 = vld [vmem:[%s234 + $0xe8] sm:$0xff]
                %267 = vst [vmem:[%s235 + $0x78] sm:$0xff] %v266
                %v268 = vld [vmem:[%s234 + $0x100] sm:$0xff]
                %269 = vst [vmem:[%s235 + $0x80] sm:$0xff] %v268
                %v270 = vld [vmem:[%s234 + $0x108] sm:$0xff]
                %271 = vst [vmem:[%s235 + $0x88] sm:$0xff] %v270
                %v272 = vld [vmem:[%s234 + $0x120] sm:$0xff]
                %273 = vst [vmem:[%s235 + $0x90] sm:$0xff] %v272
                %v274 = vld [vmem:[%s234 + $0x128] sm:$0xff]
                %275 = vst [vmem:[%s235 + $0x98] sm:$0xff] %v274
                %v276 = vld [vmem:[%s234 + $0x140] sm:$0xff]
                %277 = vst [vmem:[%s235 + $0xa0] sm:$0xff] %v276
                %v278 = vld [vmem:[%s234 + $0x148] sm:$0xff]
                %279 = vst [vmem:[%s235 + $0xa8] sm:$0xff] %v278
                %v280 = vld [vmem:[%s234 + $0x160] sm:$0xff]
                %281 = vst [vmem:[%s235 + $0xb0] sm:$0xff] %v280
                %v282 = vld [vmem:[%s234 + $0x168] sm:$0xff]
                %283 = vst [vmem:[%s235 + $0xb8] sm:$0xff] %v282
                %v284 = vld [vmem:[%s234 + $0x180] sm:$0xff]
                %285 = vst [vmem:[%s235 + $0xc0] sm:$0xff] %v284
                %v286 = vld [vmem:[%s234 + $0x188] sm:$0xff]
                %287 = vst [vmem:[%s235 + $0xc8] sm:$0xff] %v286
                %v288 = vld [vmem:[%s234 + $0x1a0] sm:$0xff]
                %289 = vst [vmem:[%s235 + $0xd0] sm:$0xff] %v288
                %v290 = vld [vmem:[%s234 + $0x1a8] sm:$0xff]
                %291 = vst [vmem:[%s235 + $0xd8] sm:$0xff] %v290
                %v292 = vld [vmem:[%s234 + $0x1c0] sm:$0xff]
                %293 = vst [vmem:[%s235 + $0xe0] sm:$0xff] %v292
                %v294 = vld [vmem:[%s234 + $0x1c8] sm:$0xff]
                %295 = vst [vmem:[%s235 + $0xe8] sm:$0xff] %v294
                %v296 = vld [vmem:[%s234 + $0x1e0] sm:$0xff]
                %297 = vst [vmem:[%s235 + $0xf0] sm:$0xff] %v296
                %v298 = vld [vmem:[%s234 + $0x1e8] sm:$0xff]
                %299 = vst [vmem:[%s235 + $0xf8] sm:$0xff] %v298
                %v300 = vld [vmem:[%s234 + $0x200] sm:$0xff]
                %301 = vst [vmem:[%s235 + $0x100] sm:$0xff] %v300
                %v302 = vld [vmem:[%s234 + $0x208] sm:$0xff]
                %303 = vst [vmem:[%s235 + $0x108] sm:$0xff] %v302
                %v304 = vld [vmem:[%s234 + $0x220] sm:$0xff]
                %305 = vst [vmem:[%s235 + $0x110] sm:$0xff] %v304
                %v306 = vld [vmem:[%s234 + $0x228] sm:$0xff]
                %307 = vst [vmem:[%s235 + $0x118] sm:$0xff] %v306
                %v308 = vld [vmem:[%s234 + $0x240] sm:$0xff]
                %309 = vst [vmem:[%s235 + $0x120] sm:$0xff] %v308
                %v310 = vld [vmem:[%s234 + $0x248] sm:$0xff]
                %311 = vst [vmem:[%s235 + $0x128] sm:$0xff] %v310
                %v312 = vld [vmem:[%s234 + $0x260] sm:$0xff]
                %313 = vst [vmem:[%s235 + $0x130] sm:$0xff] %v312
                %v314 = vld [vmem:[%s234 + $0x268] sm:$0xff]
                %315 = vst [vmem:[%s235 + $0x138] sm:$0xff] %v314
                %v316 = vld [vmem:[%s234 + $0x280] sm:$0xff]
                %317 = vst [vmem:[%s235 + $0x140] sm:$0xff] %v316
                %v318 = vld [vmem:[%s234 + $0x288] sm:$0xff]
                %319 = vst [vmem:[%s235 + $0x148] sm:$0xff] %v318
                %v320 = vld [vmem:[%s234 + $0x2a0] sm:$0xff]
                %321 = vst [vmem:[%s235 + $0x150] sm:$0xff] %v320
                %v322 = vld [vmem:[%s234 + $0x2a8] sm:$0xff]
                %323 = vst [vmem:[%s235 + $0x158] sm:$0xff] %v322
                %v324 = vld [vmem:[%s234 + $0x2c0] sm:$0xff]
                %325 = vst [vmem:[%s235 + $0x160] sm:$0xff] %v324
                %v326 = vld [vmem:[%s234 + $0x2c8] sm:$0xff]
                %327 = vst [vmem:[%s235 + $0x168] sm:$0xff] %v326
                %v328 = vld [vmem:[%s234 + $0x2e0] sm:$0xff]
                %329 = vst [vmem:[%s235 + $0x170] sm:$0xff] %v328
                %v330 = vld [vmem:[%s234 + $0x2e8] sm:$0xff]
                %331 = vst [vmem:[%s235 + $0x178] sm:$0xff] %v330
                %v332 = vld [vmem:[%s234 + $0x300] sm:$0xff]
                %333 = vst [vmem:[%s235 + $0x180] sm:$0xff] %v332
                %v334 = vld [vmem:[%s234 + $0x308] sm:$0xff]
                %335 = vst [vmem:[%s235 + $0x188] sm:$0xff] %v334
                %v336 = vld [vmem:[%s234 + $0x320] sm:$0xff]
                %337 = vst [vmem:[%s235 + $0x190] sm:$0xff] %v336
                %v338 = vld [vmem:[%s234 + $0x328] sm:$0xff]
                %339 = vst [vmem:[%s235 + $0x198] sm:$0xff] %v338
                %v340 = vld [vmem:[%s234 + $0x340] sm:$0xff]
                %341 = vst [vmem:[%s235 + $0x1a0] sm:$0xff] %v340
                %v342 = vld [vmem:[%s234 + $0x348] sm:$0xff]
                %343 = vst [vmem:[%s235 + $0x1a8] sm:$0xff] %v342
                %v344 = vld [vmem:[%s234 + $0x360] sm:$0xff]
                %345 = vst [vmem:[%s235 + $0x1b0] sm:$0xff] %v344
                %v346 = vld [vmem:[%s234 + $0x368] sm:$0xff]
                %347 = vst [vmem:[%s235 + $0x1b8] sm:$0xff] %v346
                %v348 = vld [vmem:[%s234 + $0x380] sm:$0xff]
                %349 = vst [vmem:[%s235 + $0x1c0] sm:$0xff] %v348
                %v350 = vld [vmem:[%s234 + $0x388] sm:$0xff]
                %351 = vst [vmem:[%s235 + $0x1c8] sm:$0xff] %v350
                %v352 = vld [vmem:[%s234 + $0x3a0] sm:$0xff]
                %353 = vst [vmem:[%s235 + $0x1d0] sm:$0xff] %v352
                %v354 = vld [vmem:[%s234 + $0x3a8] sm:$0xff]
                %355 = vst [vmem:[%s235 + $0x1d8] sm:$0xff] %v354
                %v356 = vld [vmem:[%s234 + $0x3c0] sm:$0xff]
                %357 = vst [vmem:[%s235 + $0x1e0] sm:$0xff] %v356
                %v358 = vld [vmem:[%s234 + $0x3c8] sm:$0xff]
                %359 = vst [vmem:[%s235 + $0x1e8] sm:$0xff] %v358
                %v360 = vld [vmem:[%s234 + $0x3e0] sm:$0xff]
                %361 = vst [vmem:[%s235 + $0x1f0] sm:$0xff] %v360
                %v362 = vld [vmem:[%s234 + $0x3e8] sm:$0xff]
                %363 = vst [vmem:[%s235 + $0x1f8] sm:$0xff] %v362
              $region49: #{self_attn_forward.3} parent=43 // loop_footer
                %s233 = sadd.s32 1, %s229
              $region50: #{self_attn_forward.3} parent=43 // loop_footer_branch
                %228 = sbr.rel target = $region46
              $region51: #{self_attn_forward.3} parent=43 // loop_exit
                _
            $region44: #{self_attn_forward.3} parent=39 // pred_fallthru
              _
            // Predicated region
            $region52: #{self_attn_forward.3} parent=39 // pred_check
              _
            $region53: #{self_attn_forward.3} parent=39 // pred_check_branch
              %365 = sbr.rel target = $region55
            $region54: #{self_attn_forward.3} parent=39 // pred_region
              _
            $region55: #{self_attn_forward.3} parent=39 // pred_fallthru
              _
          $region40: #{self_attn_forward.3} parent=35 // pred_fallthru
            _
          %366 = vnop
        $region36: #{self_attn_forward.3} parent=31 // pred_fallthru
          _
        // Predicated region
        $region56: #{self_attn_forward.3} parent=31 // pred_check
          %p367 = pneg %p102
        $region57: #{self_attn_forward.3} parent=31 // pred_check_branch
          %369 = sbr.rel (%p367) target = $region59
        $region58: #{self_attn_forward.3} parent=31 // pred_region
          %s370 = sand.u32 %s92, 1
          %s371 = sand.u32 %s92, 1
          %s372 = smul.addr %s371, 512
          %s373 = scalar_lea.vmem [#allocation6], %s372
          %s374 = smul.u32 4, %s14
          %s375 = smul.addr %s374, 8
          %s376 = scalar_lea.vmem %s3, %s375
          // Predicated region
          $region60: #{self_attn_forward.3} parent=58 // pred_check
            _
          $region61: #{self_attn_forward.3} parent=58 // pred_check_branch
            %378 = sbr.rel (0) target = $region63
          $region62: #{self_attn_forward.3} parent=58 // pred_region
            // Predicated region
            $region64: #{self_attn_forward.3} parent=62 // pred_check
              _
            $region65: #{self_attn_forward.3} parent=62 // pred_check_branch
              %380 = sbr.rel (0) target = $region67
            $region66: #{self_attn_forward.3} parent=62 // pred_region
              loop: start=0, step=1, limit=1
              $region68: #{self_attn_forward.3} parent=66 // loop_pre_header
                _
              $region69: #{self_attn_forward.3} parent=66 // loop_header
                %s382 = sphi 0, %s386
                %p383 = scmp.ge.s32.totalorder %s382, 1
                %s387 = sphi %s376, %s376
                %s388 = sphi %s373, %s373
              $region70: #{self_attn_forward.3} parent=66 // loop_header_branch
                %385 = sbr.rel (%p383) target = $region74
              $region71: #{self_attn_forward.3} parent=66 // loop_body
                %v389 = vld [vmem:[%s387] sm:$0xff]
                %390 = vst [vmem:[%s388] sm:$0xff] %v389
                %v391 = vld [vmem:[%s387 + $0x8] sm:$0xff]
                %392 = vst [vmem:[%s388 + $0x8] sm:$0xff] %v391
                %v393 = vld [vmem:[%s387 + $0x10] sm:$0xff]
                %394 = vst [vmem:[%s388 + $0x10] sm:$0xff] %v393
                %v395 = vld [vmem:[%s387 + $0x18] sm:$0xff]
                %396 = vst [vmem:[%s388 + $0x18] sm:$0xff] %v395
                %v397 = vld [vmem:[%s387 + $0x40] sm:$0xff]
                %398 = vst [vmem:[%s388 + $0x20] sm:$0xff] %v397
                %v399 = vld [vmem:[%s387 + $0x48] sm:$0xff]
                %400 = vst [vmem:[%s388 + $0x28] sm:$0xff] %v399
                %v401 = vld [vmem:[%s387 + $0x50] sm:$0xff]
                %402 = vst [vmem:[%s388 + $0x30] sm:$0xff] %v401
                %v403 = vld [vmem:[%s387 + $0x58] sm:$0xff]
                %404 = vst [vmem:[%s388 + $0x38] sm:$0xff] %v403
                %v405 = vld [vmem:[%s387 + $0x80] sm:$0xff]
                %406 = vst [vmem:[%s388 + $0x40] sm:$0xff] %v405
                %v407 = vld [vmem:[%s387 + $0x88] sm:$0xff]
                %408 = vst [vmem:[%s388 + $0x48] sm:$0xff] %v407
                %v409 = vld [vmem:[%s387 + $0x90] sm:$0xff]
                %410 = vst [vmem:[%s388 + $0x50] sm:$0xff] %v409
                %v411 = vld [vmem:[%s387 + $0x98] sm:$0xff]
                %412 = vst [vmem:[%s388 + $0x58] sm:$0xff] %v411
                %v413 = vld [vmem:[%s387 + $0xc0] sm:$0xff]
                %414 = vst [vmem:[%s388 + $0x60] sm:$0xff] %v413
                %v415 = vld [vmem:[%s387 + $0xc8] sm:$0xff]
                %416 = vst [vmem:[%s388 + $0x68] sm:$0xff] %v415
                %v417 = vld [vmem:[%s387 + $0xd0] sm:$0xff]
                %418 = vst [vmem:[%s388 + $0x70] sm:$0xff] %v417
                %v419 = vld [vmem:[%s387 + $0xd8] sm:$0xff]
                %420 = vst [vmem:[%s388 + $0x78] sm:$0xff] %v419
                %v421 = vld [vmem:[%s387 + $0x100] sm:$0xff]
                %422 = vst [vmem:[%s388 + $0x80] sm:$0xff] %v421
                %v423 = vld [vmem:[%s387 + $0x108] sm:$0xff]
                %424 = vst [vmem:[%s388 + $0x88] sm:$0xff] %v423
                %v425 = vld [vmem:[%s387 + $0x110] sm:$0xff]
                %426 = vst [vmem:[%s388 + $0x90] sm:$0xff] %v425
                %v427 = vld [vmem:[%s387 + $0x118] sm:$0xff]
                %428 = vst [vmem:[%s388 + $0x98] sm:$0xff] %v427
                %v429 = vld [vmem:[%s387 + $0x140] sm:$0xff]
                %430 = vst [vmem:[%s388 + $0xa0] sm:$0xff] %v429
                %v431 = vld [vmem:[%s387 + $0x148] sm:$0xff]
                %432 = vst [vmem:[%s388 + $0xa8] sm:$0xff] %v431
                %v433 = vld [vmem:[%s387 + $0x150] sm:$0xff]
                %434 = vst [vmem:[%s388 + $0xb0] sm:$0xff] %v433
                %v435 = vld [vmem:[%s387 + $0x158] sm:$0xff]
                %436 = vst [vmem:[%s388 + $0xb8] sm:$0xff] %v435
                %v437 = vld [vmem:[%s387 + $0x180] sm:$0xff]
                %438 = vst [vmem:[%s388 + $0xc0] sm:$0xff] %v437
                %v439 = vld [vmem:[%s387 + $0x188] sm:$0xff]
                %440 = vst [vmem:[%s388 + $0xc8] sm:$0xff] %v439
                %v441 = vld [vmem:[%s387 + $0x190] sm:$0xff]
                %442 = vst [vmem:[%s388 + $0xd0] sm:$0xff] %v441
                %v443 = vld [vmem:[%s387 + $0x198] sm:$0xff]
                %444 = vst [vmem:[%s388 + $0xd8] sm:$0xff] %v443
                %v445 = vld [vmem:[%s387 + $0x1c0] sm:$0xff]
                %446 = vst [vmem:[%s388 + $0xe0] sm:$0xff] %v445
                %v447 = vld [vmem:[%s387 + $0x1c8] sm:$0xff]
                %448 = vst [vmem:[%s388 + $0xe8] sm:$0xff] %v447
                %v449 = vld [vmem:[%s387 + $0x1d0] sm:$0xff]
                %450 = vst [vmem:[%s388 + $0xf0] sm:$0xff] %v449
                %v451 = vld [vmem:[%s387 + $0x1d8] sm:$0xff]
                %452 = vst [vmem:[%s388 + $0xf8] sm:$0xff] %v451
                %v453 = vld [vmem:[%s387 + $0x200] sm:$0xff]
                %454 = vst [vmem:[%s388 + $0x100] sm:$0xff] %v453
                %v455 = vld [vmem:[%s387 + $0x208] sm:$0xff]
                %456 = vst [vmem:[%s388 + $0x108] sm:$0xff] %v455
                %v457 = vld [vmem:[%s387 + $0x210] sm:$0xff]
                %458 = vst [vmem:[%s388 + $0x110] sm:$0xff] %v457
                %v459 = vld [vmem:[%s387 + $0x218] sm:$0xff]
                %460 = vst [vmem:[%s388 + $0x118] sm:$0xff] %v459
                %v461 = vld [vmem:[%s387 + $0x240] sm:$0xff]
                %462 = vst [vmem:[%s388 + $0x120] sm:$0xff] %v461
                %v463 = vld [vmem:[%s387 + $0x248] sm:$0xff]
                %464 = vst [vmem:[%s388 + $0x128] sm:$0xff] %v463
                %v465 = vld [vmem:[%s387 + $0x250] sm:$0xff]
                %466 = vst [vmem:[%s388 + $0x130] sm:$0xff] %v465
                %v467 = vld [vmem:[%s387 + $0x258] sm:$0xff]
                %468 = vst [vmem:[%s388 + $0x138] sm:$0xff] %v467
                %v469 = vld [vmem:[%s387 + $0x280] sm:$0xff]
                %470 = vst [vmem:[%s388 + $0x140] sm:$0xff] %v469
                %v471 = vld [vmem:[%s387 + $0x288] sm:$0xff]
                %472 = vst [vmem:[%s388 + $0x148] sm:$0xff] %v471
                %v473 = vld [vmem:[%s387 + $0x290] sm:$0xff]
                %474 = vst [vmem:[%s388 + $0x150] sm:$0xff] %v473
                %v475 = vld [vmem:[%s387 + $0x298] sm:$0xff]
                %476 = vst [vmem:[%s388 + $0x158] sm:$0xff] %v475
                %v477 = vld [vmem:[%s387 + $0x2c0] sm:$0xff]
                %478 = vst [vmem:[%s388 + $0x160] sm:$0xff] %v477
                %v479 = vld [vmem:[%s387 + $0x2c8] sm:$0xff]
                %480 = vst [vmem:[%s388 + $0x168] sm:$0xff] %v479
                %v481 = vld [vmem:[%s387 + $0x2d0] sm:$0xff]
                %482 = vst [vmem:[%s388 + $0x170] sm:$0xff] %v481
                %v483 = vld [vmem:[%s387 + $0x2d8] sm:$0xff]
                %484 = vst [vmem:[%s388 + $0x178] sm:$0xff] %v483
                %v485 = vld [vmem:[%s387 + $0x300] sm:$0xff]
                %486 = vst [vmem:[%s388 + $0x180] sm:$0xff] %v485
                %v487 = vld [vmem:[%s387 + $0x308] sm:$0xff]
                %488 = vst [vmem:[%s388 + $0x188] sm:$0xff] %v487
                %v489 = vld [vmem:[%s387 + $0x310] sm:$0xff]
                %490 = vst [vmem:[%s388 + $0x190] sm:$0xff] %v489
                %v491 = vld [vmem:[%s387 + $0x318] sm:$0xff]
                %492 = vst [vmem:[%s388 + $0x198] sm:$0xff] %v491
                %v493 = vld [vmem:[%s387 + $0x340] sm:$0xff]
                %494 = vst [vmem:[%s388 + $0x1a0] sm:$0xff] %v493
                %v495 = vld [vmem:[%s387 + $0x348] sm:$0xff]
                %496 = vst [vmem:[%s388 + $0x1a8] sm:$0xff] %v495
                %v497 = vld [vmem:[%s387 + $0x350] sm:$0xff]
                %498 = vst [vmem:[%s388 + $0x1b0] sm:$0xff] %v497
                %v499 = vld [vmem:[%s387 + $0x358] sm:$0xff]
                %500 = vst [vmem:[%s388 + $0x1b8] sm:$0xff] %v499
                %v501 = vld [vmem:[%s387 + $0x380] sm:$0xff]
                %502 = vst [vmem:[%s388 + $0x1c0] sm:$0xff] %v501
                %v503 = vld [vmem:[%s387 + $0x388] sm:$0xff]
                %504 = vst [vmem:[%s388 + $0x1c8] sm:$0xff] %v503
                %v505 = vld [vmem:[%s387 + $0x390] sm:$0xff]
                %506 = vst [vmem:[%s388 + $0x1d0] sm:$0xff] %v505
                %v507 = vld [vmem:[%s387 + $0x398] sm:$0xff]
                %508 = vst [vmem:[%s388 + $0x1d8] sm:$0xff] %v507
                %v509 = vld [vmem:[%s387 + $0x3c0] sm:$0xff]
                %510 = vst [vmem:[%s388 + $0x1e0] sm:$0xff] %v509
                %v511 = vld [vmem:[%s387 + $0x3c8] sm:$0xff]
                %512 = vst [vmem:[%s388 + $0x1e8] sm:$0xff] %v511
                %v513 = vld [vmem:[%s387 + $0x3d0] sm:$0xff]
                %514 = vst [vmem:[%s388 + $0x1f0] sm:$0xff] %v513
                %v515 = vld [vmem:[%s387 + $0x3d8] sm:$0xff]
                %516 = vst [vmem:[%s388 + $0x1f8] sm:$0xff] %v515
              $region72: #{self_attn_forward.3} parent=66 // loop_footer
                %s386 = sadd.s32 1, %s382
              $region73: #{self_attn_forward.3} parent=66 // loop_footer_branch
                %381 = sbr.rel target = $region69
              $region74: #{self_attn_forward.3} parent=66 // loop_exit
                _
            $region67: #{self_attn_forward.3} parent=62 // pred_fallthru
              _
            // Predicated region
            $region75: #{self_attn_forward.3} parent=62 // pred_check
              _
            $region76: #{self_attn_forward.3} parent=62 // pred_check_branch
              %518 = sbr.rel target = $region78
            $region77: #{self_attn_forward.3} parent=62 // pred_region
              _
            $region78: #{self_attn_forward.3} parent=62 // pred_fallthru
              _
          $region63: #{self_attn_forward.3} parent=58 // pred_fallthru
            _
          %519 = vnop
        $region59: #{self_attn_forward.3} parent=31 // pred_fallthru
          _
      $region32: #{self_attn_forward.3} parent=5 // pred_fallthru
        _
      %p520 = scmp.le.s32.totalorder 1, %s14
      %p521 = scmp.lt.s32.totalorder %s14, 3
      %p522 = pnand %p520, %p521
      %p523 = pneg %p522
      // Predicated region
      $region79: #{self_attn_forward.3} parent=5 // pred_check
        _
      $region80: #{self_attn_forward.3} parent=5 // pred_check_branch
        %525 = sbr.rel (%p522) target = $region82
      $region81: #{self_attn_forward.3} parent=5 // pred_region
        %s526 = ssub.s32 %s14, 1
        // Predicated region
        $region83: #{self_attn_forward.3} parent=81 // pred_check
          %p527 = pneg %p35
        $region84: #{self_attn_forward.3} parent=81 // pred_check_branch
          %529 = sbr.rel (%p527) target = $region86
        $region85: #{self_attn_forward.3} parent=81 // pred_region
          %531 = dma.done [#allocation4], 64
        $region86: #{self_attn_forward.3} parent=81 // pred_fallthru
          _
        %s532 = sand.u32 %s69, 1
        %s533 = sand.u32 %s69, 1
        %s534 = smul.addr %s533, 512
        %s535 = scalar_lea.vmem [#allocation5], %s534
        // Predicated region
        $region87: #{self_attn_forward.3} parent=81 // pred_check
          %p536 = pneg %p82
        $region88: #{self_attn_forward.3} parent=81 // pred_check_branch
          %538 = sbr.rel (%p536) target = $region90
        $region89: #{self_attn_forward.3} parent=81 // pred_region
          _
        $region90: #{self_attn_forward.3} parent=81 // pred_fallthru
          _
        %s539 = sand.u32 %s95, 1
        %s540 = sand.u32 %s95, 1
        %s541 = smul.addr %s540, 512
        %s542 = scalar_lea.vmem [#allocation6], %s541
        // Predicated region
        $region91: #{self_attn_forward.3} parent=81 // pred_check
          %p543 = pneg %p108
        $region92: #{self_attn_forward.3} parent=81 // pred_check_branch
          %545 = sbr.rel (%p543) target = $region94
        $region93: #{self_attn_forward.3} parent=81 // pred_region
          _
        $region94: #{self_attn_forward.3} parent=81 // pred_fallthru
          _
        %546 = sfence
        %p547 = pneg %p35
        %p548 = pneg %p32
        %p549 = pneg %p56
        %p550 = pneg %p53
        %s551 = sand.u32 %s69, 1
        %s552 = sand.u32 %s69, 1
        %s553 = smul.addr %s552, 512
        %s554 = scalar_lea.vmem [#allocation5], %s553
        %p555 = pneg %p82
        %p556 = pneg %p79
        %s557 = sand.u32 %s95, 1
        %s558 = sand.u32 %s95, 1
        %s559 = smul.addr %s558, 512
        %s560 = scalar_lea.vmem [#allocation6], %s559
        %p561 = pneg %p108
        %p562 = pneg %p105
        %p563 = pneg %p129
        %p564 = pneg %p126
        %p565 = pneg %p150
        %p566 = pneg %p147
        %p567 = pneg %p176
        %p568 = pneg %p173
        %s569 = sand.u32 %s163, 1
        %s570 = sand.u32 %s163, 1
        %s571 = smul.addr %s570, 512
        %s572 = scalar_lea.vmem [#allocation7], %s571
        %s573 = smul.u32 4, %s19
        %s574 = smul.u32 4, %s19
        %s575 = smul.u32 4, %s19
        %s577 = sld [smem:[#allocation2]]
        %v578 = vld [vmem:[%s4] sm:$0xf]
        %v579 = vld [vmem:[%s4 + $0x4] sm:$0xf]
        %v580 = vld [vmem:[%s4 + $0x8] sm:$0xf]
        %v581 = vld [vmem:[%s4 + $0xc] sm:$0xf]
        %v582 = vld [vmem:[%s5] sm:$0xff]
        %v583 = vld [vmem:[%s5 + $0x8] sm:$0xff]
        %v584 = vld [vmem:[%s5 + $0x10] sm:$0xff]
        %v585 = vld [vmem:[%s5 + $0x18] sm:$0xff]
        %v586 = vld [vmem:[%s535] sm:$0xff]
        %v587 = vld [vmem:[%s535 + $0x8] sm:$0xff]
        %v588 = vld [vmem:[%s535 + $0x10] sm:$0xff]
        %v589 = vld [vmem:[%s535 + $0x18] sm:$0xff]
        %v590 = vld [vmem:[%s535 + $0x20] sm:$0xff]
        %v591 = vld [vmem:[%s535 + $0x28] sm:$0xff]
        %v592 = vld [vmem:[%s535 + $0x30] sm:$0xff]
        %v593 = vld [vmem:[%s535 + $0x38] sm:$0xff]
        %595 = vset.pattern.permute.xlu0 0
        %596 = vperm.xlu0 %595, %v582
        %v597 = vpop.permute.xlu0 %596
        %600 = vset.pattern.permute.xlu0 0
        %601 = vperm.xlu0 %600, %v583
        %v602 = vpop.permute.xlu0 %601
        %605 = vset.pattern.permute.xlu0 0
        %606 = vperm.xlu0 %605, %v584
        %v607 = vpop.permute.xlu0 %606
        %610 = vset.pattern.permute.xlu0 0
        %611 = vperm.xlu0 %610, %v585
        %v612 = vpop.permute.xlu0 %611
        %v618 = vunpack.c.l.b16 %v578
        %v619 = vunpack.c.l.b16 %v579
        %v620 = vunpack.c.l.b16 %v580
        %v621 = vunpack.c.l.b16 %v581
        %v622 = vpack.c.b16 %v619, %v618
        %v623 = vpack.c.b16 %v621, %v620
        %v632 = vunpack.c.l.b16 %v586
        %v633 = vunpack.c.h.b16 %v586
        %v634 = vunpack.c.l.b16 %v587
        %v635 = vunpack.c.h.b16 %v587
        %v636 = vunpack.c.l.b16 %v588
        %v637 = vunpack.c.h.b16 %v588
        %v638 = vunpack.c.l.b16 %v589
        %v639 = vunpack.c.h.b16 %v589
        %v640 = vunpack.c.l.b16 %v590
        %v641 = vunpack.c.h.b16 %v590
        %v642 = vunpack.c.l.b16 %v591
        %v643 = vunpack.c.h.b16 %v591
        %v644 = vunpack.c.l.b16 %v592
        %v645 = vunpack.c.h.b16 %v592
        %v646 = vunpack.c.l.b16 %v593
        %v647 = vunpack.c.h.b16 %v593
        %v648 = vpack.c.b16 %v636, %v632
        %v649 = vpack.c.b16 %v637, %v633
        %v650 = vpack.c.b16 %v638, %v634
        %v651 = vpack.c.b16 %v639, %v635
        %v652 = vpack.c.b16 %v644, %v640
        %v653 = vpack.c.b16 %v645, %v641
        %v654 = vpack.c.b16 %v646, %v642
        %v655 = vpack.c.b16 %v647, %v643
        %vm664 = vcmask 261120
        %v666 = vsel %vm664, %v622, 0
        %v669 = vsel %vm664, %v623, 0
        %671 = vmatpush.bf16.msra.mxu0 0
        %672 = vmatpush.bf16.msra.mxu0 0
        %673 = vmatpush.bf16.msra.mxu0 0
        %674 = vmatpush.bf16.msra.mxu0 0
        %675 = vmatpush.bf16.msra.mxu0 0
        %676 = vmatpush.bf16.msra.mxu0 0
        %677 = vmatpush.bf16.msra.mxu0 %v652
        %678 = vmatpush.bf16.msra.mxu0 %v648
        %679 = vmatmul.bf16.gmra.mxu0 %v666
        %v680 = vpop.f32.mrf.mxu0
        %v681 = vadd.f32 %v597, %v680
        %v682 = vpop.f32.mrf.mxu0
        %v683 = vadd.f32 %v602, %v682
        %684 = vmatmul.bf16.gmra.mxu0 %v669
        %v685 = vpop.f32.mrf.mxu0
        %v686 = vadd.f32 %v607, %v685
        %v687 = vpop.f32.mrf.mxu0
        %v688 = vadd.f32 %v612, %v687
        %689 = vdwg.mxu0
        %690 = vmatpush.bf16.msra.mxu0 0
        %691 = vmatpush.bf16.msra.mxu0 0
        %692 = vmatpush.bf16.msra.mxu0 0
        %693 = vmatpush.bf16.msra.mxu0 0
        %694 = vmatpush.bf16.msra.mxu0 0
        %695 = vmatpush.bf16.msra.mxu0 0
        %696 = vmatpush.bf16.msra.mxu0 %v653
        %697 = vmatpush.bf16.msra.mxu0 %v649
        %698 = vmatmul.bf16.gmra.mxu0 %v666
        %v699 = vpop.f32.mrf.mxu0
        %v700 = vadd.f32 %v597, %v699
        %v701 = vpop.f32.mrf.mxu0
        %v702 = vadd.f32 %v602, %v701
        %703 = vmatmul.bf16.gmra.mxu0 %v669
        %v704 = vpop.f32.mrf.mxu0
        %v705 = vadd.f32 %v607, %v704
        %v706 = vpop.f32.mrf.mxu0
        %v707 = vadd.f32 %v612, %v706
        %708 = vdwg.mxu0
        %709 = vmatpush.bf16.msra.mxu0 0
        %710 = vmatpush.bf16.msra.mxu0 0
        %711 = vmatpush.bf16.msra.mxu0 0
        %712 = vmatpush.bf16.msra.mxu0 0
        %713 = vmatpush.bf16.msra.mxu0 0
        %714 = vmatpush.bf16.msra.mxu0 0
        %715 = vmatpush.bf16.msra.mxu0 %v654
        %716 = vmatpush.bf16.msra.mxu0 %v650
        %717 = vmatmul.bf16.gmra.mxu0 %v666
        %v718 = vpop.f32.mrf.mxu0
        %v719 = vadd.f32 %v597, %v718
        %v720 = vpop.f32.mrf.mxu0
        %v721 = vadd.f32 %v602, %v720
        %722 = vmatmul.bf16.gmra.mxu0 %v669
        %v723 = vpop.f32.mrf.mxu0
        %v724 = vadd.f32 %v607, %v723
        %v725 = vpop.f32.mrf.mxu0
        %v726 = vadd.f32 %v612, %v725
        %727 = vdwg.mxu0
        %728 = vmatpush.bf16.msra.mxu0 0
        %729 = vmatpush.bf16.msra.mxu0 0
        %730 = vmatpush.bf16.msra.mxu0 0
        %731 = vmatpush.bf16.msra.mxu0 0
        %732 = vmatpush.bf16.msra.mxu0 0
        %733 = vmatpush.bf16.msra.mxu0 0
        %734 = vmatpush.bf16.msra.mxu0 %v655
        %735 = vmatpush.bf16.msra.mxu0 %v651
        %736 = vmatmul.bf16.gmra.mxu0 %v666
        %v737 = vpop.f32.mrf.mxu0
        %v738 = vadd.f32 %v597, %v737
        %v739 = vpop.f32.mrf.mxu0
        %v740 = vadd.f32 %v602, %v739
        %741 = vmatmul.bf16.gmra.mxu0 %v669
        %v742 = vpop.f32.mrf.mxu0
        %v743 = vadd.f32 %v607, %v742
        %v744 = vpop.f32.mrf.mxu0
        %v745 = vadd.f32 %v612, %v744
        %746 = vdwg.mxu0
        %s747 = sld [smem:[#allocation3]]
        %s748 = smul.f32 %s577, %s747
        %v749 = vstv %s748
        %v750 = vmul.f32 %v749, %v681
        %v751 = vmul.f32 %v749, %v700
        %v752 = vmul.f32 %v749, %v719
        %v753 = vmul.f32 %v749, %v738
        %v754 = vmul.f32 %v749, %v683
        %v755 = vmul.f32 %v749, %v702
        %v756 = vmul.f32 %v749, %v721
        %v757 = vmul.f32 %v749, %v740
        %v758 = vmul.f32 %v749, %v686
        %v759 = vmul.f32 %v749, %v705
        %v760 = vmul.f32 %v749, %v724
        %v761 = vmul.f32 %v749, %v743
        %v762 = vmul.f32 %v749, %v688
        %v763 = vmul.f32 %v749, %v707
        %v764 = vmul.f32 %v749, %v726
        %v765 = vmul.f32 %v749, %v745
        %v766 = vld [vmem:[%s542] sm:$0xff]
        %v767 = vld [vmem:[%s542 + $0x8] sm:$0xff]
        %v768 = vld [vmem:[%s542 + $0x10] sm:$0xff]
        %v769 = vld [vmem:[%s542 + $0x18] sm:$0xff]
        %v770 = vld [vmem:[%s542 + $0x20] sm:$0xff]
        %v771 = vld [vmem:[%s542 + $0x28] sm:$0xff]
        %v772 = vld [vmem:[%s542 + $0x30] sm:$0xff]
        %v773 = vld [vmem:[%s542 + $0x38] sm:$0xff]
        %v774 = vld [vmem:[%s542 + $0x40] sm:$0xff]
        %v775 = vld [vmem:[%s542 + $0x48] sm:$0xff]
        %v776 = vld [vmem:[%s542 + $0x50] sm:$0xff]
        %v777 = vld [vmem:[%s542 + $0x58] sm:$0xff]
        %v778 = vld [vmem:[%s542 + $0x60] sm:$0xff]
        %v779 = vld [vmem:[%s542 + $0x68] sm:$0xff]
        %v780 = vld [vmem:[%s542 + $0x70] sm:$0xff]
        %v781 = vld [vmem:[%s542 + $0x78] sm:$0xff]
        %v782 = vadd.f32 %v766, %v750
        %v783 = vadd.f32 %v767, %v751
        %v784 = vadd.f32 %v768, %v752
        %v785 = vadd.f32 %v769, %v753
        %v786 = vadd.f32 %v770, %v754
        %v787 = vadd.f32 %v771, %v755
        %v788 = vadd.f32 %v772, %v756
        %v789 = vadd.f32 %v773, %v757
        %v790 = vadd.f32 %v774, %v758
        %v791 = vadd.f32 %v775, %v759
        %v792 = vadd.f32 %v776, %v760
        %v793 = vadd.f32 %v777, %v761
        %v794 = vadd.f32 %v778, %v762
        %v795 = vadd.f32 %v779, %v763
        %v796 = vadd.f32 %v780, %v764
        %v797 = vadd.f32 %v781, %v765
        %798 = vst [vmem:[%s572] sm:$0xff] %v782
        %799 = vst [vmem:[%s572 + $0x8] sm:$0xff] %v783
        %800 = vst [vmem:[%s572 + $0x10] sm:$0xff] %v784
        %801 = vst [vmem:[%s572 + $0x18] sm:$0xff] %v785
        %802 = vst [vmem:[%s572 + $0x20] sm:$0xff] %v786
        %803 = vst [vmem:[%s572 + $0x28] sm:$0xff] %v787
        %804 = vst [vmem:[%s572 + $0x30] sm:$0xff] %v788
        %805 = vst [vmem:[%s572 + $0x38] sm:$0xff] %v789
        %806 = vst [vmem:[%s572 + $0x40] sm:$0xff] %v790
        %807 = vst [vmem:[%s572 + $0x48] sm:$0xff] %v791
        %808 = vst [vmem:[%s572 + $0x50] sm:$0xff] %v792
        %809 = vst [vmem:[%s572 + $0x58] sm:$0xff] %v793
        %810 = vst [vmem:[%s572 + $0x60] sm:$0xff] %v794
        %811 = vst [vmem:[%s572 + $0x68] sm:$0xff] %v795
        %812 = vst [vmem:[%s572 + $0x70] sm:$0xff] %v796
        %813 = vst [vmem:[%s572 + $0x78] sm:$0xff] %v797
        %s814 = sld [smem:[#allocation3 + $0x80]]
        %s815 = smul.f32 %s577, %s814
        %v816 = vstv %s815
        %v817 = vmul.f32 %v816, %v681
        %v818 = vmul.f32 %v816, %v700
        %v819 = vmul.f32 %v816, %v719
        %v820 = vmul.f32 %v816, %v738
        %v821 = vmul.f32 %v816, %v683
        %v822 = vmul.f32 %v816, %v702
        %v823 = vmul.f32 %v816, %v721
        %v824 = vmul.f32 %v816, %v740
        %v825 = vmul.f32 %v816, %v686
        %v826 = vmul.f32 %v816, %v705
        %v827 = vmul.f32 %v816, %v724
        %v828 = vmul.f32 %v816, %v743
        %v829 = vmul.f32 %v816, %v688
        %v830 = vmul.f32 %v816, %v707
        %v831 = vmul.f32 %v816, %v726
        %v832 = vmul.f32 %v816, %v745
        %s833 = scalar_lea.vmem %s542, 128 [#allocation6]
        %v834 = vld [vmem:[%s833] sm:$0xff]
        %v835 = vld [vmem:[%s833 + $0x8] sm:$0xff]
        %v836 = vld [vmem:[%s833 + $0x10] sm:$0xff]
        %v837 = vld [vmem:[%s833 + $0x18] sm:$0xff]
        %v838 = vld [vmem:[%s833 + $0x20] sm:$0xff]
        %v839 = vld [vmem:[%s833 + $0x28] sm:$0xff]
        %v840 = vld [vmem:[%s833 + $0x30] sm:$0xff]
        %v841 = vld [vmem:[%s833 + $0x38] sm:$0xff]
        %v842 = vld [vmem:[%s833 + $0x40] sm:$0xff]
        %v843 = vld [vmem:[%s833 + $0x48] sm:$0xff]
        %v844 = vld [vmem:[%s833 + $0x50] sm:$0xff]
        %v845 = vld [vmem:[%s833 + $0x58] sm:$0xff]
        %v846 = vld [vmem:[%s833 + $0x60] sm:$0xff]
        %v847 = vld [vmem:[%s833 + $0x68] sm:$0xff]
        %v848 = vld [vmem:[%s833 + $0x70] sm:$0xff]
        %v849 = vld [vmem:[%s833 + $0x78] sm:$0xff]
        %v850 = vadd.f32 %v834, %v817
        %v851 = vadd.f32 %v835, %v818
        %v852 = vadd.f32 %v836, %v819
        %v853 = vadd.f32 %v837, %v820
        %v854 = vadd.f32 %v838, %v821
        %v855 = vadd.f32 %v839, %v822
        %v856 = vadd.f32 %v840, %v823
        %v857 = vadd.f32 %v841, %v824
        %v858 = vadd.f32 %v842, %v825
        %v859 = vadd.f32 %v843, %v826
        %v860 = vadd.f32 %v844, %v827
        %v861 = vadd.f32 %v845, %v828
        %v862 = vadd.f32 %v846, %v829
        %v863 = vadd.f32 %v847, %v830
        %v864 = vadd.f32 %v848, %v831
        %v865 = vadd.f32 %v849, %v832
        %s866 = scalar_lea.vmem %s572, 128 [#allocation7]
        %867 = vst [vmem:[%s866] sm:$0xff] %v850
        %868 = vst [vmem:[%s866 + $0x8] sm:$0xff] %v851
        %869 = vst [vmem:[%s866 + $0x10] sm:$0xff] %v852
        %870 = vst [vmem:[%s866 + $0x18] sm:$0xff] %v853
        %871 = vst [vmem:[%s866 + $0x20] sm:$0xff] %v854
        %872 = vst [vmem:[%s866 + $0x28] sm:$0xff] %v855
        %873 = vst [vmem:[%s866 + $0x30] sm:$0xff] %v856
        %874 = vst [vmem:[%s866 + $0x38] sm:$0xff] %v857
        %875 = vst [vmem:[%s866 + $0x40] sm:$0xff] %v858
        %876 = vst [vmem:[%s866 + $0x48] sm:$0xff] %v859
        %877 = vst [vmem:[%s866 + $0x50] sm:$0xff] %v860
        %878 = vst [vmem:[%s866 + $0x58] sm:$0xff] %v861
        %879 = vst [vmem:[%s866 + $0x60] sm:$0xff] %v862
        %880 = vst [vmem:[%s866 + $0x68] sm:$0xff] %v863
        %881 = vst [vmem:[%s866 + $0x70] sm:$0xff] %v864
        %882 = vst [vmem:[%s866 + $0x78] sm:$0xff] %v865
        %s883 = sld [smem:[#allocation3 + $0x100]]
        %s884 = smul.f32 %s577, %s883
        %v885 = vstv %s884
        %v886 = vmul.f32 %v885, %v681
        %v887 = vmul.f32 %v885, %v700
        %v888 = vmul.f32 %v885, %v719
        %v889 = vmul.f32 %v885, %v738
        %v890 = vmul.f32 %v885, %v683
        %v891 = vmul.f32 %v885, %v702
        %v892 = vmul.f32 %v885, %v721
        %v893 = vmul.f32 %v885, %v740
        %v894 = vmul.f32 %v885, %v686
        %v895 = vmul.f32 %v885, %v705
        %v896 = vmul.f32 %v885, %v724
        %v897 = vmul.f32 %v885, %v743
        %v898 = vmul.f32 %v885, %v688
        %v899 = vmul.f32 %v885, %v707
        %v900 = vmul.f32 %v885, %v726
        %v901 = vmul.f32 %v885, %v745
        %s902 = scalar_lea.vmem %s542, 256 [#allocation6]
        %v903 = vld [vmem:[%s902] sm:$0xff]
        %v904 = vld [vmem:[%s902 + $0x8] sm:$0xff]
        %v905 = vld [vmem:[%s902 + $0x10] sm:$0xff]
        %v906 = vld [vmem:[%s902 + $0x18] sm:$0xff]
        %v907 = vld [vmem:[%s902 + $0x20] sm:$0xff]
        %v908 = vld [vmem:[%s902 + $0x28] sm:$0xff]
        %v909 = vld [vmem:[%s902 + $0x30] sm:$0xff]
        %v910 = vld [vmem:[%s902 + $0x38] sm:$0xff]
        %v911 = vld [vmem:[%s902 + $0x40] sm:$0xff]
        %v912 = vld [vmem:[%s902 + $0x48] sm:$0xff]
        %v913 = vld [vmem:[%s902 + $0x50] sm:$0xff]
        %v914 = vld [vmem:[%s902 + $0x58] sm:$0xff]
        %v915 = vld [vmem:[%s902 + $0x60] sm:$0xff]
        %v916 = vld [vmem:[%s902 + $0x68] sm:$0xff]
        %v917 = vld [vmem:[%s902 + $0x70] sm:$0xff]
        %v918 = vld [vmem:[%s902 + $0x78] sm:$0xff]
        %v919 = vadd.f32 %v903, %v886
        %v920 = vadd.f32 %v904, %v887
        %v921 = vadd.f32 %v905, %v888
        %v922 = vadd.f32 %v906, %v889
        %v923 = vadd.f32 %v907, %v890
        %v924 = vadd.f32 %v908, %v891
        %v925 = vadd.f32 %v909, %v892
        %v926 = vadd.f32 %v910, %v893
        %v927 = vadd.f32 %v911, %v894
        %v928 = vadd.f32 %v912, %v895
        %v929 = vadd.f32 %v913, %v896
        %v930 = vadd.f32 %v914, %v897
        %v931 = vadd.f32 %v915, %v898
        %v932 = vadd.f32 %v916, %v899
        %v933 = vadd.f32 %v917, %v900
        %v934 = vadd.f32 %v918, %v901
        %s935 = scalar_lea.vmem %s572, 256 [#allocation7]
        %936 = vst [vmem:[%s935] sm:$0xff] %v919
        %937 = vst [vmem:[%s935 + $0x8] sm:$0xff] %v920
        %938 = vst [vmem:[%s935 + $0x10] sm:$0xff] %v921
        %939 = vst [vmem:[%s935 + $0x18] sm:$0xff] %v922
        %940 = vst [vmem:[%s935 + $0x20] sm:$0xff] %v923
        %941 = vst [vmem:[%s935 + $0x28] sm:$0xff] %v924
        %942 = vst [vmem:[%s935 + $0x30] sm:$0xff] %v925
        %943 = vst [vmem:[%s935 + $0x38] sm:$0xff] %v926
        %944 = vst [vmem:[%s935 + $0x40] sm:$0xff] %v927
        %945 = vst [vmem:[%s935 + $0x48] sm:$0xff] %v928
        %946 = vst [vmem:[%s935 + $0x50] sm:$0xff] %v929
        %947 = vst [vmem:[%s935 + $0x58] sm:$0xff] %v930
        %948 = vst [vmem:[%s935 + $0x60] sm:$0xff] %v931
        %949 = vst [vmem:[%s935 + $0x68] sm:$0xff] %v932
        %950 = vst [vmem:[%s935 + $0x70] sm:$0xff] %v933
        %951 = vst [vmem:[%s935 + $0x78] sm:$0xff] %v934
        %s952 = sld [smem:[#allocation3 + $0x180]]
        %s953 = smul.f32 %s577, %s952
        %v954 = vstv %s953
        %v955 = vmul.f32 %v954, %v681
        %v956 = vmul.f32 %v954, %v700
        %v957 = vmul.f32 %v954, %v719
        %v958 = vmul.f32 %v954, %v738
        %v959 = vmul.f32 %v954, %v683
        %v960 = vmul.f32 %v954, %v702
        %v961 = vmul.f32 %v954, %v721
        %v962 = vmul.f32 %v954, %v740
        %v963 = vmul.f32 %v954, %v686
        %v964 = vmul.f32 %v954, %v705
        %v965 = vmul.f32 %v954, %v724
        %v966 = vmul.f32 %v954, %v743
        %v967 = vmul.f32 %v954, %v688
        %v968 = vmul.f32 %v954, %v707
        %v969 = vmul.f32 %v954, %v726
        %v970 = vmul.f32 %v954, %v745
        %s971 = scalar_lea.vmem %s542, 384 [#allocation6]
        %v972 = vld [vmem:[%s971] sm:$0xff]
        %v973 = vld [vmem:[%s971 + $0x8] sm:$0xff]
        %v974 = vld [vmem:[%s971 + $0x10] sm:$0xff]
        %v975 = vld [vmem:[%s971 + $0x18] sm:$0xff]
        %v976 = vld [vmem:[%s971 + $0x20] sm:$0xff]
        %v977 = vld [vmem:[%s971 + $0x28] sm:$0xff]
        %v978 = vld [vmem:[%s971 + $0x30] sm:$0xff]
        %v979 = vld [vmem:[%s971 + $0x38] sm:$0xff]
        %v980 = vld [vmem:[%s971 + $0x40] sm:$0xff]
        %v981 = vld [vmem:[%s971 + $0x48] sm:$0xff]
        %v982 = vld [vmem:[%s971 + $0x50] sm:$0xff]
        %v983 = vld [vmem:[%s971 + $0x58] sm:$0xff]
        %v984 = vld [vmem:[%s971 + $0x60] sm:$0xff]
        %v985 = vld [vmem:[%s971 + $0x68] sm:$0xff]
        %v986 = vld [vmem:[%s971 + $0x70] sm:$0xff]
        %v987 = vld [vmem:[%s971 + $0x78] sm:$0xff]
        %v988 = vadd.f32 %v972, %v955
        %v989 = vadd.f32 %v973, %v956
        %v990 = vadd.f32 %v974, %v957
        %v991 = vadd.f32 %v975, %v958
        %v992 = vadd.f32 %v976, %v959
        %v993 = vadd.f32 %v977, %v960
        %v994 = vadd.f32 %v978, %v961
        %v995 = vadd.f32 %v979, %v962
        %v996 = vadd.f32 %v980, %v963
        %v997 = vadd.f32 %v981, %v964
        %v998 = vadd.f32 %v982, %v965
        %v999 = vadd.f32 %v983, %v966
        %v1000 = vadd.f32 %v984, %v967
        %v1001 = vadd.f32 %v985, %v968
        %v1002 = vadd.f32 %v986, %v969
        %v1003 = vadd.f32 %v987, %v970
        %s1004 = scalar_lea.vmem %s572, 384 [#allocation7]
        %1005 = vst [vmem:[%s1004] sm:$0xff] %v988
        %1006 = vst [vmem:[%s1004 + $0x8] sm:$0xff] %v989
        %1007 = vst [vmem:[%s1004 + $0x10] sm:$0xff] %v990
        %1008 = vst [vmem:[%s1004 + $0x18] sm:$0xff] %v991
        %1009 = vst [vmem:[%s1004 + $0x20] sm:$0xff] %v992
        %1010 = vst [vmem:[%s1004 + $0x28] sm:$0xff] %v993
        %1011 = vst [vmem:[%s1004 + $0x30] sm:$0xff] %v994
        %1012 = vst [vmem:[%s1004 + $0x38] sm:$0xff] %v995
        %1013 = vst [vmem:[%s1004 + $0x40] sm:$0xff] %v996
        %1014 = vst [vmem:[%s1004 + $0x48] sm:$0xff] %v997
        %1015 = vst [vmem:[%s1004 + $0x50] sm:$0xff] %v998
        %1016 = vst [vmem:[%s1004 + $0x58] sm:$0xff] %v999
        %1017 = vst [vmem:[%s1004 + $0x60] sm:$0xff] %v1000
        %1018 = vst [vmem:[%s1004 + $0x68] sm:$0xff] %v1001
        %1019 = vst [vmem:[%s1004 + $0x70] sm:$0xff] %v1002
        %1020 = vst [vmem:[%s1004 + $0x78] sm:$0xff] %v1003
        %s1021 = scalar_lea.vmem %s535, 64 [#allocation5]
        %v1022 = vld [vmem:[%s1021] sm:$0xff]
        %v1023 = vld [vmem:[%s1021 + $0x8] sm:$0xff]
        %v1024 = vld [vmem:[%s1021 + $0x10] sm:$0xff]
        %v1025 = vld [vmem:[%s1021 + $0x18] sm:$0xff]
        %v1026 = vld [vmem:[%s1021 + $0x20] sm:$0xff]
        %v1027 = vld [vmem:[%s1021 + $0x28] sm:$0xff]
        %v1028 = vld [vmem:[%s1021 + $0x30] sm:$0xff]
        %v1029 = vld [vmem:[%s1021 + $0x38] sm:$0xff]
        %v1038 = vunpack.c.l.b16 %v1022
        %v1039 = vunpack.c.h.b16 %v1022
        %v1040 = vunpack.c.l.b16 %v1023
        %v1041 = vunpack.c.h.b16 %v1023
        %v1042 = vunpack.c.l.b16 %v1024
        %v1043 = vunpack.c.h.b16 %v1024
        %v1044 = vunpack.c.l.b16 %v1025
        %v1045 = vunpack.c.h.b16 %v1025
        %v1046 = vunpack.c.l.b16 %v1026
        %v1047 = vunpack.c.h.b16 %v1026
        %v1048 = vunpack.c.l.b16 %v1027
        %v1049 = vunpack.c.h.b16 %v1027
        %v1050 = vunpack.c.l.b16 %v1028
        %v1051 = vunpack.c.h.b16 %v1028
        %v1052 = vunpack.c.l.b16 %v1029
        %v1053 = vunpack.c.h.b16 %v1029
        %v1054 = vpack.c.b16 %v1042, %v1038
        %v1055 = vpack.c.b16 %v1043, %v1039
        %v1056 = vpack.c.b16 %v1044, %v1040
        %v1057 = vpack.c.b16 %v1045, %v1041
        %v1058 = vpack.c.b16 %v1050, %v1046
        %v1059 = vpack.c.b16 %v1051, %v1047
        %v1060 = vpack.c.b16 %v1052, %v1048
        %v1061 = vpack.c.b16 %v1053, %v1049
        %1070 = vmatpush.bf16.msra.mxu0 0
        %1071 = vmatpush.bf16.msra.mxu0 0
        %1072 = vmatpush.bf16.msra.mxu0 0
        %1073 = vmatpush.bf16.msra.mxu0 0
        %1074 = vmatpush.bf16.msra.mxu0 0
        %1075 = vmatpush.bf16.msra.mxu0 0
        %1076 = vmatpush.bf16.msra.mxu0 %v1058
        %1077 = vmatpush.bf16.msra.mxu0 %v1054
        %1078 = vmatmul.bf16.gmra.mxu0 %v666
        %v1079 = vpop.f32.mrf.mxu0
        %v1080 = vadd.f32 %v597, %v1079
        %v1081 = vpop.f32.mrf.mxu0
        %v1082 = vadd.f32 %v602, %v1081
        %1083 = vmatmul.bf16.gmra.mxu0 %v669
        %v1084 = vpop.f32.mrf.mxu0
        %v1085 = vadd.f32 %v607, %v1084
        %v1086 = vpop.f32.mrf.mxu0
        %v1087 = vadd.f32 %v612, %v1086
        %1088 = vdwg.mxu0
        %1089 = vmatpush.bf16.msra.mxu0 0
        %1090 = vmatpush.bf16.msra.mxu0 0
        %1091 = vmatpush.bf16.msra.mxu0 0
        %1092 = vmatpush.bf16.msra.mxu0 0
        %1093 = vmatpush.bf16.msra.mxu0 0
        %1094 = vmatpush.bf16.msra.mxu0 0
        %1095 = vmatpush.bf16.msra.mxu0 %v1059
        %1096 = vmatpush.bf16.msra.mxu0 %v1055
        %1097 = vmatmul.bf16.gmra.mxu0 %v666
        %v1098 = vpop.f32.mrf.mxu0
        %v1099 = vadd.f32 %v597, %v1098
        %v1100 = vpop.f32.mrf.mxu0
        %v1101 = vadd.f32 %v602, %v1100
        %1102 = vmatmul.bf16.gmra.mxu0 %v669
        %v1103 = vpop.f32.mrf.mxu0
        %v1104 = vadd.f32 %v607, %v1103
        %v1105 = vpop.f32.mrf.mxu0
        %v1106 = vadd.f32 %v612, %v1105
        %1107 = vdwg.mxu0
        %1108 = vmatpush.bf16.msra.mxu0 0
        %1109 = vmatpush.bf16.msra.mxu0 0
        %1110 = vmatpush.bf16.msra.mxu0 0
        %1111 = vmatpush.bf16.msra.mxu0 0
        %1112 = vmatpush.bf16.msra.mxu0 0
        %1113 = vmatpush.bf16.msra.mxu0 0
        %1114 = vmatpush.bf16.msra.mxu0 %v1060
        %1115 = vmatpush.bf16.msra.mxu0 %v1056
        %1116 = vmatmul.bf16.gmra.mxu0 %v666
        %v1117 = vpop.f32.mrf.mxu0
        %v1118 = vadd.f32 %v597, %v1117
        %v1119 = vpop.f32.mrf.mxu0
        %v1120 = vadd.f32 %v602, %v1119
        %1121 = vmatmul.bf16.gmra.mxu0 %v669
        %v1122 = vpop.f32.mrf.mxu0
        %v1123 = vadd.f32 %v607, %v1122
        %v1124 = vpop.f32.mrf.mxu0
        %v1125 = vadd.f32 %v612, %v1124
        %1126 = vdwg.mxu0
        %1127 = vmatpush.bf16.msra.mxu0 0
        %1128 = vmatpush.bf16.msra.mxu0 0
        %1129 = vmatpush.bf16.msra.mxu0 0
        %1130 = vmatpush.bf16.msra.mxu0 0
        %1131 = vmatpush.bf16.msra.mxu0 0
        %1132 = vmatpush.bf16.msra.mxu0 0
        %1133 = vmatpush.bf16.msra.mxu0 %v1061
        %1134 = vmatpush.bf16.msra.mxu0 %v1057
        %1135 = vmatmul.bf16.gmra.mxu0 %v666
        %v1136 = vpop.f32.mrf.mxu0
        %v1137 = vadd.f32 %v597, %v1136
        %v1138 = vpop.f32.mrf.mxu0
        %v1139 = vadd.f32 %v602, %v1138
        %1140 = vmatmul.bf16.gmra.mxu0 %v669
        %v1141 = vpop.f32.mrf.mxu0
        %v1142 = vadd.f32 %v607, %v1141
        %v1143 = vpop.f32.mrf.mxu0
        %v1144 = vadd.f32 %v612, %v1143
        %1145 = vdwg.mxu0
        %s1146 = sld [smem:[#allocation3 + $0x1]]
        %s1147 = smul.f32 %s577, %s1146
        %v1148 = vstv %s1147
        %v1149 = vmul.f32 %v1148, %v1080
        %v1150 = vmul.f32 %v1148, %v1099
        %v1151 = vmul.f32 %v1148, %v1118
        %v1152 = vmul.f32 %v1148, %v1137
        %v1153 = vmul.f32 %v1148, %v1082
        %v1154 = vmul.f32 %v1148, %v1101
        %v1155 = vmul.f32 %v1148, %v1120
        %v1156 = vmul.f32 %v1148, %v1139
        %v1157 = vmul.f32 %v1148, %v1085
        %v1158 = vmul.f32 %v1148, %v1104
        %v1159 = vmul.f32 %v1148, %v1123
        %v1160 = vmul.f32 %v1148, %v1142
        %v1161 = vmul.f32 %v1148, %v1087
        %v1162 = vmul.f32 %v1148, %v1106
        %v1163 = vmul.f32 %v1148, %v1125
        %v1164 = vmul.f32 %v1148, %v1144
        %v1165 = vld [vmem:[%s572] sm:$0xff]
        %v1166 = vld [vmem:[%s572 + $0x8] sm:$0xff]
        %v1167 = vld [vmem:[%s572 + $0x10] sm:$0xff]
        %v1168 = vld [vmem:[%s572 + $0x18] sm:$0xff]
        %v1169 = vld [vmem:[%s572 + $0x20] sm:$0xff]
        %v1170 = vld [vmem:[%s572 + $0x28] sm:$0xff]
        %v1171 = vld [vmem:[%s572 + $0x30] sm:$0xff]
        %v1172 = vld [vmem:[%s572 + $0x38] sm:$0xff]
        %v1173 = vld [vmem:[%s572 + $0x40] sm:$0xff]
        %v1174 = vld [vmem:[%s572 + $0x48] sm:$0xff]
        %v1175 = vld [vmem:[%s572 + $0x50] sm:$0xff]
        %v1176 = vld [vmem:[%s572 + $0x58] sm:$0xff]
        %v1177 = vld [vmem:[%s572 + $0x60] sm:$0xff]
        %v1178 = vld [vmem:[%s572 + $0x68] sm:$0xff]
        %v1179 = vld [vmem:[%s572 + $0x70] sm:$0xff]
        %v1180 = vld [vmem:[%s572 + $0x78] sm:$0xff]
        %v1181 = vadd.f32 %v1165, %v1149
        %v1182 = vadd.f32 %v1166, %v1150
        %v1183 = vadd.f32 %v1167, %v1151
        %v1184 = vadd.f32 %v1168, %v1152
        %v1185 = vadd.f32 %v1169, %v1153
        %v1186 = vadd.f32 %v1170, %v1154
        %v1187 = vadd.f32 %v1171, %v1155
        %v1188 = vadd.f32 %v1172, %v1156
        %v1189 = vadd.f32 %v1173, %v1157
        %v1190 = vadd.f32 %v1174, %v1158
        %v1191 = vadd.f32 %v1175, %v1159
        %v1192 = vadd.f32 %v1176, %v1160
        %v1193 = vadd.f32 %v1177, %v1161
        %v1194 = vadd.f32 %v1178, %v1162
        %v1195 = vadd.f32 %v1179, %v1163
        %v1196 = vadd.f32 %v1180, %v1164
        %1197 = vst [vmem:[%s572] sm:$0xff] %v1181
        %1198 = vst [vmem:[%s572 + $0x8] sm:$0xff] %v1182
        %1199 = vst [vmem:[%s572 + $0x10] sm:$0xff] %v1183
        %1200 = vst [vmem:[%s572 + $0x18] sm:$0xff] %v1184
        %1201 = vst [vmem:[%s572 + $0x20] sm:$0xff] %v1185
        %1202 = vst [vmem:[%s572 + $0x28] sm:$0xff] %v1186
        %1203 = vst [vmem:[%s572 + $0x30] sm:$0xff] %v1187
        %1204 = vst [vmem:[%s572 + $0x38] sm:$0xff] %v1188
        %1205 = vst [vmem:[%s572 + $0x40] sm:$0xff] %v1189
        %1206 = vst [vmem:[%s572 + $0x48] sm:$0xff] %v1190
        %1207 = vst [vmem:[%s572 + $0x50] sm:$0xff] %v1191
        %1208 = vst [vmem:[%s572 + $0x58] sm:$0xff] %v1192
        %1209 = vst [vmem:[%s572 + $0x60] sm:$0xff] %v1193
        %1210 = vst [vmem:[%s572 + $0x68] sm:$0xff] %v1194
        %1211 = vst [vmem:[%s572 + $0x70] sm:$0xff] %v1195
        %1212 = vst [vmem:[%s572 + $0x78] sm:$0xff] %v1196
        %s1213 = sld [smem:[#allocation3 + $0x81]]
        %s1214 = smul.f32 %s577, %s1213
        %v1215 = vstv %s1214
        %v1216 = vmul.f32 %v1215, %v1080
        %v1217 = vmul.f32 %v1215, %v1099
        %v1218 = vmul.f32 %v1215, %v1118
        %v1219 = vmul.f32 %v1215, %v1137
        %v1220 = vmul.f32 %v1215, %v1082
        %v1221 = vmul.f32 %v1215, %v1101
        %v1222 = vmul.f32 %v1215, %v1120
        %v1223 = vmul.f32 %v1215, %v1139
        %v1224 = vmul.f32 %v1215, %v1085
        %v1225 = vmul.f32 %v1215, %v1104
        %v1226 = vmul.f32 %v1215, %v1123
        %v1227 = vmul.f32 %v1215, %v1142
        %v1228 = vmul.f32 %v1215, %v1087
        %v1229 = vmul.f32 %v1215, %v1106
        %v1230 = vmul.f32 %v1215, %v1125
        %v1231 = vmul.f32 %v1215, %v1144
        %v1232 = vld [vmem:[%s866] sm:$0xff]
        %v1233 = vld [vmem:[%s866 + $0x8] sm:$0xff]
        %v1234 = vld [vmem:[%s866 + $0x10] sm:$0xff]
        %v1235 = vld [vmem:[%s866 + $0x18] sm:$0xff]
        %v1236 = vld [vmem:[%s866 + $0x20] sm:$0xff]
        %v1237 = vld [vmem:[%s866 + $0x28] sm:$0xff]
        %v1238 = vld [vmem:[%s866 + $0x30] sm:$0xff]
        %v1239 = vld [vmem:[%s866 + $0x38] sm:$0xff]
        %v1240 = vld [vmem:[%s866 + $0x40] sm:$0xff]
        %v1241 = vld [vmem:[%s866 + $0x48] sm:$0xff]
        %v1242 = vld [vmem:[%s866 + $0x50] sm:$0xff]
        %v1243 = vld [vmem:[%s866 + $0x58] sm:$0xff]
        %v1244 = vld [vmem:[%s866 + $0x60] sm:$0xff]
        %v1245 = vld [vmem:[%s866 + $0x68] sm:$0xff]
        %v1246 = vld [vmem:[%s866 + $0x70] sm:$0xff]
        %v1247 = vld [vmem:[%s866 + $0x78] sm:$0xff]
        %v1248 = vadd.f32 %v1232, %v1216
        %v1249 = vadd.f32 %v1233, %v1217
        %v1250 = vadd.f32 %v1234, %v1218
        %v1251 = vadd.f32 %v1235, %v1219
        %v1252 = vadd.f32 %v1236, %v1220
        %v1253 = vadd.f32 %v1237, %v1221
        %v1254 = vadd.f32 %v1238, %v1222
        %v1255 = vadd.f32 %v1239, %v1223
        %v1256 = vadd.f32 %v1240, %v1224
        %v1257 = vadd.f32 %v1241, %v1225
        %v1258 = vadd.f32 %v1242, %v1226
        %v1259 = vadd.f32 %v1243, %v1227
        %v1260 = vadd.f32 %v1244, %v1228
        %v1261 = vadd.f32 %v1245, %v1229
        %v1262 = vadd.f32 %v1246, %v1230
        %v1263 = vadd.f32 %v1247, %v1231
        %1264 = vst [vmem:[%s866] sm:$0xff] %v1248
        %1265 = vst [vmem:[%s866 + $0x8] sm:$0xff] %v1249
        %1266 = vst [vmem:[%s866 + $0x10] sm:$0xff] %v1250
        %1267 = vst [vmem:[%s866 + $0x18] sm:$0xff] %v1251
        %1268 = vst [vmem:[%s866 + $0x20] sm:$0xff] %v1252
        %1269 = vst [vmem:[%s866 + $0x28] sm:$0xff] %v1253
        %1270 = vst [vmem:[%s866 + $0x30] sm:$0xff] %v1254
        %1271 = vst [vmem:[%s866 + $0x38] sm:$0xff] %v1255
        %1272 = vst [vmem:[%s866 + $0x40] sm:$0xff] %v1256
        %1273 = vst [vmem:[%s866 + $0x48] sm:$0xff] %v1257
        %1274 = vst [vmem:[%s866 + $0x50] sm:$0xff] %v1258
        %1275 = vst [vmem:[%s866 + $0x58] sm:$0xff] %v1259
        %1276 = vst [vmem:[%s866 + $0x60] sm:$0xff] %v1260
        %1277 = vst [vmem:[%s866 + $0x68] sm:$0xff] %v1261
        %1278 = vst [vmem:[%s866 + $0x70] sm:$0xff] %v1262
        %1279 = vst [vmem:[%s866 + $0x78] sm:$0xff] %v1263
        %s1280 = sld [smem:[#allocation3 + $0x101]]
        %s1281 = smul.f32 %s577, %s1280
        %v1282 = vstv %s1281
        %v1283 = vmul.f32 %v1282, %v1080
        %v1284 = vmul.f32 %v1282, %v1099
        %v1285 = vmul.f32 %v1282, %v1118
        %v1286 = vmul.f32 %v1282, %v1137
        %v1287 = vmul.f32 %v1282, %v1082
        %v1288 = vmul.f32 %v1282, %v1101
        %v1289 = vmul.f32 %v1282, %v1120
        %v1290 = vmul.f32 %v1282, %v1139
        %v1291 = vmul.f32 %v1282, %v1085
        %v1292 = vmul.f32 %v1282, %v1104
        %v1293 = vmul.f32 %v1282, %v1123
        %v1294 = vmul.f32 %v1282, %v1142
        %v1295 = vmul.f32 %v1282, %v1087
        %v1296 = vmul.f32 %v1282, %v1106
        %v1297 = vmul.f32 %v1282, %v1125
        %v1298 = vmul.f32 %v1282, %v1144
        %v1299 = vld [vmem:[%s935] sm:$0xff]
        %v1300 = vld [vmem:[%s935 + $0x8] sm:$0xff]
        %v1301 = vld [vmem:[%s935 + $0x10] sm:$0xff]
        %v1302 = vld [vmem:[%s935 + $0x18] sm:$0xff]
        %v1303 = vld [vmem:[%s935 + $0x20] sm:$0xff]
        %v1304 = vld [vmem:[%s935 + $0x28] sm:$0xff]
        %v1305 = vld [vmem:[%s935 + $0x30] sm:$0xff]
        %v1306 = vld [vmem:[%s935 + $0x38] sm:$0xff]
        %v1307 = vld [vmem:[%s935 + $0x40] sm:$0xff]
        %v1308 = vld [vmem:[%s935 + $0x48] sm:$0xff]
        %v1309 = vld [vmem:[%s935 + $0x50] sm:$0xff]
        %v1310 = vld [vmem:[%s935 + $0x58] sm:$0xff]
        %v1311 = vld [vmem:[%s935 + $0x60] sm:$0xff]
        %v1312 = vld [vmem:[%s935 + $0x68] sm:$0xff]
        %v1313 = vld [vmem:[%s935 + $0x70] sm:$0xff]
        %v1314 = vld [vmem:[%s935 + $0x78] sm:$0xff]
        %v1315 = vadd.f32 %v1299, %v1283
        %v1316 = vadd.f32 %v1300, %v1284
        %v1317 = vadd.f32 %v1301, %v1285
        %v1318 = vadd.f32 %v1302, %v1286
        %v1319 = vadd.f32 %v1303, %v1287
        %v1320 = vadd.f32 %v1304, %v1288
        %v1321 = vadd.f32 %v1305, %v1289
        %v1322 = vadd.f32 %v1306, %v1290
        %v1323 = vadd.f32 %v1307, %v1291
        %v1324 = vadd.f32 %v1308, %v1292
        %v1325 = vadd.f32 %v1309, %v1293
        %v1326 = vadd.f32 %v1310, %v1294
        %v1327 = vadd.f32 %v1311, %v1295
        %v1328 = vadd.f32 %v1312, %v1296
        %v1329 = vadd.f32 %v1313, %v1297
        %v1330 = vadd.f32 %v1314, %v1298
        %1331 = vst [vmem:[%s935] sm:$0xff] %v1315
        %1332 = vst [vmem:[%s935 + $0x8] sm:$0xff] %v1316
        %1333 = vst [vmem:[%s935 + $0x10] sm:$0xff] %v1317
        %1334 = vst [vmem:[%s935 + $0x18] sm:$0xff] %v1318
        %1335 = vst [vmem:[%s935 + $0x20] sm:$0xff] %v1319
        %1336 = vst [vmem:[%s935 + $0x28] sm:$0xff] %v1320
        %1337 = vst [vmem:[%s935 + $0x30] sm:$0xff] %v1321
        %1338 = vst [vmem:[%s935 + $0x38] sm:$0xff] %v1322
        %1339 = vst [vmem:[%s935 + $0x40] sm:$0xff] %v1323
        %1340 = vst [vmem:[%s935 + $0x48] sm:$0xff] %v1324
        %1341 = vst [vmem:[%s935 + $0x50] sm:$0xff] %v1325
        %1342 = vst [vmem:[%s935 + $0x58] sm:$0xff] %v1326
        %1343 = vst [vmem:[%s935 + $0x60] sm:$0xff] %v1327
        %1344 = vst [vmem:[%s935 + $0x68] sm:$0xff] %v1328
        %1345 = vst [vmem:[%s935 + $0x70] sm:$0xff] %v1329
        %1346 = vst [vmem:[%s935 + $0x78] sm:$0xff] %v1330
        %s1347 = sld [smem:[#allocation3 + $0x181]]
        %s1348 = smul.f32 %s577, %s1347
        %v1349 = vstv %s1348
        %v1350 = vmul.f32 %v1349, %v1080
        %v1351 = vmul.f32 %v1349, %v1099
        %v1352 = vmul.f32 %v1349, %v1118
        %v1353 = vmul.f32 %v1349, %v1137
        %v1354 = vmul.f32 %v1349, %v1082
        %v1355 = vmul.f32 %v1349, %v1101
        %v1356 = vmul.f32 %v1349, %v1120
        %v1357 = vmul.f32 %v1349, %v1139
        %v1358 = vmul.f32 %v1349, %v1085
        %v1359 = vmul.f32 %v1349, %v1104
        %v1360 = vmul.f32 %v1349, %v1123
        %v1361 = vmul.f32 %v1349, %v1142
        %v1362 = vmul.f32 %v1349, %v1087
        %v1363 = vmul.f32 %v1349, %v1106
        %v1364 = vmul.f32 %v1349, %v1125
        %v1365 = vmul.f32 %v1349, %v1144
        %v1366 = vld [vmem:[%s1004] sm:$0xff]
        %v1367 = vld [vmem:[%s1004 + $0x8] sm:$0xff]
        %v1368 = vld [vmem:[%s1004 + $0x10] sm:$0xff]
        %v1369 = vld [vmem:[%s1004 + $0x18] sm:$0xff]
        %v1370 = vld [vmem:[%s1004 + $0x20] sm:$0xff]
        %v1371 = vld [vmem:[%s1004 + $0x28] sm:$0xff]
        %v1372 = vld [vmem:[%s1004 + $0x30] sm:$0xff]
        %v1373 = vld [vmem:[%s1004 + $0x38] sm:$0xff]
        %v1374 = vld [vmem:[%s1004 + $0x40] sm:$0xff]
        %v1375 = vld [vmem:[%s1004 + $0x48] sm:$0xff]
        %v1376 = vld [vmem:[%s1004 + $0x50] sm:$0xff]
        %v1377 = vld [vmem:[%s1004 + $0x58] sm:$0xff]
        %v1378 = vld [vmem:[%s1004 + $0x60] sm:$0xff]
        %v1379 = vld [vmem:[%s1004 + $0x68] sm:$0xff]
        %v1380 = vld [vmem:[%s1004 + $0x70] sm:$0xff]
        %v1381 = vld [vmem:[%s1004 + $0x78] sm:$0xff]
        %v1382 = vadd.f32 %v1366, %v1350
        %v1383 = vadd.f32 %v1367, %v1351
        %v1384 = vadd.f32 %v1368, %v1352
        %v1385 = vadd.f32 %v1369, %v1353
        %v1386 = vadd.f32 %v1370, %v1354
        %v1387 = vadd.f32 %v1371, %v1355
        %v1388 = vadd.f32 %v1372, %v1356
        %v1389 = vadd.f32 %v1373, %v1357
        %v1390 = vadd.f32 %v1374, %v1358
        %v1391 = vadd.f32 %v1375, %v1359
        %v1392 = vadd.f32 %v1376, %v1360
        %v1393 = vadd.f32 %v1377, %v1361
        %v1394 = vadd.f32 %v1378, %v1362
        %v1395 = vadd.f32 %v1379, %v1363
        %v1396 = vadd.f32 %v1380, %v1364
        %v1397 = vadd.f32 %v1381, %v1365
        %1398 = vst [vmem:[%s1004] sm:$0xff] %v1382
        %1399 = vst [vmem:[%s1004 + $0x8] sm:$0xff] %v1383
        %1400 = vst [vmem:[%s1004 + $0x10] sm:$0xff] %v1384
        %1401 = vst [vmem:[%s1004 + $0x18] sm:$0xff] %v1385
        %1402 = vst [vmem:[%s1004 + $0x20] sm:$0xff] %v1386
        %1403 = vst [vmem:[%s1004 + $0x28] sm:$0xff] %v1387
        %1404 = vst [vmem:[%s1004 + $0x30] sm:$0xff] %v1388
        %1405 = vst [vmem:[%s1004 + $0x38] sm:$0xff] %v1389
        %1406 = vst [vmem:[%s1004 + $0x40] sm:$0xff] %v1390
        %1407 = vst [vmem:[%s1004 + $0x48] sm:$0xff] %v1391
        %1408 = vst [vmem:[%s1004 + $0x50] sm:$0xff] %v1392
        %1409 = vst [vmem:[%s1004 + $0x58] sm:$0xff] %v1393
        %1410 = vst [vmem:[%s1004 + $0x60] sm:$0xff] %v1394
        %1411 = vst [vmem:[%s1004 + $0x68] sm:$0xff] %v1395
        %1412 = vst [vmem:[%s1004 + $0x70] sm:$0xff] %v1396
        %1413 = vst [vmem:[%s1004 + $0x78] sm:$0xff] %v1397
        %s1414 = scalar_lea.vmem %s535, 128 [#allocation5]
        %v1415 = vld [vmem:[%s1414] sm:$0xff]
        %v1416 = vld [vmem:[%s1414 + $0x8] sm:$0xff]
        %v1417 = vld [vmem:[%s1414 + $0x10] sm:$0xff]
        %v1418 = vld [vmem:[%s1414 + $0x18] sm:$0xff]
        %v1419 = vld [vmem:[%s1414 + $0x20] sm:$0xff]
        %v1420 = vld [vmem:[%s1414 + $0x28] sm:$0xff]
        %v1421 = vld [vmem:[%s1414 + $0x30] sm:$0xff]
        %v1422 = vld [vmem:[%s1414 + $0x38] sm:$0xff]
        %v1431 = vunpack.c.l.b16 %v1415
        %v1432 = vunpack.c.h.b16 %v1415
        %v1433 = vunpack.c.l.b16 %v1416
        %v1434 = vunpack.c.h.b16 %v1416
        %v1435 = vunpack.c.l.b16 %v1417
        %v1436 = vunpack.c.h.b16 %v1417
        %v1437 = vunpack.c.l.b16 %v1418
        %v1438 = vunpack.c.h.b16 %v1418
        %v1439 = vunpack.c.l.b16 %v1419
        %v1440 = vunpack.c.h.b16 %v1419
        %v1441 = vunpack.c.l.b16 %v1420
        %v1442 = vunpack.c.h.b16 %v1420
        %v1443 = vunpack.c.l.b16 %v1421
        %v1444 = vunpack.c.h.b16 %v1421
        %v1445 = vunpack.c.l.b16 %v1422
        %v1446 = vunpack.c.h.b16 %v1422
        %v1447 = vpack.c.b16 %v1435, %v1431
        %v1448 = vpack.c.b16 %v1436, %v1432
        %v1449 = vpack.c.b16 %v1437, %v1433
        %v1450 = vpack.c.b16 %v1438, %v1434
        %v1451 = vpack.c.b16 %v1443, %v1439
        %v1452 = vpack.c.b16 %v1444, %v1440
        %v1453 = vpack.c.b16 %v1445, %v1441
        %v1454 = vpack.c.b16 %v1446, %v1442
        %1463 = vmatpush.bf16.msra.mxu0 0
        %1464 = vmatpush.bf16.msra.mxu0 0
        %1465 = vmatpush.bf16.msra.mxu0 0
        %1466 = vmatpush.bf16.msra.mxu0 0
        %1467 = vmatpush.bf16.msra.mxu0 0
        %1468 = vmatpush.bf16.msra.mxu0 0
        %1469 = vmatpush.bf16.msra.mxu0 %v1451
        %1470 = vmatpush.bf16.msra.mxu0 %v1447
        %1471 = vmatmul.bf16.gmra.mxu0 %v666
        %v1472 = vpop.f32.mrf.mxu0
        %v1473 = vadd.f32 %v597, %v1472
        %v1474 = vpop.f32.mrf.mxu0
        %v1475 = vadd.f32 %v602, %v1474
        %1476 = vmatmul.bf16.gmra.mxu0 %v669
        %v1477 = vpop.f32.mrf.mxu0
        %v1478 = vadd.f32 %v607, %v1477
        %v1479 = vpop.f32.mrf.mxu0
        %v1480 = vadd.f32 %v612, %v1479
        %1481 = vdwg.mxu0
        %1482 = vmatpush.bf16.msra.mxu0 0
        %1483 = vmatpush.bf16.msra.mxu0 0
        %1484 = vmatpush.bf16.msra.mxu0 0
        %1485 = vmatpush.bf16.msra.mxu0 0
        %1486 = vmatpush.bf16.msra.mxu0 0
        %1487 = vmatpush.bf16.msra.mxu0 0
        %1488 = vmatpush.bf16.msra.mxu0 %v1452
        %1489 = vmatpush.bf16.msra.mxu0 %v1448
        %1490 = vmatmul.bf16.gmra.mxu0 %v666
        %v1491 = vpop.f32.mrf.mxu0
        %v1492 = vadd.f32 %v597, %v1491
        %v1493 = vpop.f32.mrf.mxu0
        %v1494 = vadd.f32 %v602, %v1493
        %1495 = vmatmul.bf16.gmra.mxu0 %v669
        %v1496 = vpop.f32.mrf.mxu0
        %v1497 = vadd.f32 %v607, %v1496
        %v1498 = vpop.f32.mrf.mxu0
        %v1499 = vadd.f32 %v612, %v1498
        %1500 = vdwg.mxu0
        %1501 = vmatpush.bf16.msra.mxu0 0
        %1502 = vmatpush.bf16.msra.mxu0 0
        %1503 = vmatpush.bf16.msra.mxu0 0
        %1504 = vmatpush.bf16.msra.mxu0 0
        %1505 = vmatpush.bf16.msra.mxu0 0
        %1506 = vmatpush.bf16.msra.mxu0 0
        %1507 = vmatpush.bf16.msra.mxu0 %v1453
        %1508 = vmatpush.bf16.msra.mxu0 %v1449
        %1509 = vmatmul.bf16.gmra.mxu0 %v666
        %v1510 = vpop.f32.mrf.mxu0
        %v1511 = vadd.f32 %v597, %v1510
        %v1512 = vpop.f32.mrf.mxu0
        %v1513 = vadd.f32 %v602, %v1512
        %1514 = vmatmul.bf16.gmra.mxu0 %v669
        %v1515 = vpop.f32.mrf.mxu0
        %v1516 = vadd.f32 %v607, %v1515
        %v1517 = vpop.f32.mrf.mxu0
        %v1518 = vadd.f32 %v612, %v1517
        %1519 = vdwg.mxu0
        %1520 = vmatpush.bf16.msra.mxu0 0
        %1521 = vmatpush.bf16.msra.mxu0 0
        %1522 = vmatpush.bf16.msra.mxu0 0
        %1523 = vmatpush.bf16.msra.mxu0 0
        %1524 = vmatpush.bf16.msra.mxu0 0
        %1525 = vmatpush.bf16.msra.mxu0 0
        %1526 = vmatpush.bf16.msra.mxu0 %v1454
        %1527 = vmatpush.bf16.msra.mxu0 %v1450
        %1528 = vmatmul.bf16.gmra.mxu0 %v666
        %v1529 = vpop.f32.mrf.mxu0
        %v1530 = vadd.f32 %v597, %v1529
        %v1531 = vpop.f32.mrf.mxu0
        %v1532 = vadd.f32 %v602, %v1531
        %1533 = vmatmul.bf16.gmra.mxu0 %v669
        %v1534 = vpop.f32.mrf.mxu0
        %v1535 = vadd.f32 %v607, %v1534
        %v1536 = vpop.f32.mrf.mxu0
        %v1537 = vadd.f32 %v612, %v1536
        %1538 = vdwg.mxu0
        %s1539 = sld [smem:[#allocation3 + $0x2]]
        %s1540 = smul.f32 %s577, %s1539
        %v1541 = vstv %s1540
        %v1542 = vmul.f32 %v1541, %v1473
        %v1543 = vmul.f32 %v1541, %v1492
        %v1544 = vmul.f32 %v1541, %v1511
        %v1545 = vmul.f32 %v1541, %v1530
        %v1546 = vmul.f32 %v1541, %v1475
        %v1547 = vmul.f32 %v1541, %v1494
        %v1548 = vmul.f32 %v1541, %v1513
        %v1549 = vmul.f32 %v1541, %v1532
        %v1550 = vmul.f32 %v1541, %v1478
        %v1551 = vmul.f32 %v1541, %v1497
        %v1552 = vmul.f32 %v1541, %v1516
        %v1553 = vmul.f32 %v1541, %v1535
        %v1554 = vmul.f32 %v1541, %v1480
        %v1555 = vmul.f32 %v1541, %v1499
        %v1556 = vmul.f32 %v1541, %v1518
        %v1557 = vmul.f32 %v1541, %v1537
        %v1558 = vld [vmem:[%s572] sm:$0xff]
        %v1559 = vld [vmem:[%s572 + $0x8] sm:$0xff]
        %v1560 = vld [vmem:[%s572 + $0x10] sm:$0xff]
        %v1561 = vld [vmem:[%s572 + $0x18] sm:$0xff]
        %v1562 = vld [vmem:[%s572 + $0x20] sm:$0xff]
        %v1563 = vld [vmem:[%s572 + $0x28] sm:$0xff]
        %v1564 = vld [vmem:[%s572 + $0x30] sm:$0xff]
        %v1565 = vld [vmem:[%s572 + $0x38] sm:$0xff]
        %v1566 = vld [vmem:[%s572 + $0x40] sm:$0xff]
        %v1567 = vld [vmem:[%s572 + $0x48] sm:$0xff]
        %v1568 = vld [vmem:[%s572 + $0x50] sm:$0xff]
        %v1569 = vld [vmem:[%s572 + $0x58] sm:$0xff]
        %v1570 = vld [vmem:[%s572 + $0x60] sm:$0xff]
        %v1571 = vld [vmem:[%s572 + $0x68] sm:$0xff]
        %v1572 = vld [vmem:[%s572 + $0x70] sm:$0xff]
        %v1573 = vld [vmem:[%s572 + $0x78] sm:$0xff]
        %v1574 = vadd.f32 %v1558, %v1542
        %v1575 = vadd.f32 %v1559, %v1543
        %v1576 = vadd.f32 %v1560, %v1544
        %v1577 = vadd.f32 %v1561, %v1545
        %v1578 = vadd.f32 %v1562, %v1546
        %v1579 = vadd.f32 %v1563, %v1547
        %v1580 = vadd.f32 %v1564, %v1548
        %v1581 = vadd.f32 %v1565, %v1549
        %v1582 = vadd.f32 %v1566, %v1550
        %v1583 = vadd.f32 %v1567, %v1551
        %v1584 = vadd.f32 %v1568, %v1552
        %v1585 = vadd.f32 %v1569, %v1553
        %v1586 = vadd.f32 %v1570, %v1554
        %v1587 = vadd.f32 %v1571, %v1555
        %v1588 = vadd.f32 %v1572, %v1556
        %v1589 = vadd.f32 %v1573, %v1557
        %1590 = vst [vmem:[%s572] sm:$0xff] %v1574
        %1591 = vst [vmem:[%s572 + $0x8] sm:$0xff] %v1575
        %1592 = vst [vmem:[%s572 + $0x10] sm:$0xff] %v1576
        %1593 = vst [vmem:[%s572 + $0x18] sm:$0xff] %v1577
        %1594 = vst [vmem:[%s572 + $0x20] sm:$0xff] %v1578
        %1595 = vst [vmem:[%s572 + $0x28] sm:$0xff] %v1579
        %1596 = vst [vmem:[%s572 + $0x30] sm:$0xff] %v1580
        %1597 = vst [vmem:[%s572 + $0x38] sm:$0xff] %v1581
        %1598 = vst [vmem:[%s572 + $0x40] sm:$0xff] %v1582
        %1599 = vst [vmem:[%s572 + $0x48] sm:$0xff] %v1583
        %1600 = vst [vmem:[%s572 + $0x50] sm:$0xff] %v1584
        %1601 = vst [vmem:[%s572 + $0x58] sm:$0xff] %v1585
        %1602 = vst [vmem:[%s572 + $0x60] sm:$0xff] %v1586
        %1603 = vst [vmem:[%s572 + $0x68] sm:$0xff] %v1587
        %1604 = vst [vmem:[%s572 + $0x70] sm:$0xff] %v1588
        %1605 = vst [vmem:[%s572 + $0x78] sm:$0xff] %v1589
        %s1606 = sld [smem:[#allocation3 + $0x82]]
        %s1607 = smul.f32 %s577, %s1606
        %v1608 = vstv %s1607
        %v1609 = vmul.f32 %v1608, %v1473
        %v1610 = vmul.f32 %v1608, %v1492
        %v1611 = vmul.f32 %v1608, %v1511
        %v1612 = vmul.f32 %v1608, %v1530
        %v1613 = vmul.f32 %v1608, %v1475
        %v1614 = vmul.f32 %v1608, %v1494
        %v1615 = vmul.f32 %v1608, %v1513
        %v1616 = vmul.f32 %v1608, %v1532
        %v1617 = vmul.f32 %v1608, %v1478
        %v1618 = vmul.f32 %v1608, %v1497
        %v1619 = vmul.f32 %v1608, %v1516
        %v1620 = vmul.f32 %v1608, %v1535
        %v1621 = vmul.f32 %v1608, %v1480
        %v1622 = vmul.f32 %v1608, %v1499
        %v1623 = vmul.f32 %v1608, %v1518
        %v1624 = vmul.f32 %v1608, %v1537
        %v1625 = vld [vmem:[%s866] sm:$0xff]
        %v1626 = vld [vmem:[%s866 + $0x8] sm:$0xff]
        %v1627 = vld [vmem:[%s866 + $0x10] sm:$0xff]
        %v1628 = vld [vmem:[%s866 + $0x18] sm:$0xff]
        %v1629 = vld [vmem:[%s866 + $0x20] sm:$0xff]
        %v1630 = vld [vmem:[%s866 + $0x28] sm:$0xff]
        %v1631 = vld [vmem:[%s866 + $0x30] sm:$0xff]
        %v1632 = vld [vmem:[%s866 + $0x38] sm:$0xff]
        %v1633 = vld [vmem:[%s866 + $0x40] sm:$0xff]
        %v1634 = vld [vmem:[%s866 + $0x48] sm:$0xff]
        %v1635 = vld [vmem:[%s866 + $0x50] sm:$0xff]
        %v1636 = vld [vmem:[%s866 + $0x58] sm:$0xff]
        %v1637 = vld [vmem:[%s866 + $0x60] sm:$0xff]
        %v1638 = vld [vmem:[%s866 + $0x68] sm:$0xff]
        %v1639 = vld [vmem:[%s866 + $0x70] sm:$0xff]
        %v1640 = vld [vmem:[%s866 + $0x78] sm:$0xff]
        %v1641 = vadd.f32 %v1625, %v1609
        %v1642 = vadd.f32 %v1626, %v1610
        %v1643 = vadd.f32 %v1627, %v1611
        %v1644 = vadd.f32 %v1628, %v1612
        %v1645 = vadd.f32 %v1629, %v1613
        %v1646 = vadd.f32 %v1630, %v1614
        %v1647 = vadd.f32 %v1631, %v1615
        %v1648 = vadd.f32 %v1632, %v1616
        %v1649 = vadd.f32 %v1633, %v1617
        %v1650 = vadd.f32 %v1634, %v1618
        %v1651 = vadd.f32 %v1635, %v1619
        %v1652 = vadd.f32 %v1636, %v1620
        %v1653 = vadd.f32 %v1637, %v1621
        %v1654 = vadd.f32 %v1638, %v1622
        %v1655 = vadd.f32 %v1639, %v1623
        %v1656 = vadd.f32 %v1640, %v1624
        %1657 = vst [vmem:[%s866] sm:$0xff] %v1641
        %1658 = vst [vmem:[%s866 + $0x8] sm:$0xff] %v1642
        %1659 = vst [vmem:[%s866 + $0x10] sm:$0xff] %v1643
        %1660 = vst [vmem:[%s866 + $0x18] sm:$0xff] %v1644
        %1661 = vst [vmem:[%s866 + $0x20] sm:$0xff] %v1645
        %1662 = vst [vmem:[%s866 + $0x28] sm:$0xff] %v1646
        %1663 = vst [vmem:[%s866 + $0x30] sm:$0xff] %v1647
        %1664 = vst [vmem:[%s866 + $0x38] sm:$0xff] %v1648
        %1665 = vst [vmem:[%s866 + $0x40] sm:$0xff] %v1649
        %1666 = vst [vmem:[%s866 + $0x48] sm:$0xff] %v1650
        %1667 = vst [vmem:[%s866 + $0x50] sm:$0xff] %v1651
        %1668 = vst [vmem:[%s866 + $0x58] sm:$0xff] %v1652
        %1669 = vst [vmem:[%s866 + $0x60] sm:$0xff] %v1653
        %1670 = vst [vmem:[%s866 + $0x68] sm:$0xff] %v1654
        %1671 = vst [vmem:[%s866 + $0x70] sm:$0xff] %v1655
        %1672 = vst [vmem:[%s866 + $0x78] sm:$0xff] %v1656
        %s1673 = sld [smem:[#allocation3 + $0x102]]
        %s1674 = smul.f32 %s577, %s1673
        %v1675 = vstv %s1674
        %v1676 = vmul.f32 %v1675, %v1473
        %v1677 = vmul.f32 %v1675, %v1492
        %v1678 = vmul.f32 %v1675, %v1511
        %v1679 = vmul.f32 %v1675, %v1530
        %v1680 = vmul.f32 %v1675, %v1475
        %v1681 = vmul.f32 %v1675, %v1494
        %v1682 = vmul.f32 %v1675, %v1513
        %v1683 = vmul.f32 %v1675, %v1532
        %v1684 = vmul.f32 %v1675, %v1478
        %v1685 = vmul.f32 %v1675, %v1497
        %v1686 = vmul.f32 %v1675, %v1516
        %v1687 = vmul.f32 %v1675, %v1535
        %v1688 = vmul.f32 %v1675, %v1480
        %v1689 = vmul.f32 %v1675, %v1499
        %v1690 = vmul.f32 %v1675, %v1518
        %v1691 = vmul.f32 %v1675, %v1537
        %v1692 = vld [vmem:[%s935] sm:$0xff]
        %v1693 = vld [vmem:[%s935 + $0x8] sm:$0xff]
        %v1694 = vld [vmem:[%s935 + $0x10] sm:$0xff]
        %v1695 = vld [vmem:[%s935 + $0x18] sm:$0xff]
        %v1696 = vld [vmem:[%s935 + $0x20] sm:$0xff]
        %v1697 = vld [vmem:[%s935 + $0x28] sm:$0xff]
        %v1698 = vld [vmem:[%s935 + $0x30] sm:$0xff]
        %v1699 = vld [vmem:[%s935 + $0x38] sm:$0xff]
        %v1700 = vld [vmem:[%s935 + $0x40] sm:$0xff]
        %v1701 = vld [vmem:[%s935 + $0x48] sm:$0xff]
        %v1702 = vld [vmem:[%s935 + $0x50] sm:$0xff]
        %v1703 = vld [vmem:[%s935 + $0x58] sm:$0xff]
        %v1704 = vld [vmem:[%s935 + $0x60] sm:$0xff]
        %v1705 = vld [vmem:[%s935 + $0x68] sm:$0xff]
        %v1706 = vld [vmem:[%s935 + $0x70] sm:$0xff]
        %v1707 = vld [vmem:[%s935 + $0x78] sm:$0xff]
        %v1708 = vadd.f32 %v1692, %v1676
        %v1709 = vadd.f32 %v1693, %v1677
        %v1710 = vadd.f32 %v1694, %v1678
        %v1711 = vadd.f32 %v1695, %v1679
        %v1712 = vadd.f32 %v1696, %v1680
        %v1713 = vadd.f32 %v1697, %v1681
        %v1714 = vadd.f32 %v1698, %v1682
        %v1715 = vadd.f32 %v1699, %v1683
        %v1716 = vadd.f32 %v1700, %v1684
        %v1717 = vadd.f32 %v1701, %v1685
        %v1718 = vadd.f32 %v1702, %v1686
        %v1719 = vadd.f32 %v1703, %v1687
        %v1720 = vadd.f32 %v1704, %v1688
        %v1721 = vadd.f32 %v1705, %v1689
        %v1722 = vadd.f32 %v1706, %v1690
        %v1723 = vadd.f32 %v1707, %v1691
        %1724 = vst [vmem:[%s935] sm:$0xff] %v1708
        %1725 = vst [vmem:[%s935 + $0x8] sm:$0xff] %v1709
        %1726 = vst [vmem:[%s935 + $0x10] sm:$0xff] %v1710
        %1727 = vst [vmem:[%s935 + $0x18] sm:$0xff] %v1711
        %1728 = vst [vmem:[%s935 + $0x20] sm:$0xff] %v1712
        %1729 = vst [vmem:[%s935 + $0x28] sm:$0xff] %v1713
        %1730 = vst [vmem:[%s935 + $0x30] sm:$0xff] %v1714
        %1731 = vst [vmem:[%s935 + $0x38] sm:$0xff] %v1715
        %1732 = vst [vmem:[%s935 + $0x40] sm:$0xff] %v1716
        %1733 = vst [vmem:[%s935 + $0x48] sm:$0xff] %v1717
        %1734 = vst [vmem:[%s935 + $0x50] sm:$0xff] %v1718
        %1735 = vst [vmem:[%s935 + $0x58] sm:$0xff] %v1719
        %1736 = vst [vmem:[%s935 + $0x60] sm:$0xff] %v1720
        %1737 = vst [vmem:[%s935 + $0x68] sm:$0xff] %v1721
        %1738 = vst [vmem:[%s935 + $0x70] sm:$0xff] %v1722
        %1739 = vst [vmem:[%s935 + $0x78] sm:$0xff] %v1723
        %s1740 = sld [smem:[#allocation3 + $0x182]]
        %s1741 = smul.f32 %s577, %s1740
        %v1742 = vstv %s1741
        %v1743 = vmul.f32 %v1742, %v1473
        %v1744 = vmul.f32 %v1742, %v1492
        %v1745 = vmul.f32 %v1742, %v1511
        %v1746 = vmul.f32 %v1742, %v1530
        %v1747 = vmul.f32 %v1742, %v1475
        %v1748 = vmul.f32 %v1742, %v1494
        %v1749 = vmul.f32 %v1742, %v1513
        %v1750 = vmul.f32 %v1742, %v1532
        %v1751 = vmul.f32 %v1742, %v1478
        %v1752 = vmul.f32 %v1742, %v1497
        %v1753 = vmul.f32 %v1742, %v1516
        %v1754 = vmul.f32 %v1742, %v1535
        %v1755 = vmul.f32 %v1742, %v1480
        %v1756 = vmul.f32 %v1742, %v1499
        %v1757 = vmul.f32 %v1742, %v1518
        %v1758 = vmul.f32 %v1742, %v1537
        %v1759 = vld [vmem:[%s1004] sm:$0xff]
        %v1760 = vld [vmem:[%s1004 + $0x8] sm:$0xff]
        %v1761 = vld [vmem:[%s1004 + $0x10] sm:$0xff]
        %v1762 = vld [vmem:[%s1004 + $0x18] sm:$0xff]
        %v1763 = vld [vmem:[%s1004 + $0x20] sm:$0xff]
        %v1764 = vld [vmem:[%s1004 + $0x28] sm:$0xff]
        %v1765 = vld [vmem:[%s1004 + $0x30] sm:$0xff]
        %v1766 = vld [vmem:[%s1004 + $0x38] sm:$0xff]
        %v1767 = vld [vmem:[%s1004 + $0x40] sm:$0xff]
        %v1768 = vld [vmem:[%s1004 + $0x48] sm:$0xff]
        %v1769 = vld [vmem:[%s1004 + $0x50] sm:$0xff]
        %v1770 = vld [vmem:[%s1004 + $0x58] sm:$0xff]
        %v1771 = vld [vmem:[%s1004 + $0x60] sm:$0xff]
        %v1772 = vld [vmem:[%s1004 + $0x68] sm:$0xff]
        %v1773 = vld [vmem:[%s1004 + $0x70] sm:$0xff]
        %v1774 = vld [vmem:[%s1004 + $0x78] sm:$0xff]
        %v1775 = vadd.f32 %v1759, %v1743
        %v1776 = vadd.f32 %v1760, %v1744
        %v1777 = vadd.f32 %v1761, %v1745
        %v1778 = vadd.f32 %v1762, %v1746
        %v1779 = vadd.f32 %v1763, %v1747
        %v1780 = vadd.f32 %v1764, %v1748
        %v1781 = vadd.f32 %v1765, %v1749
        %v1782 = vadd.f32 %v1766, %v1750
        %v1783 = vadd.f32 %v1767, %v1751
        %v1784 = vadd.f32 %v1768, %v1752
        %v1785 = vadd.f32 %v1769, %v1753
        %v1786 = vadd.f32 %v1770, %v1754
        %v1787 = vadd.f32 %v1771, %v1755
        %v1788 = vadd.f32 %v1772, %v1756
        %v1789 = vadd.f32 %v1773, %v1757
        %v1790 = vadd.f32 %v1774, %v1758
        %1791 = vst [vmem:[%s1004] sm:$0xff] %v1775
        %1792 = vst [vmem:[%s1004 + $0x8] sm:$0xff] %v1776
        %1793 = vst [vmem:[%s1004 + $0x10] sm:$0xff] %v1777
        %1794 = vst [vmem:[%s1004 + $0x18] sm:$0xff] %v1778
        %1795 = vst [vmem:[%s1004 + $0x20] sm:$0xff] %v1779
        %1796 = vst [vmem:[%s1004 + $0x28] sm:$0xff] %v1780
        %1797 = vst [vmem:[%s1004 + $0x30] sm:$0xff] %v1781
        %1798 = vst [vmem:[%s1004 + $0x38] sm:$0xff] %v1782
        %1799 = vst [vmem:[%s1004 + $0x40] sm:$0xff] %v1783
        %1800 = vst [vmem:[%s1004 + $0x48] sm:$0xff] %v1784
        %1801 = vst [vmem:[%s1004 + $0x50] sm:$0xff] %v1785
        %1802 = vst [vmem:[%s1004 + $0x58] sm:$0xff] %v1786
        %1803 = vst [vmem:[%s1004 + $0x60] sm:$0xff] %v1787
        %1804 = vst [vmem:[%s1004 + $0x68] sm:$0xff] %v1788
        %1805 = vst [vmem:[%s1004 + $0x70] sm:$0xff] %v1789
        %1806 = vst [vmem:[%s1004 + $0x78] sm:$0xff] %v1790
        %s1807 = scalar_lea.vmem %s535, 192 [#allocation5]
        %v1808 = vld [vmem:[%s1807] sm:$0xff]
        %v1809 = vld [vmem:[%s1807 + $0x8] sm:$0xff]
        %v1810 = vld [vmem:[%s1807 + $0x10] sm:$0xff]
        %v1811 = vld [vmem:[%s1807 + $0x18] sm:$0xff]
        %v1812 = vld [vmem:[%s1807 + $0x20] sm:$0xff]
        %v1813 = vld [vmem:[%s1807 + $0x28] sm:$0xff]
        %v1814 = vld [vmem:[%s1807 + $0x30] sm:$0xff]
        %v1815 = vld [vmem:[%s1807 + $0x38] sm:$0xff]
        %v1824 = vunpack.c.l.b16 %v1808
        %v1825 = vunpack.c.h.b16 %v1808
        %v1826 = vunpack.c.l.b16 %v1809
        %v1827 = vunpack.c.h.b16 %v1809
        %v1828 = vunpack.c.l.b16 %v1810
        %v1829 = vunpack.c.h.b16 %v1810
        %v1830 = vunpack.c.l.b16 %v1811
        %v1831 = vunpack.c.h.b16 %v1811
        %v1832 = vunpack.c.l.b16 %v1812
        %v1833 = vunpack.c.h.b16 %v1812
        %v1834 = vunpack.c.l.b16 %v1813
        %v1835 = vunpack.c.h.b16 %v1813
        %v1836 = vunpack.c.l.b16 %v1814
        %v1837 = vunpack.c.h.b16 %v1814
        %v1838 = vunpack.c.l.b16 %v1815
        %v1839 = vunpack.c.h.b16 %v1815
        %v1840 = vpack.c.b16 %v1828, %v1824
        %v1841 = vpack.c.b16 %v1829, %v1825
        %v1842 = vpack.c.b16 %v1830, %v1826
        %v1843 = vpack.c.b16 %v1831, %v1827
        %v1844 = vpack.c.b16 %v1836, %v1832
        %v1845 = vpack.c.b16 %v1837, %v1833
        %v1846 = vpack.c.b16 %v1838, %v1834
        %v1847 = vpack.c.b16 %v1839, %v1835
        %1856 = vmatpush.bf16.msra.mxu0 0
        %1857 = vmatpush.bf16.msra.mxu0 0
        %1858 = vmatpush.bf16.msra.mxu0 0
        %1859 = vmatpush.bf16.msra.mxu0 0
        %1860 = vmatpush.bf16.msra.mxu0 0
        %1861 = vmatpush.bf16.msra.mxu0 0
        %1862 = vmatpush.bf16.msra.mxu0 %v1844
        %1863 = vmatpush.bf16.msra.mxu0 %v1840
        %1864 = vmatmul.bf16.gmra.mxu0 %v666
        %v1865 = vpop.f32.mrf.mxu0
        %v1866 = vadd.f32 %v597, %v1865
        %v1867 = vpop.f32.mrf.mxu0
        %v1868 = vadd.f32 %v602, %v1867
        %1869 = vmatmul.bf16.gmra.mxu0 %v669
        %v1870 = vpop.f32.mrf.mxu0
        %v1871 = vadd.f32 %v607, %v1870
        %v1872 = vpop.f32.mrf.mxu0
        %v1873 = vadd.f32 %v612, %v1872
        %1874 = vdwg.mxu0
        %1875 = vmatpush.bf16.msra.mxu0 0
        %1876 = vmatpush.bf16.msra.mxu0 0
        %1877 = vmatpush.bf16.msra.mxu0 0
        %1878 = vmatpush.bf16.msra.mxu0 0
        %1879 = vmatpush.bf16.msra.mxu0 0
        %1880 = vmatpush.bf16.msra.mxu0 0
        %1881 = vmatpush.bf16.msra.mxu0 %v1845
        %1882 = vmatpush.bf16.msra.mxu0 %v1841
        %1883 = vmatmul.bf16.gmra.mxu0 %v666
        %v1884 = vpop.f32.mrf.mxu0
        %v1885 = vadd.f32 %v597, %v1884
        %v1886 = vpop.f32.mrf.mxu0
        %v1887 = vadd.f32 %v602, %v1886
        %1888 = vmatmul.bf16.gmra.mxu0 %v669
        %v1889 = vpop.f32.mrf.mxu0
        %v1890 = vadd.f32 %v607, %v1889
        %v1891 = vpop.f32.mrf.mxu0
        %v1892 = vadd.f32 %v612, %v1891
        %1893 = vdwg.mxu0
        %1894 = vmatpush.bf16.msra.mxu0 0
        %1895 = vmatpush.bf16.msra.mxu0 0
        %1896 = vmatpush.bf16.msra.mxu0 0
        %1897 = vmatpush.bf16.msra.mxu0 0
        %1898 = vmatpush.bf16.msra.mxu0 0
        %1899 = vmatpush.bf16.msra.mxu0 0
        %1900 = vmatpush.bf16.msra.mxu0 %v1846
        %1901 = vmatpush.bf16.msra.mxu0 %v1842
        %1902 = vmatmul.bf16.gmra.mxu0 %v666
        %v1903 = vpop.f32.mrf.mxu0
        %v1904 = vadd.f32 %v597, %v1903
        %v1905 = vpop.f32.mrf.mxu0
        %v1906 = vadd.f32 %v602, %v1905
        %1907 = vmatmul.bf16.gmra.mxu0 %v669
        %v1908 = vpop.f32.mrf.mxu0
        %v1909 = vadd.f32 %v607, %v1908
        %v1910 = vpop.f32.mrf.mxu0
        %v1911 = vadd.f32 %v612, %v1910
        %1912 = vdwg.mxu0
        %1913 = vmatpush.bf16.msra.mxu0 0
        %1914 = vmatpush.bf16.msra.mxu0 0
        %1915 = vmatpush.bf16.msra.mxu0 0
        %1916 = vmatpush.bf16.msra.mxu0 0
        %1917 = vmatpush.bf16.msra.mxu0 0
        %1918 = vmatpush.bf16.msra.mxu0 0
        %1919 = vmatpush.bf16.msra.mxu0 %v1847
        %1920 = vmatpush.bf16.msra.mxu0 %v1843
        %1921 = vmatmul.bf16.gmra.mxu0 %v666
        %v1922 = vpop.f32.mrf.mxu0
        %v1923 = vadd.f32 %v597, %v1922
        %v1924 = vpop.f32.mrf.mxu0
        %v1925 = vadd.f32 %v602, %v1924
        %1926 = vmatmul.bf16.gmra.mxu0 %v669
        %v1927 = vpop.f32.mrf.mxu0
        %v1928 = vadd.f32 %v607, %v1927
        %v1929 = vpop.f32.mrf.mxu0
        %v1930 = vadd.f32 %v612, %v1929
        %1931 = vdwg.mxu0
        %s1932 = sld [smem:[#allocation3 + $0x3]]
        %s1933 = smul.f32 %s577, %s1932
        %v1934 = vstv %s1933
        %v1935 = vmul.f32 %v1934, %v1866
        %v1936 = vmul.f32 %v1934, %v1885
        %v1937 = vmul.f32 %v1934, %v1904
        %v1938 = vmul.f32 %v1934, %v1923
        %v1939 = vmul.f32 %v1934, %v1868
        %v1940 = vmul.f32 %v1934, %v1887
        %v1941 = vmul.f32 %v1934, %v1906
        %v1942 = vmul.f32 %v1934, %v1925
        %v1943 = vmul.f32 %v1934, %v1871
        %v1944 = vmul.f32 %v1934, %v1890
        %v1945 = vmul.f32 %v1934, %v1909
        %v1946 = vmul.f32 %v1934, %v1928
        %v1947 = vmul.f32 %v1934, %v1873
        %v1948 = vmul.f32 %v1934, %v1892
        %v1949 = vmul.f32 %v1934, %v1911
        %v1950 = vmul.f32 %v1934, %v1930
        %v1951 = vld [vmem:[%s572] sm:$0xff]
        %v1952 = vld [vmem:[%s572 + $0x8] sm:$0xff]
        %v1953 = vld [vmem:[%s572 + $0x10] sm:$0xff]
        %v1954 = vld [vmem:[%s572 + $0x18] sm:$0xff]
        %v1955 = vld [vmem:[%s572 + $0x20] sm:$0xff]
        %v1956 = vld [vmem:[%s572 + $0x28] sm:$0xff]
        %v1957 = vld [vmem:[%s572 + $0x30] sm:$0xff]
        %v1958 = vld [vmem:[%s572 + $0x38] sm:$0xff]
        %v1959 = vld [vmem:[%s572 + $0x40] sm:$0xff]
        %v1960 = vld [vmem:[%s572 + $0x48] sm:$0xff]
        %v1961 = vld [vmem:[%s572 + $0x50] sm:$0xff]
        %v1962 = vld [vmem:[%s572 + $0x58] sm:$0xff]
        %v1963 = vld [vmem:[%s572 + $0x60] sm:$0xff]
        %v1964 = vld [vmem:[%s572 + $0x68] sm:$0xff]
        %v1965 = vld [vmem:[%s572 + $0x70] sm:$0xff]
        %v1966 = vld [vmem:[%s572 + $0x78] sm:$0xff]
        %v1967 = vadd.f32 %v1951, %v1935
        %v1968 = vadd.f32 %v1952, %v1936
        %v1969 = vadd.f32 %v1953, %v1937
        %v1970 = vadd.f32 %v1954, %v1938
        %v1971 = vadd.f32 %v1955, %v1939
        %v1972 = vadd.f32 %v1956, %v1940
        %v1973 = vadd.f32 %v1957, %v1941
        %v1974 = vadd.f32 %v1958, %v1942
        %v1975 = vadd.f32 %v1959, %v1943
        %v1976 = vadd.f32 %v1960, %v1944
        %v1977 = vadd.f32 %v1961, %v1945
        %v1978 = vadd.f32 %v1962, %v1946
        %v1979 = vadd.f32 %v1963, %v1947
        %v1980 = vadd.f32 %v1964, %v1948
        %v1981 = vadd.f32 %v1965, %v1949
        %v1982 = vadd.f32 %v1966, %v1950
        %1983 = vst [vmem:[%s572] sm:$0xff] %v1967
        %1984 = vst [vmem:[%s572 + $0x8] sm:$0xff] %v1968
        %1985 = vst [vmem:[%s572 + $0x10] sm:$0xff] %v1969
        %1986 = vst [vmem:[%s572 + $0x18] sm:$0xff] %v1970
        %1987 = vst [vmem:[%s572 + $0x20] sm:$0xff] %v1971
        %1988 = vst [vmem:[%s572 + $0x28] sm:$0xff] %v1972
        %1989 = vst [vmem:[%s572 + $0x30] sm:$0xff] %v1973
        %1990 = vst [vmem:[%s572 + $0x38] sm:$0xff] %v1974
        %1991 = vst [vmem:[%s572 + $0x40] sm:$0xff] %v1975
        %1992 = vst [vmem:[%s572 + $0x48] sm:$0xff] %v1976
        %1993 = vst [vmem:[%s572 + $0x50] sm:$0xff] %v1977
        %1994 = vst [vmem:[%s572 + $0x58] sm:$0xff] %v1978
        %1995 = vst [vmem:[%s572 + $0x60] sm:$0xff] %v1979
        %1996 = vst [vmem:[%s572 + $0x68] sm:$0xff] %v1980
        %1997 = vst [vmem:[%s572 + $0x70] sm:$0xff] %v1981
        %1998 = vst [vmem:[%s572 + $0x78] sm:$0xff] %v1982
        %s1999 = sld [smem:[#allocation3 + $0x83]]
        %s2000 = smul.f32 %s577, %s1999
        %v2001 = vstv %s2000
        %v2002 = vmul.f32 %v2001, %v1866
        %v2003 = vmul.f32 %v2001, %v1885
        %v2004 = vmul.f32 %v2001, %v1904
        %v2005 = vmul.f32 %v2001, %v1923
        %v2006 = vmul.f32 %v2001, %v1868
        %v2007 = vmul.f32 %v2001, %v1887
        %v2008 = vmul.f32 %v2001, %v1906
        %v2009 = vmul.f32 %v2001, %v1925
        %v2010 = vmul.f32 %v2001, %v1871
        %v2011 = vmul.f32 %v2001, %v1890
        %v2012 = vmul.f32 %v2001, %v1909
        %v2013 = vmul.f32 %v2001, %v1928
        %v2014 = vmul.f32 %v2001, %v1873
        %v2015 = vmul.f32 %v2001, %v1892
        %v2016 = vmul.f32 %v2001, %v1911
        %v2017 = vmul.f32 %v2001, %v1930
        %v2018 = vld [vmem:[%s866] sm:$0xff]
        %v2019 = vld [vmem:[%s866 + $0x8] sm:$0xff]
        %v2020 = vld [vmem:[%s866 + $0x10] sm:$0xff]
        %v2021 = vld [vmem:[%s866 + $0x18] sm:$0xff]
        %v2022 = vld [vmem:[%s866 + $0x20] sm:$0xff]
        %v2023 = vld [vmem:[%s866 + $0x28] sm:$0xff]
        %v2024 = vld [vmem:[%s866 + $0x30] sm:$0xff]
        %v2025 = vld [vmem:[%s866 + $0x38] sm:$0xff]
        %v2026 = vld [vmem:[%s866 + $0x40] sm:$0xff]
        %v2027 = vld [vmem:[%s866 + $0x48] sm:$0xff]
        %v2028 = vld [vmem:[%s866 + $0x50] sm:$0xff]
        %v2029 = vld [vmem:[%s866 + $0x58] sm:$0xff]
        %v2030 = vld [vmem:[%s866 + $0x60] sm:$0xff]
        %v2031 = vld [vmem:[%s866 + $0x68] sm:$0xff]
        %v2032 = vld [vmem:[%s866 + $0x70] sm:$0xff]
        %v2033 = vld [vmem:[%s866 + $0x78] sm:$0xff]
        %v2034 = vadd.f32 %v2018, %v2002
        %v2035 = vadd.f32 %v2019, %v2003
        %v2036 = vadd.f32 %v2020, %v2004
        %v2037 = vadd.f32 %v2021, %v2005
        %v2038 = vadd.f32 %v2022, %v2006
        %v2039 = vadd.f32 %v2023, %v2007
        %v2040 = vadd.f32 %v2024, %v2008
        %v2041 = vadd.f32 %v2025, %v2009
        %v2042 = vadd.f32 %v2026, %v2010
        %v2043 = vadd.f32 %v2027, %v2011
        %v2044 = vadd.f32 %v2028, %v2012
        %v2045 = vadd.f32 %v2029, %v2013
        %v2046 = vadd.f32 %v2030, %v2014
        %v2047 = vadd.f32 %v2031, %v2015
        %v2048 = vadd.f32 %v2032, %v2016
        %v2049 = vadd.f32 %v2033, %v2017
        %2050 = vst [vmem:[%s866] sm:$0xff] %v2034
        %2051 = vst [vmem:[%s866 + $0x8] sm:$0xff] %v2035
        %2052 = vst [vmem:[%s866 + $0x10] sm:$0xff] %v2036
        %2053 = vst [vmem:[%s866 + $0x18] sm:$0xff] %v2037
        %2054 = vst [vmem:[%s866 + $0x20] sm:$0xff] %v2038
        %2055 = vst [vmem:[%s866 + $0x28] sm:$0xff] %v2039
        %2056 = vst [vmem:[%s866 + $0x30] sm:$0xff] %v2040
        %2057 = vst [vmem:[%s866 + $0x38] sm:$0xff] %v2041
        %2058 = vst [vmem:[%s866 + $0x40] sm:$0xff] %v2042
        %2059 = vst [vmem:[%s866 + $0x48] sm:$0xff] %v2043
        %2060 = vst [vmem:[%s866 + $0x50] sm:$0xff] %v2044
        %2061 = vst [vmem:[%s866 + $0x58] sm:$0xff] %v2045
        %2062 = vst [vmem:[%s866 + $0x60] sm:$0xff] %v2046
        %2063 = vst [vmem:[%s866 + $0x68] sm:$0xff] %v2047
        %2064 = vst [vmem:[%s866 + $0x70] sm:$0xff] %v2048
        %2065 = vst [vmem:[%s866 + $0x78] sm:$0xff] %v2049
        %s2066 = sld [smem:[#allocation3 + $0x103]]
        %s2067 = smul.f32 %s577, %s2066
        %v2068 = vstv %s2067
        %v2069 = vmul.f32 %v2068, %v1866
        %v2070 = vmul.f32 %v2068, %v1885
        %v2071 = vmul.f32 %v2068, %v1904
        %v2072 = vmul.f32 %v2068, %v1923
        %v2073 = vmul.f32 %v2068, %v1868
        %v2074 = vmul.f32 %v2068, %v1887
        %v2075 = vmul.f32 %v2068, %v1906
        %v2076 = vmul.f32 %v2068, %v1925
        %v2077 = vmul.f32 %v2068, %v1871
        %v2078 = vmul.f32 %v2068, %v1890
        %v2079 = vmul.f32 %v2068, %v1909
        %v2080 = vmul.f32 %v2068, %v1928
        %v2081 = vmul.f32 %v2068, %v1873
        %v2082 = vmul.f32 %v2068, %v1892
        %v2083 = vmul.f32 %v2068, %v1911
        %v2084 = vmul.f32 %v2068, %v1930
        %v2085 = vld [vmem:[%s935] sm:$0xff]
        %v2086 = vld [vmem:[%s935 + $0x8] sm:$0xff]
        %v2087 = vld [vmem:[%s935 + $0x10] sm:$0xff]
        %v2088 = vld [vmem:[%s935 + $0x18] sm:$0xff]
        %v2089 = vld [vmem:[%s935 + $0x20] sm:$0xff]
        %v2090 = vld [vmem:[%s935 + $0x28] sm:$0xff]
        %v2091 = vld [vmem:[%s935 + $0x30] sm:$0xff]
        %v2092 = vld [vmem:[%s935 + $0x38] sm:$0xff]
        %v2093 = vld [vmem:[%s935 + $0x40] sm:$0xff]
        %v2094 = vld [vmem:[%s935 + $0x48] sm:$0xff]
        %v2095 = vld [vmem:[%s935 + $0x50] sm:$0xff]
        %v2096 = vld [vmem:[%s935 + $0x58] sm:$0xff]
        %v2097 = vld [vmem:[%s935 + $0x60] sm:$0xff]
        %v2098 = vld [vmem:[%s935 + $0x68] sm:$0xff]
        %v2099 = vld [vmem:[%s935 + $0x70] sm:$0xff]
        %v2100 = vld [vmem:[%s935 + $0x78] sm:$0xff]
        %v2101 = vadd.f32 %v2085, %v2069
        %v2102 = vadd.f32 %v2086, %v2070
        %v2103 = vadd.f32 %v2087, %v2071
        %v2104 = vadd.f32 %v2088, %v2072
        %v2105 = vadd.f32 %v2089, %v2073
        %v2106 = vadd.f32 %v2090, %v2074
        %v2107 = vadd.f32 %v2091, %v2075
        %v2108 = vadd.f32 %v2092, %v2076
        %v2109 = vadd.f32 %v2093, %v2077
        %v2110 = vadd.f32 %v2094, %v2078
        %v2111 = vadd.f32 %v2095, %v2079
        %v2112 = vadd.f32 %v2096, %v2080
        %v2113 = vadd.f32 %v2097, %v2081
        %v2114 = vadd.f32 %v2098, %v2082
        %v2115 = vadd.f32 %v2099, %v2083
        %v2116 = vadd.f32 %v2100, %v2084
        %2117 = vst [vmem:[%s935] sm:$0xff] %v2101
        %2118 = vst [vmem:[%s935 + $0x8] sm:$0xff] %v2102
        %2119 = vst [vmem:[%s935 + $0x10] sm:$0xff] %v2103
        %2120 = vst [vmem:[%s935 + $0x18] sm:$0xff] %v2104
        %2121 = vst [vmem:[%s935 + $0x20] sm:$0xff] %v2105
        %2122 = vst [vmem:[%s935 + $0x28] sm:$0xff] %v2106
        %2123 = vst [vmem:[%s935 + $0x30] sm:$0xff] %v2107
        %2124 = vst [vmem:[%s935 + $0x38] sm:$0xff] %v2108
        %2125 = vst [vmem:[%s935 + $0x40] sm:$0xff] %v2109
        %2126 = vst [vmem:[%s935 + $0x48] sm:$0xff] %v2110
        %2127 = vst [vmem:[%s935 + $0x50] sm:$0xff] %v2111
        %2128 = vst [vmem:[%s935 + $0x58] sm:$0xff] %v2112
        %2129 = vst [vmem:[%s935 + $0x60] sm:$0xff] %v2113
        %2130 = vst [vmem:[%s935 + $0x68] sm:$0xff] %v2114
        %2131 = vst [vmem:[%s935 + $0x70] sm:$0xff] %v2115
        %2132 = vst [vmem:[%s935 + $0x78] sm:$0xff] %v2116
        %s2133 = sld [smem:[#allocation3 + $0x183]]
        %s2134 = smul.f32 %s577, %s2133
        %v2135 = vstv %s2134
        %v2136 = vmul.f32 %v2135, %v1866
        %v2137 = vmul.f32 %v2135, %v1885
        %v2138 = vmul.f32 %v2135, %v1904
        %v2139 = vmul.f32 %v2135, %v1923
        %v2140 = vmul.f32 %v2135, %v1868
        %v2141 = vmul.f32 %v2135, %v1887
        %v2142 = vmul.f32 %v2135, %v1906
        %v2143 = vmul.f32 %v2135, %v1925
        %v2144 = vmul.f32 %v2135, %v1871
        %v2145 = vmul.f32 %v2135, %v1890
        %v2146 = vmul.f32 %v2135, %v1909
        %v2147 = vmul.f32 %v2135, %v1928
        %v2148 = vmul.f32 %v2135, %v1873
        %v2149 = vmul.f32 %v2135, %v1892
        %v2150 = vmul.f32 %v2135, %v1911
        %v2151 = vmul.f32 %v2135, %v1930
        %v2152 = vld [vmem:[%s1004] sm:$0xff]
        %v2153 = vld [vmem:[%s1004 + $0x8] sm:$0xff]
        %v2154 = vld [vmem:[%s1004 + $0x10] sm:$0xff]
        %v2155 = vld [vmem:[%s1004 + $0x18] sm:$0xff]
        %v2156 = vld [vmem:[%s1004 + $0x20] sm:$0xff]
        %v2157 = vld [vmem:[%s1004 + $0x28] sm:$0xff]
        %v2158 = vld [vmem:[%s1004 + $0x30] sm:$0xff]
        %v2159 = vld [vmem:[%s1004 + $0x38] sm:$0xff]
        %v2160 = vld [vmem:[%s1004 + $0x40] sm:$0xff]
        %v2161 = vld [vmem:[%s1004 + $0x48] sm:$0xff]
        %v2162 = vld [vmem:[%s1004 + $0x50] sm:$0xff]
        %v2163 = vld [vmem:[%s1004 + $0x58] sm:$0xff]
        %v2164 = vld [vmem:[%s1004 + $0x60] sm:$0xff]
        %v2165 = vld [vmem:[%s1004 + $0x68] sm:$0xff]
        %v2166 = vld [vmem:[%s1004 + $0x70] sm:$0xff]
        %v2167 = vld [vmem:[%s1004 + $0x78] sm:$0xff]
        %v2168 = vadd.f32 %v2152, %v2136
        %v2169 = vadd.f32 %v2153, %v2137
        %v2170 = vadd.f32 %v2154, %v2138
        %v2171 = vadd.f32 %v2155, %v2139
        %v2172 = vadd.f32 %v2156, %v2140
        %v2173 = vadd.f32 %v2157, %v2141
        %v2174 = vadd.f32 %v2158, %v2142
        %v2175 = vadd.f32 %v2159, %v2143
        %v2176 = vadd.f32 %v2160, %v2144
        %v2177 = vadd.f32 %v2161, %v2145
        %v2178 = vadd.f32 %v2162, %v2146
        %v2179 = vadd.f32 %v2163, %v2147
        %v2180 = vadd.f32 %v2164, %v2148
        %v2181 = vadd.f32 %v2165, %v2149
        %v2182 = vadd.f32 %v2166, %v2150
        %v2183 = vadd.f32 %v2167, %v2151
        %2184 = vst [vmem:[%s1004] sm:$0xff] %v2168
        %2185 = vst [vmem:[%s1004 + $0x8] sm:$0xff] %v2169
        %2186 = vst [vmem:[%s1004 + $0x10] sm:$0xff] %v2170
        %2187 = vst [vmem:[%s1004 + $0x18] sm:$0xff] %v2171
        %2188 = vst [vmem:[%s1004 + $0x20] sm:$0xff] %v2172
        %2189 = vst [vmem:[%s1004 + $0x28] sm:$0xff] %v2173
        %2190 = vst [vmem:[%s1004 + $0x30] sm:$0xff] %v2174
        %2191 = vst [vmem:[%s1004 + $0x38] sm:$0xff] %v2175
        %2192 = vst [vmem:[%s1004 + $0x40] sm:$0xff] %v2176
        %2193 = vst [vmem:[%s1004 + $0x48] sm:$0xff] %v2177
        %2194 = vst [vmem:[%s1004 + $0x50] sm:$0xff] %v2178
        %2195 = vst [vmem:[%s1004 + $0x58] sm:$0xff] %v2179
        %2196 = vst [vmem:[%s1004 + $0x60] sm:$0xff] %v2180
        %2197 = vst [vmem:[%s1004 + $0x68] sm:$0xff] %v2181
        %2198 = vst [vmem:[%s1004 + $0x70] sm:$0xff] %v2182
        %2199 = vst [vmem:[%s1004 + $0x78] sm:$0xff] %v2183
        %s2200 = scalar_lea.vmem %s535, 256 [#allocation5]
        %v2201 = vld [vmem:[%s2200] sm:$0xff]
        %v2202 = vld [vmem:[%s2200 + $0x8] sm:$0xff]
        %v2203 = vld [vmem:[%s2200 + $0x10] sm:$0xff]
        %v2204 = vld [vmem:[%s2200 + $0x18] sm:$0xff]
        %v2205 = vld [vmem:[%s2200 + $0x20] sm:$0xff]
        %v2206 = vld [vmem:[%s2200 + $0x28] sm:$0xff]
        %v2207 = vld [vmem:[%s2200 + $0x30] sm:$0xff]
        %v2208 = vld [vmem:[%s2200 + $0x38] sm:$0xff]
        %v2217 = vunpack.c.l.b16 %v2201
        %v2218 = vunpack.c.h.b16 %v2201
        %v2219 = vunpack.c.l.b16 %v2202
        %v2220 = vunpack.c.h.b16 %v2202
        %v2221 = vunpack.c.l.b16 %v2203
        %v2222 = vunpack.c.h.b16 %v2203
        %v2223 = vunpack.c.l.b16 %v2204
        %v2224 = vunpack.c.h.b16 %v2204
        %v2225 = vunpack.c.l.b16 %v2205
        %v2226 = vunpack.c.h.b16 %v2205
        %v2227 = vunpack.c.l.b16 %v2206
        %v2228 = vunpack.c.h.b16 %v2206
        %v2229 = vunpack.c.l.b16 %v2207
        %v2230 = vunpack.c.h.b16 %v2207
        %v2231 = vunpack.c.l.b16 %v2208
        %v2232 = vunpack.c.h.b16 %v2208
        %v2233 = vpack.c.b16 %v2221, %v2217
        %v2234 = vpack.c.b16 %v2222, %v2218
        %v2235 = vpack.c.b16 %v2223, %v2219
        %v2236 = vpack.c.b16 %v2224, %v2220
        %v2237 = vpack.c.b16 %v2229, %v2225
        %v2238 = vpack.c.b16 %v2230, %v2226
        %v2239 = vpack.c.b16 %v2231, %v2227
        %v2240 = vpack.c.b16 %v2232, %v2228
        %2249 = vmatpush.bf16.msra.mxu0 0
        %2250 = vmatpush.bf16.msra.mxu0 0
        %2251 = vmatpush.bf16.msra.mxu0 0
        %2252 = vmatpush.bf16.msra.mxu0 0
        %2253 = vmatpush.bf16.msra.mxu0 0
        %2254 = vmatpush.bf16.msra.mxu0 0
        %2255 = vmatpush.bf16.msra.mxu0 %v2237
        %2256 = vmatpush.bf16.msra.mxu0 %v2233
        %2257 = vmatmul.bf16.gmra.mxu0 %v666
        %v2258 = vpop.f32.mrf.mxu0
        %v2259 = vadd.f32 %v597, %v2258
        %v2260 = vpop.f32.mrf.mxu0
        %v2261 = vadd.f32 %v602, %v2260
        %2262 = vmatmul.bf16.gmra.mxu0 %v669
        %v2263 = vpop.f32.mrf.mxu0
        %v2264 = vadd.f32 %v607, %v2263
        %v2265 = vpop.f32.mrf.mxu0
        %v2266 = vadd.f32 %v612, %v2265
        %2267 = vdwg.mxu0
        %2268 = vmatpush.bf16.msra.mxu0 0
        %2269 = vmatpush.bf16.msra.mxu0 0
        %2270 = vmatpush.bf16.msra.mxu0 0
        %2271 = vmatpush.bf16.msra.mxu0 0
        %2272 = vmatpush.bf16.msra.mxu0 0
        %2273 = vmatpush.bf16.msra.mxu0 0
        %2274 = vmatpush.bf16.msra.mxu0 %v2238
        %2275 = vmatpush.bf16.msra.mxu0 %v2234
        %2276 = vmatmul.bf16.gmra.mxu0 %v666
        %v2277 = vpop.f32.mrf.mxu0
        %v2278 = vadd.f32 %v597, %v2277
        %v2279 = vpop.f32.mrf.mxu0
        %v2280 = vadd.f32 %v602, %v2279
        %2281 = vmatmul.bf16.gmra.mxu0 %v669
        %v2282 = vpop.f32.mrf.mxu0
        %v2283 = vadd.f32 %v607, %v2282
        %v2284 = vpop.f32.mrf.mxu0
        %v2285 = vadd.f32 %v612, %v2284
        %2286 = vdwg.mxu0
        %2287 = vmatpush.bf16.msra.mxu0 0
        %2288 = vmatpush.bf16.msra.mxu0 0
        %2289 = vmatpush.bf16.msra.mxu0 0
        %2290 = vmatpush.bf16.msra.mxu0 0
        %2291 = vmatpush.bf16.msra.mxu0 0
        %2292 = vmatpush.bf16.msra.mxu0 0
        %2293 = vmatpush.bf16.msra.mxu0 %v2239
        %2294 = vmatpush.bf16.msra.mxu0 %v2235
        %2295 = vmatmul.bf16.gmra.mxu0 %v666
        %v2296 = vpop.f32.mrf.mxu0
        %v2297 = vadd.f32 %v597, %v2296
        %v2298 = vpop.f32.mrf.mxu0
        %v2299 = vadd.f32 %v602, %v2298
        %2300 = vmatmul.bf16.gmra.mxu0 %v669
        %v2301 = vpop.f32.mrf.mxu0
        %v2302 = vadd.f32 %v607, %v2301
        %v2303 = vpop.f32.mrf.mxu0
        %v2304 = vadd.f32 %v612, %v2303
        %2305 = vdwg.mxu0
        %2306 = vmatpush.bf16.msra.mxu0 0
        %2307 = vmatpush.bf16.msra.mxu0 0
        %2308 = vmatpush.bf16.msra.mxu0 0
        %2309 = vmatpush.bf16.msra.mxu0 0
        %2310 = vmatpush.bf16.msra.mxu0 0
        %2311 = vmatpush.bf16.msra.mxu0 0
        %2312 = vmatpush.bf16.msra.mxu0 %v2240
        %2313 = vmatpush.bf16.msra.mxu0 %v2236
        %2314 = vmatmul.bf16.gmra.mxu0 %v666
        %v2315 = vpop.f32.mrf.mxu0
        %v2316 = vadd.f32 %v597, %v2315
        %v2317 = vpop.f32.mrf.mxu0
        %v2318 = vadd.f32 %v602, %v2317
        %2319 = vmatmul.bf16.gmra.mxu0 %v669
        %v2320 = vpop.f32.mrf.mxu0
        %v2321 = vadd.f32 %v607, %v2320
        %v2322 = vpop.f32.mrf.mxu0
        %v2323 = vadd.f32 %v612, %v2322
        %2324 = vdwg.mxu0
        %s2325 = sld [smem:[#allocation3 + $0x4]]
        %s2326 = smul.f32 %s577, %s2325
        %v2327 = vstv %s2326
        %v2328 = vmul.f32 %v2327, %v2259
        %v2329 = vmul.f32 %v2327, %v2278
        %v2330 = vmul.f32 %v2327, %v2297
        %v2331 = vmul.f32 %v2327, %v2316
        %v2332 = vmul.f32 %v2327, %v2261
        %v2333 = vmul.f32 %v2327, %v2280
        %v2334 = vmul.f32 %v2327, %v2299
        %v2335 = vmul.f32 %v2327, %v2318
        %v2336 = vmul.f32 %v2327, %v2264
        %v2337 = vmul.f32 %v2327, %v2283
        %v2338 = vmul.f32 %v2327, %v2302
        %v2339 = vmul.f32 %v2327, %v2321
        %v2340 = vmul.f32 %v2327, %v2266
        %v2341 = vmul.f32 %v2327, %v2285
        %v2342 = vmul.f32 %v2327, %v2304
        %v2343 = vmul.f32 %v2327, %v2323
        %v2344 = vld [vmem:[%s572] sm:$0xff]
        %v2345 = vld [vmem:[%s572 + $0x8] sm:$0xff]
        %v2346 = vld [vmem:[%s572 + $0x10] sm:$0xff]
        %v2347 = vld [vmem:[%s572 + $0x18] sm:$0xff]
        %v2348 = vld [vmem:[%s572 + $0x20] sm:$0xff]
        %v2349 = vld [vmem:[%s572 + $0x28] sm:$0xff]
        %v2350 = vld [vmem:[%s572 + $0x30] sm:$0xff]
        %v2351 = vld [vmem:[%s572 + $0x38] sm:$0xff]
        %v2352 = vld [vmem:[%s572 + $0x40] sm:$0xff]
        %v2353 = vld [vmem:[%s572 + $0x48] sm:$0xff]
        %v2354 = vld [vmem:[%s572 + $0x50] sm:$0xff]
        %v2355 = vld [vmem:[%s572 + $0x58] sm:$0xff]
        %v2356 = vld [vmem:[%s572 + $0x60] sm:$0xff]
        %v2357 = vld [vmem:[%s572 + $0x68] sm:$0xff]
        %v2358 = vld [vmem:[%s572 + $0x70] sm:$0xff]
        %v2359 = vld [vmem:[%s572 + $0x78] sm:$0xff]
        %v2360 = vadd.f32 %v2344, %v2328
        %v2361 = vadd.f32 %v2345, %v2329
        %v2362 = vadd.f32 %v2346, %v2330
        %v2363 = vadd.f32 %v2347, %v2331
        %v2364 = vadd.f32 %v2348, %v2332
        %v2365 = vadd.f32 %v2349, %v2333
        %v2366 = vadd.f32 %v2350, %v2334
        %v2367 = vadd.f32 %v2351, %v2335
        %v2368 = vadd.f32 %v2352, %v2336
        %v2369 = vadd.f32 %v2353, %v2337
        %v2370 = vadd.f32 %v2354, %v2338
        %v2371 = vadd.f32 %v2355, %v2339
        %v2372 = vadd.f32 %v2356, %v2340
        %v2373 = vadd.f32 %v2357, %v2341
        %v2374 = vadd.f32 %v2358, %v2342
        %v2375 = vadd.f32 %v2359, %v2343
        %2376 = vst [vmem:[%s572] sm:$0xff] %v2360
        %2377 = vst [vmem:[%s572 + $0x8] sm:$0xff] %v2361
        %2378 = vst [vmem:[%s572 + $0x10] sm:$0xff] %v2362
        %2379 = vst [vmem:[%s572 + $0x18] sm:$0xff] %v2363
        %2380 = vst [vmem:[%s572 + $0x20] sm:$0xff] %v2364
        %2381 = vst [vmem:[%s572 + $0x28] sm:$0xff] %v2365
        %2382 = vst [vmem:[%s572 + $0x30] sm:$0xff] %v2366
        %2383 = vst [vmem:[%s572 + $0x38] sm:$0xff] %v2367
        %2384 = vst [vmem:[%s572 + $0x40] sm:$0xff] %v2368
        %2385 = vst [vmem:[%s572 + $0x48] sm:$0xff] %v2369
        %2386 = vst [vmem:[%s572 + $0x50] sm:$0xff] %v2370
        %2387 = vst [vmem:[%s572 + $0x58] sm:$0xff] %v2371
        %2388 = vst [vmem:[%s572 + $0x60] sm:$0xff] %v2372
        %2389 = vst [vmem:[%s572 + $0x68] sm:$0xff] %v2373
        %2390 = vst [vmem:[%s572 + $0x70] sm:$0xff] %v2374
        %2391 = vst [vmem:[%s572 + $0x78] sm:$0xff] %v2375
        %s2392 = sld [smem:[#allocation3 + $0x84]]
        %s2393 = smul.f32 %s577, %s2392
        %v2394 = vstv %s2393
        %v2395 = vmul.f32 %v2394, %v2259
        %v2396 = vmul.f32 %v2394, %v2278
        %v2397 = vmul.f32 %v2394, %v2297
        %v2398 = vmul.f32 %v2394, %v2316
        %v2399 = vmul.f32 %v2394, %v2261
        %v2400 = vmul.f32 %v2394, %v2280
        %v2401 = vmul.f32 %v2394, %v2299
        %v2402 = vmul.f32 %v2394, %v2318
        %v2403 = vmul.f32 %v2394, %v2264
        %v2404 = vmul.f32 %v2394, %v2283
        %v2405 = vmul.f32 %v2394, %v2302
        %v2406 = vmul.f32 %v2394, %v2321
        %v2407 = vmul.f32 %v2394, %v2266
        %v2408 = vmul.f32 %v2394, %v2285
        %v2409 = vmul.f32 %v2394, %v2304
        %v2410 = vmul.f32 %v2394, %v2323
        %v2411 = vld [vmem:[%s866] sm:$0xff]
        %v2412 = vld [vmem:[%s866 + $0x8] sm:$0xff]
        %v2413 = vld [vmem:[%s866 + $0x10] sm:$0xff]
        %v2414 = vld [vmem:[%s866 + $0x18] sm:$0xff]
        %v2415 = vld [vmem:[%s866 + $0x20] sm:$0xff]
        %v2416 = vld [vmem:[%s866 + $0x28] sm:$0xff]
        %v2417 = vld [vmem:[%s866 + $0x30] sm:$0xff]
        %v2418 = vld [vmem:[%s866 + $0x38] sm:$0xff]
        %v2419 = vld [vmem:[%s866 + $0x40] sm:$0xff]
        %v2420 = vld [vmem:[%s866 + $0x48] sm:$0xff]
        %v2421 = vld [vmem:[%s866 + $0x50] sm:$0xff]
        %v2422 = vld [vmem:[%s866 + $0x58] sm:$0xff]
        %v2423 = vld [vmem:[%s866 + $0x60] sm:$0xff]
        %v2424 = vld [vmem:[%s866 + $0x68] sm:$0xff]
        %v2425 = vld [vmem:[%s866 + $0x70] sm:$0xff]
        %v2426 = vld [vmem:[%s866 + $0x78] sm:$0xff]
        %v2427 = vadd.f32 %v2411, %v2395
        %v2428 = vadd.f32 %v2412, %v2396
        %v2429 = vadd.f32 %v2413, %v2397
        %v2430 = vadd.f32 %v2414, %v2398
        %v2431 = vadd.f32 %v2415, %v2399
        %v2432 = vadd.f32 %v2416, %v2400
        %v2433 = vadd.f32 %v2417, %v2401
        %v2434 = vadd.f32 %v2418, %v2402
        %v2435 = vadd.f32 %v2419, %v2403
        %v2436 = vadd.f32 %v2420, %v2404
        %v2437 = vadd.f32 %v2421, %v2405
        %v2438 = vadd.f32 %v2422, %v2406
        %v2439 = vadd.f32 %v2423, %v2407
        %v2440 = vadd.f32 %v2424, %v2408
        %v2441 = vadd.f32 %v2425, %v2409
        %v2442 = vadd.f32 %v2426, %v2410
        %2443 = vst [vmem:[%s866] sm:$0xff] %v2427
        %2444 = vst [vmem:[%s866 + $0x8] sm:$0xff] %v2428
        %2445 = vst [vmem:[%s866 + $0x10] sm:$0xff] %v2429
        %2446 = vst [vmem:[%s866 + $0x18] sm:$0xff] %v2430
        %2447 = vst [vmem:[%s866 + $0x20] sm:$0xff] %v2431
        %2448 = vst [vmem:[%s866 + $0x28] sm:$0xff] %v2432
        %2449 = vst [vmem:[%s866 + $0x30] sm:$0xff] %v2433
        %2450 = vst [vmem:[%s866 + $0x38] sm:$0xff] %v2434
        %2451 = vst [vmem:[%s866 + $0x40] sm:$0xff] %v2435
        %2452 = vst [vmem:[%s866 + $0x48] sm:$0xff] %v2436
        %2453 = vst [vmem:[%s866 + $0x50] sm:$0xff] %v2437
        %2454 = vst [vmem:[%s866 + $0x58] sm:$0xff] %v2438
        %2455 = vst [vmem:[%s866 + $0x60] sm:$0xff] %v2439
        %2456 = vst [vmem:[%s866 + $0x68] sm:$0xff] %v2440
        %2457 = vst [vmem:[%s866 + $0x70] sm:$0xff] %v2441
        %2458 = vst [vmem:[%s866 + $0x78] sm:$0xff] %v2442
        %s2459 = sld [smem:[#allocation3 + $0x104]]
        %s2460 = smul.f32 %s577, %s2459
        %v2461 = vstv %s2460
        %v2462 = vmul.f32 %v2461, %v2259
        %v2463 = vmul.f32 %v2461, %v2278
        %v2464 = vmul.f32 %v2461, %v2297
        %v2465 = vmul.f32 %v2461, %v2316
        %v2466 = vmul.f32 %v2461, %v2261
        %v2467 = vmul.f32 %v2461, %v2280
        %v2468 = vmul.f32 %v2461, %v2299
        %v2469 = vmul.f32 %v2461, %v2318
        %v2470 = vmul.f32 %v2461, %v2264
        %v2471 = vmul.f32 %v2461, %v2283
        %v2472 = vmul.f32 %v2461, %v2302
        %v2473 = vmul.f32 %v2461, %v2321
        %v2474 = vmul.f32 %v2461, %v2266
        %v2475 = vmul.f32 %v2461, %v2285
        %v2476 = vmul.f32 %v2461, %v2304
        %v2477 = vmul.f32 %v2461, %v2323
        %v2478 = vld [vmem:[%s935] sm:$0xff]
        %v2479 = vld [vmem:[%s935 + $0x8] sm:$0xff]
        %v2480 = vld [vmem:[%s935 + $0x10] sm:$0xff]
        %v2481 = vld [vmem:[%s935 + $0x18] sm:$0xff]
        %v2482 = vld [vmem:[%s935 + $0x20] sm:$0xff]
        %v2483 = vld [vmem:[%s935 + $0x28] sm:$0xff]
        %v2484 = vld [vmem:[%s935 + $0x30] sm:$0xff]
        %v2485 = vld [vmem:[%s935 + $0x38] sm:$0xff]
        %v2486 = vld [vmem:[%s935 + $0x40] sm:$0xff]
        %v2487 = vld [vmem:[%s935 + $0x48] sm:$0xff]
        %v2488 = vld [vmem:[%s935 + $0x50] sm:$0xff]
        %v2489 = vld [vmem:[%s935 + $0x58] sm:$0xff]
        %v2490 = vld [vmem:[%s935 + $0x60] sm:$0xff]
        %v2491 = vld [vmem:[%s935 + $0x68] sm:$0xff]
        %v2492 = vld [vmem:[%s935 + $0x70] sm:$0xff]
        %v2493 = vld [vmem:[%s935 + $0x78] sm:$0xff]
        %v2494 = vadd.f32 %v2478, %v2462
        %v2495 = vadd.f32 %v2479, %v2463
        %v2496 = vadd.f32 %v2480, %v2464
        %v2497 = vadd.f32 %v2481, %v2465
        %v2498 = vadd.f32 %v2482, %v2466
        %v2499 = vadd.f32 %v2483, %v2467
        %v2500 = vadd.f32 %v2484, %v2468
        %v2501 = vadd.f32 %v2485, %v2469
        %v2502 = vadd.f32 %v2486, %v2470
        %v2503 = vadd.f32 %v2487, %v2471
        %v2504 = vadd.f32 %v2488, %v2472
        %v2505 = vadd.f32 %v2489, %v2473
        %v2506 = vadd.f32 %v2490, %v2474
        %v2507 = vadd.f32 %v2491, %v2475
        %v2508 = vadd.f32 %v2492, %v2476
        %v2509 = vadd.f32 %v2493, %v2477
        %2510 = vst [vmem:[%s935] sm:$0xff] %v2494
        %2511 = vst [vmem:[%s935 + $0x8] sm:$0xff] %v2495
        %2512 = vst [vmem:[%s935 + $0x10] sm:$0xff] %v2496
        %2513 = vst [vmem:[%s935 + $0x18] sm:$0xff] %v2497
        %2514 = vst [vmem:[%s935 + $0x20] sm:$0xff] %v2498
        %2515 = vst [vmem:[%s935 + $0x28] sm:$0xff] %v2499
        %2516 = vst [vmem:[%s935 + $0x30] sm:$0xff] %v2500
        %2517 = vst [vmem:[%s935 + $0x38] sm:$0xff] %v2501
        %2518 = vst [vmem:[%s935 + $0x40] sm:$0xff] %v2502
        %2519 = vst [vmem:[%s935 + $0x48] sm:$0xff] %v2503
        %2520 = vst [vmem:[%s935 + $0x50] sm:$0xff] %v2504
        %2521 = vst [vmem:[%s935 + $0x58] sm:$0xff] %v2505
        %2522 = vst [vmem:[%s935 + $0x60] sm:$0xff] %v2506
        %2523 = vst [vmem:[%s935 + $0x68] sm:$0xff] %v2507
        %2524 = vst [vmem:[%s935 + $0x70] sm:$0xff] %v2508
        %2525 = vst [vmem:[%s935 + $0x78] sm:$0xff] %v2509
        %s2526 = sld [smem:[#allocation3 + $0x184]]
        %s2527 = smul.f32 %s577, %s2526
        %v2528 = vstv %s2527
        %v2529 = vmul.f32 %v2528, %v2259
        %v2530 = vmul.f32 %v2528, %v2278
        %v2531 = vmul.f32 %v2528, %v2297
        %v2532 = vmul.f32 %v2528, %v2316
        %v2533 = vmul.f32 %v2528, %v2261
        %v2534 = vmul.f32 %v2528, %v2280
        %v2535 = vmul.f32 %v2528, %v2299
        %v2536 = vmul.f32 %v2528, %v2318
        %v2537 = vmul.f32 %v2528, %v2264
        %v2538 = vmul.f32 %v2528, %v2283
        %v2539 = vmul.f32 %v2528, %v2302
        %v2540 = vmul.f32 %v2528, %v2321
        %v2541 = vmul.f32 %v2528, %v2266
        %v2542 = vmul.f32 %v2528, %v2285
        %v2543 = vmul.f32 %v2528, %v2304
        %v2544 = vmul.f32 %v2528, %v2323
        %v2545 = vld [vmem:[%s1004] sm:$0xff]
        %v2546 = vld [vmem:[%s1004 + $0x8] sm:$0xff]
        %v2547 = vld [vmem:[%s1004 + $0x10] sm:$0xff]
        %v2548 = vld [vmem:[%s1004 + $0x18] sm:$0xff]
        %v2549 = vld [vmem:[%s1004 + $0x20] sm:$0xff]
        %v2550 = vld [vmem:[%s1004 + $0x28] sm:$0xff]
        %v2551 = vld [vmem:[%s1004 + $0x30] sm:$0xff]
        %v2552 = vld [vmem:[%s1004 + $0x38] sm:$0xff]
        %v2553 = vld [vmem:[%s1004 + $0x40] sm:$0xff]
        %v2554 = vld [vmem:[%s1004 + $0x48] sm:$0xff]
        %v2555 = vld [vmem:[%s1004 + $0x50] sm:$0xff]
        %v2556 = vld [vmem:[%s1004 + $0x58] sm:$0xff]
        %v2557 = vld [vmem:[%s1004 + $0x60] sm:$0xff]
        %v2558 = vld [vmem:[%s1004 + $0x68] sm:$0xff]
        %v2559 = vld [vmem:[%s1004 + $0x70] sm:$0xff]
        %v2560 = vld [vmem:[%s1004 + $0x78] sm:$0xff]
        %v2561 = vadd.f32 %v2545, %v2529
        %v2562 = vadd.f32 %v2546, %v2530
        %v2563 = vadd.f32 %v2547, %v2531
        %v2564 = vadd.f32 %v2548, %v2532
        %v2565 = vadd.f32 %v2549, %v2533
        %v2566 = vadd.f32 %v2550, %v2534
        %v2567 = vadd.f32 %v2551, %v2535
        %v2568 = vadd.f32 %v2552, %v2536
        %v2569 = vadd.f32 %v2553, %v2537
        %v2570 = vadd.f32 %v2554, %v2538
        %v2571 = vadd.f32 %v2555, %v2539
        %v2572 = vadd.f32 %v2556, %v2540
        %v2573 = vadd.f32 %v2557, %v2541
        %v2574 = vadd.f32 %v2558, %v2542
        %v2575 = vadd.f32 %v2559, %v2543
        %v2576 = vadd.f32 %v2560, %v2544
        %2577 = vst [vmem:[%s1004] sm:$0xff] %v2561
        %2578 = vst [vmem:[%s1004 + $0x8] sm:$0xff] %v2562
        %2579 = vst [vmem:[%s1004 + $0x10] sm:$0xff] %v2563
        %2580 = vst [vmem:[%s1004 + $0x18] sm:$0xff] %v2564
        %2581 = vst [vmem:[%s1004 + $0x20] sm:$0xff] %v2565
        %2582 = vst [vmem:[%s1004 + $0x28] sm:$0xff] %v2566
        %2583 = vst [vmem:[%s1004 + $0x30] sm:$0xff] %v2567
        %2584 = vst [vmem:[%s1004 + $0x38] sm:$0xff] %v2568
        %2585 = vst [vmem:[%s1004 + $0x40] sm:$0xff] %v2569
        %2586 = vst [vmem:[%s1004 + $0x48] sm:$0xff] %v2570
        %2587 = vst [vmem:[%s1004 + $0x50] sm:$0xff] %v2571
        %2588 = vst [vmem:[%s1004 + $0x58] sm:$0xff] %v2572
        %2589 = vst [vmem:[%s1004 + $0x60] sm:$0xff] %v2573
        %2590 = vst [vmem:[%s1004 + $0x68] sm:$0xff] %v2574
        %2591 = vst [vmem:[%s1004 + $0x70] sm:$0xff] %v2575
        %2592 = vst [vmem:[%s1004 + $0x78] sm:$0xff] %v2576
        %s2593 = scalar_lea.vmem %s535, 320 [#allocation5]
        %v2594 = vld [vmem:[%s2593] sm:$0xff]
        %v2595 = vld [vmem:[%s2593 + $0x8] sm:$0xff]
        %v2596 = vld [vmem:[%s2593 + $0x10] sm:$0xff]
        %v2597 = vld [vmem:[%s2593 + $0x18] sm:$0xff]
        %v2598 = vld [vmem:[%s2593 + $0x20] sm:$0xff]
        %v2599 = vld [vmem:[%s2593 + $0x28] sm:$0xff]
        %v2600 = vld [vmem:[%s2593 + $0x30] sm:$0xff]
        %v2601 = vld [vmem:[%s2593 + $0x38] sm:$0xff]
        %v2610 = vunpack.c.l.b16 %v2594
        %v2611 = vunpack.c.h.b16 %v2594
        %v2612 = vunpack.c.l.b16 %v2595
        %v2613 = vunpack.c.h.b16 %v2595
        %v2614 = vunpack.c.l.b16 %v2596
        %v2615 = vunpack.c.h.b16 %v2596
        %v2616 = vunpack.c.l.b16 %v2597
        %v2617 = vunpack.c.h.b16 %v2597
        %v2618 = vunpack.c.l.b16 %v2598
        %v2619 = vunpack.c.h.b16 %v2598
        %v2620 = vunpack.c.l.b16 %v2599
        %v2621 = vunpack.c.h.b16 %v2599
        %v2622 = vunpack.c.l.b16 %v2600
        %v2623 = vunpack.c.h.b16 %v2600
        %v2624 = vunpack.c.l.b16 %v2601
        %v2625 = vunpack.c.h.b16 %v2601
        %v2626 = vpack.c.b16 %v2614, %v2610
        %v2627 = vpack.c.b16 %v2615, %v2611
        %v2628 = vpack.c.b16 %v2616, %v2612
        %v2629 = vpack.c.b16 %v2617, %v2613
        %v2630 = vpack.c.b16 %v2622, %v2618
        %v2631 = vpack.c.b16 %v2623, %v2619
        %v2632 = vpack.c.b16 %v2624, %v2620
        %v2633 = vpack.c.b16 %v2625, %v2621
        %2642 = vmatpush.bf16.msra.mxu0 0
        %2643 = vmatpush.bf16.msra.mxu0 0
        %2644 = vmatpush.bf16.msra.mxu0 0
        %2645 = vmatpush.bf16.msra.mxu0 0
        %2646 = vmatpush.bf16.msra.mxu0 0
        %2647 = vmatpush.bf16.msra.mxu0 0
        %2648 = vmatpush.bf16.msra.mxu0 %v2630
        %2649 = vmatpush.bf16.msra.mxu0 %v2626
        %2650 = vmatmul.bf16.gmra.mxu0 %v666
        %v2651 = vpop.f32.mrf.mxu0
        %v2652 = vadd.f32 %v597, %v2651
        %v2653 = vpop.f32.mrf.mxu0
        %v2654 = vadd.f32 %v602, %v2653
        %2655 = vmatmul.bf16.gmra.mxu0 %v669
        %v2656 = vpop.f32.mrf.mxu0
        %v2657 = vadd.f32 %v607, %v2656
        %v2658 = vpop.f32.mrf.mxu0
        %v2659 = vadd.f32 %v612, %v2658
        %2660 = vdwg.mxu0
        %2661 = vmatpush.bf16.msra.mxu0 0
        %2662 = vmatpush.bf16.msra.mxu0 0
        %2663 = vmatpush.bf16.msra.mxu0 0
        %2664 = vmatpush.bf16.msra.mxu0 0
        %2665 = vmatpush.bf16.msra.mxu0 0
        %2666 = vmatpush.bf16.msra.mxu0 0
        %2667 = vmatpush.bf16.msra.mxu0 %v2631
        %2668 = vmatpush.bf16.msra.mxu0 %v2627
        %2669 = vmatmul.bf16.gmra.mxu0 %v666
        %v2670 = vpop.f32.mrf.mxu0
        %v2671 = vadd.f32 %v597, %v2670
        %v2672 = vpop.f32.mrf.mxu0
        %v2673 = vadd.f32 %v602, %v2672
        %2674 = vmatmul.bf16.gmra.mxu0 %v669
        %v2675 = vpop.f32.mrf.mxu0
        %v2676 = vadd.f32 %v607, %v2675
        %v2677 = vpop.f32.mrf.mxu0
        %v2678 = vadd.f32 %v612, %v2677
        %2679 = vdwg.mxu0
        %2680 = vmatpush.bf16.msra.mxu0 0
        %2681 = vmatpush.bf16.msra.mxu0 0
        %2682 = vmatpush.bf16.msra.mxu0 0
        %2683 = vmatpush.bf16.msra.mxu0 0
        %2684 = vmatpush.bf16.msra.mxu0 0
        %2685 = vmatpush.bf16.msra.mxu0 0
        %2686 = vmatpush.bf16.msra.mxu0 %v2632
        %2687 = vmatpush.bf16.msra.mxu0 %v2628
        %2688 = vmatmul.bf16.gmra.mxu0 %v666
        %v2689 = vpop.f32.mrf.mxu0
        %v2690 = vadd.f32 %v597, %v2689
        %v2691 = vpop.f32.mrf.mxu0
        %v2692 = vadd.f32 %v602, %v2691
        %2693 = vmatmul.bf16.gmra.mxu0 %v669
        %v2694 = vpop.f32.mrf.mxu0
        %v2695 = vadd.f32 %v607, %v2694
        %v2696 = vpop.f32.mrf.mxu0
        %v2697 = vadd.f32 %v612, %v2696
        %2698 = vdwg.mxu0
        %2699 = vmatpush.bf16.msra.mxu0 0
        %2700 = vmatpush.bf16.msra.mxu0 0
        %2701 = vmatpush.bf16.msra.mxu0 0
        %2702 = vmatpush.bf16.msra.mxu0 0
        %2703 = vmatpush.bf16.msra.mxu0 0
        %2704 = vmatpush.bf16.msra.mxu0 0
        %2705 = vmatpush.bf16.msra.mxu0 %v2633
        %2706 = vmatpush.bf16.msra.mxu0 %v2629
        %2707 = vmatmul.bf16.gmra.mxu0 %v666
        %v2708 = vpop.f32.mrf.mxu0
        %v2709 = vadd.f32 %v597, %v2708
        %v2710 = vpop.f32.mrf.mxu0
        %v2711 = vadd.f32 %v602, %v2710
        %2712 = vmatmul.bf16.gmra.mxu0 %v669
        %v2713 = vpop.f32.mrf.mxu0
        %v2714 = vadd.f32 %v607, %v2713
        %v2715 = vpop.f32.mrf.mxu0
        %v2716 = vadd.f32 %v612, %v2715
        %2717 = vdwg.mxu0
        %s2718 = sld [smem:[#allocation3 + $0x5]]
        %s2719 = smul.f32 %s577, %s2718
        %v2720 = vstv %s2719
        %v2721 = vmul.f32 %v2720, %v2652
        %v2722 = vmul.f32 %v2720, %v2671
        %v2723 = vmul.f32 %v2720, %v2690
        %v2724 = vmul.f32 %v2720, %v2709
        %v2725 = vmul.f32 %v2720, %v2654
        %v2726 = vmul.f32 %v2720, %v2673
        %v2727 = vmul.f32 %v2720, %v2692
        %v2728 = vmul.f32 %v2720, %v2711
        %v2729 = vmul.f32 %v2720, %v2657
        %v2730 = vmul.f32 %v2720, %v2676
        %v2731 = vmul.f32 %v2720, %v2695
        %v2732 = vmul.f32 %v2720, %v2714
        %v2733 = vmul.f32 %v2720, %v2659
        %v2734 = vmul.f32 %v2720, %v2678
        %v2735 = vmul.f32 %v2720, %v2697
        %v2736 = vmul.f32 %v2720, %v2716
        %v2737 = vld [vmem:[%s572] sm:$0xff]
        %v2738 = vld [vmem:[%s572 + $0x8] sm:$0xff]
        %v2739 = vld [vmem:[%s572 + $0x10] sm:$0xff]
        %v2740 = vld [vmem:[%s572 + $0x18] sm:$0xff]
        %v2741 = vld [vmem:[%s572 + $0x20] sm:$0xff]
        %v2742 = vld [vmem:[%s572 + $0x28] sm:$0xff]
        %v2743 = vld [vmem:[%s572 + $0x30] sm:$0xff]
        %v2744 = vld [vmem:[%s572 + $0x38] sm:$0xff]
        %v2745 = vld [vmem:[%s572 + $0x40] sm:$0xff]
        %v2746 = vld [vmem:[%s572 + $0x48] sm:$0xff]
        %v2747 = vld [vmem:[%s572 + $0x50] sm:$0xff]
        %v2748 = vld [vmem:[%s572 + $0x58] sm:$0xff]
        %v2749 = vld [vmem:[%s572 + $0x60] sm:$0xff]
        %v2750 = vld [vmem:[%s572 + $0x68] sm:$0xff]
        %v2751 = vld [vmem:[%s572 + $0x70] sm:$0xff]
        %v2752 = vld [vmem:[%s572 + $0x78] sm:$0xff]
        %v2753 = vadd.f32 %v2737, %v2721
        %v2754 = vadd.f32 %v2738, %v2722
        %v2755 = vadd.f32 %v2739, %v2723
        %v2756 = vadd.f32 %v2740, %v2724
        %v2757 = vadd.f32 %v2741, %v2725
        %v2758 = vadd.f32 %v2742, %v2726
        %v2759 = vadd.f32 %v2743, %v2727
        %v2760 = vadd.f32 %v2744, %v2728
        %v2761 = vadd.f32 %v2745, %v2729
        %v2762 = vadd.f32 %v2746, %v2730
        %v2763 = vadd.f32 %v2747, %v2731
        %v2764 = vadd.f32 %v2748, %v2732
        %v2765 = vadd.f32 %v2749, %v2733
        %v2766 = vadd.f32 %v2750, %v2734
        %v2767 = vadd.f32 %v2751, %v2735
        %v2768 = vadd.f32 %v2752, %v2736
        %2769 = vst [vmem:[%s572] sm:$0xff] %v2753
        %2770 = vst [vmem:[%s572 + $0x8] sm:$0xff] %v2754
        %2771 = vst [vmem:[%s572 + $0x10] sm:$0xff] %v2755
        %2772 = vst [vmem:[%s572 + $0x18] sm:$0xff] %v2756
        %2773 = vst [vmem:[%s572 + $0x20] sm:$0xff] %v2757
        %2774 = vst [vmem:[%s572 + $0x28] sm:$0xff] %v2758
        %2775 = vst [vmem:[%s572 + $0x30] sm:$0xff] %v2759
        %2776 = vst [vmem:[%s572 + $0x38] sm:$0xff] %v2760
        %2777 = vst [vmem:[%s572 + $0x40] sm:$0xff] %v2761
        %2778 = vst [vmem:[%s572 + $0x48] sm:$0xff] %v2762
        %2779 = vst [vmem:[%s572 + $0x50] sm:$0xff] %v2763
        %2780 = vst [vmem:[%s572 + $0x58] sm:$0xff] %v2764
        %2781 = vst [vmem:[%s572 + $0x60] sm:$0xff] %v2765
        %2782 = vst [vmem:[%s572 + $0x68] sm:$0xff] %v2766
        %2783 = vst [vmem:[%s572 + $0x70] sm:$0xff] %v2767
        %2784 = vst [vmem:[%s572 + $0x78] sm:$0xff] %v2768
        %s2785 = sld [smem:[#allocation3 + $0x85]]
        %s2786 = smul.f32 %s577, %s2785
        %v2787 = vstv %s2786
        %v2788 = vmul.f32 %v2787, %v2652
        %v2789 = vmul.f32 %v2787, %v2671
        %v2790 = vmul.f32 %v2787, %v2690
        %v2791 = vmul.f32 %v2787, %v2709
        %v2792 = vmul.f32 %v2787, %v2654
        %v2793 = vmul.f32 %v2787, %v2673
        %v2794 = vmul.f32 %v2787, %v2692
        %v2795 = vmul.f32 %v2787, %v2711
        %v2796 = vmul.f32 %v2787, %v2657
        %v2797 = vmul.f32 %v2787, %v2676
        %v2798 = vmul.f32 %v2787, %v2695
        %v2799 = vmul.f32 %v2787, %v2714
        %v2800 = vmul.f32 %v2787, %v2659
        %v2801 = vmul.f32 %v2787, %v2678
        %v2802 = vmul.f32 %v2787, %v2697
        %v2803 = vmul.f32 %v2787, %v2716
        %v2804 = vld [vmem:[%s866] sm:$0xff]
        %v2805 = vld [vmem:[%s866 + $0x8] sm:$0xff]
        %v2806 = vld [vmem:[%s866 + $0x10] sm:$0xff]
        %v2807 = vld [vmem:[%s866 + $0x18] sm:$0xff]
        %v2808 = vld [vmem:[%s866 + $0x20] sm:$0xff]
        %v2809 = vld [vmem:[%s866 + $0x28] sm:$0xff]
        %v2810 = vld [vmem:[%s866 + $0x30] sm:$0xff]
        %v2811 = vld [vmem:[%s866 + $0x38] sm:$0xff]
        %v2812 = vld [vmem:[%s866 + $0x40] sm:$0xff]
        %v2813 = vld [vmem:[%s866 + $0x48] sm:$0xff]
        %v2814 = vld [vmem:[%s866 + $0x50] sm:$0xff]
        %v2815 = vld [vmem:[%s866 + $0x58] sm:$0xff]
        %v2816 = vld [vmem:[%s866 + $0x60] sm:$0xff]
        %v2817 = vld [vmem:[%s866 + $0x68] sm:$0xff]
        %v2818 = vld [vmem:[%s866 + $0x70] sm:$0xff]
        %v2819 = vld [vmem:[%s866 + $0x78] sm:$0xff]
        %v2820 = vadd.f32 %v2804, %v2788
        %v2821 = vadd.f32 %v2805, %v2789
        %v2822 = vadd.f32 %v2806, %v2790
        %v2823 = vadd.f32 %v2807, %v2791
        %v2824 = vadd.f32 %v2808, %v2792
        %v2825 = vadd.f32 %v2809, %v2793
        %v2826 = vadd.f32 %v2810, %v2794
        %v2827 = vadd.f32 %v2811, %v2795
        %v2828 = vadd.f32 %v2812, %v2796
        %v2829 = vadd.f32 %v2813, %v2797
        %v2830 = vadd.f32 %v2814, %v2798
        %v2831 = vadd.f32 %v2815, %v2799
        %v2832 = vadd.f32 %v2816, %v2800
        %v2833 = vadd.f32 %v2817, %v2801
        %v2834 = vadd.f32 %v2818, %v2802
        %v2835 = vadd.f32 %v2819, %v2803
        %2836 = vst [vmem:[%s866] sm:$0xff] %v2820
        %2837 = vst [vmem:[%s866 + $0x8] sm:$0xff] %v2821
        %2838 = vst [vmem:[%s866 + $0x10] sm:$0xff] %v2822
        %2839 = vst [vmem:[%s866 + $0x18] sm:$0xff] %v2823
        %2840 = vst [vmem:[%s866 + $0x20] sm:$0xff] %v2824
        %2841 = vst [vmem:[%s866 + $0x28] sm:$0xff] %v2825
        %2842 = vst [vmem:[%s866 + $0x30] sm:$0xff] %v2826
        %2843 = vst [vmem:[%s866 + $0x38] sm:$0xff] %v2827
        %2844 = vst [vmem:[%s866 + $0x40] sm:$0xff] %v2828
        %2845 = vst [vmem:[%s866 + $0x48] sm:$0xff] %v2829
        %2846 = vst [vmem:[%s866 + $0x50] sm:$0xff] %v2830
        %2847 = vst [vmem:[%s866 + $0x58] sm:$0xff] %v2831
        %2848 = vst [vmem:[%s866 + $0x60] sm:$0xff] %v2832
        %2849 = vst [vmem:[%s866 + $0x68] sm:$0xff] %v2833
        %2850 = vst [vmem:[%s866 + $0x70] sm:$0xff] %v2834
        %2851 = vst [vmem:[%s866 + $0x78] sm:$0xff] %v2835
        %s2852 = sld [smem:[#allocation3 + $0x105]]
        %s2853 = smul.f32 %s577, %s2852
        %v2854 = vstv %s2853
        %v2855 = vmul.f32 %v2854, %v2652
        %v2856 = vmul.f32 %v2854, %v2671
        %v2857 = vmul.f32 %v2854, %v2690
        %v2858 = vmul.f32 %v2854, %v2709
        %v2859 = vmul.f32 %v2854, %v2654
        %v2860 = vmul.f32 %v2854, %v2673
        %v2861 = vmul.f32 %v2854, %v2692
        %v2862 = vmul.f32 %v2854, %v2711
        %v2863 = vmul.f32 %v2854, %v2657
        %v2864 = vmul.f32 %v2854, %v2676
        %v2865 = vmul.f32 %v2854, %v2695
        %v2866 = vmul.f32 %v2854, %v2714
        %v2867 = vmul.f32 %v2854, %v2659
        %v2868 = vmul.f32 %v2854, %v2678
        %v2869 = vmul.f32 %v2854, %v2697
        %v2870 = vmul.f32 %v2854, %v2716
        %v2871 = vld [vmem:[%s935] sm:$0xff]
        %v2872 = vld [vmem:[%s935 + $0x8] sm:$0xff]
        %v2873 = vld [vmem:[%s935 + $0x10] sm:$0xff]
        %v2874 = vld [vmem:[%s935 + $0x18] sm:$0xff]
        %v2875 = vld [vmem:[%s935 + $0x20] sm:$0xff]
        %v2876 = vld [vmem:[%s935 + $0x28] sm:$0xff]
        %v2877 = vld [vmem:[%s935 + $0x30] sm:$0xff]
        %v2878 = vld [vmem:[%s935 + $0x38] sm:$0xff]
        %v2879 = vld [vmem:[%s935 + $0x40] sm:$0xff]
        %v2880 = vld [vmem:[%s935 + $0x48] sm:$0xff]
        %v2881 = vld [vmem:[%s935 + $0x50] sm:$0xff]
        %v2882 = vld [vmem:[%s935 + $0x58] sm:$0xff]
        %v2883 = vld [vmem:[%s935 + $0x60] sm:$0xff]
        %v2884 = vld [vmem:[%s935 + $0x68] sm:$0xff]
        %v2885 = vld [vmem:[%s935 + $0x70] sm:$0xff]
        %v2886 = vld [vmem:[%s935 + $0x78] sm:$0xff]
        %v2887 = vadd.f32 %v2871, %v2855
        %v2888 = vadd.f32 %v2872, %v2856
        %v2889 = vadd.f32 %v2873, %v2857
        %v2890 = vadd.f32 %v2874, %v2858
        %v2891 = vadd.f32 %v2875, %v2859
        %v2892 = vadd.f32 %v2876, %v2860
        %v2893 = vadd.f32 %v2877, %v2861
        %v2894 = vadd.f32 %v2878, %v2862
        %v2895 = vadd.f32 %v2879, %v2863
        %v2896 = vadd.f32 %v2880, %v2864
        %v2897 = vadd.f32 %v2881, %v2865
        %v2898 = vadd.f32 %v2882, %v2866
        %v2899 = vadd.f32 %v2883, %v2867
        %v2900 = vadd.f32 %v2884, %v2868
        %v2901 = vadd.f32 %v2885, %v2869
        %v2902 = vadd.f32 %v2886, %v2870
        %2903 = vst [vmem:[%s935] sm:$0xff] %v2887
        %2904 = vst [vmem:[%s935 + $0x8] sm:$0xff] %v2888
        %2905 = vst [vmem:[%s935 + $0x10] sm:$0xff] %v2889
        %2906 = vst [vmem:[%s935 + $0x18] sm:$0xff] %v2890
        %2907 = vst [vmem:[%s935 + $0x20] sm:$0xff] %v2891
        %2908 = vst [vmem:[%s935 + $0x28] sm:$0xff] %v2892
        %2909 = vst [vmem:[%s935 + $0x30] sm:$0xff] %v2893
        %2910 = vst [vmem:[%s935 + $0x38] sm:$0xff] %v2894
        %2911 = vst [vmem:[%s935 + $0x40] sm:$0xff] %v2895
        %2912 = vst [vmem:[%s935 + $0x48] sm:$0xff] %v2896
        %2913 = vst [vmem:[%s935 + $0x50] sm:$0xff] %v2897
        %2914 = vst [vmem:[%s935 + $0x58] sm:$0xff] %v2898
        %2915 = vst [vmem:[%s935 + $0x60] sm:$0xff] %v2899
        %2916 = vst [vmem:[%s935 + $0x68] sm:$0xff] %v2900
        %2917 = vst [vmem:[%s935 + $0x70] sm:$0xff] %v2901
        %2918 = vst [vmem:[%s935 + $0x78] sm:$0xff] %v2902
        %s2919 = sld [smem:[#allocation3 + $0x185]]
        %s2920 = smul.f32 %s577, %s2919
        %v2921 = vstv %s2920
        %v2922 = vmul.f32 %v2921, %v2652
        %v2923 = vmul.f32 %v2921, %v2671
        %v2924 = vmul.f32 %v2921, %v2690
        %v2925 = vmul.f32 %v2921, %v2709
        %v2926 = vmul.f32 %v2921, %v2654
        %v2927 = vmul.f32 %v2921, %v2673
        %v2928 = vmul.f32 %v2921, %v2692
        %v2929 = vmul.f32 %v2921, %v2711
        %v2930 = vmul.f32 %v2921, %v2657
        %v2931 = vmul.f32 %v2921, %v2676
        %v2932 = vmul.f32 %v2921, %v2695
        %v2933 = vmul.f32 %v2921, %v2714
        %v2934 = vmul.f32 %v2921, %v2659
        %v2935 = vmul.f32 %v2921, %v2678
        %v2936 = vmul.f32 %v2921, %v2697
        %v2937 = vmul.f32 %v2921, %v2716
        %v2938 = vld [vmem:[%s1004] sm:$0xff]
        %v2939 = vld [vmem:[%s1004 + $0x8] sm:$0xff]
        %v2940 = vld [vmem:[%s1004 + $0x10] sm:$0xff]
        %v2941 = vld [vmem:[%s1004 + $0x18] sm:$0xff]
        %v2942 = vld [vmem:[%s1004 + $0x20] sm:$0xff]
        %v2943 = vld [vmem:[%s1004 + $0x28] sm:$0xff]
        %v2944 = vld [vmem:[%s1004 + $0x30] sm:$0xff]
        %v2945 = vld [vmem:[%s1004 + $0x38] sm:$0xff]
        %v2946 = vld [vmem:[%s1004 + $0x40] sm:$0xff]
        %v2947 = vld [vmem:[%s1004 + $0x48] sm:$0xff]
        %v2948 = vld [vmem:[%s1004 + $0x50] sm:$0xff]
        %v2949 = vld [vmem:[%s1004 + $0x58] sm:$0xff]
        %v2950 = vld [vmem:[%s1004 + $0x60] sm:$0xff]
        %v2951 = vld [vmem:[%s1004 + $0x68] sm:$0xff]
        %v2952 = vld [vmem:[%s1004 + $0x70] sm:$0xff]
        %v2953 = vld [vmem:[%s1004 + $0x78] sm:$0xff]
        %v2954 = vadd.f32 %v2938, %v2922
        %v2955 = vadd.f32 %v2939, %v2923
        %v2956 = vadd.f32 %v2940, %v2924
        %v2957 = vadd.f32 %v2941, %v2925
        %v2958 = vadd.f32 %v2942, %v2926
        %v2959 = vadd.f32 %v2943, %v2927
        %v2960 = vadd.f32 %v2944, %v2928
        %v2961 = vadd.f32 %v2945, %v2929
        %v2962 = vadd.f32 %v2946, %v2930
        %v2963 = vadd.f32 %v2947, %v2931
        %v2964 = vadd.f32 %v2948, %v2932
        %v2965 = vadd.f32 %v2949, %v2933
        %v2966 = vadd.f32 %v2950, %v2934
        %v2967 = vadd.f32 %v2951, %v2935
        %v2968 = vadd.f32 %v2952, %v2936
        %v2969 = vadd.f32 %v2953, %v2937
        %2970 = vst [vmem:[%s1004] sm:$0xff] %v2954
        %2971 = vst [vmem:[%s1004 + $0x8] sm:$0xff] %v2955
        %2972 = vst [vmem:[%s1004 + $0x10] sm:$0xff] %v2956
        %2973 = vst [vmem:[%s1004 + $0x18] sm:$0xff] %v2957
        %2974 = vst [vmem:[%s1004 + $0x20] sm:$0xff] %v2958
        %2975 = vst [vmem:[%s1004 + $0x28] sm:$0xff] %v2959
        %2976 = vst [vmem:[%s1004 + $0x30] sm:$0xff] %v2960
        %2977 = vst [vmem:[%s1004 + $0x38] sm:$0xff] %v2961
        %2978 = vst [vmem:[%s1004 + $0x40] sm:$0xff] %v2962
        %2979 = vst [vmem:[%s1004 + $0x48] sm:$0xff] %v2963
        %2980 = vst [vmem:[%s1004 + $0x50] sm:$0xff] %v2964
        %2981 = vst [vmem:[%s1004 + $0x58] sm:$0xff] %v2965
        %2982 = vst [vmem:[%s1004 + $0x60] sm:$0xff] %v2966
        %2983 = vst [vmem:[%s1004 + $0x68] sm:$0xff] %v2967
        %2984 = vst [vmem:[%s1004 + $0x70] sm:$0xff] %v2968
        %2985 = vst [vmem:[%s1004 + $0x78] sm:$0xff] %v2969
        %s2986 = scalar_lea.vmem %s535, 384 [#allocation5]
        %v2987 = vld [vmem:[%s2986] sm:$0xff]
        %v2988 = vld [vmem:[%s2986 + $0x8] sm:$0xff]
        %v2989 = vld [vmem:[%s2986 + $0x10] sm:$0xff]
        %v2990 = vld [vmem:[%s2986 + $0x18] sm:$0xff]
        %v2991 = vld [vmem:[%s2986 + $0x20] sm:$0xff]
        %v2992 = vld [vmem:[%s2986 + $0x28] sm:$0xff]
        %v2993 = vld [vmem:[%s2986 + $0x30] sm:$0xff]
        %v2994 = vld [vmem:[%s2986 + $0x38] sm:$0xff]
        %v3003 = vunpack.c.l.b16 %v2987
        %v3004 = vunpack.c.h.b16 %v2987
        %v3005 = vunpack.c.l.b16 %v2988
        %v3006 = vunpack.c.h.b16 %v2988
        %v3007 = vunpack.c.l.b16 %v2989
        %v3008 = vunpack.c.h.b16 %v2989
        %v3009 = vunpack.c.l.b16 %v2990
        %v3010 = vunpack.c.h.b16 %v2990
        %v3011 = vunpack.c.l.b16 %v2991
        %v3012 = vunpack.c.h.b16 %v2991
        %v3013 = vunpack.c.l.b16 %v2992
        %v3014 = vunpack.c.h.b16 %v2992
        %v3015 = vunpack.c.l.b16 %v2993
        %v3016 = vunpack.c.h.b16 %v2993
        %v3017 = vunpack.c.l.b16 %v2994
        %v3018 = vunpack.c.h.b16 %v2994
        %v3019 = vpack.c.b16 %v3007, %v3003
        %v3020 = vpack.c.b16 %v3008, %v3004
        %v3021 = vpack.c.b16 %v3009, %v3005
        %v3022 = vpack.c.b16 %v3010, %v3006
        %v3023 = vpack.c.b16 %v3015, %v3011
        %v3024 = vpack.c.b16 %v3016, %v3012
        %v3025 = vpack.c.b16 %v3017, %v3013
        %v3026 = vpack.c.b16 %v3018, %v3014
        %3035 = vmatpush.bf16.msra.mxu0 0
        %3036 = vmatpush.bf16.msra.mxu0 0
        %3037 = vmatpush.bf16.msra.mxu0 0
        %3038 = vmatpush.bf16.msra.mxu0 0
        %3039 = vmatpush.bf16.msra.mxu0 0
        %3040 = vmatpush.bf16.msra.mxu0 0
        %3041 = vmatpush.bf16.msra.mxu0 %v3023
        %3042 = vmatpush.bf16.msra.mxu0 %v3019
        %3043 = vmatmul.bf16.gmra.mxu0 %v666
        %v3044 = vpop.f32.mrf.mxu0
        %v3045 = vadd.f32 %v597, %v3044
        %v3046 = vpop.f32.mrf.mxu0
        %v3047 = vadd.f32 %v602, %v3046
        %3048 = vmatmul.bf16.gmra.mxu0 %v669
        %v3049 = vpop.f32.mrf.mxu0
        %v3050 = vadd.f32 %v607, %v3049
        %v3051 = vpop.f32.mrf.mxu0
        %v3052 = vadd.f32 %v612, %v3051
        %3053 = vdwg.mxu0
        %3054 = vmatpush.bf16.msra.mxu0 0
        %3055 = vmatpush.bf16.msra.mxu0 0
        %3056 = vmatpush.bf16.msra.mxu0 0
        %3057 = vmatpush.bf16.msra.mxu0 0
        %3058 = vmatpush.bf16.msra.mxu0 0
        %3059 = vmatpush.bf16.msra.mxu0 0
        %3060 = vmatpush.bf16.msra.mxu0 %v3024
        %3061 = vmatpush.bf16.msra.mxu0 %v3020
        %3062 = vmatmul.bf16.gmra.mxu0 %v666
        %v3063 = vpop.f32.mrf.mxu0
        %v3064 = vadd.f32 %v597, %v3063
        %v3065 = vpop.f32.mrf.mxu0
        %v3066 = vadd.f32 %v602, %v3065
        %3067 = vmatmul.bf16.gmra.mxu0 %v669
        %v3068 = vpop.f32.mrf.mxu0
        %v3069 = vadd.f32 %v607, %v3068
        %v3070 = vpop.f32.mrf.mxu0
        %v3071 = vadd.f32 %v612, %v3070
        %3072 = vdwg.mxu0
        %3073 = vmatpush.bf16.msra.mxu0 0
        %3074 = vmatpush.bf16.msra.mxu0 0
        %3075 = vmatpush.bf16.msra.mxu0 0
        %3076 = vmatpush.bf16.msra.mxu0 0
        %3077 = vmatpush.bf16.msra.mxu0 0
        %3078 = vmatpush.bf16.msra.mxu0 0
        %3079 = vmatpush.bf16.msra.mxu0 %v3025
        %3080 = vmatpush.bf16.msra.mxu0 %v3021
        %3081 = vmatmul.bf16.gmra.mxu0 %v666
        %v3082 = vpop.f32.mrf.mxu0
        %v3083 = vadd.f32 %v597, %v3082
        %v3084 = vpop.f32.mrf.mxu0
        %v3085 = vadd.f32 %v602, %v3084
        %3086 = vmatmul.bf16.gmra.mxu0 %v669
        %v3087 = vpop.f32.mrf.mxu0
        %v3088 = vadd.f32 %v607, %v3087
        %v3089 = vpop.f32.mrf.mxu0
        %v3090 = vadd.f32 %v612, %v3089
        %3091 = vdwg.mxu0
        %3092 = vmatpush.bf16.msra.mxu0 0
        %3093 = vmatpush.bf16.msra.mxu0 0
        %3094 = vmatpush.bf16.msra.mxu0 0
        %3095 = vmatpush.bf16.msra.mxu0 0
        %3096 = vmatpush.bf16.msra.mxu0 0
        %3097 = vmatpush.bf16.msra.mxu0 0
        %3098 = vmatpush.bf16.msra.mxu0 %v3026
        %3099 = vmatpush.bf16.msra.mxu0 %v3022
        %3100 = vmatmul.bf16.gmra.mxu0 %v666
        %v3101 = vpop.f32.mrf.mxu0
        %v3102 = vadd.f32 %v597, %v3101
        %v3103 = vpop.f32.mrf.mxu0
        %v3104 = vadd.f32 %v602, %v3103
        %3105 = vmatmul.bf16.gmra.mxu0 %v669
        %v3106 = vpop.f32.mrf.mxu0
        %v3107 = vadd.f32 %v607, %v3106
        %v3108 = vpop.f32.mrf.mxu0
        %v3109 = vadd.f32 %v612, %v3108
        %3110 = vdwg.mxu0
        %s3111 = sld [smem:[#allocation3 + $0x6]]
        %s3112 = smul.f32 %s577, %s3111
        %v3113 = vstv %s3112
        %v3114 = vmul.f32 %v3113, %v3045
        %v3115 = vmul.f32 %v3113, %v3064
        %v3116 = vmul.f32 %v3113, %v3083
        %v3117 = vmul.f32 %v3113, %v3102
        %v3118 = vmul.f32 %v3113, %v3047
        %v3119 = vmul.f32 %v3113, %v3066
        %v3120 = vmul.f32 %v3113, %v3085
        %v3121 = vmul.f32 %v3113, %v3104
        %v3122 = vmul.f32 %v3113, %v3050
        %v3123 = vmul.f32 %v3113, %v3069
        %v3124 = vmul.f32 %v3113, %v3088
        %v3125 = vmul.f32 %v3113, %v3107
        %v3126 = vmul.f32 %v3113, %v3052
        %v3127 = vmul.f32 %v3113, %v3071
        %v3128 = vmul.f32 %v3113, %v3090
        %v3129 = vmul.f32 %v3113, %v3109
        %v3130 = vld [vmem:[%s572] sm:$0xff]
        %v3131 = vld [vmem:[%s572 + $0x8] sm:$0xff]
        %v3132 = vld [vmem:[%s572 + $0x10] sm:$0xff]
        %v3133 = vld [vmem:[%s572 + $0x18] sm:$0xff]
        %v3134 = vld [vmem:[%s572 + $0x20] sm:$0xff]
        %v3135 = vld [vmem:[%s572 + $0x28] sm:$0xff]
        %v3136 = vld [vmem:[%s572 + $0x30] sm:$0xff]
        %v3137 = vld [vmem:[%s572 + $0x38] sm:$0xff]
        %v3138 = vld [vmem:[%s572 + $0x40] sm:$0xff]
        %v3139 = vld [vmem:[%s572 + $0x48] sm:$0xff]
        %v3140 = vld [vmem:[%s572 + $0x50] sm:$0xff]
        %v3141 = vld [vmem:[%s572 + $0x58] sm:$0xff]
        %v3142 = vld [vmem:[%s572 + $0x60] sm:$0xff]
        %v3143 = vld [vmem:[%s572 + $0x68] sm:$0xff]
        %v3144 = vld [vmem:[%s572 + $0x70] sm:$0xff]
        %v3145 = vld [vmem:[%s572 + $0x78] sm:$0xff]
        %v3146 = vadd.f32 %v3130, %v3114
        %v3147 = vadd.f32 %v3131, %v3115
        %v3148 = vadd.f32 %v3132, %v3116
        %v3149 = vadd.f32 %v3133, %v3117
        %v3150 = vadd.f32 %v3134, %v3118
        %v3151 = vadd.f32 %v3135, %v3119
        %v3152 = vadd.f32 %v3136, %v3120
        %v3153 = vadd.f32 %v3137, %v3121
        %v3154 = vadd.f32 %v3138, %v3122
        %v3155 = vadd.f32 %v3139, %v3123
        %v3156 = vadd.f32 %v3140, %v3124
        %v3157 = vadd.f32 %v3141, %v3125
        %v3158 = vadd.f32 %v3142, %v3126
        %v3159 = vadd.f32 %v3143, %v3127
        %v3160 = vadd.f32 %v3144, %v3128
        %v3161 = vadd.f32 %v3145, %v3129
        %3162 = vst [vmem:[%s572] sm:$0xff] %v3146
        %3163 = vst [vmem:[%s572 + $0x8] sm:$0xff] %v3147
        %3164 = vst [vmem:[%s572 + $0x10] sm:$0xff] %v3148
        %3165 = vst [vmem:[%s572 + $0x18] sm:$0xff] %v3149
        %3166 = vst [vmem:[%s572 + $0x20] sm:$0xff] %v3150
        %3167 = vst [vmem:[%s572 + $0x28] sm:$0xff] %v3151
        %3168 = vst [vmem:[%s572 + $0x30] sm:$0xff] %v3152
        %3169 = vst [vmem:[%s572 + $0x38] sm:$0xff] %v3153
        %3170 = vst [vmem:[%s572 + $0x40] sm:$0xff] %v3154
        %3171 = vst [vmem:[%s572 + $0x48] sm:$0xff] %v3155
        %3172 = vst [vmem:[%s572 + $0x50] sm:$0xff] %v3156
        %3173 = vst [vmem:[%s572 + $0x58] sm:$0xff] %v3157
        %3174 = vst [vmem:[%s572 + $0x60] sm:$0xff] %v3158
        %3175 = vst [vmem:[%s572 + $0x68] sm:$0xff] %v3159
        %3176 = vst [vmem:[%s572 + $0x70] sm:$0xff] %v3160
        %3177 = vst [vmem:[%s572 + $0x78] sm:$0xff] %v3161
        %s3178 = sld [smem:[#allocation3 + $0x86]]
        %s3179 = smul.f32 %s577, %s3178
        %v3180 = vstv %s3179
        %v3181 = vmul.f32 %v3180, %v3045
        %v3182 = vmul.f32 %v3180, %v3064
        %v3183 = vmul.f32 %v3180, %v3083
        %v3184 = vmul.f32 %v3180, %v3102
        %v3185 = vmul.f32 %v3180, %v3047
        %v3186 = vmul.f32 %v3180, %v3066
        %v3187 = vmul.f32 %v3180, %v3085
        %v3188 = vmul.f32 %v3180, %v3104
        %v3189 = vmul.f32 %v3180, %v3050
        %v3190 = vmul.f32 %v3180, %v3069
        %v3191 = vmul.f32 %v3180, %v3088
        %v3192 = vmul.f32 %v3180, %v3107
        %v3193 = vmul.f32 %v3180, %v3052
        %v3194 = vmul.f32 %v3180, %v3071
        %v3195 = vmul.f32 %v3180, %v3090
        %v3196 = vmul.f32 %v3180, %v3109
        %v3197 = vld [vmem:[%s866] sm:$0xff]
        %v3198 = vld [vmem:[%s866 + $0x8] sm:$0xff]
        %v3199 = vld [vmem:[%s866 + $0x10] sm:$0xff]
        %v3200 = vld [vmem:[%s866 + $0x18] sm:$0xff]
        %v3201 = vld [vmem:[%s866 + $0x20] sm:$0xff]
        %v3202 = vld [vmem:[%s866 + $0x28] sm:$0xff]
        %v3203 = vld [vmem:[%s866 + $0x30] sm:$0xff]
        %v3204 = vld [vmem:[%s866 + $0x38] sm:$0xff]
        %v3205 = vld [vmem:[%s866 + $0x40] sm:$0xff]
        %v3206 = vld [vmem:[%s866 + $0x48] sm:$0xff]
        %v3207 = vld [vmem:[%s866 + $0x50] sm:$0xff]
        %v3208 = vld [vmem:[%s866 + $0x58] sm:$0xff]
        %v3209 = vld [vmem:[%s866 + $0x60] sm:$0xff]
        %v3210 = vld [vmem:[%s866 + $0x68] sm:$0xff]
        %v3211 = vld [vmem:[%s866 + $0x70] sm:$0xff]
        %v3212 = vld [vmem:[%s866 + $0x78] sm:$0xff]
        %v3213 = vadd.f32 %v3197, %v3181
        %v3214 = vadd.f32 %v3198, %v3182
        %v3215 = vadd.f32 %v3199, %v3183
        %v3216 = vadd.f32 %v3200, %v3184
        %v3217 = vadd.f32 %v3201, %v3185
        %v3218 = vadd.f32 %v3202, %v3186
        %v3219 = vadd.f32 %v3203, %v3187
        %v3220 = vadd.f32 %v3204, %v3188
        %v3221 = vadd.f32 %v3205, %v3189
        %v3222 = vadd.f32 %v3206, %v3190
        %v3223 = vadd.f32 %v3207, %v3191
        %v3224 = vadd.f32 %v3208, %v3192
        %v3225 = vadd.f32 %v3209, %v3193
        %v3226 = vadd.f32 %v3210, %v3194
        %v3227 = vadd.f32 %v3211, %v3195
        %v3228 = vadd.f32 %v3212, %v3196
        %3229 = vst [vmem:[%s866] sm:$0xff] %v3213
        %3230 = vst [vmem:[%s866 + $0x8] sm:$0xff] %v3214
        %3231 = vst [vmem:[%s866 + $0x10] sm:$0xff] %v3215
        %3232 = vst [vmem:[%s866 + $0x18] sm:$0xff] %v3216
        %3233 = vst [vmem:[%s866 + $0x20] sm:$0xff] %v3217
        %3234 = vst [vmem:[%s866 + $0x28] sm:$0xff] %v3218
        %3235 = vst [vmem:[%s866 + $0x30] sm:$0xff] %v3219
        %3236 = vst [vmem:[%s866 + $0x38] sm:$0xff] %v3220
        %3237 = vst [vmem:[%s866 + $0x40] sm:$0xff] %v3221
        %3238 = vst [vmem:[%s866 + $0x48] sm:$0xff] %v3222
        %3239 = vst [vmem:[%s866 + $0x50] sm:$0xff] %v3223
        %3240 = vst [vmem:[%s866 + $0x58] sm:$0xff] %v3224
        %3241 = vst [vmem:[%s866 + $0x60] sm:$0xff] %v3225
        %3242 = vst [vmem:[%s866 + $0x68] sm:$0xff] %v3226
        %3243 = vst [vmem:[%s866 + $0x70] sm:$0xff] %v3227
        %3244 = vst [vmem:[%s866 + $0x78] sm:$0xff] %v3228
        %s3245 = sld [smem:[#allocation3 + $0x106]]
        %s3246 = smul.f32 %s577, %s3245
        %v3247 = vstv %s3246
        %v3248 = vmul.f32 %v3247, %v3045
        %v3249 = vmul.f32 %v3247, %v3064
        %v3250 = vmul.f32 %v3247, %v3083
        %v3251 = vmul.f32 %v3247, %v3102
        %v3252 = vmul.f32 %v3247, %v3047
        %v3253 = vmul.f32 %v3247, %v3066
        %v3254 = vmul.f32 %v3247, %v3085
        %v3255 = vmul.f32 %v3247, %v3104
        %v3256 = vmul.f32 %v3247, %v3050
        %v3257 = vmul.f32 %v3247, %v3069
        %v3258 = vmul.f32 %v3247, %v3088
        %v3259 = vmul.f32 %v3247, %v3107
        %v3260 = vmul.f32 %v3247, %v3052
        %v3261 = vmul.f32 %v3247, %v3071
        %v3262 = vmul.f32 %v3247, %v3090
        %v3263 = vmul.f32 %v3247, %v3109
        %v3264 = vld [vmem:[%s935] sm:$0xff]
        %v3265 = vld [vmem:[%s935 + $0x8] sm:$0xff]
        %v3266 = vld [vmem:[%s935 + $0x10] sm:$0xff]
        %v3267 = vld [vmem:[%s935 + $0x18] sm:$0xff]
        %v3268 = vld [vmem:[%s935 + $0x20] sm:$0xff]
        %v3269 = vld [vmem:[%s935 + $0x28] sm:$0xff]
        %v3270 = vld [vmem:[%s935 + $0x30] sm:$0xff]
        %v3271 = vld [vmem:[%s935 + $0x38] sm:$0xff]
        %v3272 = vld [vmem:[%s935 + $0x40] sm:$0xff]
        %v3273 = vld [vmem:[%s935 + $0x48] sm:$0xff]
        %v3274 = vld [vmem:[%s935 + $0x50] sm:$0xff]
        %v3275 = vld [vmem:[%s935 + $0x58] sm:$0xff]
        %v3276 = vld [vmem:[%s935 + $0x60] sm:$0xff]
        %v3277 = vld [vmem:[%s935 + $0x68] sm:$0xff]
        %v3278 = vld [vmem:[%s935 + $0x70] sm:$0xff]
        %v3279 = vld [vmem:[%s935 + $0x78] sm:$0xff]
        %v3280 = vadd.f32 %v3264, %v3248
        %v3281 = vadd.f32 %v3265, %v3249
        %v3282 = vadd.f32 %v3266, %v3250
        %v3283 = vadd.f32 %v3267, %v3251
        %v3284 = vadd.f32 %v3268, %v3252
        %v3285 = vadd.f32 %v3269, %v3253
        %v3286 = vadd.f32 %v3270, %v3254
        %v3287 = vadd.f32 %v3271, %v3255
        %v3288 = vadd.f32 %v3272, %v3256
        %v3289 = vadd.f32 %v3273, %v3257
        %v3290 = vadd.f32 %v3274, %v3258
        %v3291 = vadd.f32 %v3275, %v3259
        %v3292 = vadd.f32 %v3276, %v3260
        %v3293 = vadd.f32 %v3277, %v3261
        %v3294 = vadd.f32 %v3278, %v3262
        %v3295 = vadd.f32 %v3279, %v3263
        %3296 = vst [vmem:[%s935] sm:$0xff] %v3280
        %3297 = vst [vmem:[%s935 + $0x8] sm:$0xff] %v3281
        %3298 = vst [vmem:[%s935 + $0x10] sm:$0xff] %v3282
        %3299 = vst [vmem:[%s935 + $0x18] sm:$0xff] %v3283
        %3300 = vst [vmem:[%s935 + $0x20] sm:$0xff] %v3284
        %3301 = vst [vmem:[%s935 + $0x28] sm:$0xff] %v3285
        %3302 = vst [vmem:[%s935 + $0x30] sm:$0xff] %v3286
        %3303 = vst [vmem:[%s935 + $0x38] sm:$0xff] %v3287
        %3304 = vst [vmem:[%s935 + $0x40] sm:$0xff] %v3288
        %3305 = vst [vmem:[%s935 + $0x48] sm:$0xff] %v3289
        %3306 = vst [vmem:[%s935 + $0x50] sm:$0xff] %v3290
        %3307 = vst [vmem:[%s935 + $0x58] sm:$0xff] %v3291
        %3308 = vst [vmem:[%s935 + $0x60] sm:$0xff] %v3292
        %3309 = vst [vmem:[%s935 + $0x68] sm:$0xff] %v3293
        %3310 = vst [vmem:[%s935 + $0x70] sm:$0xff] %v3294
        %3311 = vst [vmem:[%s935 + $0x78] sm:$0xff] %v3295
        %s3312 = sld [smem:[#allocation3 + $0x186]]
        %s3313 = smul.f32 %s577, %s3312
        %v3314 = vstv %s3313
        %v3315 = vmul.f32 %v3314, %v3045
        %v3316 = vmul.f32 %v3314, %v3064
        %v3317 = vmul.f32 %v3314, %v3083
        %v3318 = vmul.f32 %v3314, %v3102
        %v3319 = vmul.f32 %v3314, %v3047
        %v3320 = vmul.f32 %v3314, %v3066
        %v3321 = vmul.f32 %v3314, %v3085
        %v3322 = vmul.f32 %v3314, %v3104
        %v3323 = vmul.f32 %v3314, %v3050
        %v3324 = vmul.f32 %v3314, %v3069
        %v3325 = vmul.f32 %v3314, %v3088
        %v3326 = vmul.f32 %v3314, %v3107
        %v3327 = vmul.f32 %v3314, %v3052
        %v3328 = vmul.f32 %v3314, %v3071
        %v3329 = vmul.f32 %v3314, %v3090
        %v3330 = vmul.f32 %v3314, %v3109
        %v3331 = vld [vmem:[%s1004] sm:$0xff]
        %v3332 = vld [vmem:[%s1004 + $0x8] sm:$0xff]
        %v3333 = vld [vmem:[%s1004 + $0x10] sm:$0xff]
        %v3334 = vld [vmem:[%s1004 + $0x18] sm:$0xff]
        %v3335 = vld [vmem:[%s1004 + $0x20] sm:$0xff]
        %v3336 = vld [vmem:[%s1004 + $0x28] sm:$0xff]
        %v3337 = vld [vmem:[%s1004 + $0x30] sm:$0xff]
        %v3338 = vld [vmem:[%s1004 + $0x38] sm:$0xff]
        %v3339 = vld [vmem:[%s1004 + $0x40] sm:$0xff]
        %v3340 = vld [vmem:[%s1004 + $0x48] sm:$0xff]
        %v3341 = vld [vmem:[%s1004 + $0x50] sm:$0xff]
        %v3342 = vld [vmem:[%s1004 + $0x58] sm:$0xff]
        %v3343 = vld [vmem:[%s1004 + $0x60] sm:$0xff]
        %v3344 = vld [vmem:[%s1004 + $0x68] sm:$0xff]
        %v3345 = vld [vmem:[%s1004 + $0x70] sm:$0xff]
        %v3346 = vld [vmem:[%s1004 + $0x78] sm:$0xff]
        %v3347 = vadd.f32 %v3331, %v3315
        %v3348 = vadd.f32 %v3332, %v3316
        %v3349 = vadd.f32 %v3333, %v3317
        %v3350 = vadd.f32 %v3334, %v3318
        %v3351 = vadd.f32 %v3335, %v3319
        %v3352 = vadd.f32 %v3336, %v3320
        %v3353 = vadd.f32 %v3337, %v3321
        %v3354 = vadd.f32 %v3338, %v3322
        %v3355 = vadd.f32 %v3339, %v3323
        %v3356 = vadd.f32 %v3340, %v3324
        %v3357 = vadd.f32 %v3341, %v3325
        %v3358 = vadd.f32 %v3342, %v3326
        %v3359 = vadd.f32 %v3343, %v3327
        %v3360 = vadd.f32 %v3344, %v3328
        %v3361 = vadd.f32 %v3345, %v3329
        %v3362 = vadd.f32 %v3346, %v3330
        %3363 = vst [vmem:[%s1004] sm:$0xff] %v3347
        %3364 = vst [vmem:[%s1004 + $0x8] sm:$0xff] %v3348
        %3365 = vst [vmem:[%s1004 + $0x10] sm:$0xff] %v3349
        %3366 = vst [vmem:[%s1004 + $0x18] sm:$0xff] %v3350
        %3367 = vst [vmem:[%s1004 + $0x20] sm:$0xff] %v3351
        %3368 = vst [vmem:[%s1004 + $0x28] sm:$0xff] %v3352
        %3369 = vst [vmem:[%s1004 + $0x30] sm:$0xff] %v3353
        %3370 = vst [vmem:[%s1004 + $0x38] sm:$0xff] %v3354
        %3371 = vst [vmem:[%s1004 + $0x40] sm:$0xff] %v3355
        %3372 = vst [vmem:[%s1004 + $0x48] sm:$0xff] %v3356
        %3373 = vst [vmem:[%s1004 + $0x50] sm:$0xff] %v3357
        %3374 = vst [vmem:[%s1004 + $0x58] sm:$0xff] %v3358
        %3375 = vst [vmem:[%s1004 + $0x60] sm:$0xff] %v3359
        %3376 = vst [vmem:[%s1004 + $0x68] sm:$0xff] %v3360
        %3377 = vst [vmem:[%s1004 + $0x70] sm:$0xff] %v3361
        %3378 = vst [vmem:[%s1004 + $0x78] sm:$0xff] %v3362
        %s3379 = scalar_lea.vmem %s535, 448 [#allocation5]
        %v3380 = vld [vmem:[%s3379] sm:$0xff]
        %v3381 = vld [vmem:[%s3379 + $0x8] sm:$0xff]
        %v3382 = vld [vmem:[%s3379 + $0x10] sm:$0xff]
        %v3383 = vld [vmem:[%s3379 + $0x18] sm:$0xff]
        %v3384 = vld [vmem:[%s3379 + $0x20] sm:$0xff]
        %v3385 = vld [vmem:[%s3379 + $0x28] sm:$0xff]
        %v3386 = vld [vmem:[%s3379 + $0x30] sm:$0xff]
        %v3387 = vld [vmem:[%s3379 + $0x38] sm:$0xff]
        %v3396 = vunpack.c.l.b16 %v3380
        %v3397 = vunpack.c.h.b16 %v3380
        %v3398 = vunpack.c.l.b16 %v3381
        %v3399 = vunpack.c.h.b16 %v3381
        %v3400 = vunpack.c.l.b16 %v3382
        %v3401 = vunpack.c.h.b16 %v3382
        %v3402 = vunpack.c.l.b16 %v3383
        %v3403 = vunpack.c.h.b16 %v3383
        %v3404 = vunpack.c.l.b16 %v3384
        %v3405 = vunpack.c.h.b16 %v3384
        %v3406 = vunpack.c.l.b16 %v3385
        %v3407 = vunpack.c.h.b16 %v3385
        %v3408 = vunpack.c.l.b16 %v3386
        %v3409 = vunpack.c.h.b16 %v3386
        %v3410 = vunpack.c.l.b16 %v3387
        %v3411 = vunpack.c.h.b16 %v3387
        %v3412 = vpack.c.b16 %v3400, %v3396
        %v3413 = vpack.c.b16 %v3401, %v3397
        %v3414 = vpack.c.b16 %v3402, %v3398
        %v3415 = vpack.c.b16 %v3403, %v3399
        %v3416 = vpack.c.b16 %v3408, %v3404
        %v3417 = vpack.c.b16 %v3409, %v3405
        %v3418 = vpack.c.b16 %v3410, %v3406
        %v3419 = vpack.c.b16 %v3411, %v3407
        %3428 = vmatpush.bf16.msra.mxu0 0
        %3429 = vmatpush.bf16.msra.mxu0 0
        %3430 = vmatpush.bf16.msra.mxu0 0
        %3431 = vmatpush.bf16.msra.mxu0 0
        %3432 = vmatpush.bf16.msra.mxu0 0
        %3433 = vmatpush.bf16.msra.mxu0 0
        %3434 = vmatpush.bf16.msra.mxu0 %v3416
        %3435 = vmatpush.bf16.msra.mxu0 %v3412
        %3436 = vmatmul.bf16.gmra.mxu0 %v666
        %v3437 = vpop.f32.mrf.mxu0
        %v3438 = vadd.f32 %v597, %v3437
        %v3439 = vpop.f32.mrf.mxu0
        %v3440 = vadd.f32 %v602, %v3439
        %3441 = vmatmul.bf16.gmra.mxu0 %v669
        %v3442 = vpop.f32.mrf.mxu0
        %v3443 = vadd.f32 %v607, %v3442
        %v3444 = vpop.f32.mrf.mxu0
        %v3445 = vadd.f32 %v612, %v3444
        %3446 = vdwg.mxu0
        %3447 = vmatpush.bf16.msra.mxu0 0
        %3448 = vmatpush.bf16.msra.mxu0 0
        %3449 = vmatpush.bf16.msra.mxu0 0
        %3450 = vmatpush.bf16.msra.mxu0 0
        %3451 = vmatpush.bf16.msra.mxu0 0
        %3452 = vmatpush.bf16.msra.mxu0 0
        %3453 = vmatpush.bf16.msra.mxu0 %v3417
        %3454 = vmatpush.bf16.msra.mxu0 %v3413
        %3455 = vmatmul.bf16.gmra.mxu0 %v666
        %v3456 = vpop.f32.mrf.mxu0
        %v3457 = vadd.f32 %v597, %v3456
        %v3458 = vpop.f32.mrf.mxu0
        %v3459 = vadd.f32 %v602, %v3458
        %3460 = vmatmul.bf16.gmra.mxu0 %v669
        %v3461 = vpop.f32.mrf.mxu0
        %v3462 = vadd.f32 %v607, %v3461
        %v3463 = vpop.f32.mrf.mxu0
        %v3464 = vadd.f32 %v612, %v3463
        %3465 = vdwg.mxu0
        %3466 = vmatpush.bf16.msra.mxu0 0
        %3467 = vmatpush.bf16.msra.mxu0 0
        %3468 = vmatpush.bf16.msra.mxu0 0
        %3469 = vmatpush.bf16.msra.mxu0 0
        %3470 = vmatpush.bf16.msra.mxu0 0
        %3471 = vmatpush.bf16.msra.mxu0 0
        %3472 = vmatpush.bf16.msra.mxu0 %v3418
        %3473 = vmatpush.bf16.msra.mxu0 %v3414
        %3474 = vmatmul.bf16.gmra.mxu0 %v666
        %v3475 = vpop.f32.mrf.mxu0
        %v3476 = vadd.f32 %v597, %v3475
        %v3477 = vpop.f32.mrf.mxu0
        %v3478 = vadd.f32 %v602, %v3477
        %3479 = vmatmul.bf16.gmra.mxu0 %v669
        %v3480 = vpop.f32.mrf.mxu0
        %v3481 = vadd.f32 %v607, %v3480
        %v3482 = vpop.f32.mrf.mxu0
        %v3483 = vadd.f32 %v612, %v3482
        %3484 = vdwg.mxu0
        %3485 = vmatpush.bf16.msra.mxu0 0
        %3486 = vmatpush.bf16.msra.mxu0 0
        %3487 = vmatpush.bf16.msra.mxu0 0
        %3488 = vmatpush.bf16.msra.mxu0 0
        %3489 = vmatpush.bf16.msra.mxu0 0
        %3490 = vmatpush.bf16.msra.mxu0 0
        %3491 = vmatpush.bf16.msra.mxu0 %v3419
        %3492 = vmatpush.bf16.msra.mxu0 %v3415
        %3493 = vmatmul.bf16.gmra.mxu0 %v666
        %v3494 = vpop.f32.mrf.mxu0
        %v3495 = vadd.f32 %v597, %v3494
        %v3496 = vpop.f32.mrf.mxu0
        %v3497 = vadd.f32 %v602, %v3496
        %3498 = vmatmul.bf16.gmra.mxu0 %v669
        %v3499 = vpop.f32.mrf.mxu0
        %v3500 = vadd.f32 %v607, %v3499
        %v3501 = vpop.f32.mrf.mxu0
        %v3502 = vadd.f32 %v612, %v3501
        %3503 = vdwg.mxu0
        %s3504 = sld [smem:[#allocation3 + $0x7]]
        %s3505 = smul.f32 %s577, %s3504
        %v3506 = vstv %s3505
        %v3507 = vmul.f32 %v3506, %v3438
        %v3508 = vmul.f32 %v3506, %v3457
        %v3509 = vmul.f32 %v3506, %v3476
        %v3510 = vmul.f32 %v3506, %v3495
        %v3511 = vmul.f32 %v3506, %v3440
        %v3512 = vmul.f32 %v3506, %v3459
        %v3513 = vmul.f32 %v3506, %v3478
        %v3514 = vmul.f32 %v3506, %v3497
        %v3515 = vmul.f32 %v3506, %v3443
        %v3516 = vmul.f32 %v3506, %v3462
        %v3517 = vmul.f32 %v3506, %v3481
        %v3518 = vmul.f32 %v3506, %v3500
        %v3519 = vmul.f32 %v3506, %v3445
        %v3520 = vmul.f32 %v3506, %v3464
        %v3521 = vmul.f32 %v3506, %v3483
        %v3522 = vmul.f32 %v3506, %v3502
        %v3523 = vld [vmem:[%s572] sm:$0xff]
        %v3524 = vld [vmem:[%s572 + $0x8] sm:$0xff]
        %v3525 = vld [vmem:[%s572 + $0x10] sm:$0xff]
        %v3526 = vld [vmem:[%s572 + $0x18] sm:$0xff]
        %v3527 = vld [vmem:[%s572 + $0x20] sm:$0xff]
        %v3528 = vld [vmem:[%s572 + $0x28] sm:$0xff]
        %v3529 = vld [vmem:[%s572 + $0x30] sm:$0xff]
        %v3530 = vld [vmem:[%s572 + $0x38] sm:$0xff]
        %v3531 = vld [vmem:[%s572 + $0x40] sm:$0xff]
        %v3532 = vld [vmem:[%s572 + $0x48] sm:$0xff]
        %v3533 = vld [vmem:[%s572 + $0x50] sm:$0xff]
        %v3534 = vld [vmem:[%s572 + $0x58] sm:$0xff]
        %v3535 = vld [vmem:[%s572 + $0x60] sm:$0xff]
        %v3536 = vld [vmem:[%s572 + $0x68] sm:$0xff]
        %v3537 = vld [vmem:[%s572 + $0x70] sm:$0xff]
        %v3538 = vld [vmem:[%s572 + $0x78] sm:$0xff]
        %v3539 = vadd.f32 %v3523, %v3507
        %v3540 = vadd.f32 %v3524, %v3508
        %v3541 = vadd.f32 %v3525, %v3509
        %v3542 = vadd.f32 %v3526, %v3510
        %v3543 = vadd.f32 %v3527, %v3511
        %v3544 = vadd.f32 %v3528, %v3512
        %v3545 = vadd.f32 %v3529, %v3513
        %v3546 = vadd.f32 %v3530, %v3514
        %v3547 = vadd.f32 %v3531, %v3515
        %v3548 = vadd.f32 %v3532, %v3516
        %v3549 = vadd.f32 %v3533, %v3517
        %v3550 = vadd.f32 %v3534, %v3518
        %v3551 = vadd.f32 %v3535, %v3519
        %v3552 = vadd.f32 %v3536, %v3520
        %v3553 = vadd.f32 %v3537, %v3521
        %v3554 = vadd.f32 %v3538, %v3522
        %3555 = vst [vmem:[%s572] sm:$0xff] %v3539
        %3556 = vst [vmem:[%s572 + $0x8] sm:$0xff] %v3540
        %3557 = vst [vmem:[%s572 + $0x10] sm:$0xff] %v3541
        %3558 = vst [vmem:[%s572 + $0x18] sm:$0xff] %v3542
        %3559 = vst [vmem:[%s572 + $0x20] sm:$0xff] %v3543
        %3560 = vst [vmem:[%s572 + $0x28] sm:$0xff] %v3544
        %3561 = vst [vmem:[%s572 + $0x30] sm:$0xff] %v3545
        %3562 = vst [vmem:[%s572 + $0x38] sm:$0xff] %v3546
        %3563 = vst [vmem:[%s572 + $0x40] sm:$0xff] %v3547
        %3564 = vst [vmem:[%s572 + $0x48] sm:$0xff] %v3548
        %3565 = vst [vmem:[%s572 + $0x50] sm:$0xff] %v3549
        %3566 = vst [vmem:[%s572 + $0x58] sm:$0xff] %v3550
        %3567 = vst [vmem:[%s572 + $0x60] sm:$0xff] %v3551
        %3568 = vst [vmem:[%s572 + $0x68] sm:$0xff] %v3552
        %3569 = vst [vmem:[%s572 + $0x70] sm:$0xff] %v3553
        %3570 = vst [vmem:[%s572 + $0x78] sm:$0xff] %v3554
        %s3571 = sld [smem:[#allocation3 + $0x87]]
        %s3572 = smul.f32 %s577, %s3571
        %v3573 = vstv %s3572
        %v3574 = vmul.f32 %v3573, %v3438
        %v3575 = vmul.f32 %v3573, %v3457
        %v3576 = vmul.f32 %v3573, %v3476
        %v3577 = vmul.f32 %v3573, %v3495
        %v3578 = vmul.f32 %v3573, %v3440
        %v3579 = vmul.f32 %v3573, %v3459
        %v3580 = vmul.f32 %v3573, %v3478
        %v3581 = vmul.f32 %v3573, %v3497
        %v3582 = vmul.f32 %v3573, %v3443
        %v3583 = vmul.f32 %v3573, %v3462
        %v3584 = vmul.f32 %v3573, %v3481
        %v3585 = vmul.f32 %v3573, %v3500
        %v3586 = vmul.f32 %v3573, %v3445
        %v3587 = vmul.f32 %v3573, %v3464
        %v3588 = vmul.f32 %v3573, %v3483
        %v3589 = vmul.f32 %v3573, %v3502
        %v3590 = vld [vmem:[%s866] sm:$0xff]
        %v3591 = vld [vmem:[%s866 + $0x8] sm:$0xff]
        %v3592 = vld [vmem:[%s866 + $0x10] sm:$0xff]
        %v3593 = vld [vmem:[%s866 + $0x18] sm:$0xff]
        %v3594 = vld [vmem:[%s866 + $0x20] sm:$0xff]
        %v3595 = vld [vmem:[%s866 + $0x28] sm:$0xff]
        %v3596 = vld [vmem:[%s866 + $0x30] sm:$0xff]
        %v3597 = vld [vmem:[%s866 + $0x38] sm:$0xff]
        %v3598 = vld [vmem:[%s866 + $0x40] sm:$0xff]
        %v3599 = vld [vmem:[%s866 + $0x48] sm:$0xff]
        %v3600 = vld [vmem:[%s866 + $0x50] sm:$0xff]
        %v3601 = vld [vmem:[%s866 + $0x58] sm:$0xff]
        %v3602 = vld [vmem:[%s866 + $0x60] sm:$0xff]
        %v3603 = vld [vmem:[%s866 + $0x68] sm:$0xff]
        %v3604 = vld [vmem:[%s866 + $0x70] sm:$0xff]
        %v3605 = vld [vmem:[%s866 + $0x78] sm:$0xff]
        %v3606 = vadd.f32 %v3590, %v3574
        %v3607 = vadd.f32 %v3591, %v3575
        %v3608 = vadd.f32 %v3592, %v3576
        %v3609 = vadd.f32 %v3593, %v3577
        %v3610 = vadd.f32 %v3594, %v3578
        %v3611 = vadd.f32 %v3595, %v3579
        %v3612 = vadd.f32 %v3596, %v3580
        %v3613 = vadd.f32 %v3597, %v3581
        %v3614 = vadd.f32 %v3598, %v3582
        %v3615 = vadd.f32 %v3599, %v3583
        %v3616 = vadd.f32 %v3600, %v3584
        %v3617 = vadd.f32 %v3601, %v3585
        %v3618 = vadd.f32 %v3602, %v3586
        %v3619 = vadd.f32 %v3603, %v3587
        %v3620 = vadd.f32 %v3604, %v3588
        %v3621 = vadd.f32 %v3605, %v3589
        %3622 = vst [vmem:[%s866] sm:$0xff] %v3606
        %3623 = vst [vmem:[%s866 + $0x8] sm:$0xff] %v3607
        %3624 = vst [vmem:[%s866 + $0x10] sm:$0xff] %v3608
        %3625 = vst [vmem:[%s866 + $0x18] sm:$0xff] %v3609
        %3626 = vst [vmem:[%s866 + $0x20] sm:$0xff] %v3610
        %3627 = vst [vmem:[%s866 + $0x28] sm:$0xff] %v3611
        %3628 = vst [vmem:[%s866 + $0x30] sm:$0xff] %v3612
        %3629 = vst [vmem:[%s866 + $0x38] sm:$0xff] %v3613
        %3630 = vst [vmem:[%s866 + $0x40] sm:$0xff] %v3614
        %3631 = vst [vmem:[%s866 + $0x48] sm:$0xff] %v3615
        %3632 = vst [vmem:[%s866 + $0x50] sm:$0xff] %v3616
        %3633 = vst [vmem:[%s866 + $0x58] sm:$0xff] %v3617
        %3634 = vst [vmem:[%s866 + $0x60] sm:$0xff] %v3618
        %3635 = vst [vmem:[%s866 + $0x68] sm:$0xff] %v3619
        %3636 = vst [vmem:[%s866 + $0x70] sm:$0xff] %v3620
        %3637 = vst [vmem:[%s866 + $0x78] sm:$0xff] %v3621
        %s3638 = sld [smem:[#allocation3 + $0x107]]
        %s3639 = smul.f32 %s577, %s3638
        %v3640 = vstv %s3639
        %v3641 = vmul.f32 %v3640, %v3438
        %v3642 = vmul.f32 %v3640, %v3457
        %v3643 = vmul.f32 %v3640, %v3476
        %v3644 = vmul.f32 %v3640, %v3495
        %v3645 = vmul.f32 %v3640, %v3440
        %v3646 = vmul.f32 %v3640, %v3459
        %v3647 = vmul.f32 %v3640, %v3478
        %v3648 = vmul.f32 %v3640, %v3497
        %v3649 = vmul.f32 %v3640, %v3443
        %v3650 = vmul.f32 %v3640, %v3462
        %v3651 = vmul.f32 %v3640, %v3481
        %v3652 = vmul.f32 %v3640, %v3500
        %v3653 = vmul.f32 %v3640, %v3445
        %v3654 = vmul.f32 %v3640, %v3464
        %v3655 = vmul.f32 %v3640, %v3483
        %v3656 = vmul.f32 %v3640, %v3502
        %v3657 = vld [vmem:[%s935] sm:$0xff]
        %v3658 = vld [vmem:[%s935 + $0x8] sm:$0xff]
        %v3659 = vld [vmem:[%s935 + $0x10] sm:$0xff]
        %v3660 = vld [vmem:[%s935 + $0x18] sm:$0xff]
        %v3661 = vld [vmem:[%s935 + $0x20] sm:$0xff]
        %v3662 = vld [vmem:[%s935 + $0x28] sm:$0xff]
        %v3663 = vld [vmem:[%s935 + $0x30] sm:$0xff]
        %v3664 = vld [vmem:[%s935 + $0x38] sm:$0xff]
        %v3665 = vld [vmem:[%s935 + $0x40] sm:$0xff]
        %v3666 = vld [vmem:[%s935 + $0x48] sm:$0xff]
        %v3667 = vld [vmem:[%s935 + $0x50] sm:$0xff]
        %v3668 = vld [vmem:[%s935 + $0x58] sm:$0xff]
        %v3669 = vld [vmem:[%s935 + $0x60] sm:$0xff]
        %v3670 = vld [vmem:[%s935 + $0x68] sm:$0xff]
        %v3671 = vld [vmem:[%s935 + $0x70] sm:$0xff]
        %v3672 = vld [vmem:[%s935 + $0x78] sm:$0xff]
        %v3673 = vadd.f32 %v3657, %v3641
        %v3674 = vadd.f32 %v3658, %v3642
        %v3675 = vadd.f32 %v3659, %v3643
        %v3676 = vadd.f32 %v3660, %v3644
        %v3677 = vadd.f32 %v3661, %v3645
        %v3678 = vadd.f32 %v3662, %v3646
        %v3679 = vadd.f32 %v3663, %v3647
        %v3680 = vadd.f32 %v3664, %v3648
        %v3681 = vadd.f32 %v3665, %v3649
        %v3682 = vadd.f32 %v3666, %v3650
        %v3683 = vadd.f32 %v3667, %v3651
        %v3684 = vadd.f32 %v3668, %v3652
        %v3685 = vadd.f32 %v3669, %v3653
        %v3686 = vadd.f32 %v3670, %v3654
        %v3687 = vadd.f32 %v3671, %v3655
        %v3688 = vadd.f32 %v3672, %v3656
        %3689 = vst [vmem:[%s935] sm:$0xff] %v3673
        %3690 = vst [vmem:[%s935 + $0x8] sm:$0xff] %v3674
        %3691 = vst [vmem:[%s935 + $0x10] sm:$0xff] %v3675
        %3692 = vst [vmem:[%s935 + $0x18] sm:$0xff] %v3676
        %3693 = vst [vmem:[%s935 + $0x20] sm:$0xff] %v3677
        %3694 = vst [vmem:[%s935 + $0x28] sm:$0xff] %v3678
        %3695 = vst [vmem:[%s935 + $0x30] sm:$0xff] %v3679
        %3696 = vst [vmem:[%s935 + $0x38] sm:$0xff] %v3680
        %3697 = vst [vmem:[%s935 + $0x40] sm:$0xff] %v3681
        %3698 = vst [vmem:[%s935 + $0x48] sm:$0xff] %v3682
        %3699 = vst [vmem:[%s935 + $0x50] sm:$0xff] %v3683
        %3700 = vst [vmem:[%s935 + $0x58] sm:$0xff] %v3684
        %3701 = vst [vmem:[%s935 + $0x60] sm:$0xff] %v3685
        %3702 = vst [vmem:[%s935 + $0x68] sm:$0xff] %v3686
        %3703 = vst [vmem:[%s935 + $0x70] sm:$0xff] %v3687
        %3704 = vst [vmem:[%s935 + $0x78] sm:$0xff] %v3688
        %s3705 = sld [smem:[#allocation3 + $0x187]]
        %s3706 = smul.f32 %s577, %s3705
        %v3707 = vstv %s3706
        %v3708 = vmul.f32 %v3707, %v3438
        %v3709 = vmul.f32 %v3707, %v3457
        %v3710 = vmul.f32 %v3707, %v3476
        %v3711 = vmul.f32 %v3707, %v3495
        %v3712 = vmul.f32 %v3707, %v3440
        %v3713 = vmul.f32 %v3707, %v3459
        %v3714 = vmul.f32 %v3707, %v3478
        %v3715 = vmul.f32 %v3707, %v3497
        %v3716 = vmul.f32 %v3707, %v3443
        %v3717 = vmul.f32 %v3707, %v3462
        %v3718 = vmul.f32 %v3707, %v3481
        %v3719 = vmul.f32 %v3707, %v3500
        %v3720 = vmul.f32 %v3707, %v3445
        %v3721 = vmul.f32 %v3707, %v3464
        %v3722 = vmul.f32 %v3707, %v3483
        %v3723 = vmul.f32 %v3707, %v3502
        %v3724 = vld [vmem:[%s1004] sm:$0xff]
        %v3725 = vld [vmem:[%s1004 + $0x8] sm:$0xff]
        %v3726 = vld [vmem:[%s1004 + $0x10] sm:$0xff]
        %v3727 = vld [vmem:[%s1004 + $0x18] sm:$0xff]
        %v3728 = vld [vmem:[%s1004 + $0x20] sm:$0xff]
        %v3729 = vld [vmem:[%s1004 + $0x28] sm:$0xff]
        %v3730 = vld [vmem:[%s1004 + $0x30] sm:$0xff]
        %v3731 = vld [vmem:[%s1004 + $0x38] sm:$0xff]
        %v3732 = vld [vmem:[%s1004 + $0x40] sm:$0xff]
        %v3733 = vld [vmem:[%s1004 + $0x48] sm:$0xff]
        %v3734 = vld [vmem:[%s1004 + $0x50] sm:$0xff]
        %v3735 = vld [vmem:[%s1004 + $0x58] sm:$0xff]
        %v3736 = vld [vmem:[%s1004 + $0x60] sm:$0xff]
        %v3737 = vld [vmem:[%s1004 + $0x68] sm:$0xff]
        %v3738 = vld [vmem:[%s1004 + $0x70] sm:$0xff]
        %v3739 = vld [vmem:[%s1004 + $0x78] sm:$0xff]
        %v3740 = vadd.f32 %v3724, %v3708
        %v3741 = vadd.f32 %v3725, %v3709
        %v3742 = vadd.f32 %v3726, %v3710
        %v3743 = vadd.f32 %v3727, %v3711
        %v3744 = vadd.f32 %v3728, %v3712
        %v3745 = vadd.f32 %v3729, %v3713
        %v3746 = vadd.f32 %v3730, %v3714
        %v3747 = vadd.f32 %v3731, %v3715
        %v3748 = vadd.f32 %v3732, %v3716
        %v3749 = vadd.f32 %v3733, %v3717
        %v3750 = vadd.f32 %v3734, %v3718
        %v3751 = vadd.f32 %v3735, %v3719
        %v3752 = vadd.f32 %v3736, %v3720
        %v3753 = vadd.f32 %v3737, %v3721
        %v3754 = vadd.f32 %v3738, %v3722
        %v3755 = vadd.f32 %v3739, %v3723
        %3756 = vst [vmem:[%s1004] sm:$0xff] %v3740
        %3757 = vst [vmem:[%s1004 + $0x8] sm:$0xff] %v3741
        %3758 = vst [vmem:[%s1004 + $0x10] sm:$0xff] %v3742
        %3759 = vst [vmem:[%s1004 + $0x18] sm:$0xff] %v3743
        %3760 = vst [vmem:[%s1004 + $0x20] sm:$0xff] %v3744
        %3761 = vst [vmem:[%s1004 + $0x28] sm:$0xff] %v3745
        %3762 = vst [vmem:[%s1004 + $0x30] sm:$0xff] %v3746
        %3763 = vst [vmem:[%s1004 + $0x38] sm:$0xff] %v3747
        %3764 = vst [vmem:[%s1004 + $0x40] sm:$0xff] %v3748
        %3765 = vst [vmem:[%s1004 + $0x48] sm:$0xff] %v3749
        %3766 = vst [vmem:[%s1004 + $0x50] sm:$0xff] %v3750
        %3767 = vst [vmem:[%s1004 + $0x58] sm:$0xff] %v3751
        %3768 = vst [vmem:[%s1004 + $0x60] sm:$0xff] %v3752
        %3769 = vst [vmem:[%s1004 + $0x68] sm:$0xff] %v3753
        %3770 = vst [vmem:[%s1004 + $0x70] sm:$0xff] %v3754
        %3771 = vst [vmem:[%s1004 + $0x78] sm:$0xff] %v3755
        %s3772 = sand.u32 %s163, 1
        %s3773 = sand.u32 %s163, 1
        %s3774 = smul.addr %s3773, 512
        %s3775 = scalar_lea.vmem [#allocation7], %s3774
        // Predicated region
        $region95: #{self_attn_forward.3} parent=81 // pred_check
          %p3776 = pneg %p173
        $region96: #{self_attn_forward.3} parent=81 // pred_check_branch
          %3778 = sbr.rel (%p3776) target = $region98
        $region97: #{self_attn_forward.3} parent=81 // pred_region
          %s3779 = smul.u32 4, %s19
          %s3780 = smul.addr %s3779, 8
          %s3781 = scalar_lea.vmem %s6, %s3780
          // Predicated region
          $region99: #{self_attn_forward.3} parent=97 // pred_check
            _
          $region100: #{self_attn_forward.3} parent=97 // pred_check_branch
            %3783 = sbr.rel (0) target = $region102
          $region101: #{self_attn_forward.3} parent=97 // pred_region
            // Predicated region
            $region103: #{self_attn_forward.3} parent=101 // pred_check
              _
            $region104: #{self_attn_forward.3} parent=101 // pred_check_branch
              %3785 = sbr.rel (0) target = $region106
            $region105: #{self_attn_forward.3} parent=101 // pred_region
              loop: start=0, step=1, limit=1
              $region107: #{self_attn_forward.3} parent=105 // loop_pre_header
                _
              $region108: #{self_attn_forward.3} parent=105 // loop_header
                %s3787 = sphi 0, %s3791
                %p3788 = scmp.ge.s32.totalorder %s3787, 1
                %s3792 = sphi %s3775, %s3775
                %s3793 = sphi %s3781, %s3781
              $region109: #{self_attn_forward.3} parent=105 // loop_header_branch
                %3790 = sbr.rel (%p3788) target = $region113
              $region110: #{self_attn_forward.3} parent=105 // loop_body
                %v3794 = vld [vmem:[%s3792] sm:$0xff]
                %3795 = vst [vmem:[%s3793] sm:$0xff] %v3794
                %v3796 = vld [vmem:[%s3792 + $0x8] sm:$0xff]
                %3797 = vst [vmem:[%s3793 + $0x8] sm:$0xff] %v3796
                %v3798 = vld [vmem:[%s3792 + $0x10] sm:$0xff]
                %3799 = vst [vmem:[%s3793 + $0x10] sm:$0xff] %v3798
                %v3800 = vld [vmem:[%s3792 + $0x18] sm:$0xff]
                %3801 = vst [vmem:[%s3793 + $0x18] sm:$0xff] %v3800
                %v3802 = vld [vmem:[%s3792 + $0x20] sm:$0xff]
                %3803 = vst [vmem:[%s3793 + $0x40] sm:$0xff] %v3802
                %v3804 = vld [vmem:[%s3792 + $0x28] sm:$0xff]
                %3805 = vst [vmem:[%s3793 + $0x48] sm:$0xff] %v3804
                %v3806 = vld [vmem:[%s3792 + $0x30] sm:$0xff]
                %3807 = vst [vmem:[%s3793 + $0x50] sm:$0xff] %v3806
                %v3808 = vld [vmem:[%s3792 + $0x38] sm:$0xff]
                %3809 = vst [vmem:[%s3793 + $0x58] sm:$0xff] %v3808
                %v3810 = vld [vmem:[%s3792 + $0x40] sm:$0xff]
                %3811 = vst [vmem:[%s3793 + $0x80] sm:$0xff] %v3810
                %v3812 = vld [vmem:[%s3792 + $0x48] sm:$0xff]
                %3813 = vst [vmem:[%s3793 + $0x88] sm:$0xff] %v3812
                %v3814 = vld [vmem:[%s3792 + $0x50] sm:$0xff]
                %3815 = vst [vmem:[%s3793 + $0x90] sm:$0xff] %v3814
                %v3816 = vld [vmem:[%s3792 + $0x58] sm:$0xff]
                %3817 = vst [vmem:[%s3793 + $0x98] sm:$0xff] %v3816
                %v3818 = vld [vmem:[%s3792 + $0x60] sm:$0xff]
                %3819 = vst [vmem:[%s3793 + $0xc0] sm:$0xff] %v3818
                %v3820 = vld [vmem:[%s3792 + $0x68] sm:$0xff]
                %3821 = vst [vmem:[%s3793 + $0xc8] sm:$0xff] %v3820
                %v3822 = vld [vmem:[%s3792 + $0x70] sm:$0xff]
                %3823 = vst [vmem:[%s3793 + $0xd0] sm:$0xff] %v3822
                %v3824 = vld [vmem:[%s3792 + $0x78] sm:$0xff]
                %3825 = vst [vmem:[%s3793 + $0xd8] sm:$0xff] %v3824
                %v3826 = vld [vmem:[%s3792 + $0x80] sm:$0xff]
                %3827 = vst [vmem:[%s3793 + $0x100] sm:$0xff] %v3826
                %v3828 = vld [vmem:[%s3792 + $0x88] sm:$0xff]
                %3829 = vst [vmem:[%s3793 + $0x108] sm:$0xff] %v3828
                %v3830 = vld [vmem:[%s3792 + $0x90] sm:$0xff]
                %3831 = vst [vmem:[%s3793 + $0x110] sm:$0xff] %v3830
                %v3832 = vld [vmem:[%s3792 + $0x98] sm:$0xff]
                %3833 = vst [vmem:[%s3793 + $0x118] sm:$0xff] %v3832
                %v3834 = vld [vmem:[%s3792 + $0xa0] sm:$0xff]
                %3835 = vst [vmem:[%s3793 + $0x140] sm:$0xff] %v3834
                %v3836 = vld [vmem:[%s3792 + $0xa8] sm:$0xff]
                %3837 = vst [vmem:[%s3793 + $0x148] sm:$0xff] %v3836
                %v3838 = vld [vmem:[%s3792 + $0xb0] sm:$0xff]
                %3839 = vst [vmem:[%s3793 + $0x150] sm:$0xff] %v3838
                %v3840 = vld [vmem:[%s3792 + $0xb8] sm:$0xff]
                %3841 = vst [vmem:[%s3793 + $0x158] sm:$0xff] %v3840
                %v3842 = vld [vmem:[%s3792 + $0xc0] sm:$0xff]
                %3843 = vst [vmem:[%s3793 + $0x180] sm:$0xff] %v3842
                %v3844 = vld [vmem:[%s3792 + $0xc8] sm:$0xff]
                %3845 = vst [vmem:[%s3793 + $0x188] sm:$0xff] %v3844
                %v3846 = vld [vmem:[%s3792 + $0xd0] sm:$0xff]
                %3847 = vst [vmem:[%s3793 + $0x190] sm:$0xff] %v3846
                %v3848 = vld [vmem:[%s3792 + $0xd8] sm:$0xff]
                %3849 = vst [vmem:[%s3793 + $0x198] sm:$0xff] %v3848
                %v3850 = vld [vmem:[%s3792 + $0xe0] sm:$0xff]
                %3851 = vst [vmem:[%s3793 + $0x1c0] sm:$0xff] %v3850
                %v3852 = vld [vmem:[%s3792 + $0xe8] sm:$0xff]
                %3853 = vst [vmem:[%s3793 + $0x1c8] sm:$0xff] %v3852
                %v3854 = vld [vmem:[%s3792 + $0xf0] sm:$0xff]
                %3855 = vst [vmem:[%s3793 + $0x1d0] sm:$0xff] %v3854
                %v3856 = vld [vmem:[%s3792 + $0xf8] sm:$0xff]
                %3857 = vst [vmem:[%s3793 + $0x1d8] sm:$0xff] %v3856
                %v3858 = vld [vmem:[%s3792 + $0x100] sm:$0xff]
                %3859 = vst [vmem:[%s3793 + $0x200] sm:$0xff] %v3858
                %v3860 = vld [vmem:[%s3792 + $0x108] sm:$0xff]
                %3861 = vst [vmem:[%s3793 + $0x208] sm:$0xff] %v3860
                %v3862 = vld [vmem:[%s3792 + $0x110] sm:$0xff]
                %3863 = vst [vmem:[%s3793 + $0x210] sm:$0xff] %v3862
                %v3864 = vld [vmem:[%s3792 + $0x118] sm:$0xff]
                %3865 = vst [vmem:[%s3793 + $0x218] sm:$0xff] %v3864
                %v3866 = vld [vmem:[%s3792 + $0x120] sm:$0xff]
                %3867 = vst [vmem:[%s3793 + $0x240] sm:$0xff] %v3866
                %v3868 = vld [vmem:[%s3792 + $0x128] sm:$0xff]
                %3869 = vst [vmem:[%s3793 + $0x248] sm:$0xff] %v3868
                %v3870 = vld [vmem:[%s3792 + $0x130] sm:$0xff]
                %3871 = vst [vmem:[%s3793 + $0x250] sm:$0xff] %v3870
                %v3872 = vld [vmem:[%s3792 + $0x138] sm:$0xff]
                %3873 = vst [vmem:[%s3793 + $0x258] sm:$0xff] %v3872
                %v3874 = vld [vmem:[%s3792 + $0x140] sm:$0xff]
                %3875 = vst [vmem:[%s3793 + $0x280] sm:$0xff] %v3874
                %v3876 = vld [vmem:[%s3792 + $0x148] sm:$0xff]
                %3877 = vst [vmem:[%s3793 + $0x288] sm:$0xff] %v3876
                %v3878 = vld [vmem:[%s3792 + $0x150] sm:$0xff]
                %3879 = vst [vmem:[%s3793 + $0x290] sm:$0xff] %v3878
                %v3880 = vld [vmem:[%s3792 + $0x158] sm:$0xff]
                %3881 = vst [vmem:[%s3793 + $0x298] sm:$0xff] %v3880
                %v3882 = vld [vmem:[%s3792 + $0x160] sm:$0xff]
                %3883 = vst [vmem:[%s3793 + $0x2c0] sm:$0xff] %v3882
                %v3884 = vld [vmem:[%s3792 + $0x168] sm:$0xff]
                %3885 = vst [vmem:[%s3793 + $0x2c8] sm:$0xff] %v3884
                %v3886 = vld [vmem:[%s3792 + $0x170] sm:$0xff]
                %3887 = vst [vmem:[%s3793 + $0x2d0] sm:$0xff] %v3886
                %v3888 = vld [vmem:[%s3792 + $0x178] sm:$0xff]
                %3889 = vst [vmem:[%s3793 + $0x2d8] sm:$0xff] %v3888
                %v3890 = vld [vmem:[%s3792 + $0x180] sm:$0xff]
                %3891 = vst [vmem:[%s3793 + $0x300] sm:$0xff] %v3890
                %v3892 = vld [vmem:[%s3792 + $0x188] sm:$0xff]
                %3893 = vst [vmem:[%s3793 + $0x308] sm:$0xff] %v3892
                %v3894 = vld [vmem:[%s3792 + $0x190] sm:$0xff]
                %3895 = vst [vmem:[%s3793 + $0x310] sm:$0xff] %v3894
                %v3896 = vld [vmem:[%s3792 + $0x198] sm:$0xff]
                %3897 = vst [vmem:[%s3793 + $0x318] sm:$0xff] %v3896
                %v3898 = vld [vmem:[%s3792 + $0x1a0] sm:$0xff]
                %3899 = vst [vmem:[%s3793 + $0x340] sm:$0xff] %v3898
                %v3900 = vld [vmem:[%s3792 + $0x1a8] sm:$0xff]
                %3901 = vst [vmem:[%s3793 + $0x348] sm:$0xff] %v3900
                %v3902 = vld [vmem:[%s3792 + $0x1b0] sm:$0xff]
                %3903 = vst [vmem:[%s3793 + $0x350] sm:$0xff] %v3902
                %v3904 = vld [vmem:[%s3792 + $0x1b8] sm:$0xff]
                %3905 = vst [vmem:[%s3793 + $0x358] sm:$0xff] %v3904
                %v3906 = vld [vmem:[%s3792 + $0x1c0] sm:$0xff]
                %3907 = vst [vmem:[%s3793 + $0x380] sm:$0xff] %v3906
                %v3908 = vld [vmem:[%s3792 + $0x1c8] sm:$0xff]
                %3909 = vst [vmem:[%s3793 + $0x388] sm:$0xff] %v3908
                %v3910 = vld [vmem:[%s3792 + $0x1d0] sm:$0xff]
                %3911 = vst [vmem:[%s3793 + $0x390] sm:$0xff] %v3910
                %v3912 = vld [vmem:[%s3792 + $0x1d8] sm:$0xff]
                %3913 = vst [vmem:[%s3793 + $0x398] sm:$0xff] %v3912
                %v3914 = vld [vmem:[%s3792 + $0x1e0] sm:$0xff]
                %3915 = vst [vmem:[%s3793 + $0x3c0] sm:$0xff] %v3914
                %v3916 = vld [vmem:[%s3792 + $0x1e8] sm:$0xff]
                %3917 = vst [vmem:[%s3793 + $0x3c8] sm:$0xff] %v3916
                %v3918 = vld [vmem:[%s3792 + $0x1f0] sm:$0xff]
                %3919 = vst [vmem:[%s3793 + $0x3d0] sm:$0xff] %v3918
                %v3920 = vld [vmem:[%s3792 + $0x1f8] sm:$0xff]
                %3921 = vst [vmem:[%s3793 + $0x3d8] sm:$0xff] %v3920
              $region111: #{self_attn_forward.3} parent=105 // loop_footer
                %s3791 = sadd.s32 1, %s3787
              $region112: #{self_attn_forward.3} parent=105 // loop_footer_branch
                %3786 = sbr.rel target = $region108
              $region113: #{self_attn_forward.3} parent=105 // loop_exit
                _
            $region106: #{self_attn_forward.3} parent=101 // pred_fallthru
              _
            // Predicated region
            $region114: #{self_attn_forward.3} parent=101 // pred_check
              _
            $region115: #{self_attn_forward.3} parent=101 // pred_check_branch
              %3923 = sbr.rel target = $region117
            $region116: #{self_attn_forward.3} parent=101 // pred_region
              _
            $region117: #{self_attn_forward.3} parent=101 // pred_fallthru
              _
          $region102: #{self_attn_forward.3} parent=97 // pred_fallthru
            _
          %3924 = vnop
        $region98: #{self_attn_forward.3} parent=81 // pred_fallthru
          _
      $region82: #{self_attn_forward.3} parent=5 // pred_fallthru
        _
      %p3925 = scmp.le.s32.totalorder 2, %s14
      // Predicated region
      $region118: #{self_attn_forward.3} parent=5 // pred_check
        %p3926 = pneg %p3925
      $region119: #{self_attn_forward.3} parent=5 // pred_check_branch
        %3928 = sbr.rel (%p3926) target = $region121
      $region120: #{self_attn_forward.3} parent=5 // pred_region
        %s3929 = ssub.s32 %s14, 2
        // Predicated region
        $region122: #{self_attn_forward.3} parent=120 // pred_check
          %p3930 = pneg %p179
        $region123: #{self_attn_forward.3} parent=120 // pred_check_branch
          %3932 = sbr.rel (%p3930) target = $region125
        $region124: #{self_attn_forward.3} parent=120 // pred_region
          %s3933 = sand.u32 %s164, 1
          %s3934 = sand.u32 %s164, 1
          %s3935 = smul.addr %s3934, 512
          %s3936 = scalar_lea.vmem [#allocation7], %s3935
        $region125: #{self_attn_forward.3} parent=120 // pred_fallthru
          _
      $region121: #{self_attn_forward.3} parent=5 // pred_fallthru
        _
    $region6: #{self_attn_forward.3} parent=1 // loop_footer
      %s18 = sadd.s32 1, %s14
    $region7: #{self_attn_forward.3} parent=1 // loop_footer_branch
      %13 = sbr.rel target = $region3
    $region8: #{self_attn_forward.3} parent=1 // loop_exit
      _
    %3937 = vsyncpa [#allocation4], 1
    %s3938 = scalar_lea.sflag [#allocation4], 1
    %3939 = vsyncpa %s3938, 1

</llo_original>
